<compile_context>
chip_gen: v7x
topology: tpu7x:2x2x1
jax: 0.10.0
libtpu: 0.0.40
codegen_flags: <defaults>
</compile_context>

<pallas_src>
import functools

import jax
import jax.numpy as jnp
import numpy as np
from jax.experimental import pallas as pl
from jax.experimental.pallas import tpu as pltpu


def _fused_kernel(x_ref, w1_ref, b1_ref, w2_ref, b2_ref, w3_ref, b3_ref,
                  sel_ref, o_ref, p0_ref, p1_ref, p2_ref, im_ref,
                  *, H, W, PAD):
    """Two lane-packed images: conv1+ReLU -> conv2+ReLU -> conv3, all in VMEM."""
    HW = H * W
    RP = HW + 2 * PAD
    f32 = jnp.float32
    p_refs = (p0_ref, p1_ref, p2_ref)
    # Buffer j holds the activation stored starting at row PAD - (j - 1), so
    # tap (kh, kw=j) is the ALIGNED slice p_refs[j][PAD + (kh-1)*W : ... + HW]
    # (aligned because PAD and W are multiples of 8 at the demo shape).
    starts = (PAD + 1, PAD, PAD - 1)

    # ---- Halo-only zero init (interior rows are fully overwritten below;
    #      re-done every grid step so each megacore's scratch is valid). -----
    for p_ref, s in zip(p_refs, starts):
        p_ref[0:s, :] = jnp.zeros((s, 128), f32)
        p_ref[s + HW:RP, :] = jnp.zeros((RP - s - HW, 128), f32)

    # ---- Column masks: hoisted, computed once, full (HW, 128) width.
    #      Input-position form: baked into the shifted copies at store time,
    #      so every later tap read is mask-free. ------------------------------
    col = jax.lax.broadcasted_iota(jnp.int32, (HW, 128), 0) % W
    m_not_last = (col != W - 1).astype(f32)    # feeds the kw-offset -1 ("left") taps
    m_not_first = (col != 0).astype(f32)       # feeds the kw-offset +1 ("right") taps

    def store_stage(act):                      # act: (HW, 128)
        p0_ref[PAD + 1:PAD + 1 + HW, :] = act * m_not_last
        p1_ref[PAD:PAD + HW, :] = act
        p2_ref[PAD - 1:PAD - 1 + HW, :] = act * m_not_first

    def taps():                                # 9 aligned, pre-masked slices
        out = []
        for kh in range(3):
            base = PAD + (kh - 1) * W
            for j in range(3):                 # tap index t = kh*3 + kw
                out.append(p_refs[j][base:base + HW, :])
        return out

    def conv_vpu(tap_list, w_ref):             # 9 broadcast-FMAs, tree-summed
        rows = []
        for kh in range(3):
            terms = []
            for j in range(3):
                t = kh * 3 + j
                terms.append(tap_list[t] * w_ref[t:t + 1, :])
            rows.append((terms[0] + terms[1]) + terms[2])
        return (rows[0] + rows[1]) + rows[2]

    # ---- conv1: 1 -> 64.  x lane-broadcast once at write time; taps are
    #      pure full-width VPU FMAs (no K=1 MXU matmuls). ---------------------
    x2 = x_ref[0]                                            # (HW, 2)
    xw = jnp.concatenate(
        [jnp.broadcast_to(x2[:, 0:1], (HW, 64)),
         jnp.broadcast_to(x2[:, 1:2], (HW, 64))], axis=1)    # (HW, 128)
    store_stage(xw)
    h1 = jnp.maximum(conv_vpu(taps(), w1_ref) + b1_ref[...], 0.0)   # (HW,128)

    # ---- conv2: 64 -> 64 as ONE im2col MXU matmul (HW,1152)@(1152,128). ----
    store_stage(h1)
    t2 = taps()
    for t in range(9):
        im_ref[:, t * 128:(t + 1) * 128] = t2[t]             # lane-aligned stores
    acc2 = jnp.dot(im_ref[...], w2_ref[...], preferred_element_type=f32)
    h2 = jnp.maximum(acc2 + b2_ref[...], 0.0)                # (HW, 128)

    # ---- conv3: 64 -> 1.  VPU MACs, then a per-image lane reduction via a
    #      (2,128) selector matmul -> lane-dense (2, HW) output block. --------
    store_stage(h2)
    acc3 = conv_vpu(taps(), w3_ref)                          # (HW, 128)
    out2 = jax.lax.dot_general(sel_ref[...], acc3, (((1,), (1,)), ((), ())),
                               preferred_element_type=f32)   # (2, HW)
    o_ref[0] = out2 + b3_ref[...]


def _build_fused_call(num_pairs, H, W):
    HW = H * W
    PAD = max(8 * ((W + 7) // 8), 8)     # >= W, multiple of 8 (aligned tap reads)
    RP = HW + 2 * PAD
    kernel = functools.partial(_fused_kernel, H=H, W=W, PAD=PAD)

    grid_spec = pltpu.PrefetchScalarGridSpec(
        num_scalar_prefetch=0,
        grid=(num_pairs,),
        in_specs=[
            pl.BlockSpec((1, HW, 2), lambda p: (p, 0, 0)),     # x (image pair)
            pl.BlockSpec((9, 128), lambda p: (0, 0)),          # w1 (lane-packed)
            pl.BlockSpec((1, 128), lambda p: (0, 0)),          # b1 (lane-packed)
            pl.BlockSpec((9 * 128, 128), lambda p: (0, 0)),    # w2 (im2col blockdiag)
            pl.BlockSpec((1, 128), lambda p: (0, 0)),          # b2 (lane-packed)
            pl.BlockSpec((9, 128), lambda p: (0, 0)),          # w3 (lane-packed)
            pl.BlockSpec((1, 1), lambda p: (0, 0)),            # b3
            pl.BlockSpec((2, 128), lambda p: (0, 0)),          # per-image selector
        ],
        out_specs=pl.BlockSpec((1, 2, HW), lambda p: (p, 0, 0)),
        scratch_shapes=[
            pltpu.VMEM((RP, 128), jnp.float32),     # kw-offset -1 shifted copy
            pltpu.VMEM((RP, 128), jnp.float32),     # kw-offset  0 copy
            pltpu.VMEM((RP, 128), jnp.float32),     # kw-offset +1 shifted copy
            pltpu.VMEM((HW, 9 * 128), jnp.float32),  # conv2 im2col LHS
        ],
    )
    return pl.pallas_call(
        kernel,
        out_shape=jax.ShapeDtypeStruct((num_pairs, 2, HW), jnp.float32),
        grid_spec=grid_spec,
        # On v7x, verify both TensorCores pick up the pair axis in xprof; if
        # one core idles, switch this axis to pltpu.CORE_PARALLEL.
        compiler_params=pltpu.CompilerParams(
            dimension_semantics=("parallel",)),
    )


def init_params(key):
    """Deterministic synthetic parameters (PyTorch weight layout OIHW)."""
    ks = jax.random.split(key, 6)
    scale = 0.1
    return {
        "w1": jax.random.normal(ks[0], (64, 1, 3, 3), jnp.float32) * scale,
        "b1": jax.random.normal(ks[1], (64,), jnp.float32) * scale,
        "w2": jax.random.normal(ks[2], (64, 64, 3, 3), jnp.float32) * scale,
        "b2": jax.random.normal(ks[3], (64,), jnp.float32) * scale,
        "w3": jax.random.normal(ks[4], (1, 64, 3, 3), jnp.float32) * scale,
        "b3": jax.random.normal(ks[5], (1,), jnp.float32) * scale,
    }


def prepare_params(params):
    """One-time re-layout of PyTorch OIHW params into the lane-packed layout."""
    f32 = jnp.float32
    w1, w2, w3 = params["w1"], params["w2"], params["w3"]
    # w1t[t, co] = w1[co, 0, kh, kw],  t = kh*3 + kw
    w1t = jnp.transpose(w1[:, 0, :, :], (1, 2, 0)).reshape(9, 64)
    # w2t[t, ci, co] = w2[co, ci, kh, kw]
    w2t = jnp.transpose(w2, (2, 3, 1, 0)).reshape(9, 64, 64)
    # w3t[t, ci] = w3[0, ci, kh, kw]
    w3t = jnp.transpose(w3[0], (1, 2, 0)).reshape(9, 64)

    # Block-diagonal im2col weight (both lane-packed images share weights).
    zeros = jnp.zeros((9, 64, 64), f32)
    w2big = jnp.concatenate(
        [jnp.concatenate([w2t, zeros], axis=2),
         jnp.concatenate([zeros, w2t], axis=2)],
        axis=1).reshape(9 * 128, 128)

    # Per-image lane selector: row0 = lanes 0:64, row1 = lanes 64:128.
    sel = jnp.repeat(jnp.eye(2, dtype=f32), 64, axis=1)      # (2, 128)

    return {
        "w1p": jnp.concatenate([w1t, w1t], axis=1),                       # (9,128)
        "b1p": jnp.concatenate([params["b1"], params["b1"]]).reshape(1, 128),
        "w2big": w2big,                                                   # (1152,128)
        "b2p": jnp.concatenate([params["b2"], params["b2"]]).reshape(1, 128),
        "w3p": jnp.concatenate([w3t, w3t], axis=1),                       # (9,128)
        "b3": params["b3"].reshape(1, 1),
        "sel": sel,
    }


def diffusion_model_forward(prepared, x_nchw, t):
    """Matches DiffusionModel.forward(x, t) -> net(x).  `t` is unused."""
    del t  # the PyTorch forward ignores t
    B, C, H, W = x_nchw.shape
    assert C == 1
    Bp = B + (B % 2)                       # pad batch to an even image count
    xf = x_nchw.reshape(B, H * W)
    if Bp != B:
        xf = jnp.concatenate([xf, jnp.zeros((1, H * W), xf.dtype)], axis=0)
    x_pairs = jnp.transpose(xf.reshape(Bp // 2, 2, H * W), (0, 2, 1))  # (NP,HW,2)
    out = _build_fused_call(Bp // 2, H, W)(
        x_pairs, prepared["w1p"], prepared["b1p"], prepared["w2big"],
        prepared["b2p"], prepared["w3p"], prepared["b3"], prepared["sel"])
    return out.reshape(Bp, 1, H, W)[:B]


def _ref_forward(params, x_nchw):
    """Pure-XLA reference for the correctness check."""
    def conv(x, w, b):
        y = jax.lax.conv_general_dilated(
            x, w, window_strides=(1, 1), padding="SAME",
            dimension_numbers=("NCHW", "OIHW", "NCHW"))
        return y + b.reshape(1, -1, 1, 1)
    h = jax.nn.relu(conv(x_nchw, params["w1"], params["b1"]))
    h = jax.nn.relu(conv(h, params["w2"], params["b2"]))
    return conv(h, params["w3"], params["b3"])


if __name__ == "__main__":
    key = jax.random.PRNGKey(0)
    k_param, k_x, k_t = jax.random.split(key, 3)

    params = init_params(k_param)
    prepared = prepare_params(params)

    # Small MNIST-ish input consistent with Conv2d(1, ...): B=2, C=1, 16x16.
    x = jax.random.normal(k_x, (2, 1, 16, 16), jnp.float32)
    t = jax.random.randint(k_t, (2,), 0, 1000)  # ignored, as in the reference

    out = jax.block_until_ready(diffusion_model_forward(prepared, x, t))
    ref = jax.block_until_ready(_ref_forward(params, x))

    assert out.shape == (2, 1, 16, 16)
    np.testing.assert_allclose(np.asarray(out), np.asarray(ref),
                               rtol=1e-4, atol=1e-4)

    print("KERNEL_OK")
</pallas_src>

<mosaic_0001>
module attributes {stable_mosaic.version = 11 : i64} {
  func.func @_fused_kernel(%arg0: i32, %arg1: memref<1x256x2xf32, #tpu.memory_space<vmem>>, %arg2: memref<9x128xf32, #tpu.memory_space<vmem>>, %arg3: memref<1x128xf32, #tpu.memory_space<vmem>>, %arg4: memref<1152x128xf32, #tpu.memory_space<vmem>>, %arg5: memref<1x128xf32, #tpu.memory_space<vmem>>, %arg6: memref<9x128xf32, #tpu.memory_space<vmem>>, %arg7: memref<1x1xf32, #tpu.memory_space<vmem>>, %arg8: memref<2x128xf32, #tpu.memory_space<vmem>>, %arg9: memref<1x2x256xf32, #tpu.memory_space<vmem>>, %arg10: memref<288x128xf32, #tpu.memory_space<vmem>>, %arg11: memref<288x128xf32, #tpu.memory_space<vmem>>, %arg12: memref<288x128xf32, #tpu.memory_space<vmem>>, %arg13: memref<256x1152xf32, #tpu.memory_space<vmem>>) attributes {dimension_semantics = [#tpu.dimension_semantics<parallel>], iteration_bounds = array<i64: 1>, scalar_prefetch = 0 : i64, scratch_operands = 4 : i64, tpu.core_type = #tpu.core_type<tc>, window_params = [{transform_indices = @transform_0, window_bounds = array<i64: 1, 256, 2>}, {pipeline_mode = #tpu.pipeline_mode<synchronous>, transform_indices = @transform_1, window_bounds = array<i64: 9, 128>}, {pipeline_mode = #tpu.pipeline_mode<synchronous>, transform_indices = @transform_2, window_bounds = array<i64: 1, 128>}, {pipeline_mode = #tpu.pipeline_mode<synchronous>, transform_indices = @transform_3, window_bounds = array<i64: 1152, 128>}, {pipeline_mode = #tpu.pipeline_mode<synchronous>, transform_indices = @transform_4, window_bounds = array<i64: 1, 128>}, {pipeline_mode = #tpu.pipeline_mode<synchronous>, transform_indices = @transform_5, window_bounds = array<i64: 9, 128>}, {pipeline_mode = #tpu.pipeline_mode<synchronous>, transform_indices = @transform_6, window_bounds = array<i64: 1, 1>}, {pipeline_mode = #tpu.pipeline_mode<synchronous>, transform_indices = @transform_7, window_bounds = array<i64: 2, 128>}, {transform_indices = @transform_8, window_bounds = array<i64: 1, 2, 256>}]} {
    %cst = arith.constant 0.000000e+00 : f32
    %0 = vector.broadcast %cst : f32 to vector<17x128xf32>
    %c0 = arith.constant 0 : index
    %c0_0 = arith.constant 0 : index
    %1 = vector.load %arg10[%c0, %c0_0] : memref<288x128xf32, #tpu.memory_space<vmem>>, vector<17x128xf32>
    tpu.vector_store %arg10[%c0, %c0_0], %0 {strides = array<i32>} : memref<288x128xf32, #tpu.memory_space<vmem>>, vector<17x128xf32>,
    %cst_1 = arith.constant 0.000000e+00 : f32
    %2 = vector.broadcast %cst_1 : f32 to vector<15x128xf32>
    %c273 = arith.constant 273 : index
    %c0_2 = arith.constant 0 : index
    %3 = vector.load %arg10[%c273, %c0_2] : memref<288x128xf32, #tpu.memory_space<vmem>>, vector<15x128xf32>
    tpu.vector_store %arg10[%c273, %c0_2], %2 {strides = array<i32>} : memref<288x128xf32, #tpu.memory_space<vmem>>, vector<15x128xf32>,
    %cst_3 = arith.constant 0.000000e+00 : f32
    %4 = vector.broadcast %cst_3 : f32 to vector<16x128xf32>
    %c0_4 = arith.constant 0 : index
    %c0_5 = arith.constant 0 : index
    %5 = vector.load %arg11[%c0_4, %c0_5] : memref<288x128xf32, #tpu.memory_space<vmem>>, vector<16x128xf32>
    tpu.vector_store %arg11[%c0_4, %c0_5], %4 {strides = array<i32>} : memref<288x128xf32, #tpu.memory_space<vmem>>, vector<16x128xf32>,
    %cst_6 = arith.constant 0.000000e+00 : f32
    %6 = vector.broadcast %cst_6 : f32 to vector<16x128xf32>
    %c272 = arith.constant 272 : index
    %c0_7 = arith.constant 0 : index
    %7 = vector.load %arg11[%c272, %c0_7] : memref<288x128xf32, #tpu.memory_space<vmem>>, vector<16x128xf32>
    tpu.vector_store %arg11[%c272, %c0_7], %6 {strides = array<i32>} : memref<288x128xf32, #tpu.memory_space<vmem>>, vector<16x128xf32>,
    %cst_8 = arith.constant 0.000000e+00 : f32
    %8 = vector.broadcast %cst_8 : f32 to vector<15x128xf32>
    %c0_9 = arith.constant 0 : index
    %c0_10 = arith.constant 0 : index
    %9 = vector.load %arg12[%c0_9, %c0_10] : memref<288x128xf32, #tpu.memory_space<vmem>>, vector<15x128xf32>
    tpu.vector_store %arg12[%c0_9, %c0_10], %8 {strides = array<i32>} : memref<288x128xf32, #tpu.memory_space<vmem>>, vector<15x128xf32>,
    %cst_11 = arith.constant 0.000000e+00 : f32
    %10 = vector.broadcast %cst_11 : f32 to vector<17x128xf32>
    %c271 = arith.constant 271 : index
    %c0_12 = arith.constant 0 : index
    %11 = vector.load %arg12[%c271, %c0_12] : memref<288x128xf32, #tpu.memory_space<vmem>>, vector<17x128xf32>
    tpu.vector_store %arg12[%c271, %c0_12], %10 {strides = array<i32>} : memref<288x128xf32, #tpu.memory_space<vmem>>, vector<17x128xf32>,
    %12 = tpu.iota {dimensions = array<i32: 0>} : vector<256x128xi32>
    %c16_i32 = arith.constant 16 : i32
    %c0_i32 = arith.constant 0 : i32
    %13 = arith.cmpi eq, %c16_i32, %c0_i32 : i32
    %c1_i32 = arith.constant 1 : i32
    %14 = arith.select %13, %c1_i32, %c16_i32 : i32
    %15 = vector.broadcast %14 : i32 to vector<256x128xi32>
    %16 = arith.remsi %12, %15 : vector<256x128xi32>
    %c0_i32_13 = arith.constant 0 : i32
    %17 = vector.broadcast %c0_i32_13 : i32 to vector<256x128xi32>
    %18 = arith.cmpi ne, %16, %17 : vector<256x128xi32>
    %c0_i32_14 = arith.constant 0 : i32
    %19 = vector.broadcast %c0_i32_14 : i32 to vector<256x128xi32>
    %20 = arith.cmpi slt, %16, %19 : vector<256x128xi32>
    %c0_i32_15 = arith.constant 0 : i32
    %21 = arith.cmpi slt, %14, %c0_i32_15 : i32
    %22 = vector.broadcast %21 : i1 to vector<256x128xi1>
    %23 = vector.broadcast %22 : vector<256x128xi1> to vector<256x128xi1>
    %24 = arith.xori %20, %23 : vector<256x128xi1>
    %25 = arith.andi %24, %18 : vector<256x128xi1>
    %26 = vector.broadcast %14 : i32 to vector<256x128xi32>
    %27 = arith.addi %16, %26 : vector<256x128xi32>
    %28 = arith.select %25, %27, %16 : vector<256x128xi1>, vector<256x128xi32>
    %c15_i32 = arith.constant 15 : i32
    %29 = vector.broadcast %c15_i32 : i32 to vector<256x128xi32>
    %30 = arith.cmpi ne, %28, %29 : vector<256x128xi32>
    %31 = arith.extui %30 : vector<256x128xi1> to vector<256x128xi32>
    %32 = arith.sitofp %31 : vector<256x128xi32> to vector<256x128xf32>
    %c0_i32_16 = arith.constant 0 : i32
    %33 = vector.broadcast %c0_i32_16 : i32 to vector<256x128xi32>
    %34 = arith.cmpi ne, %28, %33 : vector<256x128xi32>
    %35 = arith.extui %34 : vector<256x128xi1> to vector<256x128xi32>
    %36 = arith.sitofp %35 : vector<256x128xi32> to vector<256x128xf32>
    %c0_17 = arith.constant 0 : index
    %c0_18 = arith.constant 0 : index
    %c0_19 = arith.constant 0 : index
    %37 = vector.load %arg1[%c0_17, %c0_18, %c0_19] : memref<1x256x2xf32, #tpu.memory_space<vmem>>, vector<1x256x2xf32>
    %38 = vector.shape_cast %37 : vector<1x256x2xf32> to vector<256x2xf32>
    %39 = vector.extract_strided_slice %38 {offsets = [0, 0], sizes = [256, 1], strides = [1, 1]} : vector<256x2xf32> to vector<256x1xf32>
    %40 = vector.shape_cast %39 : vector<256x1xf32> to vector<256x1xf32>
    %41 = vector.broadcast %40 : vector<256x1xf32> to vector<256x64xf32>
    %42 = vector.extract_strided_slice %38 {offsets = [0, 1], sizes = [256, 1], strides = [1, 1]} : vector<256x2xf32> to vector<256x1xf32>
    %43 = vector.shape_cast %42 : vector<256x1xf32> to vector<256x1xf32>
    %44 = vector.broadcast %43 : vector<256x1xf32> to vector<256x64xf32>
    %45 = tpu.concatenate %41, %44 in 1 : vector<256x64xf32>, vector<256x64xf32> -> vector<256x128xf32>
    %46 = arith.mulf %45, %32 : vector<256x128xf32>
    %c17 = arith.constant 17 : index
    %c0_20 = arith.constant 0 : index
    %47 = vector.load %arg10[%c17, %c0_20] : memref<288x128xf32, #tpu.memory_space<vmem>>, vector<256x128xf32>
    tpu.vector_store %arg10[%c17, %c0_20], %46 {strides = array<i32>} : memref<288x128xf32, #tpu.memory_space<vmem>>, vector<256x128xf32>,
    %c16 = arith.constant 16 : index
    %c0_21 = arith.constant 0 : index
    %48 = vector.load %arg11[%c16, %c0_21] : memref<288x128xf32, #tpu.memory_space<vmem>>, vector<256x128xf32>
    tpu.vector_store %arg11[%c16, %c0_21], %45 {strides = array<i32>} : memref<288x128xf32, #tpu.memory_space<vmem>>, vector<256x128xf32>,
    %49 = arith.mulf %45, %36 : vector<256x128xf32>
    %c15 = arith.constant 15 : index
    %c0_22 = arith.constant 0 : index
    %50 = vector.load %arg12[%c15, %c0_22] : memref<288x128xf32, #tpu.memory_space<vmem>>, vector<256x128xf32>
    tpu.vector_store %arg12[%c15, %c0_22], %49 {strides = array<i32>} : memref<288x128xf32, #tpu.memory_space<vmem>>, vector<256x128xf32>,
    %c0_23 = arith.constant 0 : index
    %c0_24 = arith.constant 0 : index
    %51 = vector.load %arg10[%c0_23, %c0_24] : memref<288x128xf32, #tpu.memory_space<vmem>>, vector<256x128xf32>
    %c0_25 = arith.constant 0 : index
    %c0_26 = arith.constant 0 : index
    %52 = vector.load %arg11[%c0_25, %c0_26] : memref<288x128xf32, #tpu.memory_space<vmem>>, vector<256x128xf32>
    %c0_27 = arith.constant 0 : index
    %c0_28 = arith.constant 0 : index
    %53 = vector.load %arg12[%c0_27, %c0_28] : memref<288x128xf32, #tpu.memory_space<vmem>>, vector<256x128xf32>
    %c16_29 = arith.constant 16 : index
    %c0_30 = arith.constant 0 : index
    %54 = vector.load %arg10[%c16_29, %c0_30] : memref<288x128xf32, #tpu.memory_space<vmem>>, vector<256x128xf32>
    %c16_31 = arith.constant 16 : index
    %c0_32 = arith.constant 0 : index
    %55 = vector.load %arg11[%c16_31, %c0_32] : memref<288x128xf32, #tpu.memory_space<vmem>>, vector<256x128xf32>
    %c16_33 = arith.constant 16 : index
    %c0_34 = arith.constant 0 : index
    %56 = vector.load %arg12[%c16_33, %c0_34] : memref<288x128xf32, #tpu.memory_space<vmem>>, vector<256x128xf32>
    %c32 = arith.constant 32 : index
    %c0_35 = arith.constant 0 : index
    %57 = vector.load %arg10[%c32, %c0_35] : memref<288x128xf32, #tpu.memory_space<vmem>>, vector<256x128xf32>
    %c32_36 = arith.constant 32 : index
    %c0_37 = arith.constant 0 : index
    %58 = vector.load %arg11[%c32_36, %c0_37] : memref<288x128xf32, #tpu.memory_space<vmem>>, vector<256x128xf32>
    %c32_38 = arith.constant 32 : index
    %c0_39 = arith.constant 0 : index
    %59 = vector.load %arg12[%c32_38, %c0_39] : memref<288x128xf32, #tpu.memory_space<vmem>>, vector<256x128xf32>
    %c0_40 = arith.constant 0 : index
    %c0_41 = arith.constant 0 : index
    %60 = vector.load %arg2[%c0_40, %c0_41] : memref<9x128xf32, #tpu.memory_space<vmem>>, vector<1x128xf32>
    %61 = vector.broadcast %60 : vector<1x128xf32> to vector<256x128xf32>
    %62 = arith.mulf %51, %61 : vector<256x128xf32>
    %c1 = arith.constant 1 : index
    %c0_42 = arith.constant 0 : index
    %63 = vector.load %arg2[%c1, %c0_42] : memref<9x128xf32, #tpu.memory_space<vmem>>, vector<1x128xf32>
    %64 = vector.broadcast %63 : vector<1x128xf32> to vector<256x128xf32>
    %65 = arith.mulf %52, %64 : vector<256x128xf32>
    %c2 = arith.constant 2 : index
    %c0_43 = arith.constant 0 : index
    %66 = vector.load %arg2[%c2, %c0_43] : memref<9x128xf32, #tpu.memory_space<vmem>>, vector<1x128xf32>
    %67 = vector.broadcast %66 : vector<1x128xf32> to vector<256x128xf32>
    %68 = arith.mulf %53, %67 : vector<256x128xf32>
    %69 = arith.addf %62, %65 : vector<256x128xf32>
    %70 = arith.addf %69, %68 : vector<256x128xf32>
    %c3 = arith.constant 3 : index
    %c0_44 = arith.constant 0 : index
    %71 = vector.load %arg2[%c3, %c0_44] : memref<9x128xf32, #tpu.memory_space<vmem>>, vector<1x128xf32>
    %72 = vector.broadcast %71 : vector<1x128xf32> to vector<256x128xf32>
    %73 = arith.mulf %54, %72 : vector<256x128xf32>
    %c4 = arith.constant 4 : index
    %c0_45 = arith.constant 0 : index
    %74 = vector.load %arg2[%c4, %c0_45] : memref<9x128xf32, #tpu.memory_space<vmem>>, vector<1x128xf32>
    %75 = vector.broadcast %74 : vector<1x128xf32> to vector<256x128xf32>
    %76 = arith.mulf %55, %75 : vector<256x128xf32>
    %c5 = arith.constant 5 : index
    %c0_46 = arith.constant 0 : index
    %77 = vector.load %arg2[%c5, %c0_46] : memref<9x128xf32, #tpu.memory_space<vmem>>, vector<1x128xf32>
    %78 = vector.broadcast %77 : vector<1x128xf32> to vector<256x128xf32>
    %79 = arith.mulf %56, %78 : vector<256x128xf32>
    %80 = arith.addf %73, %76 : vector<256x128xf32>
    %81 = arith.addf %80, %79 : vector<256x128xf32>
    %c6 = arith.constant 6 : index
    %c0_47 = arith.constant 0 : index
    %82 = vector.load %arg2[%c6, %c0_47] : memref<9x128xf32, #tpu.memory_space<vmem>>, vector<1x128xf32>
    %83 = vector.broadcast %82 : vector<1x128xf32> to vector<256x128xf32>
    %84 = arith.mulf %57, %83 : vector<256x128xf32>
    %c7 = arith.constant 7 : index
    %c0_48 = arith.constant 0 : index
    %85 = vector.load %arg2[%c7, %c0_48] : memref<9x128xf32, #tpu.memory_space<vmem>>, vector<1x128xf32>
    %86 = vector.broadcast %85 : vector<1x128xf32> to vector<256x128xf32>
    %87 = arith.mulf %58, %86 : vector<256x128xf32>
    %c8 = arith.constant 8 : index
    %c0_49 = arith.constant 0 : index
    %88 = vector.load %arg2[%c8, %c0_49] : memref<9x128xf32, #tpu.memory_space<vmem>>, vector<1x128xf32>
    %89 = vector.broadcast %88 : vector<1x128xf32> to vector<256x128xf32>
    %90 = arith.mulf %59, %89 : vector<256x128xf32>
    %91 = arith.addf %84, %87 : vector<256x128xf32>
    %92 = arith.addf %91, %90 : vector<256x128xf32>
    %93 = arith.addf %70, %81 : vector<256x128xf32>
    %94 = arith.addf %93, %92 : vector<256x128xf32>
    %c0_50 = arith.constant 0 : index
    %c0_51 = arith.constant 0 : index
    %95 = vector.load %arg3[%c0_50, %c0_51] : memref<1x128xf32, #tpu.memory_space<vmem>>, vector<1x128xf32>
    %96 = vector.broadcast %95 : vector<1x128xf32> to vector<256x128xf32>
    %97 = arith.addf %94, %96 : vector<256x128xf32>
    %cst_52 = arith.constant 0.000000e+00 : f32
    %98 = vector.broadcast %cst_52 : f32 to vector<256x128xf32>
    %99 = arith.maximumf %97, %98 : vector<256x128xf32>
    %100 = arith.mulf %99, %32 : vector<256x128xf32>
    %c17_53 = arith.constant 17 : index
    %c0_54 = arith.constant 0 : index
    %101 = vector.load %arg10[%c17_53, %c0_54] : memref<288x128xf32, #tpu.memory_space<vmem>>, vector<256x128xf32>
    tpu.vector_store %arg10[%c17_53, %c0_54], %100 {strides = array<i32>} : memref<288x128xf32, #tpu.memory_space<vmem>>, vector<256x128xf32>,
    %c16_55 = arith.constant 16 : index
    %c0_56 = arith.constant 0 : index
    %102 = vector.load %arg11[%c16_55, %c0_56] : memref<288x128xf32, #tpu.memory_space<vmem>>, vector<256x128xf32>
    tpu.vector_store %arg11[%c16_55, %c0_56], %99 {strides = array<i32>} : memref<288x128xf32, #tpu.memory_space<vmem>>, vector<256x128xf32>,
    %103 = arith.mulf %99, %36 : vector<256x128xf32>
    %c15_57 = arith.constant 15 : index
    %c0_58 = arith.constant 0 : index
    %104 = vector.load %arg12[%c15_57, %c0_58] : memref<288x128xf32, #tpu.memory_space<vmem>>, vector<256x128xf32>
    tpu.vector_store %arg12[%c15_57, %c0_58], %103 {strides = array<i32>} : memref<288x128xf32, #tpu.memory_space<vmem>>, vector<256x128xf32>,
    %c0_59 = arith.constant 0 : index
    %c0_60 = arith.constant 0 : index
    %105 = vector.load %arg10[%c0_59, %c0_60] : memref<288x128xf32, #tpu.memory_space<vmem>>, vector<256x128xf32>
    %c0_61 = arith.constant 0 : index
    %c0_62 = arith.constant 0 : index
    %106 = vector.load %arg11[%c0_61, %c0_62] : memref<288x128xf32, #tpu.memory_space<vmem>>, vector<256x128xf32>
    %c0_63 = arith.constant 0 : index
    %c0_64 = arith.constant 0 : index
    %107 = vector.load %arg12[%c0_63, %c0_64] : memref<288x128xf32, #tpu.memory_space<vmem>>, vector<256x128xf32>
    %c16_65 = arith.constant 16 : index
    %c0_66 = arith.constant 0 : index
    %108 = vector.load %arg10[%c16_65, %c0_66] : memref<288x128xf32, #tpu.memory_space<vmem>>, vector<256x128xf32>
    %c16_67 = arith.constant 16 : index
    %c0_68 = arith.constant 0 : index
    %109 = vector.load %arg11[%c16_67, %c0_68] : memref<288x128xf32, #tpu.memory_space<vmem>>, vector<256x128xf32>
    %c16_69 = arith.constant 16 : index
    %c0_70 = arith.constant 0 : index
    %110 = vector.load %arg12[%c16_69, %c0_70] : memref<288x128xf32, #tpu.memory_space<vmem>>, vector<256x128xf32>
    %c32_71 = arith.constant 32 : index
    %c0_72 = arith.constant 0 : index
    %111 = vector.load %arg10[%c32_71, %c0_72] : memref<288x128xf32, #tpu.memory_space<vmem>>, vector<256x128xf32>
    %c32_73 = arith.constant 32 : index
    %c0_74 = arith.constant 0 : index
    %112 = vector.load %arg11[%c32_73, %c0_74] : memref<288x128xf32, #tpu.memory_space<vmem>>, vector<256x128xf32>
    %c32_75 = arith.constant 32 : index
    %c0_76 = arith.constant 0 : index
    %113 = vector.load %arg12[%c32_75, %c0_76] : memref<288x128xf32, #tpu.memory_space<vmem>>, vector<256x128xf32>
    %c0_77 = arith.constant 0 : index
    %c0_78 = arith.constant 0 : index
    %114 = vector.load %arg13[%c0_77, %c0_78] : memref<256x1152xf32, #tpu.memory_space<vmem>>, vector<256x128xf32>
    tpu.vector_store %arg13[%c0_77, %c0_78], %105 {strides = array<i32>} : memref<256x1152xf32, #tpu.memory_space<vmem>>, vector<256x128xf32>,
    %c0_79 = arith.constant 0 : index
    %c128 = arith.constant 128 : index
    %115 = vector.load %arg13[%c0_79, %c128] : memref<256x1152xf32, #tpu.memory_space<vmem>>, vector<256x128xf32>
    tpu.vector_store %arg13[%c0_79, %c128], %106 {strides = array<i32>} : memref<256x1152xf32, #tpu.memory_space<vmem>>, vector<256x128xf32>,
    %c0_80 = arith.constant 0 : index
    %c256 = arith.constant 256 : index
    %116 = vector.load %arg13[%c0_80, %c256] : memref<256x1152xf32, #tpu.memory_space<vmem>>, vector<256x128xf32>
    tpu.vector_store %arg13[%c0_80, %c256], %107 {strides = array<i32>} : memref<256x1152xf32, #tpu.memory_space<vmem>>, vector<256x128xf32>,
    %c0_81 = arith.constant 0 : index
    %c384 = arith.constant 384 : index
    %117 = vector.load %arg13[%c0_81, %c384] : memref<256x1152xf32, #tpu.memory_space<vmem>>, vector<256x128xf32>
    tpu.vector_store %arg13[%c0_81, %c384], %108 {strides = array<i32>} : memref<256x1152xf32, #tpu.memory_space<vmem>>, vector<256x128xf32>,
    %c0_82 = arith.constant 0 : index
    %c512 = arith.constant 512 : index
    %118 = vector.load %arg13[%c0_82, %c512] : memref<256x1152xf32, #tpu.memory_space<vmem>>, vector<256x128xf32>
    tpu.vector_store %arg13[%c0_82, %c512], %109 {strides = array<i32>} : memref<256x1152xf32, #tpu.memory_space<vmem>>, vector<256x128xf32>,
    %c0_83 = arith.constant 0 : index
    %c640 = arith.constant 640 : index
    %119 = vector.load %arg13[%c0_83, %c640] : memref<256x1152xf32, #tpu.memory_space<vmem>>, vector<256x128xf32>
    tpu.vector_store %arg13[%c0_83, %c640], %110 {strides = array<i32>} : memref<256x1152xf32, #tpu.memory_space<vmem>>, vector<256x128xf32>,
    %c0_84 = arith.constant 0 : index
    %c768 = arith.constant 768 : index
    %120 = vector.load %arg13[%c0_84, %c768] : memref<256x1152xf32, #tpu.memory_space<vmem>>, vector<256x128xf32>
    tpu.vector_store %arg13[%c0_84, %c768], %111 {strides = array<i32>} : memref<256x1152xf32, #tpu.memory_space<vmem>>, vector<256x128xf32>,
    %c0_85 = arith.constant 0 : index
    %c896 = arith.constant 896 : index
    %121 = vector.load %arg13[%c0_85, %c896] : memref<256x1152xf32, #tpu.memory_space<vmem>>, vector<256x128xf32>
    tpu.vector_store %arg13[%c0_85, %c896], %112 {strides = array<i32>} : memref<256x1152xf32, #tpu.memory_space<vmem>>, vector<256x128xf32>,
    %c0_86 = arith.constant 0 : index
    %c1024 = arith.constant 1024 : index
    %122 = vector.load %arg13[%c0_86, %c1024] : memref<256x1152xf32, #tpu.memory_space<vmem>>, vector<256x128xf32>
    tpu.vector_store %arg13[%c0_86, %c1024], %113 {strides = array<i32>} : memref<256x1152xf32, #tpu.memory_space<vmem>>, vector<256x128xf32>,
    %c0_87 = arith.constant 0 : index
    %c0_88 = arith.constant 0 : index
    %123 = vector.load %arg13[%c0_87, %c0_88] : memref<256x1152xf32, #tpu.memory_space<vmem>>, vector<256x1152xf32>
    %c0_89 = arith.constant 0 : index
    %c0_90 = arith.constant 0 : index
    %124 = vector.load %arg4[%c0_89, %c0_90] : memref<1152x128xf32, #tpu.memory_space<vmem>>, vector<1152x128xf32>
    %cst_91 = arith.constant dense<0.000000e+00> : vector<256x128xf32>
    %125 = tpu.matmul %123, %124, %cst_91 {dimension_numbers = #tpu.dot_dimension_numbers<[1], [0], [0], [1], [0, 0, 1, 1], [], []>} : vector<256x1152xf32>, vector<1152x128xf32>, vector<256x128xf32> -> vector<256x128xf32>
    %c0_92 = arith.constant 0 : index
    %c0_93 = arith.constant 0 : index
    %126 = vector.load %arg5[%c0_92, %c0_93] : memref<1x128xf32, #tpu.memory_space<vmem>>, vector<1x128xf32>
    %127 = vector.broadcast %126 : vector<1x128xf32> to vector<256x128xf32>
    %128 = arith.addf %125, %127 : vector<256x128xf32>
    %cst_94 = arith.constant 0.000000e+00 : f32
    %129 = vector.broadcast %cst_94 : f32 to vector<256x128xf32>
    %130 = arith.maximumf %128, %129 : vector<256x128xf32>
    %131 = arith.mulf %130, %32 : vector<256x128xf32>
    %c17_95 = arith.constant 17 : index
    %c0_96 = arith.constant 0 : index
    %132 = vector.load %arg10[%c17_95, %c0_96] : memref<288x128xf32, #tpu.memory_space<vmem>>, vector<256x128xf32>
    tpu.vector_store %arg10[%c17_95, %c0_96], %131 {strides = array<i32>} : memref<288x128xf32, #tpu.memory_space<vmem>>, vector<256x128xf32>,
    %c16_97 = arith.constant 16 : index
    %c0_98 = arith.constant 0 : index
    %133 = vector.load %arg11[%c16_97, %c0_98] : memref<288x128xf32, #tpu.memory_space<vmem>>, vector<256x128xf32>
    tpu.vector_store %arg11[%c16_97, %c0_98], %130 {strides = array<i32>} : memref<288x128xf32, #tpu.memory_space<vmem>>, vector<256x128xf32>,
    %134 = arith.mulf %130, %36 : vector<256x128xf32>
    %c15_99 = arith.constant 15 : index
    %c0_100 = arith.constant 0 : index
    %135 = vector.load %arg12[%c15_99, %c0_100] : memref<288x128xf32, #tpu.memory_space<vmem>>, vector<256x128xf32>
    tpu.vector_store %arg12[%c15_99, %c0_100], %134 {strides = array<i32>} : memref<288x128xf32, #tpu.memory_space<vmem>>, vector<256x128xf32>,
    %c0_101 = arith.constant 0 : index
    %c0_102 = arith.constant 0 : index
    %136 = vector.load %arg10[%c0_101, %c0_102] : memref<288x128xf32, #tpu.memory_space<vmem>>, vector<256x128xf32>
    %c0_103 = arith.constant 0 : index
    %c0_104 = arith.constant 0 : index
    %137 = vector.load %arg11[%c0_103, %c0_104] : memref<288x128xf32, #tpu.memory_space<vmem>>, vector<256x128xf32>
    %c0_105 = arith.constant 0 : index
    %c0_106 = arith.constant 0 : index
    %138 = vector.load %arg12[%c0_105, %c0_106] : memref<288x128xf32, #tpu.memory_space<vmem>>, vector<256x128xf32>
    %c16_107 = arith.constant 16 : index
    %c0_108 = arith.constant 0 : index
    %139 = vector.load %arg10[%c16_107, %c0_108] : memref<288x128xf32, #tpu.memory_space<vmem>>, vector<256x128xf32>
    %c16_109 = arith.constant 16 : index
    %c0_110 = arith.constant 0 : index
    %140 = vector.load %arg11[%c16_109, %c0_110] : memref<288x128xf32, #tpu.memory_space<vmem>>, vector<256x128xf32>
    %c16_111 = arith.constant 16 : index
    %c0_112 = arith.constant 0 : index
    %141 = vector.load %arg12[%c16_111, %c0_112] : memref<288x128xf32, #tpu.memory_space<vmem>>, vector<256x128xf32>
    %c32_113 = arith.constant 32 : index
    %c0_114 = arith.constant 0 : index
    %142 = vector.load %arg10[%c32_113, %c0_114] : memref<288x128xf32, #tpu.memory_space<vmem>>, vector<256x128xf32>
    %c32_115 = arith.constant 32 : index
    %c0_116 = arith.constant 0 : index
    %143 = vector.load %arg11[%c32_115, %c0_116] : memref<288x128xf32, #tpu.memory_space<vmem>>, vector<256x128xf32>
    %c32_117 = arith.constant 32 : index
    %c0_118 = arith.constant 0 : index
    %144 = vector.load %arg12[%c32_117, %c0_118] : memref<288x128xf32, #tpu.memory_space<vmem>>, vector<256x128xf32>
    %c0_119 = arith.constant 0 : index
    %c0_120 = arith.constant 0 : index
    %145 = vector.load %arg6[%c0_119, %c0_120] : memref<9x128xf32, #tpu.memory_space<vmem>>, vector<1x128xf32>
    %146 = vector.broadcast %145 : vector<1x128xf32> to vector<256x128xf32>
    %147 = arith.mulf %136, %146 : vector<256x128xf32>
    %c1_121 = arith.constant 1 : index
    %c0_122 = arith.constant 0 : index
    %148 = vector.load %arg6[%c1_121, %c0_122] : memref<9x128xf32, #tpu.memory_space<vmem>>, vector<1x128xf32>
    %149 = vector.broadcast %148 : vector<1x128xf32> to vector<256x128xf32>
    %150 = arith.mulf %137, %149 : vector<256x128xf32>
    %c2_123 = arith.constant 2 : index
    %c0_124 = arith.constant 0 : index
    %151 = vector.load %arg6[%c2_123, %c0_124] : memref<9x128xf32, #tpu.memory_space<vmem>>, vector<1x128xf32>
    %152 = vector.broadcast %151 : vector<1x128xf32> to vector<256x128xf32>
    %153 = arith.mulf %138, %152 : vector<256x128xf32>
    %154 = arith.addf %147, %150 : vector<256x128xf32>
    %155 = arith.addf %154, %153 : vector<256x128xf32>
    %c3_125 = arith.constant 3 : index
    %c0_126 = arith.constant 0 : index
    %156 = vector.load %arg6[%c3_125, %c0_126] : memref<9x128xf32, #tpu.memory_space<vmem>>, vector<1x128xf32>
    %157 = vector.broadcast %156 : vector<1x128xf32> to vector<256x128xf32>
    %158 = arith.mulf %139, %157 : vector<256x128xf32>
    %c4_127 = arith.constant 4 : index
    %c0_128 = arith.constant 0 : index
    %159 = vector.load %arg6[%c4_127, %c0_128] : memref<9x128xf32, #tpu.memory_space<vmem>>, vector<1x128xf32>
    %160 = vector.broadcast %159 : vector<1x128xf32> to vector<256x128xf32>
    %161 = arith.mulf %140, %160 : vector<256x128xf32>
    %c5_129 = arith.constant 5 : index
    %c0_130 = arith.constant 0 : index
    %162 = vector.load %arg6[%c5_129, %c0_130] : memref<9x128xf32, #tpu.memory_space<vmem>>, vector<1x128xf32>
    %163 = vector.broadcast %162 : vector<1x128xf32> to vector<256x128xf32>
    %164 = arith.mulf %141, %163 : vector<256x128xf32>
    %165 = arith.addf %158, %161 : vector<256x128xf32>
    %166 = arith.addf %165, %164 : vector<256x128xf32>
    %c6_131 = arith.constant 6 : index
    %c0_132 = arith.constant 0 : index
    %167 = vector.load %arg6[%c6_131, %c0_132] : memref<9x128xf32, #tpu.memory_space<vmem>>, vector<1x128xf32>
    %168 = vector.broadcast %167 : vector<1x128xf32> to vector<256x128xf32>
    %169 = arith.mulf %142, %168 : vector<256x128xf32>
    %c7_133 = arith.constant 7 : index
    %c0_134 = arith.constant 0 : index
    %170 = vector.load %arg6[%c7_133, %c0_134] : memref<9x128xf32, #tpu.memory_space<vmem>>, vector<1x128xf32>
    %171 = vector.broadcast %170 : vector<1x128xf32> to vector<256x128xf32>
    %172 = arith.mulf %143, %171 : vector<256x128xf32>
    %c8_135 = arith.constant 8 : index
    %c0_136 = arith.constant 0 : index
    %173 = vector.load %arg6[%c8_135, %c0_136] : memref<9x128xf32, #tpu.memory_space<vmem>>, vector<1x128xf32>
    %174 = vector.broadcast %173 : vector<1x128xf32> to vector<256x128xf32>
    %175 = arith.mulf %144, %174 : vector<256x128xf32>
    %176 = arith.addf %169, %172 : vector<256x128xf32>
    %177 = arith.addf %176, %175 : vector<256x128xf32>
    %178 = arith.addf %155, %166 : vector<256x128xf32>
    %179 = arith.addf %178, %177 : vector<256x128xf32>
    %c0_137 = arith.constant 0 : index
    %c0_138 = arith.constant 0 : index
    %180 = vector.load %arg8[%c0_137, %c0_138] : memref<2x128xf32, #tpu.memory_space<vmem>>, vector<2x128xf32>
    %cst_139 = arith.constant dense<0.000000e+00> : vector<2x256xf32>
    %181 = tpu.matmul %180, %179, %cst_139 {dimension_numbers = #tpu.dot_dimension_numbers<[1], [1], [0], [0], [0, 0, 1, 0], [], []>} : vector<2x128xf32>, vector<256x128xf32>, vector<2x256xf32> -> vector<2x256xf32>
    %c0_140 = arith.constant 0 : index
    %c0_141 = arith.constant 0 : index
    %182 = vector.load %arg7[%c0_140, %c0_141] : memref<1x1xf32, #tpu.memory_space<vmem>>, vector<1x1xf32>
    %183 = vector.broadcast %182 : vector<1x1xf32> to vector<2x256xf32>
    %184 = arith.addf %181, %183 : vector<2x256xf32>
    %c0_142 = arith.constant 0 : index
    %c0_143 = arith.constant 0 : index
    %c0_144 = arith.constant 0 : index
    %185 = vector.load %arg9[%c0_142, %c0_143, %c0_144] : memref<1x2x256xf32, #tpu.memory_space<vmem>>, vector<1x2x256xf32>
    %186 = vector.shape_cast %185 : vector<1x2x256xf32> to vector<2x256xf32>
    %187 = vector.shape_cast %184 : vector<2x256xf32> to vector<1x2x256xf32>
    tpu.vector_store %arg9[%c0_142, %c0_143, %c0_144], %187 {strides = array<i32>} : memref<1x2x256xf32, #tpu.memory_space<vmem>>, vector<1x2x256xf32>,
    return
  }
  func.func @transform_0(%arg0: i32) -> (i32, i32, i32) {
    %c0_i32 = arith.constant 0 : i32
    %c0_i32_0 = arith.constant 0 : i32
    %c0_i32_1 = arith.constant 0 : i32
    return %arg0, %c0_i32, %c0_i32_0 : i32, i32, i32
  }
  func.func @transform_1(%arg0: i32) -> (i32, i32) {
    %c0_i32 = arith.constant 0 : i32
    %c0_i32_0 = arith.constant 0 : i32
    %c0_i32_1 = arith.constant 0 : i32
    return %c0_i32, %c0_i32_0 : i32, i32
  }
  func.func @transform_2(%arg0: i32) -> (i32, i32) {
    %c0_i32 = arith.constant 0 : i32
    %c0_i32_0 = arith.constant 0 : i32
    %c0_i32_1 = arith.constant 0 : i32
    return %c0_i32, %c0_i32_0 : i32, i32
  }
  func.func @transform_3(%arg0: i32) -> (i32, i32) {
    %c0_i32 = arith.constant 0 : i32
    %c0_i32_0 = arith.constant 0 : i32
    %c0_i32_1 = arith.constant 0 : i32
    return %c0_i32, %c0_i32_0 : i32, i32
  }
  func.func @transform_4(%arg0: i32) -> (i32, i32) {
    %c0_i32 = arith.constant 0 : i32
    %c0_i32_0 = arith.constant 0 : i32
    %c0_i32_1 = arith.constant 0 : i32
    return %c0_i32, %c0_i32_0 : i32, i32
  }
  func.func @transform_5(%arg0: i32) -> (i32, i32) {
    %c0_i32 = arith.constant 0 : i32
    %c0_i32_0 = arith.constant 0 : i32
    %c0_i32_1 = arith.constant 0 : i32
    return %c0_i32, %c0_i32_0 : i32, i32
  }
  func.func @transform_6(%arg0: i32) -> (i32, i32) {
    %c0_i32 = arith.constant 0 : i32
    %c0_i32_0 = arith.constant 0 : i32
    %c0_i32_1 = arith.constant 0 : i32
    return %c0_i32, %c0_i32_0 : i32, i32
  }
  func.func @transform_7(%arg0: i32) -> (i32, i32) {
    %c0_i32 = arith.constant 0 : i32
    %c0_i32_0 = arith.constant 0 : i32
    %c0_i32_1 = arith.constant 0 : i32
    return %c0_i32, %c0_i32_0 : i32, i32
  }
  func.func @transform_8(%arg0: i32) -> (i32, i32, i32) {
    %c0_i32 = arith.constant 0 : i32
    %c0_i32_0 = arith.constant 0 : i32
    %c0_i32_1 = arith.constant 0 : i32
    return %arg0, %c0_i32, %c0_i32_0 : i32, i32, i32
  }
}

</mosaic_0001>

<llo_original>
// kernel: tpu_custom_call.1
$region0: #{tpu_custom_call.1}
  #allocation0 [shape = 'u32[]', space=smem, size = 0x4, offset = 0x4, fixed_abs, tag = 'smem constant byte address 0x4 - core index']
  #allocation1 [shape = 'u32[144,128]{1,0:T(1,128)}', space=vmem, size = 0x12000, scoped, tag = 'internal scratch']
  #allocation2 [shape = 'f32[288,128]{1,0:T(8,128)}', space=vmem, size = 0x24000, scoped, tag = 'scratch operand']
  #allocation3 [shape = 'f32[288,128]{1,0:T(8,128)}', space=vmem, size = 0x24000, scoped, tag = 'scratch operand']
  #allocation4 [shape = 'f32[288,128]{1,0:T(8,128)}', space=vmem, size = 0x24000, scoped, tag = 'scratch operand']
  #allocation5 [shape = 'f32[256,1152]{1,0:T(8,128)}', space=vmem, size = 0x120000, scoped, tag = 'scratch operand']
  #allocation6 [shape = 'f32[1,1]{1,0:T(1,128)S(1)}', space=vmem, size = 0x200, scoped, tag = 'scoped memory for tpu_custom_call.1']
  %s0 = inlined_call_operand.vmem [shape: f32[1,256,2], index: 0, kind: input, shape index: {}]
  %s1 = inlined_call_operand.vmem [shape: f32[9,128], index: 1, kind: input, shape index: {}]
  %s2 = inlined_call_operand.vmem [shape: f32[1,128], index: 2, kind: input, shape index: {}]
  %s3 = inlined_call_operand.hbm [shape: f32[1152,128], index: 3, kind: input, shape index: {}]
  %s4 = inlined_call_operand.vmem [shape: f32[1,128], index: 4, kind: input, shape index: {}]
  %s5 = inlined_call_operand.vmem [shape: f32[9,128], index: 5, kind: input, shape index: {}]
  %s6 = inlined_call_operand.<no memory space> [shape: f32[1,1], index: 6, kind: input, shape index: {}]
  %s7 = inlined_call_operand.vmem [shape: f32[2,128], index: 7, kind: input, shape index: {}]
  %s8 = inlined_call_operand.hbm [shape: f32[1,2,256], index: 8, kind: output, shape index: {}]
  %s9 = sld [smem:[#allocation0]]
  $region46: #{tpu_custom_call.1} parent=0
    _
  %s11 = ssub.s32 1, %s9
  %s12 = scalar_select 0, %s11, %s9
  %v13 = vstv %s6
  %14 = vst [vmem:[#allocation6] sm:$0x1] %v13
  $region1: #{tpu_custom_call.1} parent=0
    #allocation7 [shape = 'u8[589824]{0}', space=vmem, size = 0x90000, scoped, tag = 'input window, operand 3, single buffered']
    #allocation8 [shape = 's32[1]{0}', space=sflag, size = 0x4, scoped, tag = 'scoped memory for tpu_custom_call.1']
    #allocation9 [shape = 's32[1]{0}', space=sflag, size = 0x4, scoped, tag = 'scoped memory for tpu_custom_call.1']
    #allocation10 [shape = 'u8[2048]{0}', space=vmem, size = 0x800, scoped, tag = 'output window, operand 0, single buffered']
    %15 = vsyncpa [#allocation8], 0
    %16 = vsyncpa [#allocation9], 0
    // Predicated region
    $region2: #{tpu_custom_call.1} parent=1 // pred_check
      _
    $region3: #{tpu_custom_call.1} parent=1 // pred_check_branch
      %18 = sbr.rel (0) target = $region5
    $region4: #{tpu_custom_call.1} parent=1 // pred_region
      _
    $region5: #{tpu_custom_call.1} parent=1 // pred_fallthru
      _
    // Predicated region
    $region6: #{tpu_custom_call.1} parent=1 // pred_check
      _
    $region7: #{tpu_custom_call.1} parent=1 // pred_check_branch
      %20 = sbr.rel (0) target = $region9
    $region8: #{tpu_custom_call.1} parent=1 // pred_region
      _
    $region9: #{tpu_custom_call.1} parent=1 // pred_fallthru
      _
    // Predicated region
    $region10: #{tpu_custom_call.1} parent=1 // pred_check
      _
    $region11: #{tpu_custom_call.1} parent=1 // pred_check_branch
      %22 = sbr.rel (0) target = $region13
    $region12: #{tpu_custom_call.1} parent=1 // pred_region
      _
    $region13: #{tpu_custom_call.1} parent=1 // pred_fallthru
      _
    // Predicated region
    $region14: #{tpu_custom_call.1} parent=1 // pred_check
      _
    $region15: #{tpu_custom_call.1} parent=1 // pred_check_branch
      %24 = sbr.rel (0) target = $region17
    $region16: #{tpu_custom_call.1} parent=1 // pred_region
      %s26 = ssub.s32 18432, 18432
      %27 = vsyncadd [#allocation8], %s26
      %s28 = sshll.u32 [#allocation7], 4
      %s29 = int_to_ptr.vmem [resolvable:$true] %s28
      %34 = dma.hbm_to_vmem [thread:$0]  %s3, 18432, %s29, [#allocation8], 128, 128, 8
    $region17: #{tpu_custom_call.1} parent=1 // pred_fallthru
      _
    // Predicated region
    $region18: #{tpu_custom_call.1} parent=1 // pred_check
      _
    $region19: #{tpu_custom_call.1} parent=1 // pred_check_branch
      %36 = sbr.rel (0) target = $region21
    $region20: #{tpu_custom_call.1} parent=1 // pred_region
      _
    $region21: #{tpu_custom_call.1} parent=1 // pred_fallthru
      _
    // Predicated region
    $region22: #{tpu_custom_call.1} parent=1 // pred_check
      _
    $region23: #{tpu_custom_call.1} parent=1 // pred_check_branch
      %38 = sbr.rel (0) target = $region25
    $region24: #{tpu_custom_call.1} parent=1 // pred_region
      _
    $region25: #{tpu_custom_call.1} parent=1 // pred_fallthru
      _
    // Predicated region
    $region26: #{tpu_custom_call.1} parent=1 // pred_check
      _
    $region27: #{tpu_custom_call.1} parent=1 // pred_check_branch
      %40 = sbr.rel (0) target = $region29
    $region28: #{tpu_custom_call.1} parent=1 // pred_region
      _
    $region29: #{tpu_custom_call.1} parent=1 // pred_fallthru
      _
    // Predicated region
    $region30: #{tpu_custom_call.1} parent=1 // pred_check
      _
    $region31: #{tpu_custom_call.1} parent=1 // pred_check_branch
      %42 = sbr.rel (0) target = $region33
    $region32: #{tpu_custom_call.1} parent=1 // pred_region
      _
    $region33: #{tpu_custom_call.1} parent=1 // pred_fallthru
      _
    // Predicated region
    $region34: #{tpu_custom_call.1} parent=1 // pred_check
      _
    $region35: #{tpu_custom_call.1} parent=1 // pred_check_branch
      %44 = sbr.rel (0) target = $region37
    $region36: #{tpu_custom_call.1} parent=1 // pred_region
      %45 = dma.done [#allocation8], 18432
    $region37: #{tpu_custom_call.1} parent=1 // pred_fallthru
      _
    %46 = vst [vmem:[#allocation2] sm:$0xff] 0.0
    %47 = vst [vmem:[#allocation2 + $0x8] sm:$0xff] 0.0
    %48 = vst [vmem:[#allocation2 + $0x10] sm:$0x1] 0.0
    %49 = vst [vmem:[#allocation2 + $0x111] sm:$0xff] 0.0
    %50 = vst [vmem:[#allocation2 + $0x119] sm:$0x7f] 0.0
    %51 = vst [vmem:[#allocation3] sm:$0xff] 0.0
    %52 = vst [vmem:[#allocation3 + $0x8] sm:$0xff] 0.0
    %53 = vst [vmem:[#allocation3 + $0x110] sm:$0xff] 0.0
    %54 = vst [vmem:[#allocation3 + $0x118] sm:$0xff] 0.0
    %55 = vst [vmem:[#allocation4] sm:$0xff] 0.0
    %56 = vst [vmem:[#allocation4 + $0x8] sm:$0x7f] 0.0
    %57 = vst [vmem:[#allocation4 + $0x10f] sm:$0xff] 0.0
    %58 = vst [vmem:[#allocation4 + $0x117] sm:$0xff] 0.0
    %59 = vst [vmem:[#allocation4 + $0x11f] sm:$0x1] 0.0
    %v60 = vlaneseq
    %v61 = vshrl.u32 %v60, 7
    %v62 = vadd.s32 %v61, 8
    %v63 = vadd.s32 %v61, 16
    %v64 = vadd.s32 %v61, 24
    %v65 = vadd.s32 %v61, 32
    %v66 = vadd.s32 %v61, 40
    %v67 = vadd.s32 %v61, 48
    %v68 = vadd.s32 %v61, 56
    %v69 = vadd.s32 %v61, 64
    %v70 = vadd.s32 %v61, 72
    %v71 = vadd.s32 %v61, 80
    %v72 = vadd.s32 %v61, 88
    %v73 = vadd.s32 %v61, 96
    %v74 = vadd.s32 %v61, 104
    %v75 = vadd.s32 %v61, 112
    %v76 = vadd.s32 %v61, 120
    %v77 = vadd.s32 %v61, 128
    %v78 = vadd.s32 %v61, 136
    %v79 = vadd.s32 %v61, 144
    %v80 = vadd.s32 %v61, 152
    %v81 = vadd.s32 %v61, 160
    %v82 = vadd.s32 %v61, 168
    %v83 = vadd.s32 %v61, 176
    %v84 = vadd.s32 %v61, 184
    %v85 = vadd.s32 %v61, 192
    %v86 = vadd.s32 %v61, 200
    %v87 = vadd.s32 %v61, 208
    %v88 = vadd.s32 %v61, 216
    %v89 = vadd.s32 %v61, 224
    %v90 = vadd.s32 %v61, 232
    %v91 = vadd.s32 %v61, 240
    %v92 = vadd.s32 %v61, 248
    %vm93 = vcmp.lt.s32.totalorder %v61, 0
    %v94 = vsub.s32 0, %v61
    %v95 = vsel %vm93, %v94, %v61
    %v96 = vshrl.u32 %v95, 4
    %v97 = vand.u32 %v95, 15
    %v98 = vsub.s32 0, %v97
    %v99 = vsel %vm93, %v98, %v97
    %vm100 = vcmp.lt.s32.totalorder %v62, 0
    %v101 = vsub.s32 0, %v62
    %v102 = vsel %vm100, %v101, %v62
    %v103 = vshrl.u32 %v102, 4
    %v104 = vand.u32 %v102, 15
    %v105 = vsub.s32 0, %v104
    %v106 = vsel %vm100, %v105, %v104
    %vm107 = vcmp.lt.s32.totalorder %v63, 0
    %v108 = vsub.s32 0, %v63
    %v109 = vsel %vm107, %v108, %v63
    %v110 = vshrl.u32 %v109, 4
    %v111 = vand.u32 %v109, 15
    %v112 = vsub.s32 0, %v111
    %v113 = vsel %vm107, %v112, %v111
    %vm114 = vcmp.lt.s32.totalorder %v64, 0
    %v115 = vsub.s32 0, %v64
    %v116 = vsel %vm114, %v115, %v64
    %v117 = vshrl.u32 %v116, 4
    %v118 = vand.u32 %v116, 15
    %v119 = vsub.s32 0, %v118
    %v120 = vsel %vm114, %v119, %v118
    %vm121 = vcmp.lt.s32.totalorder %v65, 0
    %v122 = vsub.s32 0, %v65
    %v123 = vsel %vm121, %v122, %v65
    %v124 = vshrl.u32 %v123, 4
    %v125 = vand.u32 %v123, 15
    %v126 = vsub.s32 0, %v125
    %v127 = vsel %vm121, %v126, %v125
    %vm128 = vcmp.lt.s32.totalorder %v66, 0
    %v129 = vsub.s32 0, %v66
    %v130 = vsel %vm128, %v129, %v66
    %v131 = vshrl.u32 %v130, 4
    %v132 = vand.u32 %v130, 15
    %v133 = vsub.s32 0, %v132
    %v134 = vsel %vm128, %v133, %v132
    %vm135 = vcmp.lt.s32.totalorder %v67, 0
    %v136 = vsub.s32 0, %v67
    %v137 = vsel %vm135, %v136, %v67
    %v138 = vshrl.u32 %v137, 4
    %v139 = vand.u32 %v137, 15
    %v140 = vsub.s32 0, %v139
    %v141 = vsel %vm135, %v140, %v139
    %vm142 = vcmp.lt.s32.totalorder %v68, 0
    %v143 = vsub.s32 0, %v68
    %v144 = vsel %vm142, %v143, %v68
    %v145 = vshrl.u32 %v144, 4
    %v146 = vand.u32 %v144, 15
    %v147 = vsub.s32 0, %v146
    %v148 = vsel %vm142, %v147, %v146
    %vm149 = vcmp.lt.s32.totalorder %v69, 0
    %v150 = vsub.s32 0, %v69
    %v151 = vsel %vm149, %v150, %v69
    %v152 = vshrl.u32 %v151, 4
    %v153 = vand.u32 %v151, 15
    %v154 = vsub.s32 0, %v153
    %v155 = vsel %vm149, %v154, %v153
    %vm156 = vcmp.lt.s32.totalorder %v70, 0
    %v157 = vsub.s32 0, %v70
    %v158 = vsel %vm156, %v157, %v70
    %v159 = vshrl.u32 %v158, 4
    %v160 = vand.u32 %v158, 15
    %v161 = vsub.s32 0, %v160
    %v162 = vsel %vm156, %v161, %v160
    %vm163 = vcmp.lt.s32.totalorder %v71, 0
    %v164 = vsub.s32 0, %v71
    %v165 = vsel %vm163, %v164, %v71
    %v166 = vshrl.u32 %v165, 4
    %v167 = vand.u32 %v165, 15
    %v168 = vsub.s32 0, %v167
    %v169 = vsel %vm163, %v168, %v167
    %vm170 = vcmp.lt.s32.totalorder %v72, 0
    %v171 = vsub.s32 0, %v72
    %v172 = vsel %vm170, %v171, %v72
    %v173 = vshrl.u32 %v172, 4
    %v174 = vand.u32 %v172, 15
    %v175 = vsub.s32 0, %v174
    %v176 = vsel %vm170, %v175, %v174
    %vm177 = vcmp.lt.s32.totalorder %v73, 0
    %v178 = vsub.s32 0, %v73
    %v179 = vsel %vm177, %v178, %v73
    %v180 = vshrl.u32 %v179, 4
    %v181 = vand.u32 %v179, 15
    %v182 = vsub.s32 0, %v181
    %v183 = vsel %vm177, %v182, %v181
    %vm184 = vcmp.lt.s32.totalorder %v74, 0
    %v185 = vsub.s32 0, %v74
    %v186 = vsel %vm184, %v185, %v74
    %v187 = vshrl.u32 %v186, 4
    %v188 = vand.u32 %v186, 15
    %v189 = vsub.s32 0, %v188
    %v190 = vsel %vm184, %v189, %v188
    %vm191 = vcmp.lt.s32.totalorder %v75, 0
    %v192 = vsub.s32 0, %v75
    %v193 = vsel %vm191, %v192, %v75
    %v194 = vshrl.u32 %v193, 4
    %v195 = vand.u32 %v193, 15
    %v196 = vsub.s32 0, %v195
    %v197 = vsel %vm191, %v196, %v195
    %vm198 = vcmp.lt.s32.totalorder %v76, 0
    %v199 = vsub.s32 0, %v76
    %v200 = vsel %vm198, %v199, %v76
    %v201 = vshrl.u32 %v200, 4
    %v202 = vand.u32 %v200, 15
    %v203 = vsub.s32 0, %v202
    %v204 = vsel %vm198, %v203, %v202
    %vm205 = vcmp.lt.s32.totalorder %v77, 0
    %v206 = vsub.s32 0, %v77
    %v207 = vsel %vm205, %v206, %v77
    %v208 = vshrl.u32 %v207, 4
    %v209 = vand.u32 %v207, 15
    %v210 = vsub.s32 0, %v209
    %v211 = vsel %vm205, %v210, %v209
    %vm212 = vcmp.lt.s32.totalorder %v78, 0
    %v213 = vsub.s32 0, %v78
    %v214 = vsel %vm212, %v213, %v78
    %v215 = vshrl.u32 %v214, 4
    %v216 = vand.u32 %v214, 15
    %v217 = vsub.s32 0, %v216
    %v218 = vsel %vm212, %v217, %v216
    %vm219 = vcmp.lt.s32.totalorder %v79, 0
    %v220 = vsub.s32 0, %v79
    %v221 = vsel %vm219, %v220, %v79
    %v222 = vshrl.u32 %v221, 4
    %v223 = vand.u32 %v221, 15
    %v224 = vsub.s32 0, %v223
    %v225 = vsel %vm219, %v224, %v223
    %vm226 = vcmp.lt.s32.totalorder %v80, 0
    %v227 = vsub.s32 0, %v80
    %v228 = vsel %vm226, %v227, %v80
    %v229 = vshrl.u32 %v228, 4
    %v230 = vand.u32 %v228, 15
    %v231 = vsub.s32 0, %v230
    %v232 = vsel %vm226, %v231, %v230
    %vm233 = vcmp.lt.s32.totalorder %v81, 0
    %v234 = vsub.s32 0, %v81
    %v235 = vsel %vm233, %v234, %v81
    %v236 = vshrl.u32 %v235, 4
    %v237 = vand.u32 %v235, 15
    %v238 = vsub.s32 0, %v237
    %v239 = vsel %vm233, %v238, %v237
    %vm240 = vcmp.lt.s32.totalorder %v82, 0
    %v241 = vsub.s32 0, %v82
    %v242 = vsel %vm240, %v241, %v82
    %v243 = vshrl.u32 %v242, 4
    %v244 = vand.u32 %v242, 15
    %v245 = vsub.s32 0, %v244
    %v246 = vsel %vm240, %v245, %v244
    %vm247 = vcmp.lt.s32.totalorder %v83, 0
    %v248 = vsub.s32 0, %v83
    %v249 = vsel %vm247, %v248, %v83
    %v250 = vshrl.u32 %v249, 4
    %v251 = vand.u32 %v249, 15
    %v252 = vsub.s32 0, %v251
    %v253 = vsel %vm247, %v252, %v251
    %vm254 = vcmp.lt.s32.totalorder %v84, 0
    %v255 = vsub.s32 0, %v84
    %v256 = vsel %vm254, %v255, %v84
    %v257 = vshrl.u32 %v256, 4
    %v258 = vand.u32 %v256, 15
    %v259 = vsub.s32 0, %v258
    %v260 = vsel %vm254, %v259, %v258
    %vm261 = vcmp.lt.s32.totalorder %v85, 0
    %v262 = vsub.s32 0, %v85
    %v263 = vsel %vm261, %v262, %v85
    %v264 = vshrl.u32 %v263, 4
    %v265 = vand.u32 %v263, 15
    %v266 = vsub.s32 0, %v265
    %v267 = vsel %vm261, %v266, %v265
    %vm268 = vcmp.lt.s32.totalorder %v86, 0
    %v269 = vsub.s32 0, %v86
    %v270 = vsel %vm268, %v269, %v86
    %v271 = vshrl.u32 %v270, 4
    %v272 = vand.u32 %v270, 15
    %v273 = vsub.s32 0, %v272
    %v274 = vsel %vm268, %v273, %v272
    %vm275 = vcmp.lt.s32.totalorder %v87, 0
    %v276 = vsub.s32 0, %v87
    %v277 = vsel %vm275, %v276, %v87
    %v278 = vshrl.u32 %v277, 4
    %v279 = vand.u32 %v277, 15
    %v280 = vsub.s32 0, %v279
    %v281 = vsel %vm275, %v280, %v279
    %vm282 = vcmp.lt.s32.totalorder %v88, 0
    %v283 = vsub.s32 0, %v88
    %v284 = vsel %vm282, %v283, %v88
    %v285 = vshrl.u32 %v284, 4
    %v286 = vand.u32 %v284, 15
    %v287 = vsub.s32 0, %v286
    %v288 = vsel %vm282, %v287, %v286
    %vm289 = vcmp.lt.s32.totalorder %v89, 0
    %v290 = vsub.s32 0, %v89
    %v291 = vsel %vm289, %v290, %v89
    %v292 = vshrl.u32 %v291, 4
    %v293 = vand.u32 %v291, 15
    %v294 = vsub.s32 0, %v293
    %v295 = vsel %vm289, %v294, %v293
    %vm296 = vcmp.lt.s32.totalorder %v90, 0
    %v297 = vsub.s32 0, %v90
    %v298 = vsel %vm296, %v297, %v90
    %v299 = vshrl.u32 %v298, 4
    %v300 = vand.u32 %v298, 15
    %v301 = vsub.s32 0, %v300
    %v302 = vsel %vm296, %v301, %v300
    %vm303 = vcmp.lt.s32.totalorder %v91, 0
    %v304 = vsub.s32 0, %v91
    %v305 = vsel %vm303, %v304, %v91
    %v306 = vshrl.u32 %v305, 4
    %v307 = vand.u32 %v305, 15
    %v308 = vsub.s32 0, %v307
    %v309 = vsel %vm303, %v308, %v307
    %vm310 = vcmp.lt.s32.totalorder %v92, 0
    %v311 = vsub.s32 0, %v92
    %v312 = vsel %vm310, %v311, %v92
    %v313 = vshrl.u32 %v312, 4
    %v314 = vand.u32 %v312, 15
    %v315 = vsub.s32 0, %v314
    %v316 = vsel %vm310, %v315, %v314
    %vm317 = vcmp.ne.s32.totalorder %v99, 0
    %vm318 = vcmp.ne.s32.totalorder %v106, 0
    %vm319 = vcmp.ne.s32.totalorder %v113, 0
    %vm320 = vcmp.ne.s32.totalorder %v120, 0
    %vm321 = vcmp.ne.s32.totalorder %v127, 0
    %vm322 = vcmp.ne.s32.totalorder %v134, 0
    %vm323 = vcmp.ne.s32.totalorder %v141, 0
    %vm324 = vcmp.ne.s32.totalorder %v148, 0
    %vm325 = vcmp.ne.s32.totalorder %v155, 0
    %vm326 = vcmp.ne.s32.totalorder %v162, 0
    %vm327 = vcmp.ne.s32.totalorder %v169, 0
    %vm328 = vcmp.ne.s32.totalorder %v176, 0
    %vm329 = vcmp.ne.s32.totalorder %v183, 0
    %vm330 = vcmp.ne.s32.totalorder %v190, 0
    %vm331 = vcmp.ne.s32.totalorder %v197, 0
    %vm332 = vcmp.ne.s32.totalorder %v204, 0
    %vm333 = vcmp.ne.s32.totalorder %v211, 0
    %vm334 = vcmp.ne.s32.totalorder %v218, 0
    %vm335 = vcmp.ne.s32.totalorder %v225, 0
    %vm336 = vcmp.ne.s32.totalorder %v232, 0
    %vm337 = vcmp.ne.s32.totalorder %v239, 0
    %vm338 = vcmp.ne.s32.totalorder %v246, 0
    %vm339 = vcmp.ne.s32.totalorder %v253, 0
    %vm340 = vcmp.ne.s32.totalorder %v260, 0
    %vm341 = vcmp.ne.s32.totalorder %v267, 0
    %vm342 = vcmp.ne.s32.totalorder %v274, 0
    %vm343 = vcmp.ne.s32.totalorder %v281, 0
    %vm344 = vcmp.ne.s32.totalorder %v288, 0
    %vm345 = vcmp.ne.s32.totalorder %v295, 0
    %vm346 = vcmp.ne.s32.totalorder %v302, 0
    %vm347 = vcmp.ne.s32.totalorder %v309, 0
    %vm348 = vcmp.ne.s32.totalorder %v316, 0
    %vm349 = vcmp.lt.s32.totalorder %v99, 0
    %vm350 = vcmp.lt.s32.totalorder %v106, 0
    %vm351 = vcmp.lt.s32.totalorder %v113, 0
    %vm352 = vcmp.lt.s32.totalorder %v120, 0
    %vm353 = vcmp.lt.s32.totalorder %v127, 0
    %vm354 = vcmp.lt.s32.totalorder %v134, 0
    %vm355 = vcmp.lt.s32.totalorder %v141, 0
    %vm356 = vcmp.lt.s32.totalorder %v148, 0
    %vm357 = vcmp.lt.s32.totalorder %v155, 0
    %vm358 = vcmp.lt.s32.totalorder %v162, 0
    %vm359 = vcmp.lt.s32.totalorder %v169, 0
    %vm360 = vcmp.lt.s32.totalorder %v176, 0
    %vm361 = vcmp.lt.s32.totalorder %v183, 0
    %vm362 = vcmp.lt.s32.totalorder %v190, 0
    %vm363 = vcmp.lt.s32.totalorder %v197, 0
    %vm364 = vcmp.lt.s32.totalorder %v204, 0
    %vm365 = vcmp.lt.s32.totalorder %v211, 0
    %vm366 = vcmp.lt.s32.totalorder %v218, 0
    %vm367 = vcmp.lt.s32.totalorder %v225, 0
    %vm368 = vcmp.lt.s32.totalorder %v232, 0
    %vm369 = vcmp.lt.s32.totalorder %v239, 0
    %vm370 = vcmp.lt.s32.totalorder %v246, 0
    %vm371 = vcmp.lt.s32.totalorder %v253, 0
    %vm372 = vcmp.lt.s32.totalorder %v260, 0
    %vm373 = vcmp.lt.s32.totalorder %v267, 0
    %vm374 = vcmp.lt.s32.totalorder %v274, 0
    %vm375 = vcmp.lt.s32.totalorder %v281, 0
    %vm376 = vcmp.lt.s32.totalorder %v288, 0
    %vm377 = vcmp.lt.s32.totalorder %v295, 0
    %vm378 = vcmp.lt.s32.totalorder %v302, 0
    %vm379 = vcmp.lt.s32.totalorder %v309, 0
    %vm380 = vcmp.lt.s32.totalorder %v316, 0
    %vm381 = vmand %vm349, %vm317
    %vm382 = vmand %vm350, %vm318
    %vm383 = vmand %vm351, %vm319
    %vm384 = vmand %vm352, %vm320
    %vm385 = vmand %vm353, %vm321
    %vm386 = vmand %vm354, %vm322
    %vm387 = vmand %vm355, %vm323
    %vm388 = vmand %vm356, %vm324
    %vm389 = vmand %vm357, %vm325
    %vm390 = vmand %vm358, %vm326
    %vm391 = vmand %vm359, %vm327
    %vm392 = vmand %vm360, %vm328
    %vm393 = vmand %vm361, %vm329
    %vm394 = vmand %vm362, %vm330
    %vm395 = vmand %vm363, %vm331
    %vm396 = vmand %vm364, %vm332
    %vm397 = vmand %vm365, %vm333
    %vm398 = vmand %vm366, %vm334
    %vm399 = vmand %vm367, %vm335
    %vm400 = vmand %vm368, %vm336
    %vm401 = vmand %vm369, %vm337
    %vm402 = vmand %vm370, %vm338
    %vm403 = vmand %vm371, %vm339
    %vm404 = vmand %vm372, %vm340
    %vm405 = vmand %vm373, %vm341
    %vm406 = vmand %vm374, %vm342
    %vm407 = vmand %vm375, %vm343
    %vm408 = vmand %vm376, %vm344
    %vm409 = vmand %vm377, %vm345
    %vm410 = vmand %vm378, %vm346
    %vm411 = vmand %vm379, %vm347
    %vm412 = vmand %vm380, %vm348
    %v413 = vadd.s32 %v99, 16
    %v414 = vadd.s32 %v106, 16
    %v415 = vadd.s32 %v113, 16
    %v416 = vadd.s32 %v120, 16
    %v417 = vadd.s32 %v127, 16
    %v418 = vadd.s32 %v134, 16
    %v419 = vadd.s32 %v141, 16
    %v420 = vadd.s32 %v148, 16
    %v421 = vadd.s32 %v155, 16
    %v422 = vadd.s32 %v162, 16
    %v423 = vadd.s32 %v169, 16
    %v424 = vadd.s32 %v176, 16
    %v425 = vadd.s32 %v183, 16
    %v426 = vadd.s32 %v190, 16
    %v427 = vadd.s32 %v197, 16
    %v428 = vadd.s32 %v204, 16
    %v429 = vadd.s32 %v211, 16
    %v430 = vadd.s32 %v218, 16
    %v431 = vadd.s32 %v225, 16
    %v432 = vadd.s32 %v232, 16
    %v433 = vadd.s32 %v239, 16
    %v434 = vadd.s32 %v246, 16
    %v435 = vadd.s32 %v253, 16
    %v436 = vadd.s32 %v260, 16
    %v437 = vadd.s32 %v267, 16
    %v438 = vadd.s32 %v274, 16
    %v439 = vadd.s32 %v281, 16
    %v440 = vadd.s32 %v288, 16
    %v441 = vadd.s32 %v295, 16
    %v442 = vadd.s32 %v302, 16
    %v443 = vadd.s32 %v309, 16
    %v444 = vadd.s32 %v316, 16
    %v445 = vsel %vm381, %v413, %v99
    %v446 = vsel %vm382, %v414, %v106
    %v447 = vsel %vm383, %v415, %v113
    %v448 = vsel %vm384, %v416, %v120
    %v449 = vsel %vm385, %v417, %v127
    %v450 = vsel %vm386, %v418, %v134
    %v451 = vsel %vm387, %v419, %v141
    %v452 = vsel %vm388, %v420, %v148
    %v453 = vsel %vm389, %v421, %v155
    %v454 = vsel %vm390, %v422, %v162
    %v455 = vsel %vm391, %v423, %v169
    %v456 = vsel %vm392, %v424, %v176
    %v457 = vsel %vm393, %v425, %v183
    %v458 = vsel %vm394, %v426, %v190
    %v459 = vsel %vm395, %v427, %v197
    %v460 = vsel %vm396, %v428, %v204
    %v461 = vsel %vm397, %v429, %v211
    %v462 = vsel %vm398, %v430, %v218
    %v463 = vsel %vm399, %v431, %v225
    %v464 = vsel %vm400, %v432, %v232
    %v465 = vsel %vm401, %v433, %v239
    %v466 = vsel %vm402, %v434, %v246
    %v467 = vsel %vm403, %v435, %v253
    %v468 = vsel %vm404, %v436, %v260
    %v469 = vsel %vm405, %v437, %v267
    %v470 = vsel %vm406, %v438, %v274
    %v471 = vsel %vm407, %v439, %v281
    %v472 = vsel %vm408, %v440, %v288
    %v473 = vsel %vm409, %v441, %v295
    %v474 = vsel %vm410, %v442, %v302
    %v475 = vsel %vm411, %v443, %v309
    %v476 = vsel %vm412, %v444, %v316
    %vm477 = vcmp.ne.s32.totalorder %v445, 15
    %vm478 = vcmp.ne.s32.totalorder %v446, 15
    %vm479 = vcmp.ne.s32.totalorder %v447, 15
    %vm480 = vcmp.ne.s32.totalorder %v448, 15
    %vm481 = vcmp.ne.s32.totalorder %v449, 15
    %vm482 = vcmp.ne.s32.totalorder %v450, 15
    %vm483 = vcmp.ne.s32.totalorder %v451, 15
    %vm484 = vcmp.ne.s32.totalorder %v452, 15
    %vm485 = vcmp.ne.s32.totalorder %v453, 15
    %vm486 = vcmp.ne.s32.totalorder %v454, 15
    %vm487 = vcmp.ne.s32.totalorder %v455, 15
    %vm488 = vcmp.ne.s32.totalorder %v456, 15
    %vm489 = vcmp.ne.s32.totalorder %v457, 15
    %vm490 = vcmp.ne.s32.totalorder %v458, 15
    %vm491 = vcmp.ne.s32.totalorder %v459, 15
    %vm492 = vcmp.ne.s32.totalorder %v460, 15
    %vm493 = vcmp.ne.s32.totalorder %v461, 15
    %vm494 = vcmp.ne.s32.totalorder %v462, 15
    %vm495 = vcmp.ne.s32.totalorder %v463, 15
    %vm496 = vcmp.ne.s32.totalorder %v464, 15
    %vm497 = vcmp.ne.s32.totalorder %v465, 15
    %vm498 = vcmp.ne.s32.totalorder %v466, 15
    %vm499 = vcmp.ne.s32.totalorder %v467, 15
    %vm500 = vcmp.ne.s32.totalorder %v468, 15
    %vm501 = vcmp.ne.s32.totalorder %v469, 15
    %vm502 = vcmp.ne.s32.totalorder %v470, 15
    %vm503 = vcmp.ne.s32.totalorder %v471, 15
    %vm504 = vcmp.ne.s32.totalorder %v472, 15
    %vm505 = vcmp.ne.s32.totalorder %v473, 15
    %vm506 = vcmp.ne.s32.totalorder %v474, 15
    %vm507 = vcmp.ne.s32.totalorder %v475, 15
    %vm508 = vcmp.ne.s32.totalorder %v476, 15
    %v509 = vsel %vm477, 1, 0
    %v510 = vsel %vm478, 1, 0
    %v511 = vsel %vm479, 1, 0
    %v512 = vsel %vm480, 1, 0
    %v513 = vsel %vm481, 1, 0
    %v514 = vsel %vm482, 1, 0
    %v515 = vsel %vm483, 1, 0
    %v516 = vsel %vm484, 1, 0
    %v517 = vsel %vm485, 1, 0
    %v518 = vsel %vm486, 1, 0
    %v519 = vsel %vm487, 1, 0
    %v520 = vsel %vm488, 1, 0
    %v521 = vsel %vm489, 1, 0
    %v522 = vsel %vm490, 1, 0
    %v523 = vsel %vm491, 1, 0
    %v524 = vsel %vm492, 1, 0
    %v525 = vsel %vm493, 1, 0
    %v526 = vsel %vm494, 1, 0
    %v527 = vsel %vm495, 1, 0
    %v528 = vsel %vm496, 1, 0
    %v529 = vsel %vm497, 1, 0
    %v530 = vsel %vm498, 1, 0
    %v531 = vsel %vm499, 1, 0
    %v532 = vsel %vm500, 1, 0
    %v533 = vsel %vm501, 1, 0
    %v534 = vsel %vm502, 1, 0
    %v535 = vsel %vm503, 1, 0
    %v536 = vsel %vm504, 1, 0
    %v537 = vsel %vm505, 1, 0
    %v538 = vsel %vm506, 1, 0
    %v539 = vsel %vm507, 1, 0
    %v540 = vsel %vm508, 1, 0
    %v541 = vcvt.s32.f32 %v509
    %v542 = vcvt.s32.f32 %v510
    %v543 = vcvt.s32.f32 %v511
    %v544 = vcvt.s32.f32 %v512
    %v545 = vcvt.s32.f32 %v513
    %v546 = vcvt.s32.f32 %v514
    %v547 = vcvt.s32.f32 %v515
    %v548 = vcvt.s32.f32 %v516
    %v549 = vcvt.s32.f32 %v517
    %v550 = vcvt.s32.f32 %v518
    %v551 = vcvt.s32.f32 %v519
    %v552 = vcvt.s32.f32 %v520
    %v553 = vcvt.s32.f32 %v521
    %v554 = vcvt.s32.f32 %v522
    %v555 = vcvt.s32.f32 %v523
    %v556 = vcvt.s32.f32 %v524
    %v557 = vcvt.s32.f32 %v525
    %v558 = vcvt.s32.f32 %v526
    %v559 = vcvt.s32.f32 %v527
    %v560 = vcvt.s32.f32 %v528
    %v561 = vcvt.s32.f32 %v529
    %v562 = vcvt.s32.f32 %v530
    %v563 = vcvt.s32.f32 %v531
    %v564 = vcvt.s32.f32 %v532
    %v565 = vcvt.s32.f32 %v533
    %v566 = vcvt.s32.f32 %v534
    %v567 = vcvt.s32.f32 %v535
    %v568 = vcvt.s32.f32 %v536
    %v569 = vcvt.s32.f32 %v537
    %v570 = vcvt.s32.f32 %v538
    %v571 = vcvt.s32.f32 %v539
    %v572 = vcvt.s32.f32 %v540
    %vm573 = vcmp.ne.s32.totalorder %v445, 0
    %vm574 = vcmp.ne.s32.totalorder %v446, 0
    %vm575 = vcmp.ne.s32.totalorder %v447, 0
    %vm576 = vcmp.ne.s32.totalorder %v448, 0
    %vm577 = vcmp.ne.s32.totalorder %v449, 0
    %vm578 = vcmp.ne.s32.totalorder %v450, 0
    %vm579 = vcmp.ne.s32.totalorder %v451, 0
    %vm580 = vcmp.ne.s32.totalorder %v452, 0
    %vm581 = vcmp.ne.s32.totalorder %v453, 0
    %vm582 = vcmp.ne.s32.totalorder %v454, 0
    %vm583 = vcmp.ne.s32.totalorder %v455, 0
    %vm584 = vcmp.ne.s32.totalorder %v456, 0
    %vm585 = vcmp.ne.s32.totalorder %v457, 0
    %vm586 = vcmp.ne.s32.totalorder %v458, 0
    %vm587 = vcmp.ne.s32.totalorder %v459, 0
    %vm588 = vcmp.ne.s32.totalorder %v460, 0
    %vm589 = vcmp.ne.s32.totalorder %v461, 0
    %vm590 = vcmp.ne.s32.totalorder %v462, 0
    %vm591 = vcmp.ne.s32.totalorder %v463, 0
    %vm592 = vcmp.ne.s32.totalorder %v464, 0
    %vm593 = vcmp.ne.s32.totalorder %v465, 0
    %vm594 = vcmp.ne.s32.totalorder %v466, 0
    %vm595 = vcmp.ne.s32.totalorder %v467, 0
    %vm596 = vcmp.ne.s32.totalorder %v468, 0
    %vm597 = vcmp.ne.s32.totalorder %v469, 0
    %vm598 = vcmp.ne.s32.totalorder %v470, 0
    %vm599 = vcmp.ne.s32.totalorder %v471, 0
    %vm600 = vcmp.ne.s32.totalorder %v472, 0
    %vm601 = vcmp.ne.s32.totalorder %v473, 0
    %vm602 = vcmp.ne.s32.totalorder %v474, 0
    %vm603 = vcmp.ne.s32.totalorder %v475, 0
    %vm604 = vcmp.ne.s32.totalorder %v476, 0
    %v605 = vsel %vm573, 1, 0
    %v606 = vsel %vm574, 1, 0
    %v607 = vsel %vm575, 1, 0
    %v608 = vsel %vm576, 1, 0
    %v609 = vsel %vm577, 1, 0
    %v610 = vsel %vm578, 1, 0
    %v611 = vsel %vm579, 1, 0
    %v612 = vsel %vm580, 1, 0
    %v613 = vsel %vm581, 1, 0
    %v614 = vsel %vm582, 1, 0
    %v615 = vsel %vm583, 1, 0
    %v616 = vsel %vm584, 1, 0
    %v617 = vsel %vm585, 1, 0
    %v618 = vsel %vm586, 1, 0
    %v619 = vsel %vm587, 1, 0
    %v620 = vsel %vm588, 1, 0
    %v621 = vsel %vm589, 1, 0
    %v622 = vsel %vm590, 1, 0
    %v623 = vsel %vm591, 1, 0
    %v624 = vsel %vm592, 1, 0
    %v625 = vsel %vm593, 1, 0
    %v626 = vsel %vm594, 1, 0
    %v627 = vsel %vm595, 1, 0
    %v628 = vsel %vm596, 1, 0
    %v629 = vsel %vm597, 1, 0
    %v630 = vsel %vm598, 1, 0
    %v631 = vsel %vm599, 1, 0
    %v632 = vsel %vm600, 1, 0
    %v633 = vsel %vm601, 1, 0
    %v634 = vsel %vm602, 1, 0
    %v635 = vsel %vm603, 1, 0
    %v636 = vsel %vm604, 1, 0
    %v637 = vcvt.s32.f32 %v605
    %v638 = vcvt.s32.f32 %v606
    %v639 = vcvt.s32.f32 %v607
    %v640 = vcvt.s32.f32 %v608
    %v641 = vcvt.s32.f32 %v609
    %v642 = vcvt.s32.f32 %v610
    %v643 = vcvt.s32.f32 %v611
    %v644 = vcvt.s32.f32 %v612
    %v645 = vcvt.s32.f32 %v613
    %v646 = vcvt.s32.f32 %v614
    %v647 = vcvt.s32.f32 %v615
    %v648 = vcvt.s32.f32 %v616
    %v649 = vcvt.s32.f32 %v617
    %v650 = vcvt.s32.f32 %v618
    %v651 = vcvt.s32.f32 %v619
    %v652 = vcvt.s32.f32 %v620
    %v653 = vcvt.s32.f32 %v621
    %v654 = vcvt.s32.f32 %v622
    %v655 = vcvt.s32.f32 %v623
    %v656 = vcvt.s32.f32 %v624
    %v657 = vcvt.s32.f32 %v625
    %v658 = vcvt.s32.f32 %v626
    %v659 = vcvt.s32.f32 %v627
    %v660 = vcvt.s32.f32 %v628
    %v661 = vcvt.s32.f32 %v629
    %v662 = vcvt.s32.f32 %v630
    %v663 = vcvt.s32.f32 %v631
    %v664 = vcvt.s32.f32 %v632
    %v665 = vcvt.s32.f32 %v633
    %v666 = vcvt.s32.f32 %v634
    %v667 = vcvt.s32.f32 %v635
    %v668 = vcvt.s32.f32 %v636
    %v669 = vld [vmem:[%s0] sm:$0xff]
    %v670 = vld [vmem:[%s0 + $0x8] sm:$0xff]
    %v671 = vld [vmem:[%s0 + $0x10] sm:$0xff]
    %v672 = vld [vmem:[%s0 + $0x18] sm:$0xff]
    %v673 = vld [vmem:[%s0 + $0x20] sm:$0xff]
    %v674 = vld [vmem:[%s0 + $0x28] sm:$0xff]
    %v675 = vld [vmem:[%s0 + $0x30] sm:$0xff]
    %v676 = vld [vmem:[%s0 + $0x38] sm:$0xff]
    %v677 = vld [vmem:[%s0 + $0x40] sm:$0xff]
    %v678 = vld [vmem:[%s0 + $0x48] sm:$0xff]
    %v679 = vld [vmem:[%s0 + $0x50] sm:$0xff]
    %v680 = vld [vmem:[%s0 + $0x58] sm:$0xff]
    %v681 = vld [vmem:[%s0 + $0x60] sm:$0xff]
    %v682 = vld [vmem:[%s0 + $0x68] sm:$0xff]
    %v683 = vld [vmem:[%s0 + $0x70] sm:$0xff]
    %v684 = vld [vmem:[%s0 + $0x78] sm:$0xff]
    %v685 = vld [vmem:[%s0 + $0x80] sm:$0xff]
    %v686 = vld [vmem:[%s0 + $0x88] sm:$0xff]
    %v687 = vld [vmem:[%s0 + $0x90] sm:$0xff]
    %v688 = vld [vmem:[%s0 + $0x98] sm:$0xff]
    %v689 = vld [vmem:[%s0 + $0xa0] sm:$0xff]
    %v690 = vld [vmem:[%s0 + $0xa8] sm:$0xff]
    %v691 = vld [vmem:[%s0 + $0xb0] sm:$0xff]
    %v692 = vld [vmem:[%s0 + $0xb8] sm:$0xff]
    %v693 = vld [vmem:[%s0 + $0xc0] sm:$0xff]
    %v694 = vld [vmem:[%s0 + $0xc8] sm:$0xff]
    %v695 = vld [vmem:[%s0 + $0xd0] sm:$0xff]
    %v696 = vld [vmem:[%s0 + $0xd8] sm:$0xff]
    %v697 = vld [vmem:[%s0 + $0xe0] sm:$0xff]
    %v698 = vld [vmem:[%s0 + $0xe8] sm:$0xff]
    %v699 = vld [vmem:[%s0 + $0xf0] sm:$0xff]
    %v700 = vld [vmem:[%s0 + $0xf8] sm:$0xff]
    %702 = vset.pattern.permute.xlu0 0
    %703 = vperm.xlu0 %702, %v669
    %v704 = vpop.permute.xlu0 %703
    %707 = vset.pattern.permute.xlu0 0
    %708 = vperm.xlu0 %707, %v670
    %v709 = vpop.permute.xlu0 %708
    %712 = vset.pattern.permute.xlu0 0
    %713 = vperm.xlu0 %712, %v671
    %v714 = vpop.permute.xlu0 %713
    %717 = vset.pattern.permute.xlu0 0
    %718 = vperm.xlu0 %717, %v672
    %v719 = vpop.permute.xlu0 %718
    %722 = vset.pattern.permute.xlu0 0
    %723 = vperm.xlu0 %722, %v673
    %v724 = vpop.permute.xlu0 %723
    %727 = vset.pattern.permute.xlu0 0
    %728 = vperm.xlu0 %727, %v674
    %v729 = vpop.permute.xlu0 %728
    %732 = vset.pattern.permute.xlu0 0
    %733 = vperm.xlu0 %732, %v675
    %v734 = vpop.permute.xlu0 %733
    %737 = vset.pattern.permute.xlu0 0
    %738 = vperm.xlu0 %737, %v676
    %v739 = vpop.permute.xlu0 %738
    %742 = vset.pattern.permute.xlu0 0
    %743 = vperm.xlu0 %742, %v677
    %v744 = vpop.permute.xlu0 %743
    %747 = vset.pattern.permute.xlu0 0
    %748 = vperm.xlu0 %747, %v678
    %v749 = vpop.permute.xlu0 %748
    %752 = vset.pattern.permute.xlu0 0
    %753 = vperm.xlu0 %752, %v679
    %v754 = vpop.permute.xlu0 %753
    %757 = vset.pattern.permute.xlu0 0
    %758 = vperm.xlu0 %757, %v680
    %v759 = vpop.permute.xlu0 %758
    %762 = vset.pattern.permute.xlu0 0
    %763 = vperm.xlu0 %762, %v681
    %v764 = vpop.permute.xlu0 %763
    %767 = vset.pattern.permute.xlu0 0
    %768 = vperm.xlu0 %767, %v682
    %v769 = vpop.permute.xlu0 %768
    %772 = vset.pattern.permute.xlu0 0
    %773 = vperm.xlu0 %772, %v683
    %v774 = vpop.permute.xlu0 %773
    %777 = vset.pattern.permute.xlu0 0
    %778 = vperm.xlu0 %777, %v684
    %v779 = vpop.permute.xlu0 %778
    %782 = vset.pattern.permute.xlu0 0
    %783 = vperm.xlu0 %782, %v685
    %v784 = vpop.permute.xlu0 %783
    %787 = vset.pattern.permute.xlu0 0
    %788 = vperm.xlu0 %787, %v686
    %v789 = vpop.permute.xlu0 %788
    %792 = vset.pattern.permute.xlu0 0
    %793 = vperm.xlu0 %792, %v687
    %v794 = vpop.permute.xlu0 %793
    %797 = vset.pattern.permute.xlu0 0
    %798 = vperm.xlu0 %797, %v688
    %v799 = vpop.permute.xlu0 %798
    %802 = vset.pattern.permute.xlu0 0
    %803 = vperm.xlu0 %802, %v689
    %v804 = vpop.permute.xlu0 %803
    %807 = vset.pattern.permute.xlu0 0
    %808 = vperm.xlu0 %807, %v690
    %v809 = vpop.permute.xlu0 %808
    %812 = vset.pattern.permute.xlu0 0
    %813 = vperm.xlu0 %812, %v691
    %v814 = vpop.permute.xlu0 %813
    %817 = vset.pattern.permute.xlu0 0
    %818 = vperm.xlu0 %817, %v692
    %v819 = vpop.permute.xlu0 %818
    %822 = vset.pattern.permute.xlu0 0
    %823 = vperm.xlu0 %822, %v693
    %v824 = vpop.permute.xlu0 %823
    %827 = vset.pattern.permute.xlu0 0
    %828 = vperm.xlu0 %827, %v694
    %v829 = vpop.permute.xlu0 %828
    %832 = vset.pattern.permute.xlu0 0
    %833 = vperm.xlu0 %832, %v695
    %v834 = vpop.permute.xlu0 %833
    %837 = vset.pattern.permute.xlu0 0
    %838 = vperm.xlu0 %837, %v696
    %v839 = vpop.permute.xlu0 %838
    %842 = vset.pattern.permute.xlu0 0
    %843 = vperm.xlu0 %842, %v697
    %v844 = vpop.permute.xlu0 %843
    %847 = vset.pattern.permute.xlu0 0
    %848 = vperm.xlu0 %847, %v698
    %v849 = vpop.permute.xlu0 %848
    %852 = vset.pattern.permute.xlu0 0
    %853 = vperm.xlu0 %852, %v699
    %v854 = vpop.permute.xlu0 %853
    %857 = vset.pattern.permute.xlu0 0
    %858 = vperm.xlu0 %857, %v700
    %v859 = vpop.permute.xlu0 %858
    %861 = vset.pattern.permute.xlu0 1
    %862 = vperm.xlu0 %861, %v669
    %v863 = vpop.permute.xlu0 %862
    %865 = vset.pattern.permute.xlu0 1
    %866 = vperm.xlu0 %865, %v670
    %v867 = vpop.permute.xlu0 %866
    %869 = vset.pattern.permute.xlu0 1
    %870 = vperm.xlu0 %869, %v671
    %v871 = vpop.permute.xlu0 %870
    %873 = vset.pattern.permute.xlu0 1
    %874 = vperm.xlu0 %873, %v672
    %v875 = vpop.permute.xlu0 %874
    %877 = vset.pattern.permute.xlu0 1
    %878 = vperm.xlu0 %877, %v673
    %v879 = vpop.permute.xlu0 %878
    %881 = vset.pattern.permute.xlu0 1
    %882 = vperm.xlu0 %881, %v674
    %v883 = vpop.permute.xlu0 %882
    %885 = vset.pattern.permute.xlu0 1
    %886 = vperm.xlu0 %885, %v675
    %v887 = vpop.permute.xlu0 %886
    %889 = vset.pattern.permute.xlu0 1
    %890 = vperm.xlu0 %889, %v676
    %v891 = vpop.permute.xlu0 %890
    %893 = vset.pattern.permute.xlu0 1
    %894 = vperm.xlu0 %893, %v677
    %v895 = vpop.permute.xlu0 %894
    %897 = vset.pattern.permute.xlu0 1
    %898 = vperm.xlu0 %897, %v678
    %v899 = vpop.permute.xlu0 %898
    %901 = vset.pattern.permute.xlu0 1
    %902 = vperm.xlu0 %901, %v679
    %v903 = vpop.permute.xlu0 %902
    %905 = vset.pattern.permute.xlu0 1
    %906 = vperm.xlu0 %905, %v680
    %v907 = vpop.permute.xlu0 %906
    %909 = vset.pattern.permute.xlu0 1
    %910 = vperm.xlu0 %909, %v681
    %v911 = vpop.permute.xlu0 %910
    %913 = vset.pattern.permute.xlu0 1
    %914 = vperm.xlu0 %913, %v682
    %v915 = vpop.permute.xlu0 %914
    %917 = vset.pattern.permute.xlu0 1
    %918 = vperm.xlu0 %917, %v683
    %v919 = vpop.permute.xlu0 %918
    %921 = vset.pattern.permute.xlu0 1
    %922 = vperm.xlu0 %921, %v684
    %v923 = vpop.permute.xlu0 %922
    %925 = vset.pattern.permute.xlu0 1
    %926 = vperm.xlu0 %925, %v685
    %v927 = vpop.permute.xlu0 %926
    %929 = vset.pattern.permute.xlu0 1
    %930 = vperm.xlu0 %929, %v686
    %v931 = vpop.permute.xlu0 %930
    %933 = vset.pattern.permute.xlu0 1
    %934 = vperm.xlu0 %933, %v687
    %v935 = vpop.permute.xlu0 %934
    %937 = vset.pattern.permute.xlu0 1
    %938 = vperm.xlu0 %937, %v688
    %v939 = vpop.permute.xlu0 %938
    %941 = vset.pattern.permute.xlu0 1
    %942 = vperm.xlu0 %941, %v689
    %v943 = vpop.permute.xlu0 %942
    %945 = vset.pattern.permute.xlu0 1
    %946 = vperm.xlu0 %945, %v690
    %v947 = vpop.permute.xlu0 %946
    %949 = vset.pattern.permute.xlu0 1
    %950 = vperm.xlu0 %949, %v691
    %v951 = vpop.permute.xlu0 %950
    %953 = vset.pattern.permute.xlu0 1
    %954 = vperm.xlu0 %953, %v692
    %v955 = vpop.permute.xlu0 %954
    %957 = vset.pattern.permute.xlu0 1
    %958 = vperm.xlu0 %957, %v693
    %v959 = vpop.permute.xlu0 %958
    %961 = vset.pattern.permute.xlu0 1
    %962 = vperm.xlu0 %961, %v694
    %v963 = vpop.permute.xlu0 %962
    %965 = vset.pattern.permute.xlu0 1
    %966 = vperm.xlu0 %965, %v695
    %v967 = vpop.permute.xlu0 %966
    %969 = vset.pattern.permute.xlu0 1
    %970 = vperm.xlu0 %969, %v696
    %v971 = vpop.permute.xlu0 %970
    %973 = vset.pattern.permute.xlu0 1
    %974 = vperm.xlu0 %973, %v697
    %v975 = vpop.permute.xlu0 %974
    %977 = vset.pattern.permute.xlu0 1
    %978 = vperm.xlu0 %977, %v698
    %v979 = vpop.permute.xlu0 %978
    %981 = vset.pattern.permute.xlu0 1
    %982 = vperm.xlu0 %981, %v699
    %v983 = vpop.permute.xlu0 %982
    %985 = vset.pattern.permute.xlu0 1
    %986 = vperm.xlu0 %985, %v700
    %v987 = vpop.permute.xlu0 %986
    %vm989 = vcmask 523264
    %v990 = vsel %vm989, %v704, %v863
    %v991 = vsel %vm989, %v709, %v867
    %v992 = vsel %vm989, %v714, %v871
    %v993 = vsel %vm989, %v719, %v875
    %v994 = vsel %vm989, %v724, %v879
    %v995 = vsel %vm989, %v729, %v883
    %v996 = vsel %vm989, %v734, %v887
    %v997 = vsel %vm989, %v739, %v891
    %v998 = vsel %vm989, %v744, %v895
    %v999 = vsel %vm989, %v749, %v899
    %v1000 = vsel %vm989, %v754, %v903
    %v1001 = vsel %vm989, %v759, %v907
    %v1002 = vsel %vm989, %v764, %v911
    %v1003 = vsel %vm989, %v769, %v915
    %v1004 = vsel %vm989, %v774, %v919
    %v1005 = vsel %vm989, %v779, %v923
    %v1006 = vsel %vm989, %v784, %v927
    %v1007 = vsel %vm989, %v789, %v931
    %v1008 = vsel %vm989, %v794, %v935
    %v1009 = vsel %vm989, %v799, %v939
    %v1010 = vsel %vm989, %v804, %v943
    %v1011 = vsel %vm989, %v809, %v947
    %v1012 = vsel %vm989, %v814, %v951
    %v1013 = vsel %vm989, %v819, %v955
    %v1014 = vsel %vm989, %v824, %v959
    %v1015 = vsel %vm989, %v829, %v963
    %v1016 = vsel %vm989, %v834, %v967
    %v1017 = vsel %vm989, %v839, %v971
    %v1018 = vsel %vm989, %v844, %v975
    %v1019 = vsel %vm989, %v849, %v979
    %v1020 = vsel %vm989, %v854, %v983
    %v1021 = vsel %vm989, %v859, %v987
    %v1022 = vmul.f32 %v990, %v541
    %v1023 = vmul.f32 %v991, %v542
    %v1024 = vmul.f32 %v992, %v543
    %v1025 = vmul.f32 %v993, %v544
    %v1026 = vmul.f32 %v994, %v545
    %v1027 = vmul.f32 %v995, %v546
    %v1028 = vmul.f32 %v996, %v547
    %v1029 = vmul.f32 %v997, %v548
    %v1030 = vmul.f32 %v998, %v549
    %v1031 = vmul.f32 %v999, %v550
    %v1032 = vmul.f32 %v1000, %v551
    %v1033 = vmul.f32 %v1001, %v552
    %v1034 = vmul.f32 %v1002, %v553
    %v1035 = vmul.f32 %v1003, %v554
    %v1036 = vmul.f32 %v1004, %v555
    %v1037 = vmul.f32 %v1005, %v556
    %v1038 = vmul.f32 %v1006, %v557
    %v1039 = vmul.f32 %v1007, %v558
    %v1040 = vmul.f32 %v1008, %v559
    %v1041 = vmul.f32 %v1009, %v560
    %v1042 = vmul.f32 %v1010, %v561
    %v1043 = vmul.f32 %v1011, %v562
    %v1044 = vmul.f32 %v1012, %v563
    %v1045 = vmul.f32 %v1013, %v564
    %v1046 = vmul.f32 %v1014, %v565
    %v1047 = vmul.f32 %v1015, %v566
    %v1048 = vmul.f32 %v1016, %v567
    %v1049 = vmul.f32 %v1017, %v568
    %v1050 = vmul.f32 %v1018, %v569
    %v1051 = vmul.f32 %v1019, %v570
    %v1052 = vmul.f32 %v1020, %v571
    %v1053 = vmul.f32 %v1021, %v572
    %1054 = vst [vmem:[#allocation2 + $0x11] sm:$0xff] %v1022
    %1055 = vst [vmem:[#allocation2 + $0x19] sm:$0xff] %v1023
    %1056 = vst [vmem:[#allocation2 + $0x21] sm:$0xff] %v1024
    %1057 = vst [vmem:[#allocation2 + $0x29] sm:$0xff] %v1025
    %1058 = vst [vmem:[#allocation2 + $0x31] sm:$0xff] %v1026
    %1059 = vst [vmem:[#allocation2 + $0x39] sm:$0xff] %v1027
    %1060 = vst [vmem:[#allocation2 + $0x41] sm:$0xff] %v1028
    %1061 = vst [vmem:[#allocation2 + $0x49] sm:$0xff] %v1029
    %1062 = vst [vmem:[#allocation2 + $0x51] sm:$0xff] %v1030
    %1063 = vst [vmem:[#allocation2 + $0x59] sm:$0xff] %v1031
    %1064 = vst [vmem:[#allocation2 + $0x61] sm:$0xff] %v1032
    %1065 = vst [vmem:[#allocation2 + $0x69] sm:$0xff] %v1033
    %1066 = vst [vmem:[#allocation2 + $0x71] sm:$0xff] %v1034
    %1067 = vst [vmem:[#allocation2 + $0x79] sm:$0xff] %v1035
    %1068 = vst [vmem:[#allocation2 + $0x81] sm:$0xff] %v1036
    %1069 = vst [vmem:[#allocation2 + $0x89] sm:$0xff] %v1037
    %1070 = vst [vmem:[#allocation2 + $0x91] sm:$0xff] %v1038
    %1071 = vst [vmem:[#allocation2 + $0x99] sm:$0xff] %v1039
    %1072 = vst [vmem:[#allocation2 + $0xa1] sm:$0xff] %v1040
    %1073 = vst [vmem:[#allocation2 + $0xa9] sm:$0xff] %v1041
    %1074 = vst [vmem:[#allocation2 + $0xb1] sm:$0xff] %v1042
    %1075 = vst [vmem:[#allocation2 + $0xb9] sm:$0xff] %v1043
    %1076 = vst [vmem:[#allocation2 + $0xc1] sm:$0xff] %v1044
    %1077 = vst [vmem:[#allocation2 + $0xc9] sm:$0xff] %v1045
    %1078 = vst [vmem:[#allocation2 + $0xd1] sm:$0xff] %v1046
    %1079 = vst [vmem:[#allocation2 + $0xd9] sm:$0xff] %v1047
    %1080 = vst [vmem:[#allocation2 + $0xe1] sm:$0xff] %v1048
    %1081 = vst [vmem:[#allocation2 + $0xe9] sm:$0xff] %v1049
    %1082 = vst [vmem:[#allocation2 + $0xf1] sm:$0xff] %v1050
    %1083 = vst [vmem:[#allocation2 + $0xf9] sm:$0xff] %v1051
    %1084 = vst [vmem:[#allocation2 + $0x101] sm:$0xff] %v1052
    %1085 = vst [vmem:[#allocation2 + $0x109] sm:$0xff] %v1053
    %1086 = vst [vmem:[#allocation3 + $0x10] sm:$0xff] %v990
    %1087 = vst [vmem:[#allocation3 + $0x18] sm:$0xff] %v991
    %1088 = vst [vmem:[#allocation3 + $0x20] sm:$0xff] %v992
    %1089 = vst [vmem:[#allocation3 + $0x28] sm:$0xff] %v993
    %1090 = vst [vmem:[#allocation3 + $0x30] sm:$0xff] %v994
    %1091 = vst [vmem:[#allocation3 + $0x38] sm:$0xff] %v995
    %1092 = vst [vmem:[#allocation3 + $0x40] sm:$0xff] %v996
    %1093 = vst [vmem:[#allocation3 + $0x48] sm:$0xff] %v997
    %1094 = vst [vmem:[#allocation3 + $0x50] sm:$0xff] %v998
    %1095 = vst [vmem:[#allocation3 + $0x58] sm:$0xff] %v999
    %1096 = vst [vmem:[#allocation3 + $0x60] sm:$0xff] %v1000
    %1097 = vst [vmem:[#allocation3 + $0x68] sm:$0xff] %v1001
    %1098 = vst [vmem:[#allocation3 + $0x70] sm:$0xff] %v1002
    %1099 = vst [vmem:[#allocation3 + $0x78] sm:$0xff] %v1003
    %1100 = vst [vmem:[#allocation3 + $0x80] sm:$0xff] %v1004
    %1101 = vst [vmem:[#allocation3 + $0x88] sm:$0xff] %v1005
    %1102 = vst [vmem:[#allocation3 + $0x90] sm:$0xff] %v1006
    %1103 = vst [vmem:[#allocation3 + $0x98] sm:$0xff] %v1007
    %1104 = vst [vmem:[#allocation3 + $0xa0] sm:$0xff] %v1008
    %1105 = vst [vmem:[#allocation3 + $0xa8] sm:$0xff] %v1009
    %1106 = vst [vmem:[#allocation3 + $0xb0] sm:$0xff] %v1010
    %1107 = vst [vmem:[#allocation3 + $0xb8] sm:$0xff] %v1011
    %1108 = vst [vmem:[#allocation3 + $0xc0] sm:$0xff] %v1012
    %1109 = vst [vmem:[#allocation3 + $0xc8] sm:$0xff] %v1013
    %1110 = vst [vmem:[#allocation3 + $0xd0] sm:$0xff] %v1014
    %1111 = vst [vmem:[#allocation3 + $0xd8] sm:$0xff] %v1015
    %1112 = vst [vmem:[#allocation3 + $0xe0] sm:$0xff] %v1016
    %1113 = vst [vmem:[#allocation3 + $0xe8] sm:$0xff] %v1017
    %1114 = vst [vmem:[#allocation3 + $0xf0] sm:$0xff] %v1018
    %1115 = vst [vmem:[#allocation3 + $0xf8] sm:$0xff] %v1019
    %1116 = vst [vmem:[#allocation3 + $0x100] sm:$0xff] %v1020
    %1117 = vst [vmem:[#allocation3 + $0x108] sm:$0xff] %v1021
    %v1118 = vmul.f32 %v990, %v637
    %v1119 = vmul.f32 %v991, %v638
    %v1120 = vmul.f32 %v992, %v639
    %v1121 = vmul.f32 %v993, %v640
    %v1122 = vmul.f32 %v994, %v641
    %v1123 = vmul.f32 %v995, %v642
    %v1124 = vmul.f32 %v996, %v643
    %v1125 = vmul.f32 %v997, %v644
    %v1126 = vmul.f32 %v998, %v645
    %v1127 = vmul.f32 %v999, %v646
    %v1128 = vmul.f32 %v1000, %v647
    %v1129 = vmul.f32 %v1001, %v648
    %v1130 = vmul.f32 %v1002, %v649
    %v1131 = vmul.f32 %v1003, %v650
    %v1132 = vmul.f32 %v1004, %v651
    %v1133 = vmul.f32 %v1005, %v652
    %v1134 = vmul.f32 %v1006, %v653
    %v1135 = vmul.f32 %v1007, %v654
    %v1136 = vmul.f32 %v1008, %v655
    %v1137 = vmul.f32 %v1009, %v656
    %v1138 = vmul.f32 %v1010, %v657
    %v1139 = vmul.f32 %v1011, %v658
    %v1140 = vmul.f32 %v1012, %v659
    %v1141 = vmul.f32 %v1013, %v660
    %v1142 = vmul.f32 %v1014, %v661
    %v1143 = vmul.f32 %v1015, %v662
    %v1144 = vmul.f32 %v1016, %v663
    %v1145 = vmul.f32 %v1017, %v664
    %v1146 = vmul.f32 %v1018, %v665
    %v1147 = vmul.f32 %v1019, %v666
    %v1148 = vmul.f32 %v1020, %v667
    %v1149 = vmul.f32 %v1021, %v668
    %1150 = vst [vmem:[#allocation4 + $0xf] sm:$0xff] %v1118
    %1151 = vst [vmem:[#allocation4 + $0x17] sm:$0xff] %v1119
    %1152 = vst [vmem:[#allocation4 + $0x1f] sm:$0xff] %v1120
    %1153 = vst [vmem:[#allocation4 + $0x27] sm:$0xff] %v1121
    %1154 = vst [vmem:[#allocation4 + $0x2f] sm:$0xff] %v1122
    %1155 = vst [vmem:[#allocation4 + $0x37] sm:$0xff] %v1123
    %1156 = vst [vmem:[#allocation4 + $0x3f] sm:$0xff] %v1124
    %1157 = vst [vmem:[#allocation4 + $0x47] sm:$0xff] %v1125
    %1158 = vst [vmem:[#allocation4 + $0x4f] sm:$0xff] %v1126
    %1159 = vst [vmem:[#allocation4 + $0x57] sm:$0xff] %v1127
    %1160 = vst [vmem:[#allocation4 + $0x5f] sm:$0xff] %v1128
    %1161 = vst [vmem:[#allocation4 + $0x67] sm:$0xff] %v1129
    %1162 = vst [vmem:[#allocation4 + $0x6f] sm:$0xff] %v1130
    %1163 = vst [vmem:[#allocation4 + $0x77] sm:$0xff] %v1131
    %1164 = vst [vmem:[#allocation4 + $0x7f] sm:$0xff] %v1132
    %1165 = vst [vmem:[#allocation4 + $0x87] sm:$0xff] %v1133
    %1166 = vst [vmem:[#allocation4 + $0x8f] sm:$0xff] %v1134
    %1167 = vst [vmem:[#allocation4 + $0x97] sm:$0xff] %v1135
    %1168 = vst [vmem:[#allocation4 + $0x9f] sm:$0xff] %v1136
    %1169 = vst [vmem:[#allocation4 + $0xa7] sm:$0xff] %v1137
    %1170 = vst [vmem:[#allocation4 + $0xaf] sm:$0xff] %v1138
    %1171 = vst [vmem:[#allocation4 + $0xb7] sm:$0xff] %v1139
    %1172 = vst [vmem:[#allocation4 + $0xbf] sm:$0xff] %v1140
    %1173 = vst [vmem:[#allocation4 + $0xc7] sm:$0xff] %v1141
    %1174 = vst [vmem:[#allocation4 + $0xcf] sm:$0xff] %v1142
    %1175 = vst [vmem:[#allocation4 + $0xd7] sm:$0xff] %v1143
    %1176 = vst [vmem:[#allocation4 + $0xdf] sm:$0xff] %v1144
    %1177 = vst [vmem:[#allocation4 + $0xe7] sm:$0xff] %v1145
    %1178 = vst [vmem:[#allocation4 + $0xef] sm:$0xff] %v1146
    %1179 = vst [vmem:[#allocation4 + $0xf7] sm:$0xff] %v1147
    %1180 = vst [vmem:[#allocation4 + $0xff] sm:$0xff] %v1148
    %1181 = vst [vmem:[#allocation4 + $0x107] sm:$0xff] %v1149
    %v1182 = vld [vmem:[#allocation2] sm:$0xff]
    %v1183 = vld [vmem:[#allocation2 + $0x8] sm:$0xff]
    %v1184 = vld [vmem:[#allocation2 + $0x10] sm:$0xff]
    %v1185 = vld [vmem:[#allocation2 + $0x18] sm:$0xff]
    %v1186 = vld [vmem:[#allocation2 + $0x20] sm:$0xff]
    %v1187 = vld [vmem:[#allocation2 + $0x28] sm:$0xff]
    %v1188 = vld [vmem:[#allocation2 + $0x30] sm:$0xff]
    %v1189 = vld [vmem:[#allocation2 + $0x38] sm:$0xff]
    %v1190 = vld [vmem:[#allocation2 + $0x40] sm:$0xff]
    %v1191 = vld [vmem:[#allocation2 + $0x48] sm:$0xff]
    %v1192 = vld [vmem:[#allocation2 + $0x50] sm:$0xff]
    %v1193 = vld [vmem:[#allocation2 + $0x58] sm:$0xff]
    %v1194 = vld [vmem:[#allocation2 + $0x60] sm:$0xff]
    %v1195 = vld [vmem:[#allocation2 + $0x68] sm:$0xff]
    %v1196 = vld [vmem:[#allocation2 + $0x70] sm:$0xff]
    %v1197 = vld [vmem:[#allocation2 + $0x78] sm:$0xff]
    %v1198 = vld [vmem:[#allocation2 + $0x80] sm:$0xff]
    %v1199 = vld [vmem:[#allocation2 + $0x88] sm:$0xff]
    %v1200 = vld [vmem:[#allocation2 + $0x90] sm:$0xff]
    %v1201 = vld [vmem:[#allocation2 + $0x98] sm:$0xff]
    %v1202 = vld [vmem:[#allocation2 + $0xa0] sm:$0xff]
    %v1203 = vld [vmem:[#allocation2 + $0xa8] sm:$0xff]
    %v1204 = vld [vmem:[#allocation2 + $0xb0] sm:$0xff]
    %v1205 = vld [vmem:[#allocation2 + $0xb8] sm:$0xff]
    %v1206 = vld [vmem:[#allocation2 + $0xc0] sm:$0xff]
    %v1207 = vld [vmem:[#allocation2 + $0xc8] sm:$0xff]
    %v1208 = vld [vmem:[#allocation2 + $0xd0] sm:$0xff]
    %v1209 = vld [vmem:[#allocation2 + $0xd8] sm:$0xff]
    %v1210 = vld [vmem:[#allocation2 + $0xe0] sm:$0xff]
    %v1211 = vld [vmem:[#allocation2 + $0xe8] sm:$0xff]
    %v1212 = vld [vmem:[#allocation2 + $0xf0] sm:$0xff]
    %v1213 = vld [vmem:[#allocation2 + $0xf8] sm:$0xff]
    %v1214 = vld [vmem:[#allocation3] sm:$0xff]
    %v1215 = vld [vmem:[#allocation3 + $0x8] sm:$0xff]
    %v1216 = vld [vmem:[#allocation3 + $0x10] sm:$0xff]
    %v1217 = vld [vmem:[#allocation3 + $0x18] sm:$0xff]
    %v1218 = vld [vmem:[#allocation3 + $0x20] sm:$0xff]
    %v1219 = vld [vmem:[#allocation3 + $0x28] sm:$0xff]
    %v1220 = vld [vmem:[#allocation3 + $0x30] sm:$0xff]
    %v1221 = vld [vmem:[#allocation3 + $0x38] sm:$0xff]
    %v1222 = vld [vmem:[#allocation3 + $0x40] sm:$0xff]
    %v1223 = vld [vmem:[#allocation3 + $0x48] sm:$0xff]
    %v1224 = vld [vmem:[#allocation3 + $0x50] sm:$0xff]
    %v1225 = vld [vmem:[#allocation3 + $0x58] sm:$0xff]
    %v1226 = vld [vmem:[#allocation3 + $0x60] sm:$0xff]
    %v1227 = vld [vmem:[#allocation3 + $0x68] sm:$0xff]
    %v1228 = vld [vmem:[#allocation3 + $0x70] sm:$0xff]
    %v1229 = vld [vmem:[#allocation3 + $0x78] sm:$0xff]
    %v1230 = vld [vmem:[#allocation3 + $0x80] sm:$0xff]
    %v1231 = vld [vmem:[#allocation3 + $0x88] sm:$0xff]
    %v1232 = vld [vmem:[#allocation3 + $0x90] sm:$0xff]
    %v1233 = vld [vmem:[#allocation3 + $0x98] sm:$0xff]
    %v1234 = vld [vmem:[#allocation3 + $0xa0] sm:$0xff]
    %v1235 = vld [vmem:[#allocation3 + $0xa8] sm:$0xff]
    %v1236 = vld [vmem:[#allocation3 + $0xb0] sm:$0xff]
    %v1237 = vld [vmem:[#allocation3 + $0xb8] sm:$0xff]
    %v1238 = vld [vmem:[#allocation3 + $0xc0] sm:$0xff]
    %v1239 = vld [vmem:[#allocation3 + $0xc8] sm:$0xff]
    %v1240 = vld [vmem:[#allocation3 + $0xd0] sm:$0xff]
    %v1241 = vld [vmem:[#allocation3 + $0xd8] sm:$0xff]
    %v1242 = vld [vmem:[#allocation3 + $0xe0] sm:$0xff]
    %v1243 = vld [vmem:[#allocation3 + $0xe8] sm:$0xff]
    %v1244 = vld [vmem:[#allocation3 + $0xf0] sm:$0xff]
    %v1245 = vld [vmem:[#allocation3 + $0xf8] sm:$0xff]
    %v1246 = vld [vmem:[#allocation4] sm:$0xff]
    %v1247 = vld [vmem:[#allocation4 + $0x8] sm:$0xff]
    %v1248 = vld [vmem:[#allocation4 + $0x10] sm:$0xff]
    %v1249 = vld [vmem:[#allocation4 + $0x18] sm:$0xff]
    %v1250 = vld [vmem:[#allocation4 + $0x20] sm:$0xff]
    %v1251 = vld [vmem:[#allocation4 + $0x28] sm:$0xff]
    %v1252 = vld [vmem:[#allocation4 + $0x30] sm:$0xff]
    %v1253 = vld [vmem:[#allocation4 + $0x38] sm:$0xff]
    %v1254 = vld [vmem:[#allocation4 + $0x40] sm:$0xff]
    %v1255 = vld [vmem:[#allocation4 + $0x48] sm:$0xff]
    %v1256 = vld [vmem:[#allocation4 + $0x50] sm:$0xff]
    %v1257 = vld [vmem:[#allocation4 + $0x58] sm:$0xff]
    %v1258 = vld [vmem:[#allocation4 + $0x60] sm:$0xff]
    %v1259 = vld [vmem:[#allocation4 + $0x68] sm:$0xff]
    %v1260 = vld [vmem:[#allocation4 + $0x70] sm:$0xff]
    %v1261 = vld [vmem:[#allocation4 + $0x78] sm:$0xff]
    %v1262 = vld [vmem:[#allocation4 + $0x80] sm:$0xff]
    %v1263 = vld [vmem:[#allocation4 + $0x88] sm:$0xff]
    %v1264 = vld [vmem:[#allocation4 + $0x90] sm:$0xff]
    %v1265 = vld [vmem:[#allocation4 + $0x98] sm:$0xff]
    %v1266 = vld [vmem:[#allocation4 + $0xa0] sm:$0xff]
    %v1267 = vld [vmem:[#allocation4 + $0xa8] sm:$0xff]
    %v1268 = vld [vmem:[#allocation4 + $0xb0] sm:$0xff]
    %v1269 = vld [vmem:[#allocation4 + $0xb8] sm:$0xff]
    %v1270 = vld [vmem:[#allocation4 + $0xc0] sm:$0xff]
    %v1271 = vld [vmem:[#allocation4 + $0xc8] sm:$0xff]
    %v1272 = vld [vmem:[#allocation4 + $0xd0] sm:$0xff]
    %v1273 = vld [vmem:[#allocation4 + $0xd8] sm:$0xff]
    %v1274 = vld [vmem:[#allocation4 + $0xe0] sm:$0xff]
    %v1275 = vld [vmem:[#allocation4 + $0xe8] sm:$0xff]
    %v1276 = vld [vmem:[#allocation4 + $0xf0] sm:$0xff]
    %v1277 = vld [vmem:[#allocation4 + $0xf8] sm:$0xff]
    %v1278 = vld [vmem:[#allocation2 + $0x100] sm:$0xff]
    %v1279 = vld [vmem:[#allocation2 + $0x108] sm:$0xff]
    %v1280 = vld [vmem:[#allocation3 + $0x100] sm:$0xff]
    %v1281 = vld [vmem:[#allocation3 + $0x108] sm:$0xff]
    %v1282 = vld [vmem:[#allocation4 + $0x100] sm:$0xff]
    %v1283 = vld [vmem:[#allocation4 + $0x108] sm:$0xff]
    %v1284 = vld [vmem:[#allocation2 + $0x20] sm:$0xff]
    %v1285 = vld [vmem:[#allocation2 + $0x28] sm:$0xff]
    %v1286 = vld [vmem:[#allocation2 + $0x30] sm:$0xff]
    %v1287 = vld [vmem:[#allocation2 + $0x38] sm:$0xff]
    %v1288 = vld [vmem:[#allocation2 + $0x40] sm:$0xff]
    %v1289 = vld [vmem:[#allocation2 + $0x48] sm:$0xff]
    %v1290 = vld [vmem:[#allocation2 + $0x50] sm:$0xff]
    %v1291 = vld [vmem:[#allocation2 + $0x58] sm:$0xff]
    %v1292 = vld [vmem:[#allocation2 + $0x60] sm:$0xff]
    %v1293 = vld [vmem:[#allocation2 + $0x68] sm:$0xff]
    %v1294 = vld [vmem:[#allocation2 + $0x70] sm:$0xff]
    %v1295 = vld [vmem:[#allocation2 + $0x78] sm:$0xff]
    %v1296 = vld [vmem:[#allocation2 + $0x80] sm:$0xff]
    %v1297 = vld [vmem:[#allocation2 + $0x88] sm:$0xff]
    %v1298 = vld [vmem:[#allocation2 + $0x90] sm:$0xff]
    %v1299 = vld [vmem:[#allocation2 + $0x98] sm:$0xff]
    %v1300 = vld [vmem:[#allocation2 + $0xa0] sm:$0xff]
    %v1301 = vld [vmem:[#allocation2 + $0xa8] sm:$0xff]
    %v1302 = vld [vmem:[#allocation2 + $0xb0] sm:$0xff]
    %v1303 = vld [vmem:[#allocation2 + $0xb8] sm:$0xff]
    %v1304 = vld [vmem:[#allocation2 + $0xc0] sm:$0xff]
    %v1305 = vld [vmem:[#allocation2 + $0xc8] sm:$0xff]
    %v1306 = vld [vmem:[#allocation2 + $0xd0] sm:$0xff]
    %v1307 = vld [vmem:[#allocation2 + $0xd8] sm:$0xff]
    %v1308 = vld [vmem:[#allocation2 + $0xe0] sm:$0xff]
    %v1309 = vld [vmem:[#allocation2 + $0xe8] sm:$0xff]
    %v1310 = vld [vmem:[#allocation2 + $0xf0] sm:$0xff]
    %v1311 = vld [vmem:[#allocation2 + $0xf8] sm:$0xff]
    %v1312 = vld [vmem:[#allocation2 + $0x100] sm:$0xff]
    %v1313 = vld [vmem:[#allocation2 + $0x108] sm:$0xff]
    %v1314 = vld [vmem:[#allocation2 + $0x110] sm:$0xff]
    %v1315 = vld [vmem:[#allocation2 + $0x118] sm:$0xff]
    %v1316 = vld [vmem:[#allocation3 + $0x20] sm:$0xff]
    %v1317 = vld [vmem:[#allocation3 + $0x28] sm:$0xff]
    %v1318 = vld [vmem:[#allocation3 + $0x30] sm:$0xff]
    %v1319 = vld [vmem:[#allocation3 + $0x38] sm:$0xff]
    %v1320 = vld [vmem:[#allocation3 + $0x40] sm:$0xff]
    %v1321 = vld [vmem:[#allocation3 + $0x48] sm:$0xff]
    %v1322 = vld [vmem:[#allocation3 + $0x50] sm:$0xff]
    %v1323 = vld [vmem:[#allocation3 + $0x58] sm:$0xff]
    %v1324 = vld [vmem:[#allocation3 + $0x60] sm:$0xff]
    %v1325 = vld [vmem:[#allocation3 + $0x68] sm:$0xff]
    %v1326 = vld [vmem:[#allocation3 + $0x70] sm:$0xff]
    %v1327 = vld [vmem:[#allocation3 + $0x78] sm:$0xff]
    %v1328 = vld [vmem:[#allocation3 + $0x80] sm:$0xff]
    %v1329 = vld [vmem:[#allocation3 + $0x88] sm:$0xff]
    %v1330 = vld [vmem:[#allocation3 + $0x90] sm:$0xff]
    %v1331 = vld [vmem:[#allocation3 + $0x98] sm:$0xff]
    %v1332 = vld [vmem:[#allocation3 + $0xa0] sm:$0xff]
    %v1333 = vld [vmem:[#allocation3 + $0xa8] sm:$0xff]
    %v1334 = vld [vmem:[#allocation3 + $0xb0] sm:$0xff]
    %v1335 = vld [vmem:[#allocation3 + $0xb8] sm:$0xff]
    %v1336 = vld [vmem:[#allocation3 + $0xc0] sm:$0xff]
    %v1337 = vld [vmem:[#allocation3 + $0xc8] sm:$0xff]
    %v1338 = vld [vmem:[#allocation3 + $0xd0] sm:$0xff]
    %v1339 = vld [vmem:[#allocation3 + $0xd8] sm:$0xff]
    %v1340 = vld [vmem:[#allocation3 + $0xe0] sm:$0xff]
    %v1341 = vld [vmem:[#allocation3 + $0xe8] sm:$0xff]
    %v1342 = vld [vmem:[#allocation3 + $0xf0] sm:$0xff]
    %v1343 = vld [vmem:[#allocation3 + $0xf8] sm:$0xff]
    %v1344 = vld [vmem:[#allocation3 + $0x100] sm:$0xff]
    %v1345 = vld [vmem:[#allocation3 + $0x108] sm:$0xff]
    %v1346 = vld [vmem:[#allocation3 + $0x110] sm:$0xff]
    %v1347 = vld [vmem:[#allocation3 + $0x118] sm:$0xff]
    %v1348 = vld [vmem:[#allocation4 + $0x20] sm:$0xff]
    %v1349 = vld [vmem:[#allocation4 + $0x28] sm:$0xff]
    %v1350 = vld [vmem:[#allocation4 + $0x30] sm:$0xff]
    %v1351 = vld [vmem:[#allocation4 + $0x38] sm:$0xff]
    %v1352 = vld [vmem:[#allocation4 + $0x40] sm:$0xff]
    %v1353 = vld [vmem:[#allocation4 + $0x48] sm:$0xff]
    %v1354 = vld [vmem:[#allocation4 + $0x50] sm:$0xff]
    %v1355 = vld [vmem:[#allocation4 + $0x58] sm:$0xff]
    %v1356 = vld [vmem:[#allocation4 + $0x60] sm:$0xff]
    %v1357 = vld [vmem:[#allocation4 + $0x68] sm:$0xff]
    %v1358 = vld [vmem:[#allocation4 + $0x70] sm:$0xff]
    %v1359 = vld [vmem:[#allocation4 + $0x78] sm:$0xff]
    %v1360 = vld [vmem:[#allocation4 + $0x80] sm:$0xff]
    %v1361 = vld [vmem:[#allocation4 + $0x88] sm:$0xff]
    %v1362 = vld [vmem:[#allocation4 + $0x90] sm:$0xff]
    %v1363 = vld [vmem:[#allocation4 + $0x98] sm:$0xff]
    %v1364 = vld [vmem:[#allocation4 + $0xa0] sm:$0xff]
    %v1365 = vld [vmem:[#allocation4 + $0xa8] sm:$0xff]
    %v1366 = vld [vmem:[#allocation4 + $0xb0] sm:$0xff]
    %v1367 = vld [vmem:[#allocation4 + $0xb8] sm:$0xff]
    %v1368 = vld [vmem:[#allocation4 + $0xc0] sm:$0xff]
    %v1369 = vld [vmem:[#allocation4 + $0xc8] sm:$0xff]
    %v1370 = vld [vmem:[#allocation4 + $0xd0] sm:$0xff]
    %v1371 = vld [vmem:[#allocation4 + $0xd8] sm:$0xff]
    %v1372 = vld [vmem:[#allocation4 + $0xe0] sm:$0xff]
    %v1373 = vld [vmem:[#allocation4 + $0xe8] sm:$0xff]
    %v1374 = vld [vmem:[#allocation4 + $0xf0] sm:$0xff]
    %v1375 = vld [vmem:[#allocation4 + $0xf8] sm:$0xff]
    %v1376 = vld [vmem:[#allocation4 + $0x100] sm:$0xff]
    %v1377 = vld [vmem:[#allocation4 + $0x108] sm:$0xff]
    %v1378 = vld [vmem:[#allocation4 + $0x110] sm:$0xff]
    %v1379 = vld [vmem:[#allocation4 + $0x118] sm:$0xff]
    %v1380 = vld [vmem:[%s1] sm:$0x1]
    %v1381 = vlaneseq
    %v1382 = vshrl.u32 %v1381, 7
    %v1383 = vsub.s32 0, %v1382
    %v1384 = vrot.slane %v1380, %v1383
    %v1385 = vmul.f32 %v1182, %v1384
    %v1386 = vmul.f32 %v1183, %v1384
    %v1387 = vmul.f32 %v1184, %v1384
    %v1388 = vmul.f32 %v1185, %v1384
    %v1389 = vmul.f32 %v1186, %v1384
    %v1390 = vmul.f32 %v1187, %v1384
    %v1391 = vmul.f32 %v1188, %v1384
    %v1392 = vmul.f32 %v1189, %v1384
    %v1393 = vmul.f32 %v1190, %v1384
    %v1394 = vmul.f32 %v1191, %v1384
    %v1395 = vmul.f32 %v1192, %v1384
    %v1396 = vmul.f32 %v1193, %v1384
    %v1397 = vmul.f32 %v1194, %v1384
    %v1398 = vmul.f32 %v1195, %v1384
    %v1399 = vmul.f32 %v1196, %v1384
    %v1400 = vmul.f32 %v1197, %v1384
    %v1401 = vmul.f32 %v1198, %v1384
    %v1402 = vmul.f32 %v1199, %v1384
    %v1403 = vmul.f32 %v1200, %v1384
    %v1404 = vmul.f32 %v1201, %v1384
    %v1405 = vmul.f32 %v1202, %v1384
    %v1406 = vmul.f32 %v1203, %v1384
    %v1407 = vmul.f32 %v1204, %v1384
    %v1408 = vmul.f32 %v1205, %v1384
    %v1409 = vmul.f32 %v1206, %v1384
    %v1410 = vmul.f32 %v1207, %v1384
    %v1411 = vmul.f32 %v1208, %v1384
    %v1412 = vmul.f32 %v1209, %v1384
    %v1413 = vmul.f32 %v1210, %v1384
    %v1414 = vmul.f32 %v1211, %v1384
    %v1415 = vmul.f32 %v1212, %v1384
    %v1416 = vmul.f32 %v1213, %v1384
    %v1417 = vld [vmem:[%s1 + $0x1] sm:$0x1]
    %v1418 = vlaneseq
    %v1419 = vshrl.u32 %v1418, 7
    %v1420 = vsub.s32 0, %v1419
    %v1421 = vrot.slane %v1417, %v1420
    %v1422 = vmul.f32 %v1214, %v1421
    %v1423 = vmul.f32 %v1215, %v1421
    %v1424 = vmul.f32 %v1216, %v1421
    %v1425 = vmul.f32 %v1217, %v1421
    %v1426 = vmul.f32 %v1218, %v1421
    %v1427 = vmul.f32 %v1219, %v1421
    %v1428 = vmul.f32 %v1220, %v1421
    %v1429 = vmul.f32 %v1221, %v1421
    %v1430 = vmul.f32 %v1222, %v1421
    %v1431 = vmul.f32 %v1223, %v1421
    %v1432 = vmul.f32 %v1224, %v1421
    %v1433 = vmul.f32 %v1225, %v1421
    %v1434 = vmul.f32 %v1226, %v1421
    %v1435 = vmul.f32 %v1227, %v1421
    %v1436 = vmul.f32 %v1228, %v1421
    %v1437 = vmul.f32 %v1229, %v1421
    %v1438 = vmul.f32 %v1230, %v1421
    %v1439 = vmul.f32 %v1231, %v1421
    %v1440 = vmul.f32 %v1232, %v1421
    %v1441 = vmul.f32 %v1233, %v1421
    %v1442 = vmul.f32 %v1234, %v1421
    %v1443 = vmul.f32 %v1235, %v1421
    %v1444 = vmul.f32 %v1236, %v1421
    %v1445 = vmul.f32 %v1237, %v1421
    %v1446 = vmul.f32 %v1238, %v1421
    %v1447 = vmul.f32 %v1239, %v1421
    %v1448 = vmul.f32 %v1240, %v1421
    %v1449 = vmul.f32 %v1241, %v1421
    %v1450 = vmul.f32 %v1242, %v1421
    %v1451 = vmul.f32 %v1243, %v1421
    %v1452 = vmul.f32 %v1244, %v1421
    %v1453 = vmul.f32 %v1245, %v1421
    %v1454 = vld [vmem:[%s1 + $0x2] sm:$0x1]
    %v1455 = vlaneseq
    %v1456 = vshrl.u32 %v1455, 7
    %v1457 = vsub.s32 0, %v1456
    %v1458 = vrot.slane %v1454, %v1457
    %v1459 = vmul.f32 %v1246, %v1458
    %v1460 = vmul.f32 %v1247, %v1458
    %v1461 = vmul.f32 %v1248, %v1458
    %v1462 = vmul.f32 %v1249, %v1458
    %v1463 = vmul.f32 %v1250, %v1458
    %v1464 = vmul.f32 %v1251, %v1458
    %v1465 = vmul.f32 %v1252, %v1458
    %v1466 = vmul.f32 %v1253, %v1458
    %v1467 = vmul.f32 %v1254, %v1458
    %v1468 = vmul.f32 %v1255, %v1458
    %v1469 = vmul.f32 %v1256, %v1458
    %v1470 = vmul.f32 %v1257, %v1458
    %v1471 = vmul.f32 %v1258, %v1458
    %v1472 = vmul.f32 %v1259, %v1458
    %v1473 = vmul.f32 %v1260, %v1458
    %v1474 = vmul.f32 %v1261, %v1458
    %v1475 = vmul.f32 %v1262, %v1458
    %v1476 = vmul.f32 %v1263, %v1458
    %v1477 = vmul.f32 %v1264, %v1458
    %v1478 = vmul.f32 %v1265, %v1458
    %v1479 = vmul.f32 %v1266, %v1458
    %v1480 = vmul.f32 %v1267, %v1458
    %v1481 = vmul.f32 %v1268, %v1458
    %v1482 = vmul.f32 %v1269, %v1458
    %v1483 = vmul.f32 %v1270, %v1458
    %v1484 = vmul.f32 %v1271, %v1458
    %v1485 = vmul.f32 %v1272, %v1458
    %v1486 = vmul.f32 %v1273, %v1458
    %v1487 = vmul.f32 %v1274, %v1458
    %v1488 = vmul.f32 %v1275, %v1458
    %v1489 = vmul.f32 %v1276, %v1458
    %v1490 = vmul.f32 %v1277, %v1458
    %v1491 = vadd.f32 %v1385, %v1422
    %v1492 = vadd.f32 %v1386, %v1423
    %v1493 = vadd.f32 %v1387, %v1424
    %v1494 = vadd.f32 %v1388, %v1425
    %v1495 = vadd.f32 %v1389, %v1426
    %v1496 = vadd.f32 %v1390, %v1427
    %v1497 = vadd.f32 %v1391, %v1428
    %v1498 = vadd.f32 %v1392, %v1429
    %v1499 = vadd.f32 %v1393, %v1430
    %v1500 = vadd.f32 %v1394, %v1431
    %v1501 = vadd.f32 %v1395, %v1432
    %v1502 = vadd.f32 %v1396, %v1433
    %v1503 = vadd.f32 %v1397, %v1434
    %v1504 = vadd.f32 %v1398, %v1435
    %v1505 = vadd.f32 %v1399, %v1436
    %v1506 = vadd.f32 %v1400, %v1437
    %v1507 = vadd.f32 %v1401, %v1438
    %v1508 = vadd.f32 %v1402, %v1439
    %v1509 = vadd.f32 %v1403, %v1440
    %v1510 = vadd.f32 %v1404, %v1441
    %v1511 = vadd.f32 %v1405, %v1442
    %v1512 = vadd.f32 %v1406, %v1443
    %v1513 = vadd.f32 %v1407, %v1444
    %v1514 = vadd.f32 %v1408, %v1445
    %v1515 = vadd.f32 %v1409, %v1446
    %v1516 = vadd.f32 %v1410, %v1447
    %v1517 = vadd.f32 %v1411, %v1448
    %v1518 = vadd.f32 %v1412, %v1449
    %v1519 = vadd.f32 %v1413, %v1450
    %v1520 = vadd.f32 %v1414, %v1451
    %v1521 = vadd.f32 %v1415, %v1452
    %v1522 = vadd.f32 %v1416, %v1453
    %v1523 = vadd.f32 %v1491, %v1459
    %v1524 = vadd.f32 %v1492, %v1460
    %v1525 = vadd.f32 %v1493, %v1461
    %v1526 = vadd.f32 %v1494, %v1462
    %v1527 = vadd.f32 %v1495, %v1463
    %v1528 = vadd.f32 %v1496, %v1464
    %v1529 = vadd.f32 %v1497, %v1465
    %v1530 = vadd.f32 %v1498, %v1466
    %v1531 = vadd.f32 %v1499, %v1467
    %v1532 = vadd.f32 %v1500, %v1468
    %v1533 = vadd.f32 %v1501, %v1469
    %v1534 = vadd.f32 %v1502, %v1470
    %v1535 = vadd.f32 %v1503, %v1471
    %v1536 = vadd.f32 %v1504, %v1472
    %v1537 = vadd.f32 %v1505, %v1473
    %v1538 = vadd.f32 %v1506, %v1474
    %v1539 = vadd.f32 %v1507, %v1475
    %v1540 = vadd.f32 %v1508, %v1476
    %v1541 = vadd.f32 %v1509, %v1477
    %v1542 = vadd.f32 %v1510, %v1478
    %v1543 = vadd.f32 %v1511, %v1479
    %v1544 = vadd.f32 %v1512, %v1480
    %v1545 = vadd.f32 %v1513, %v1481
    %v1546 = vadd.f32 %v1514, %v1482
    %v1547 = vadd.f32 %v1515, %v1483
    %v1548 = vadd.f32 %v1516, %v1484
    %v1549 = vadd.f32 %v1517, %v1485
    %v1550 = vadd.f32 %v1518, %v1486
    %v1551 = vadd.f32 %v1519, %v1487
    %v1552 = vadd.f32 %v1520, %v1488
    %v1553 = vadd.f32 %v1521, %v1489
    %v1554 = vadd.f32 %v1522, %v1490
    %v1555 = vld [vmem:[%s1 + $0x3] sm:$0x1]
    %v1556 = vlaneseq
    %v1557 = vshrl.u32 %v1556, 7
    %v1558 = vsub.s32 0, %v1557
    %v1559 = vrot.slane %v1555, %v1558
    %v1560 = vmul.f32 %v1184, %v1559
    %v1561 = vmul.f32 %v1185, %v1559
    %v1562 = vmul.f32 %v1186, %v1559
    %v1563 = vmul.f32 %v1187, %v1559
    %v1564 = vmul.f32 %v1188, %v1559
    %v1565 = vmul.f32 %v1189, %v1559
    %v1566 = vmul.f32 %v1190, %v1559
    %v1567 = vmul.f32 %v1191, %v1559
    %v1568 = vmul.f32 %v1192, %v1559
    %v1569 = vmul.f32 %v1193, %v1559
    %v1570 = vmul.f32 %v1194, %v1559
    %v1571 = vmul.f32 %v1195, %v1559
    %v1572 = vmul.f32 %v1196, %v1559
    %v1573 = vmul.f32 %v1197, %v1559
    %v1574 = vmul.f32 %v1198, %v1559
    %v1575 = vmul.f32 %v1199, %v1559
    %v1576 = vmul.f32 %v1200, %v1559
    %v1577 = vmul.f32 %v1201, %v1559
    %v1578 = vmul.f32 %v1202, %v1559
    %v1579 = vmul.f32 %v1203, %v1559
    %v1580 = vmul.f32 %v1204, %v1559
    %v1581 = vmul.f32 %v1205, %v1559
    %v1582 = vmul.f32 %v1206, %v1559
    %v1583 = vmul.f32 %v1207, %v1559
    %v1584 = vmul.f32 %v1208, %v1559
    %v1585 = vmul.f32 %v1209, %v1559
    %v1586 = vmul.f32 %v1210, %v1559
    %v1587 = vmul.f32 %v1211, %v1559
    %v1588 = vmul.f32 %v1212, %v1559
    %v1589 = vmul.f32 %v1213, %v1559
    %v1590 = vmul.f32 %v1278, %v1559
    %v1591 = vmul.f32 %v1279, %v1559
    %v1592 = vld [vmem:[%s1 + $0x4] sm:$0x1]
    %v1593 = vlaneseq
    %v1594 = vshrl.u32 %v1593, 7
    %v1595 = vsub.s32 0, %v1594
    %v1596 = vrot.slane %v1592, %v1595
    %v1597 = vmul.f32 %v1216, %v1596
    %v1598 = vmul.f32 %v1217, %v1596
    %v1599 = vmul.f32 %v1218, %v1596
    %v1600 = vmul.f32 %v1219, %v1596
    %v1601 = vmul.f32 %v1220, %v1596
    %v1602 = vmul.f32 %v1221, %v1596
    %v1603 = vmul.f32 %v1222, %v1596
    %v1604 = vmul.f32 %v1223, %v1596
    %v1605 = vmul.f32 %v1224, %v1596
    %v1606 = vmul.f32 %v1225, %v1596
    %v1607 = vmul.f32 %v1226, %v1596
    %v1608 = vmul.f32 %v1227, %v1596
    %v1609 = vmul.f32 %v1228, %v1596
    %v1610 = vmul.f32 %v1229, %v1596
    %v1611 = vmul.f32 %v1230, %v1596
    %v1612 = vmul.f32 %v1231, %v1596
    %v1613 = vmul.f32 %v1232, %v1596
    %v1614 = vmul.f32 %v1233, %v1596
    %v1615 = vmul.f32 %v1234, %v1596
    %v1616 = vmul.f32 %v1235, %v1596
    %v1617 = vmul.f32 %v1236, %v1596
    %v1618 = vmul.f32 %v1237, %v1596
    %v1619 = vmul.f32 %v1238, %v1596
    %v1620 = vmul.f32 %v1239, %v1596
    %v1621 = vmul.f32 %v1240, %v1596
    %v1622 = vmul.f32 %v1241, %v1596
    %v1623 = vmul.f32 %v1242, %v1596
    %v1624 = vmul.f32 %v1243, %v1596
    %v1625 = vmul.f32 %v1244, %v1596
    %v1626 = vmul.f32 %v1245, %v1596
    %v1627 = vmul.f32 %v1280, %v1596
    %v1628 = vmul.f32 %v1281, %v1596
    %v1629 = vld [vmem:[%s1 + $0x5] sm:$0x1]
    %v1630 = vlaneseq
    %v1631 = vshrl.u32 %v1630, 7
    %v1632 = vsub.s32 0, %v1631
    %v1633 = vrot.slane %v1629, %v1632
    %v1634 = vmul.f32 %v1248, %v1633
    %v1635 = vmul.f32 %v1249, %v1633
    %v1636 = vmul.f32 %v1250, %v1633
    %v1637 = vmul.f32 %v1251, %v1633
    %v1638 = vmul.f32 %v1252, %v1633
    %v1639 = vmul.f32 %v1253, %v1633
    %v1640 = vmul.f32 %v1254, %v1633
    %v1641 = vmul.f32 %v1255, %v1633
    %v1642 = vmul.f32 %v1256, %v1633
    %v1643 = vmul.f32 %v1257, %v1633
    %v1644 = vmul.f32 %v1258, %v1633
    %v1645 = vmul.f32 %v1259, %v1633
    %v1646 = vmul.f32 %v1260, %v1633
    %v1647 = vmul.f32 %v1261, %v1633
    %v1648 = vmul.f32 %v1262, %v1633
    %v1649 = vmul.f32 %v1263, %v1633
    %v1650 = vmul.f32 %v1264, %v1633
    %v1651 = vmul.f32 %v1265, %v1633
    %v1652 = vmul.f32 %v1266, %v1633
    %v1653 = vmul.f32 %v1267, %v1633
    %v1654 = vmul.f32 %v1268, %v1633
    %v1655 = vmul.f32 %v1269, %v1633
    %v1656 = vmul.f32 %v1270, %v1633
    %v1657 = vmul.f32 %v1271, %v1633
    %v1658 = vmul.f32 %v1272, %v1633
    %v1659 = vmul.f32 %v1273, %v1633
    %v1660 = vmul.f32 %v1274, %v1633
    %v1661 = vmul.f32 %v1275, %v1633
    %v1662 = vmul.f32 %v1276, %v1633
    %v1663 = vmul.f32 %v1277, %v1633
    %v1664 = vmul.f32 %v1282, %v1633
    %v1665 = vmul.f32 %v1283, %v1633
    %v1666 = vadd.f32 %v1560, %v1597
    %v1667 = vadd.f32 %v1561, %v1598
    %v1668 = vadd.f32 %v1562, %v1599
    %v1669 = vadd.f32 %v1563, %v1600
    %v1670 = vadd.f32 %v1564, %v1601
    %v1671 = vadd.f32 %v1565, %v1602
    %v1672 = vadd.f32 %v1566, %v1603
    %v1673 = vadd.f32 %v1567, %v1604
    %v1674 = vadd.f32 %v1568, %v1605
    %v1675 = vadd.f32 %v1569, %v1606
    %v1676 = vadd.f32 %v1570, %v1607
    %v1677 = vadd.f32 %v1571, %v1608
    %v1678 = vadd.f32 %v1572, %v1609
    %v1679 = vadd.f32 %v1573, %v1610
    %v1680 = vadd.f32 %v1574, %v1611
    %v1681 = vadd.f32 %v1575, %v1612
    %v1682 = vadd.f32 %v1576, %v1613
    %v1683 = vadd.f32 %v1577, %v1614
    %v1684 = vadd.f32 %v1578, %v1615
    %v1685 = vadd.f32 %v1579, %v1616
    %v1686 = vadd.f32 %v1580, %v1617
    %v1687 = vadd.f32 %v1581, %v1618
    %v1688 = vadd.f32 %v1582, %v1619
    %v1689 = vadd.f32 %v1583, %v1620
    %v1690 = vadd.f32 %v1584, %v1621
    %v1691 = vadd.f32 %v1585, %v1622
    %v1692 = vadd.f32 %v1586, %v1623
    %v1693 = vadd.f32 %v1587, %v1624
    %v1694 = vadd.f32 %v1588, %v1625
    %v1695 = vadd.f32 %v1589, %v1626
    %v1696 = vadd.f32 %v1590, %v1627
    %v1697 = vadd.f32 %v1591, %v1628
    %v1698 = vadd.f32 %v1666, %v1634
    %v1699 = vadd.f32 %v1667, %v1635
    %v1700 = vadd.f32 %v1668, %v1636
    %v1701 = vadd.f32 %v1669, %v1637
    %v1702 = vadd.f32 %v1670, %v1638
    %v1703 = vadd.f32 %v1671, %v1639
    %v1704 = vadd.f32 %v1672, %v1640
    %v1705 = vadd.f32 %v1673, %v1641
    %v1706 = vadd.f32 %v1674, %v1642
    %v1707 = vadd.f32 %v1675, %v1643
    %v1708 = vadd.f32 %v1676, %v1644
    %v1709 = vadd.f32 %v1677, %v1645
    %v1710 = vadd.f32 %v1678, %v1646
    %v1711 = vadd.f32 %v1679, %v1647
    %v1712 = vadd.f32 %v1680, %v1648
    %v1713 = vadd.f32 %v1681, %v1649
    %v1714 = vadd.f32 %v1682, %v1650
    %v1715 = vadd.f32 %v1683, %v1651
    %v1716 = vadd.f32 %v1684, %v1652
    %v1717 = vadd.f32 %v1685, %v1653
    %v1718 = vadd.f32 %v1686, %v1654
    %v1719 = vadd.f32 %v1687, %v1655
    %v1720 = vadd.f32 %v1688, %v1656
    %v1721 = vadd.f32 %v1689, %v1657
    %v1722 = vadd.f32 %v1690, %v1658
    %v1723 = vadd.f32 %v1691, %v1659
    %v1724 = vadd.f32 %v1692, %v1660
    %v1725 = vadd.f32 %v1693, %v1661
    %v1726 = vadd.f32 %v1694, %v1662
    %v1727 = vadd.f32 %v1695, %v1663
    %v1728 = vadd.f32 %v1696, %v1664
    %v1729 = vadd.f32 %v1697, %v1665
    %v1730 = vld [vmem:[%s1 + $0x6] sm:$0x1]
    %v1731 = vlaneseq
    %v1732 = vshrl.u32 %v1731, 7
    %v1733 = vsub.s32 0, %v1732
    %v1734 = vrot.slane %v1730, %v1733
    %v1735 = vmul.f32 %v1284, %v1734
    %v1736 = vmul.f32 %v1285, %v1734
    %v1737 = vmul.f32 %v1286, %v1734
    %v1738 = vmul.f32 %v1287, %v1734
    %v1739 = vmul.f32 %v1288, %v1734
    %v1740 = vmul.f32 %v1289, %v1734
    %v1741 = vmul.f32 %v1290, %v1734
    %v1742 = vmul.f32 %v1291, %v1734
    %v1743 = vmul.f32 %v1292, %v1734
    %v1744 = vmul.f32 %v1293, %v1734
    %v1745 = vmul.f32 %v1294, %v1734
    %v1746 = vmul.f32 %v1295, %v1734
    %v1747 = vmul.f32 %v1296, %v1734
    %v1748 = vmul.f32 %v1297, %v1734
    %v1749 = vmul.f32 %v1298, %v1734
    %v1750 = vmul.f32 %v1299, %v1734
    %v1751 = vmul.f32 %v1300, %v1734
    %v1752 = vmul.f32 %v1301, %v1734
    %v1753 = vmul.f32 %v1302, %v1734
    %v1754 = vmul.f32 %v1303, %v1734
    %v1755 = vmul.f32 %v1304, %v1734
    %v1756 = vmul.f32 %v1305, %v1734
    %v1757 = vmul.f32 %v1306, %v1734
    %v1758 = vmul.f32 %v1307, %v1734
    %v1759 = vmul.f32 %v1308, %v1734
    %v1760 = vmul.f32 %v1309, %v1734
    %v1761 = vmul.f32 %v1310, %v1734
    %v1762 = vmul.f32 %v1311, %v1734
    %v1763 = vmul.f32 %v1312, %v1734
    %v1764 = vmul.f32 %v1313, %v1734
    %v1765 = vmul.f32 %v1314, %v1734
    %v1766 = vmul.f32 %v1315, %v1734
    %v1767 = vld [vmem:[%s1 + $0x7] sm:$0x1]
    %v1768 = vlaneseq
    %v1769 = vshrl.u32 %v1768, 7
    %v1770 = vsub.s32 0, %v1769
    %v1771 = vrot.slane %v1767, %v1770
    %v1772 = vmul.f32 %v1316, %v1771
    %v1773 = vmul.f32 %v1317, %v1771
    %v1774 = vmul.f32 %v1318, %v1771
    %v1775 = vmul.f32 %v1319, %v1771
    %v1776 = vmul.f32 %v1320, %v1771
    %v1777 = vmul.f32 %v1321, %v1771
    %v1778 = vmul.f32 %v1322, %v1771
    %v1779 = vmul.f32 %v1323, %v1771
    %v1780 = vmul.f32 %v1324, %v1771
    %v1781 = vmul.f32 %v1325, %v1771
    %v1782 = vmul.f32 %v1326, %v1771
    %v1783 = vmul.f32 %v1327, %v1771
    %v1784 = vmul.f32 %v1328, %v1771
    %v1785 = vmul.f32 %v1329, %v1771
    %v1786 = vmul.f32 %v1330, %v1771
    %v1787 = vmul.f32 %v1331, %v1771
    %v1788 = vmul.f32 %v1332, %v1771
    %v1789 = vmul.f32 %v1333, %v1771
    %v1790 = vmul.f32 %v1334, %v1771
    %v1791 = vmul.f32 %v1335, %v1771
    %v1792 = vmul.f32 %v1336, %v1771
    %v1793 = vmul.f32 %v1337, %v1771
    %v1794 = vmul.f32 %v1338, %v1771
    %v1795 = vmul.f32 %v1339, %v1771
    %v1796 = vmul.f32 %v1340, %v1771
    %v1797 = vmul.f32 %v1341, %v1771
    %v1798 = vmul.f32 %v1342, %v1771
    %v1799 = vmul.f32 %v1343, %v1771
    %v1800 = vmul.f32 %v1344, %v1771
    %v1801 = vmul.f32 %v1345, %v1771
    %v1802 = vmul.f32 %v1346, %v1771
    %v1803 = vmul.f32 %v1347, %v1771
    %v1804 = vld [vmem:[%s1 + $0x8] sm:$0x1]
    %v1805 = vlaneseq
    %v1806 = vshrl.u32 %v1805, 7
    %v1807 = vsub.s32 0, %v1806
    %v1808 = vrot.slane %v1804, %v1807
    %v1809 = vmul.f32 %v1348, %v1808
    %v1810 = vmul.f32 %v1349, %v1808
    %v1811 = vmul.f32 %v1350, %v1808
    %v1812 = vmul.f32 %v1351, %v1808
    %v1813 = vmul.f32 %v1352, %v1808
    %v1814 = vmul.f32 %v1353, %v1808
    %v1815 = vmul.f32 %v1354, %v1808
    %v1816 = vmul.f32 %v1355, %v1808
    %v1817 = vmul.f32 %v1356, %v1808
    %v1818 = vmul.f32 %v1357, %v1808
    %v1819 = vmul.f32 %v1358, %v1808
    %v1820 = vmul.f32 %v1359, %v1808
    %v1821 = vmul.f32 %v1360, %v1808
    %v1822 = vmul.f32 %v1361, %v1808
    %v1823 = vmul.f32 %v1362, %v1808
    %v1824 = vmul.f32 %v1363, %v1808
    %v1825 = vmul.f32 %v1364, %v1808
    %v1826 = vmul.f32 %v1365, %v1808
    %v1827 = vmul.f32 %v1366, %v1808
    %v1828 = vmul.f32 %v1367, %v1808
    %v1829 = vmul.f32 %v1368, %v1808
    %v1830 = vmul.f32 %v1369, %v1808
    %v1831 = vmul.f32 %v1370, %v1808
    %v1832 = vmul.f32 %v1371, %v1808
    %v1833 = vmul.f32 %v1372, %v1808
    %v1834 = vmul.f32 %v1373, %v1808
    %v1835 = vmul.f32 %v1374, %v1808
    %v1836 = vmul.f32 %v1375, %v1808
    %v1837 = vmul.f32 %v1376, %v1808
    %v1838 = vmul.f32 %v1377, %v1808
    %v1839 = vmul.f32 %v1378, %v1808
    %v1840 = vmul.f32 %v1379, %v1808
    %v1841 = vadd.f32 %v1735, %v1772
    %v1842 = vadd.f32 %v1736, %v1773
    %v1843 = vadd.f32 %v1737, %v1774
    %v1844 = vadd.f32 %v1738, %v1775
    %v1845 = vadd.f32 %v1739, %v1776
    %v1846 = vadd.f32 %v1740, %v1777
    %v1847 = vadd.f32 %v1741, %v1778
    %v1848 = vadd.f32 %v1742, %v1779
    %v1849 = vadd.f32 %v1743, %v1780
    %v1850 = vadd.f32 %v1744, %v1781
    %v1851 = vadd.f32 %v1745, %v1782
    %v1852 = vadd.f32 %v1746, %v1783
    %v1853 = vadd.f32 %v1747, %v1784
    %v1854 = vadd.f32 %v1748, %v1785
    %v1855 = vadd.f32 %v1749, %v1786
    %v1856 = vadd.f32 %v1750, %v1787
    %v1857 = vadd.f32 %v1751, %v1788
    %v1858 = vadd.f32 %v1752, %v1789
    %v1859 = vadd.f32 %v1753, %v1790
    %v1860 = vadd.f32 %v1754, %v1791
    %v1861 = vadd.f32 %v1755, %v1792
    %v1862 = vadd.f32 %v1756, %v1793
    %v1863 = vadd.f32 %v1757, %v1794
    %v1864 = vadd.f32 %v1758, %v1795
    %v1865 = vadd.f32 %v1759, %v1796
    %v1866 = vadd.f32 %v1760, %v1797
    %v1867 = vadd.f32 %v1761, %v1798
    %v1868 = vadd.f32 %v1762, %v1799
    %v1869 = vadd.f32 %v1763, %v1800
    %v1870 = vadd.f32 %v1764, %v1801
    %v1871 = vadd.f32 %v1765, %v1802
    %v1872 = vadd.f32 %v1766, %v1803
    %v1873 = vadd.f32 %v1841, %v1809
    %v1874 = vadd.f32 %v1842, %v1810
    %v1875 = vadd.f32 %v1843, %v1811
    %v1876 = vadd.f32 %v1844, %v1812
    %v1877 = vadd.f32 %v1845, %v1813
    %v1878 = vadd.f32 %v1846, %v1814
    %v1879 = vadd.f32 %v1847, %v1815
    %v1880 = vadd.f32 %v1848, %v1816
    %v1881 = vadd.f32 %v1849, %v1817
    %v1882 = vadd.f32 %v1850, %v1818
    %v1883 = vadd.f32 %v1851, %v1819
    %v1884 = vadd.f32 %v1852, %v1820
    %v1885 = vadd.f32 %v1853, %v1821
    %v1886 = vadd.f32 %v1854, %v1822
    %v1887 = vadd.f32 %v1855, %v1823
    %v1888 = vadd.f32 %v1856, %v1824
    %v1889 = vadd.f32 %v1857, %v1825
    %v1890 = vadd.f32 %v1858, %v1826
    %v1891 = vadd.f32 %v1859, %v1827
    %v1892 = vadd.f32 %v1860, %v1828
    %v1893 = vadd.f32 %v1861, %v1829
    %v1894 = vadd.f32 %v1862, %v1830
    %v1895 = vadd.f32 %v1863, %v1831
    %v1896 = vadd.f32 %v1864, %v1832
    %v1897 = vadd.f32 %v1865, %v1833
    %v1898 = vadd.f32 %v1866, %v1834
    %v1899 = vadd.f32 %v1867, %v1835
    %v1900 = vadd.f32 %v1868, %v1836
    %v1901 = vadd.f32 %v1869, %v1837
    %v1902 = vadd.f32 %v1870, %v1838
    %v1903 = vadd.f32 %v1871, %v1839
    %v1904 = vadd.f32 %v1872, %v1840
    %v1905 = vadd.f32 %v1523, %v1698
    %v1906 = vadd.f32 %v1524, %v1699
    %v1907 = vadd.f32 %v1525, %v1700
    %v1908 = vadd.f32 %v1526, %v1701
    %v1909 = vadd.f32 %v1527, %v1702
    %v1910 = vadd.f32 %v1528, %v1703
    %v1911 = vadd.f32 %v1529, %v1704
    %v1912 = vadd.f32 %v1530, %v1705
    %v1913 = vadd.f32 %v1531, %v1706
    %v1914 = vadd.f32 %v1532, %v1707
    %v1915 = vadd.f32 %v1533, %v1708
    %v1916 = vadd.f32 %v1534, %v1709
    %v1917 = vadd.f32 %v1535, %v1710
    %v1918 = vadd.f32 %v1536, %v1711
    %v1919 = vadd.f32 %v1537, %v1712
    %v1920 = vadd.f32 %v1538, %v1713
    %v1921 = vadd.f32 %v1539, %v1714
    %v1922 = vadd.f32 %v1540, %v1715
    %v1923 = vadd.f32 %v1541, %v1716
    %v1924 = vadd.f32 %v1542, %v1717
    %v1925 = vadd.f32 %v1543, %v1718
    %v1926 = vadd.f32 %v1544, %v1719
    %v1927 = vadd.f32 %v1545, %v1720
    %v1928 = vadd.f32 %v1546, %v1721
    %v1929 = vadd.f32 %v1547, %v1722
    %v1930 = vadd.f32 %v1548, %v1723
    %v1931 = vadd.f32 %v1549, %v1724
    %v1932 = vadd.f32 %v1550, %v1725
    %v1933 = vadd.f32 %v1551, %v1726
    %v1934 = vadd.f32 %v1552, %v1727
    %v1935 = vadd.f32 %v1553, %v1728
    %v1936 = vadd.f32 %v1554, %v1729
    %v1937 = vadd.f32 %v1905, %v1873
    %v1938 = vadd.f32 %v1906, %v1874
    %v1939 = vadd.f32 %v1907, %v1875
    %v1940 = vadd.f32 %v1908, %v1876
    %v1941 = vadd.f32 %v1909, %v1877
    %v1942 = vadd.f32 %v1910, %v1878
    %v1943 = vadd.f32 %v1911, %v1879
    %v1944 = vadd.f32 %v1912, %v1880
    %v1945 = vadd.f32 %v1913, %v1881
    %v1946 = vadd.f32 %v1914, %v1882
    %v1947 = vadd.f32 %v1915, %v1883
    %v1948 = vadd.f32 %v1916, %v1884
    %v1949 = vadd.f32 %v1917, %v1885
    %v1950 = vadd.f32 %v1918, %v1886
    %v1951 = vadd.f32 %v1919, %v1887
    %v1952 = vadd.f32 %v1920, %v1888
    %v1953 = vadd.f32 %v1921, %v1889
    %v1954 = vadd.f32 %v1922, %v1890
    %v1955 = vadd.f32 %v1923, %v1891
    %v1956 = vadd.f32 %v1924, %v1892
    %v1957 = vadd.f32 %v1925, %v1893
    %v1958 = vadd.f32 %v1926, %v1894
    %v1959 = vadd.f32 %v1927, %v1895
    %v1960 = vadd.f32 %v1928, %v1896
    %v1961 = vadd.f32 %v1929, %v1897
    %v1962 = vadd.f32 %v1930, %v1898
    %v1963 = vadd.f32 %v1931, %v1899
    %v1964 = vadd.f32 %v1932, %v1900
    %v1965 = vadd.f32 %v1933, %v1901
    %v1966 = vadd.f32 %v1934, %v1902
    %v1967 = vadd.f32 %v1935, %v1903
    %v1968 = vadd.f32 %v1936, %v1904
    %v1969 = vld [vmem:[%s2] sm:$0x1]
    %v1971 = vlaneseq
    %v1972 = vshrl.u32 %v1971, 7
    %v1973 = vsub.s32 0, %v1972
    %v1974 = vrot.slane %v1969, %v1973
    %v1976 = vadd.f32 %v1937, %v1974
    %v1977 = vadd.f32 %v1938, %v1974
    %v1978 = vadd.f32 %v1939, %v1974
    %v1979 = vadd.f32 %v1940, %v1974
    %v1980 = vadd.f32 %v1941, %v1974
    %v1981 = vadd.f32 %v1942, %v1974
    %v1982 = vadd.f32 %v1943, %v1974
    %v1983 = vadd.f32 %v1944, %v1974
    %v1984 = vadd.f32 %v1945, %v1974
    %v1985 = vadd.f32 %v1946, %v1974
    %v1986 = vadd.f32 %v1947, %v1974
    %v1987 = vadd.f32 %v1948, %v1974
    %v1988 = vadd.f32 %v1949, %v1974
    %v1989 = vadd.f32 %v1950, %v1974
    %v1990 = vadd.f32 %v1951, %v1974
    %v1991 = vadd.f32 %v1952, %v1974
    %v1992 = vadd.f32 %v1953, %v1974
    %v1993 = vadd.f32 %v1954, %v1974
    %v1994 = vadd.f32 %v1955, %v1974
    %v1995 = vadd.f32 %v1956, %v1974
    %v1996 = vadd.f32 %v1957, %v1974
    %v1997 = vadd.f32 %v1958, %v1974
    %v1998 = vadd.f32 %v1959, %v1974
    %v1999 = vadd.f32 %v1960, %v1974
    %v2000 = vadd.f32 %v1961, %v1974
    %v2001 = vadd.f32 %v1962, %v1974
    %v2002 = vadd.f32 %v1963, %v1974
    %v2003 = vadd.f32 %v1964, %v1974
    %v2004 = vadd.f32 %v1965, %v1974
    %v2005 = vadd.f32 %v1966, %v1974
    %v2006 = vadd.f32 %v1967, %v1974
    %v2007 = vadd.f32 %v1968, %v1974
    %v2008 = vmax.f32 %v1976, 0.0
    %v2009 = vmax.f32 %v1977, 0.0
    %v2010 = vmax.f32 %v1978, 0.0
    %v2011 = vmax.f32 %v1979, 0.0
    %v2012 = vmax.f32 %v1980, 0.0
    %v2013 = vmax.f32 %v1981, 0.0
    %v2014 = vmax.f32 %v1982, 0.0
    %v2015 = vmax.f32 %v1983, 0.0
    %v2016 = vmax.f32 %v1984, 0.0
    %v2017 = vmax.f32 %v1985, 0.0
    %v2018 = vmax.f32 %v1986, 0.0
    %v2019 = vmax.f32 %v1987, 0.0
    %v2020 = vmax.f32 %v1988, 0.0
    %v2021 = vmax.f32 %v1989, 0.0
    %v2022 = vmax.f32 %v1990, 0.0
    %v2023 = vmax.f32 %v1991, 0.0
    %v2024 = vmax.f32 %v1992, 0.0
    %v2025 = vmax.f32 %v1993, 0.0
    %v2026 = vmax.f32 %v1994, 0.0
    %v2027 = vmax.f32 %v1995, 0.0
    %v2028 = vmax.f32 %v1996, 0.0
    %v2029 = vmax.f32 %v1997, 0.0
    %v2030 = vmax.f32 %v1998, 0.0
    %v2031 = vmax.f32 %v1999, 0.0
    %v2032 = vmax.f32 %v2000, 0.0
    %v2033 = vmax.f32 %v2001, 0.0
    %v2034 = vmax.f32 %v2002, 0.0
    %v2035 = vmax.f32 %v2003, 0.0
    %v2036 = vmax.f32 %v2004, 0.0
    %v2037 = vmax.f32 %v2005, 0.0
    %v2038 = vmax.f32 %v2006, 0.0
    %v2039 = vmax.f32 %v2007, 0.0
    %v2040 = vmul.f32 %v2008, %v541
    %v2041 = vmul.f32 %v2009, %v542
    %v2042 = vmul.f32 %v2010, %v543
    %v2043 = vmul.f32 %v2011, %v544
    %v2044 = vmul.f32 %v2012, %v545
    %v2045 = vmul.f32 %v2013, %v546
    %v2046 = vmul.f32 %v2014, %v547
    %v2047 = vmul.f32 %v2015, %v548
    %v2048 = vmul.f32 %v2016, %v549
    %v2049 = vmul.f32 %v2017, %v550
    %v2050 = vmul.f32 %v2018, %v551
    %v2051 = vmul.f32 %v2019, %v552
    %v2052 = vmul.f32 %v2020, %v553
    %v2053 = vmul.f32 %v2021, %v554
    %v2054 = vmul.f32 %v2022, %v555
    %v2055 = vmul.f32 %v2023, %v556
    %v2056 = vmul.f32 %v2024, %v557
    %v2057 = vmul.f32 %v2025, %v558
    %v2058 = vmul.f32 %v2026, %v559
    %v2059 = vmul.f32 %v2027, %v560
    %v2060 = vmul.f32 %v2028, %v561
    %v2061 = vmul.f32 %v2029, %v562
    %v2062 = vmul.f32 %v2030, %v563
    %v2063 = vmul.f32 %v2031, %v564
    %v2064 = vmul.f32 %v2032, %v565
    %v2065 = vmul.f32 %v2033, %v566
    %v2066 = vmul.f32 %v2034, %v567
    %v2067 = vmul.f32 %v2035, %v568
    %v2068 = vmul.f32 %v2036, %v569
    %v2069 = vmul.f32 %v2037, %v570
    %v2070 = vmul.f32 %v2038, %v571
    %v2071 = vmul.f32 %v2039, %v572
    %2072 = vst [vmem:[#allocation2 + $0x11] sm:$0xff] %v2040
    %2073 = vst [vmem:[#allocation2 + $0x19] sm:$0xff] %v2041
    %2074 = vst [vmem:[#allocation2 + $0x21] sm:$0xff] %v2042
    %2075 = vst [vmem:[#allocation2 + $0x29] sm:$0xff] %v2043
    %2076 = vst [vmem:[#allocation2 + $0x31] sm:$0xff] %v2044
    %2077 = vst [vmem:[#allocation2 + $0x39] sm:$0xff] %v2045
    %2078 = vst [vmem:[#allocation2 + $0x41] sm:$0xff] %v2046
    %2079 = vst [vmem:[#allocation2 + $0x49] sm:$0xff] %v2047
    %2080 = vst [vmem:[#allocation2 + $0x51] sm:$0xff] %v2048
    %2081 = vst [vmem:[#allocation2 + $0x59] sm:$0xff] %v2049
    %2082 = vst [vmem:[#allocation2 + $0x61] sm:$0xff] %v2050
    %2083 = vst [vmem:[#allocation2 + $0x69] sm:$0xff] %v2051
    %2084 = vst [vmem:[#allocation2 + $0x71] sm:$0xff] %v2052
    %2085 = vst [vmem:[#allocation2 + $0x79] sm:$0xff] %v2053
    %2086 = vst [vmem:[#allocation2 + $0x81] sm:$0xff] %v2054
    %2087 = vst [vmem:[#allocation2 + $0x89] sm:$0xff] %v2055
    %2088 = vst [vmem:[#allocation2 + $0x91] sm:$0xff] %v2056
    %2089 = vst [vmem:[#allocation2 + $0x99] sm:$0xff] %v2057
    %2090 = vst [vmem:[#allocation2 + $0xa1] sm:$0xff] %v2058
    %2091 = vst [vmem:[#allocation2 + $0xa9] sm:$0xff] %v2059
    %2092 = vst [vmem:[#allocation2 + $0xb1] sm:$0xff] %v2060
    %2093 = vst [vmem:[#allocation2 + $0xb9] sm:$0xff] %v2061
    %2094 = vst [vmem:[#allocation2 + $0xc1] sm:$0xff] %v2062
    %2095 = vst [vmem:[#allocation2 + $0xc9] sm:$0xff] %v2063
    %2096 = vst [vmem:[#allocation2 + $0xd1] sm:$0xff] %v2064
    %2097 = vst [vmem:[#allocation2 + $0xd9] sm:$0xff] %v2065
    %2098 = vst [vmem:[#allocation2 + $0xe1] sm:$0xff] %v2066
    %2099 = vst [vmem:[#allocation2 + $0xe9] sm:$0xff] %v2067
    %2100 = vst [vmem:[#allocation2 + $0xf1] sm:$0xff] %v2068
    %2101 = vst [vmem:[#allocation2 + $0xf9] sm:$0xff] %v2069
    %2102 = vst [vmem:[#allocation2 + $0x101] sm:$0xff] %v2070
    %2103 = vst [vmem:[#allocation2 + $0x109] sm:$0xff] %v2071
    %2104 = vst [vmem:[#allocation3 + $0x10] sm:$0xff] %v2008
    %2105 = vst [vmem:[#allocation3 + $0x18] sm:$0xff] %v2009
    %2106 = vst [vmem:[#allocation3 + $0x20] sm:$0xff] %v2010
    %2107 = vst [vmem:[#allocation3 + $0x28] sm:$0xff] %v2011
    %2108 = vst [vmem:[#allocation3 + $0x30] sm:$0xff] %v2012
    %2109 = vst [vmem:[#allocation3 + $0x38] sm:$0xff] %v2013
    %2110 = vst [vmem:[#allocation3 + $0x40] sm:$0xff] %v2014
    %2111 = vst [vmem:[#allocation3 + $0x48] sm:$0xff] %v2015
    %2112 = vst [vmem:[#allocation3 + $0x50] sm:$0xff] %v2016
    %2113 = vst [vmem:[#allocation3 + $0x58] sm:$0xff] %v2017
    %2114 = vst [vmem:[#allocation3 + $0x60] sm:$0xff] %v2018
    %2115 = vst [vmem:[#allocation3 + $0x68] sm:$0xff] %v2019
    %2116 = vst [vmem:[#allocation3 + $0x70] sm:$0xff] %v2020
    %2117 = vst [vmem:[#allocation3 + $0x78] sm:$0xff] %v2021
    %2118 = vst [vmem:[#allocation3 + $0x80] sm:$0xff] %v2022
    %2119 = vst [vmem:[#allocation3 + $0x88] sm:$0xff] %v2023
    %2120 = vst [vmem:[#allocation3 + $0x90] sm:$0xff] %v2024
    %2121 = vst [vmem:[#allocation3 + $0x98] sm:$0xff] %v2025
    %2122 = vst [vmem:[#allocation3 + $0xa0] sm:$0xff] %v2026
    %2123 = vst [vmem:[#allocation3 + $0xa8] sm:$0xff] %v2027
    %2124 = vst [vmem:[#allocation3 + $0xb0] sm:$0xff] %v2028
    %2125 = vst [vmem:[#allocation3 + $0xb8] sm:$0xff] %v2029
    %2126 = vst [vmem:[#allocation3 + $0xc0] sm:$0xff] %v2030
    %2127 = vst [vmem:[#allocation3 + $0xc8] sm:$0xff] %v2031
    %2128 = vst [vmem:[#allocation3 + $0xd0] sm:$0xff] %v2032
    %2129 = vst [vmem:[#allocation3 + $0xd8] sm:$0xff] %v2033
    %2130 = vst [vmem:[#allocation3 + $0xe0] sm:$0xff] %v2034
    %2131 = vst [vmem:[#allocation3 + $0xe8] sm:$0xff] %v2035
    %2132 = vst [vmem:[#allocation3 + $0xf0] sm:$0xff] %v2036
    %2133 = vst [vmem:[#allocation3 + $0xf8] sm:$0xff] %v2037
    %2134 = vst [vmem:[#allocation3 + $0x100] sm:$0xff] %v2038
    %2135 = vst [vmem:[#allocation3 + $0x108] sm:$0xff] %v2039
    %v2136 = vmul.f32 %v2008, %v637
    %v2137 = vmul.f32 %v2009, %v638
    %v2138 = vmul.f32 %v2010, %v639
    %v2139 = vmul.f32 %v2011, %v640
    %v2140 = vmul.f32 %v2012, %v641
    %v2141 = vmul.f32 %v2013, %v642
    %v2142 = vmul.f32 %v2014, %v643
    %v2143 = vmul.f32 %v2015, %v644
    %v2144 = vmul.f32 %v2016, %v645
    %v2145 = vmul.f32 %v2017, %v646
    %v2146 = vmul.f32 %v2018, %v647
    %v2147 = vmul.f32 %v2019, %v648
    %v2148 = vmul.f32 %v2020, %v649
    %v2149 = vmul.f32 %v2021, %v650
    %v2150 = vmul.f32 %v2022, %v651
    %v2151 = vmul.f32 %v2023, %v652
    %v2152 = vmul.f32 %v2024, %v653
    %v2153 = vmul.f32 %v2025, %v654
    %v2154 = vmul.f32 %v2026, %v655
    %v2155 = vmul.f32 %v2027, %v656
    %v2156 = vmul.f32 %v2028, %v657
    %v2157 = vmul.f32 %v2029, %v658
    %v2158 = vmul.f32 %v2030, %v659
    %v2159 = vmul.f32 %v2031, %v660
    %v2160 = vmul.f32 %v2032, %v661
    %v2161 = vmul.f32 %v2033, %v662
    %v2162 = vmul.f32 %v2034, %v663
    %v2163 = vmul.f32 %v2035, %v664
    %v2164 = vmul.f32 %v2036, %v665
    %v2165 = vmul.f32 %v2037, %v666
    %v2166 = vmul.f32 %v2038, %v667
    %v2167 = vmul.f32 %v2039, %v668
    %2168 = vst [vmem:[#allocation4 + $0xf] sm:$0xff] %v2136
    %2169 = vst [vmem:[#allocation4 + $0x17] sm:$0xff] %v2137
    %2170 = vst [vmem:[#allocation4 + $0x1f] sm:$0xff] %v2138
    %2171 = vst [vmem:[#allocation4 + $0x27] sm:$0xff] %v2139
    %2172 = vst [vmem:[#allocation4 + $0x2f] sm:$0xff] %v2140
    %2173 = vst [vmem:[#allocation4 + $0x37] sm:$0xff] %v2141
    %2174 = vst [vmem:[#allocation4 + $0x3f] sm:$0xff] %v2142
    %2175 = vst [vmem:[#allocation4 + $0x47] sm:$0xff] %v2143
    %2176 = vst [vmem:[#allocation4 + $0x4f] sm:$0xff] %v2144
    %2177 = vst [vmem:[#allocation4 + $0x57] sm:$0xff] %v2145
    %2178 = vst [vmem:[#allocation4 + $0x5f] sm:$0xff] %v2146
    %2179 = vst [vmem:[#allocation4 + $0x67] sm:$0xff] %v2147
    %2180 = vst [vmem:[#allocation4 + $0x6f] sm:$0xff] %v2148
    %2181 = vst [vmem:[#allocation4 + $0x77] sm:$0xff] %v2149
    %2182 = vst [vmem:[#allocation4 + $0x7f] sm:$0xff] %v2150
    %2183 = vst [vmem:[#allocation4 + $0x87] sm:$0xff] %v2151
    %2184 = vst [vmem:[#allocation4 + $0x8f] sm:$0xff] %v2152
    %2185 = vst [vmem:[#allocation4 + $0x97] sm:$0xff] %v2153
    %2186 = vst [vmem:[#allocation4 + $0x9f] sm:$0xff] %v2154
    %2187 = vst [vmem:[#allocation4 + $0xa7] sm:$0xff] %v2155
    %2188 = vst [vmem:[#allocation4 + $0xaf] sm:$0xff] %v2156
    %2189 = vst [vmem:[#allocation4 + $0xb7] sm:$0xff] %v2157
    %2190 = vst [vmem:[#allocation4 + $0xbf] sm:$0xff] %v2158
    %2191 = vst [vmem:[#allocation4 + $0xc7] sm:$0xff] %v2159
    %2192 = vst [vmem:[#allocation4 + $0xcf] sm:$0xff] %v2160
    %2193 = vst [vmem:[#allocation4 + $0xd7] sm:$0xff] %v2161
    %2194 = vst [vmem:[#allocation4 + $0xdf] sm:$0xff] %v2162
    %2195 = vst [vmem:[#allocation4 + $0xe7] sm:$0xff] %v2163
    %2196 = vst [vmem:[#allocation4 + $0xef] sm:$0xff] %v2164
    %2197 = vst [vmem:[#allocation4 + $0xf7] sm:$0xff] %v2165
    %2198 = vst [vmem:[#allocation4 + $0xff] sm:$0xff] %v2166
    %2199 = vst [vmem:[#allocation4 + $0x107] sm:$0xff] %v2167
    %v2200 = vld [vmem:[#allocation2] sm:$0xff]
    %v2201 = vld [vmem:[#allocation2 + $0x8] sm:$0xff]
    %v2202 = vld [vmem:[#allocation2 + $0x10] sm:$0xff]
    %v2203 = vld [vmem:[#allocation2 + $0x18] sm:$0xff]
    %v2204 = vld [vmem:[#allocation2 + $0x20] sm:$0xff]
    %v2205 = vld [vmem:[#allocation2 + $0x28] sm:$0xff]
    %v2206 = vld [vmem:[#allocation2 + $0x30] sm:$0xff]
    %v2207 = vld [vmem:[#allocation2 + $0x38] sm:$0xff]
    %v2208 = vld [vmem:[#allocation2 + $0x40] sm:$0xff]
    %v2209 = vld [vmem:[#allocation2 + $0x48] sm:$0xff]
    %v2210 = vld [vmem:[#allocation2 + $0x50] sm:$0xff]
    %v2211 = vld [vmem:[#allocation2 + $0x58] sm:$0xff]
    %v2212 = vld [vmem:[#allocation2 + $0x60] sm:$0xff]
    %v2213 = vld [vmem:[#allocation2 + $0x68] sm:$0xff]
    %v2214 = vld [vmem:[#allocation2 + $0x70] sm:$0xff]
    %v2215 = vld [vmem:[#allocation2 + $0x78] sm:$0xff]
    %v2216 = vld [vmem:[#allocation2 + $0x80] sm:$0xff]
    %v2217 = vld [vmem:[#allocation2 + $0x88] sm:$0xff]
    %v2218 = vld [vmem:[#allocation2 + $0x90] sm:$0xff]
    %v2219 = vld [vmem:[#allocation2 + $0x98] sm:$0xff]
    %v2220 = vld [vmem:[#allocation2 + $0xa0] sm:$0xff]
    %v2221 = vld [vmem:[#allocation2 + $0xa8] sm:$0xff]
    %v2222 = vld [vmem:[#allocation2 + $0xb0] sm:$0xff]
    %v2223 = vld [vmem:[#allocation2 + $0xb8] sm:$0xff]
    %v2224 = vld [vmem:[#allocation2 + $0xc0] sm:$0xff]
    %v2225 = vld [vmem:[#allocation2 + $0xc8] sm:$0xff]
    %v2226 = vld [vmem:[#allocation2 + $0xd0] sm:$0xff]
    %v2227 = vld [vmem:[#allocation2 + $0xd8] sm:$0xff]
    %v2228 = vld [vmem:[#allocation2 + $0xe0] sm:$0xff]
    %v2229 = vld [vmem:[#allocation2 + $0xe8] sm:$0xff]
    %v2230 = vld [vmem:[#allocation2 + $0xf0] sm:$0xff]
    %v2231 = vld [vmem:[#allocation2 + $0xf8] sm:$0xff]
    %v2232 = vld [vmem:[#allocation3] sm:$0xff]
    %v2233 = vld [vmem:[#allocation3 + $0x8] sm:$0xff]
    %v2234 = vld [vmem:[#allocation3 + $0x10] sm:$0xff]
    %v2235 = vld [vmem:[#allocation3 + $0x18] sm:$0xff]
    %v2236 = vld [vmem:[#allocation3 + $0x20] sm:$0xff]
    %v2237 = vld [vmem:[#allocation3 + $0x28] sm:$0xff]
    %v2238 = vld [vmem:[#allocation3 + $0x30] sm:$0xff]
    %v2239 = vld [vmem:[#allocation3 + $0x38] sm:$0xff]
    %v2240 = vld [vmem:[#allocation3 + $0x40] sm:$0xff]
    %v2241 = vld [vmem:[#allocation3 + $0x48] sm:$0xff]
    %v2242 = vld [vmem:[#allocation3 + $0x50] sm:$0xff]
    %v2243 = vld [vmem:[#allocation3 + $0x58] sm:$0xff]
    %v2244 = vld [vmem:[#allocation3 + $0x60] sm:$0xff]
    %v2245 = vld [vmem:[#allocation3 + $0x68] sm:$0xff]
    %v2246 = vld [vmem:[#allocation3 + $0x70] sm:$0xff]
    %v2247 = vld [vmem:[#allocation3 + $0x78] sm:$0xff]
    %v2248 = vld [vmem:[#allocation3 + $0x80] sm:$0xff]
    %v2249 = vld [vmem:[#allocation3 + $0x88] sm:$0xff]
    %v2250 = vld [vmem:[#allocation3 + $0x90] sm:$0xff]
    %v2251 = vld [vmem:[#allocation3 + $0x98] sm:$0xff]
    %v2252 = vld [vmem:[#allocation3 + $0xa0] sm:$0xff]
    %v2253 = vld [vmem:[#allocation3 + $0xa8] sm:$0xff]
    %v2254 = vld [vmem:[#allocation3 + $0xb0] sm:$0xff]
    %v2255 = vld [vmem:[#allocation3 + $0xb8] sm:$0xff]
    %v2256 = vld [vmem:[#allocation3 + $0xc0] sm:$0xff]
    %v2257 = vld [vmem:[#allocation3 + $0xc8] sm:$0xff]
    %v2258 = vld [vmem:[#allocation3 + $0xd0] sm:$0xff]
    %v2259 = vld [vmem:[#allocation3 + $0xd8] sm:$0xff]
    %v2260 = vld [vmem:[#allocation3 + $0xe0] sm:$0xff]
    %v2261 = vld [vmem:[#allocation3 + $0xe8] sm:$0xff]
    %v2262 = vld [vmem:[#allocation3 + $0xf0] sm:$0xff]
    %v2263 = vld [vmem:[#allocation3 + $0xf8] sm:$0xff]
    %v2264 = vld [vmem:[#allocation4] sm:$0xff]
    %v2265 = vld [vmem:[#allocation4 + $0x8] sm:$0xff]
    %v2266 = vld [vmem:[#allocation4 + $0x10] sm:$0xff]
    %v2267 = vld [vmem:[#allocation4 + $0x18] sm:$0xff]
    %v2268 = vld [vmem:[#allocation4 + $0x20] sm:$0xff]
    %v2269 = vld [vmem:[#allocation4 + $0x28] sm:$0xff]
    %v2270 = vld [vmem:[#allocation4 + $0x30] sm:$0xff]
    %v2271 = vld [vmem:[#allocation4 + $0x38] sm:$0xff]
    %v2272 = vld [vmem:[#allocation4 + $0x40] sm:$0xff]
    %v2273 = vld [vmem:[#allocation4 + $0x48] sm:$0xff]
    %v2274 = vld [vmem:[#allocation4 + $0x50] sm:$0xff]
    %v2275 = vld [vmem:[#allocation4 + $0x58] sm:$0xff]
    %v2276 = vld [vmem:[#allocation4 + $0x60] sm:$0xff]
    %v2277 = vld [vmem:[#allocation4 + $0x68] sm:$0xff]
    %v2278 = vld [vmem:[#allocation4 + $0x70] sm:$0xff]
    %v2279 = vld [vmem:[#allocation4 + $0x78] sm:$0xff]
    %v2280 = vld [vmem:[#allocation4 + $0x80] sm:$0xff]
    %v2281 = vld [vmem:[#allocation4 + $0x88] sm:$0xff]
    %v2282 = vld [vmem:[#allocation4 + $0x90] sm:$0xff]
    %v2283 = vld [vmem:[#allocation4 + $0x98] sm:$0xff]
    %v2284 = vld [vmem:[#allocation4 + $0xa0] sm:$0xff]
    %v2285 = vld [vmem:[#allocation4 + $0xa8] sm:$0xff]
    %v2286 = vld [vmem:[#allocation4 + $0xb0] sm:$0xff]
    %v2287 = vld [vmem:[#allocation4 + $0xb8] sm:$0xff]
    %v2288 = vld [vmem:[#allocation4 + $0xc0] sm:$0xff]
    %v2289 = vld [vmem:[#allocation4 + $0xc8] sm:$0xff]
    %v2290 = vld [vmem:[#allocation4 + $0xd0] sm:$0xff]
    %v2291 = vld [vmem:[#allocation4 + $0xd8] sm:$0xff]
    %v2292 = vld [vmem:[#allocation4 + $0xe0] sm:$0xff]
    %v2293 = vld [vmem:[#allocation4 + $0xe8] sm:$0xff]
    %v2294 = vld [vmem:[#allocation4 + $0xf0] sm:$0xff]
    %v2295 = vld [vmem:[#allocation4 + $0xf8] sm:$0xff]
    %v2296 = vld [vmem:[#allocation2 + $0x100] sm:$0xff]
    %v2297 = vld [vmem:[#allocation2 + $0x108] sm:$0xff]
    %v2298 = vld [vmem:[#allocation3 + $0x100] sm:$0xff]
    %v2299 = vld [vmem:[#allocation3 + $0x108] sm:$0xff]
    %v2300 = vld [vmem:[#allocation4 + $0x100] sm:$0xff]
    %v2301 = vld [vmem:[#allocation4 + $0x108] sm:$0xff]
    %v2302 = vld [vmem:[#allocation2 + $0x20] sm:$0xff]
    %v2303 = vld [vmem:[#allocation2 + $0x28] sm:$0xff]
    %v2304 = vld [vmem:[#allocation2 + $0x30] sm:$0xff]
    %v2305 = vld [vmem:[#allocation2 + $0x38] sm:$0xff]
    %v2306 = vld [vmem:[#allocation2 + $0x40] sm:$0xff]
    %v2307 = vld [vmem:[#allocation2 + $0x48] sm:$0xff]
    %v2308 = vld [vmem:[#allocation2 + $0x50] sm:$0xff]
    %v2309 = vld [vmem:[#allocation2 + $0x58] sm:$0xff]
    %v2310 = vld [vmem:[#allocation2 + $0x60] sm:$0xff]
    %v2311 = vld [vmem:[#allocation2 + $0x68] sm:$0xff]
    %v2312 = vld [vmem:[#allocation2 + $0x70] sm:$0xff]
    %v2313 = vld [vmem:[#allocation2 + $0x78] sm:$0xff]
    %v2314 = vld [vmem:[#allocation2 + $0x80] sm:$0xff]
    %v2315 = vld [vmem:[#allocation2 + $0x88] sm:$0xff]
    %v2316 = vld [vmem:[#allocation2 + $0x90] sm:$0xff]
    %v2317 = vld [vmem:[#allocation2 + $0x98] sm:$0xff]
    %v2318 = vld [vmem:[#allocation2 + $0xa0] sm:$0xff]
    %v2319 = vld [vmem:[#allocation2 + $0xa8] sm:$0xff]
    %v2320 = vld [vmem:[#allocation2 + $0xb0] sm:$0xff]
    %v2321 = vld [vmem:[#allocation2 + $0xb8] sm:$0xff]
    %v2322 = vld [vmem:[#allocation2 + $0xc0] sm:$0xff]
    %v2323 = vld [vmem:[#allocation2 + $0xc8] sm:$0xff]
    %v2324 = vld [vmem:[#allocation2 + $0xd0] sm:$0xff]
    %v2325 = vld [vmem:[#allocation2 + $0xd8] sm:$0xff]
    %v2326 = vld [vmem:[#allocation2 + $0xe0] sm:$0xff]
    %v2327 = vld [vmem:[#allocation2 + $0xe8] sm:$0xff]
    %v2328 = vld [vmem:[#allocation2 + $0xf0] sm:$0xff]
    %v2329 = vld [vmem:[#allocation2 + $0xf8] sm:$0xff]
    %v2330 = vld [vmem:[#allocation2 + $0x100] sm:$0xff]
    %v2331 = vld [vmem:[#allocation2 + $0x108] sm:$0xff]
    %v2332 = vld [vmem:[#allocation2 + $0x110] sm:$0xff]
    %v2333 = vld [vmem:[#allocation2 + $0x118] sm:$0xff]
    %v2334 = vld [vmem:[#allocation3 + $0x20] sm:$0xff]
    %v2335 = vld [vmem:[#allocation3 + $0x28] sm:$0xff]
    %v2336 = vld [vmem:[#allocation3 + $0x30] sm:$0xff]
    %v2337 = vld [vmem:[#allocation3 + $0x38] sm:$0xff]
    %v2338 = vld [vmem:[#allocation3 + $0x40] sm:$0xff]
    %v2339 = vld [vmem:[#allocation3 + $0x48] sm:$0xff]
    %v2340 = vld [vmem:[#allocation3 + $0x50] sm:$0xff]
    %v2341 = vld [vmem:[#allocation3 + $0x58] sm:$0xff]
    %v2342 = vld [vmem:[#allocation3 + $0x60] sm:$0xff]
    %v2343 = vld [vmem:[#allocation3 + $0x68] sm:$0xff]
    %v2344 = vld [vmem:[#allocation3 + $0x70] sm:$0xff]
    %v2345 = vld [vmem:[#allocation3 + $0x78] sm:$0xff]
    %v2346 = vld [vmem:[#allocation3 + $0x80] sm:$0xff]
    %v2347 = vld [vmem:[#allocation3 + $0x88] sm:$0xff]
    %v2348 = vld [vmem:[#allocation3 + $0x90] sm:$0xff]
    %v2349 = vld [vmem:[#allocation3 + $0x98] sm:$0xff]
    %v2350 = vld [vmem:[#allocation3 + $0xa0] sm:$0xff]
    %v2351 = vld [vmem:[#allocation3 + $0xa8] sm:$0xff]
    %v2352 = vld [vmem:[#allocation3 + $0xb0] sm:$0xff]
    %v2353 = vld [vmem:[#allocation3 + $0xb8] sm:$0xff]
    %v2354 = vld [vmem:[#allocation3 + $0xc0] sm:$0xff]
    %v2355 = vld [vmem:[#allocation3 + $0xc8] sm:$0xff]
    %v2356 = vld [vmem:[#allocation3 + $0xd0] sm:$0xff]
    %v2357 = vld [vmem:[#allocation3 + $0xd8] sm:$0xff]
    %v2358 = vld [vmem:[#allocation3 + $0xe0] sm:$0xff]
    %v2359 = vld [vmem:[#allocation3 + $0xe8] sm:$0xff]
    %v2360 = vld [vmem:[#allocation3 + $0xf0] sm:$0xff]
    %v2361 = vld [vmem:[#allocation3 + $0xf8] sm:$0xff]
    %v2362 = vld [vmem:[#allocation3 + $0x100] sm:$0xff]
    %v2363 = vld [vmem:[#allocation3 + $0x108] sm:$0xff]
    %v2364 = vld [vmem:[#allocation3 + $0x110] sm:$0xff]
    %v2365 = vld [vmem:[#allocation3 + $0x118] sm:$0xff]
    %v2366 = vld [vmem:[#allocation4 + $0x20] sm:$0xff]
    %v2367 = vld [vmem:[#allocation4 + $0x28] sm:$0xff]
    %v2368 = vld [vmem:[#allocation4 + $0x30] sm:$0xff]
    %v2369 = vld [vmem:[#allocation4 + $0x38] sm:$0xff]
    %v2370 = vld [vmem:[#allocation4 + $0x40] sm:$0xff]
    %v2371 = vld [vmem:[#allocation4 + $0x48] sm:$0xff]
    %v2372 = vld [vmem:[#allocation4 + $0x50] sm:$0xff]
    %v2373 = vld [vmem:[#allocation4 + $0x58] sm:$0xff]
    %v2374 = vld [vmem:[#allocation4 + $0x60] sm:$0xff]
    %v2375 = vld [vmem:[#allocation4 + $0x68] sm:$0xff]
    %v2376 = vld [vmem:[#allocation4 + $0x70] sm:$0xff]
    %v2377 = vld [vmem:[#allocation4 + $0x78] sm:$0xff]
    %v2378 = vld [vmem:[#allocation4 + $0x80] sm:$0xff]
    %v2379 = vld [vmem:[#allocation4 + $0x88] sm:$0xff]
    %v2380 = vld [vmem:[#allocation4 + $0x90] sm:$0xff]
    %v2381 = vld [vmem:[#allocation4 + $0x98] sm:$0xff]
    %v2382 = vld [vmem:[#allocation4 + $0xa0] sm:$0xff]
    %v2383 = vld [vmem:[#allocation4 + $0xa8] sm:$0xff]
    %v2384 = vld [vmem:[#allocation4 + $0xb0] sm:$0xff]
    %v2385 = vld [vmem:[#allocation4 + $0xb8] sm:$0xff]
    %v2386 = vld [vmem:[#allocation4 + $0xc0] sm:$0xff]
    %v2387 = vld [vmem:[#allocation4 + $0xc8] sm:$0xff]
    %v2388 = vld [vmem:[#allocation4 + $0xd0] sm:$0xff]
    %v2389 = vld [vmem:[#allocation4 + $0xd8] sm:$0xff]
    %v2390 = vld [vmem:[#allocation4 + $0xe0] sm:$0xff]
    %v2391 = vld [vmem:[#allocation4 + $0xe8] sm:$0xff]
    %v2392 = vld [vmem:[#allocation4 + $0xf0] sm:$0xff]
    %v2393 = vld [vmem:[#allocation4 + $0xf8] sm:$0xff]
    %v2394 = vld [vmem:[#allocation4 + $0x100] sm:$0xff]
    %v2395 = vld [vmem:[#allocation4 + $0x108] sm:$0xff]
    %v2396 = vld [vmem:[#allocation4 + $0x110] sm:$0xff]
    %v2397 = vld [vmem:[#allocation4 + $0x118] sm:$0xff]
    %2398 = vst [vmem:[#allocation5] sm:$0xff] %v2200
    %2399 = vst [vmem:[#allocation5 + $0x48] sm:$0xff] %v2201
    %2400 = vst [vmem:[#allocation5 + $0x90] sm:$0xff] %v2202
    %2401 = vst [vmem:[#allocation5 + $0xd8] sm:$0xff] %v2203
    %2402 = vst [vmem:[#allocation5 + $0x120] sm:$0xff] %v2204
    %2403 = vst [vmem:[#allocation5 + $0x168] sm:$0xff] %v2205
    %2404 = vst [vmem:[#allocation5 + $0x1b0] sm:$0xff] %v2206
    %2405 = vst [vmem:[#allocation5 + $0x1f8] sm:$0xff] %v2207
    %2406 = vst [vmem:[#allocation5 + $0x240] sm:$0xff] %v2208
    %2407 = vst [vmem:[#allocation5 + $0x288] sm:$0xff] %v2209
    %2408 = vst [vmem:[#allocation5 + $0x2d0] sm:$0xff] %v2210
    %2409 = vst [vmem:[#allocation5 + $0x318] sm:$0xff] %v2211
    %2410 = vst [vmem:[#allocation5 + $0x360] sm:$0xff] %v2212
    %2411 = vst [vmem:[#allocation5 + $0x3a8] sm:$0xff] %v2213
    %2412 = vst [vmem:[#allocation5 + $0x3f0] sm:$0xff] %v2214
    %2413 = vst [vmem:[#allocation5 + $0x438] sm:$0xff] %v2215
    %2414 = vst [vmem:[#allocation5 + $0x480] sm:$0xff] %v2216
    %2415 = vst [vmem:[#allocation5 + $0x4c8] sm:$0xff] %v2217
    %2416 = vst [vmem:[#allocation5 + $0x510] sm:$0xff] %v2218
    %2417 = vst [vmem:[#allocation5 + $0x558] sm:$0xff] %v2219
    %2418 = vst [vmem:[#allocation5 + $0x5a0] sm:$0xff] %v2220
    %2419 = vst [vmem:[#allocation5 + $0x5e8] sm:$0xff] %v2221
    %2420 = vst [vmem:[#allocation5 + $0x630] sm:$0xff] %v2222
    %2421 = vst [vmem:[#allocation5 + $0x678] sm:$0xff] %v2223
    %2422 = vst [vmem:[#allocation5 + $0x6c0] sm:$0xff] %v2224
    %2423 = vst [vmem:[#allocation5 + $0x708] sm:$0xff] %v2225
    %2424 = vst [vmem:[#allocation5 + $0x750] sm:$0xff] %v2226
    %2425 = vst [vmem:[#allocation5 + $0x798] sm:$0xff] %v2227
    %2426 = vst [vmem:[#allocation5 + $0x7e0] sm:$0xff] %v2228
    %2427 = vst [vmem:[#allocation5 + $0x828] sm:$0xff] %v2229
    %2428 = vst [vmem:[#allocation5 + $0x870] sm:$0xff] %v2230
    %2429 = vst [vmem:[#allocation5 + $0x8b8] sm:$0xff] %v2231
    %2430 = vst [vmem:[#allocation5 + $0x8] sm:$0xff] %v2232
    %2431 = vst [vmem:[#allocation5 + $0x50] sm:$0xff] %v2233
    %2432 = vst [vmem:[#allocation5 + $0x98] sm:$0xff] %v2234
    %2433 = vst [vmem:[#allocation5 + $0xe0] sm:$0xff] %v2235
    %2434 = vst [vmem:[#allocation5 + $0x128] sm:$0xff] %v2236
    %2435 = vst [vmem:[#allocation5 + $0x170] sm:$0xff] %v2237
    %2436 = vst [vmem:[#allocation5 + $0x1b8] sm:$0xff] %v2238
    %2437 = vst [vmem:[#allocation5 + $0x200] sm:$0xff] %v2239
    %2438 = vst [vmem:[#allocation5 + $0x248] sm:$0xff] %v2240
    %2439 = vst [vmem:[#allocation5 + $0x290] sm:$0xff] %v2241
    %2440 = vst [vmem:[#allocation5 + $0x2d8] sm:$0xff] %v2242
    %2441 = vst [vmem:[#allocation5 + $0x320] sm:$0xff] %v2243
    %2442 = vst [vmem:[#allocation5 + $0x368] sm:$0xff] %v2244
    %2443 = vst [vmem:[#allocation5 + $0x3b0] sm:$0xff] %v2245
    %2444 = vst [vmem:[#allocation5 + $0x3f8] sm:$0xff] %v2246
    %2445 = vst [vmem:[#allocation5 + $0x440] sm:$0xff] %v2247
    %2446 = vst [vmem:[#allocation5 + $0x488] sm:$0xff] %v2248
    %2447 = vst [vmem:[#allocation5 + $0x4d0] sm:$0xff] %v2249
    %2448 = vst [vmem:[#allocation5 + $0x518] sm:$0xff] %v2250
    %2449 = vst [vmem:[#allocation5 + $0x560] sm:$0xff] %v2251
    %2450 = vst [vmem:[#allocation5 + $0x5a8] sm:$0xff] %v2252
    %2451 = vst [vmem:[#allocation5 + $0x5f0] sm:$0xff] %v2253
    %2452 = vst [vmem:[#allocation5 + $0x638] sm:$0xff] %v2254
    %2453 = vst [vmem:[#allocation5 + $0x680] sm:$0xff] %v2255
    %2454 = vst [vmem:[#allocation5 + $0x6c8] sm:$0xff] %v2256
    %2455 = vst [vmem:[#allocation5 + $0x710] sm:$0xff] %v2257
    %2456 = vst [vmem:[#allocation5 + $0x758] sm:$0xff] %v2258
    %2457 = vst [vmem:[#allocation5 + $0x7a0] sm:$0xff] %v2259
    %2458 = vst [vmem:[#allocation5 + $0x7e8] sm:$0xff] %v2260
    %2459 = vst [vmem:[#allocation5 + $0x830] sm:$0xff] %v2261
    %2460 = vst [vmem:[#allocation5 + $0x878] sm:$0xff] %v2262
    %2461 = vst [vmem:[#allocation5 + $0x8c0] sm:$0xff] %v2263
    %2462 = vst [vmem:[#allocation5 + $0x10] sm:$0xff] %v2264
    %2463 = vst [vmem:[#allocation5 + $0x58] sm:$0xff] %v2265
    %2464 = vst [vmem:[#allocation5 + $0xa0] sm:$0xff] %v2266
    %2465 = vst [vmem:[#allocation5 + $0xe8] sm:$0xff] %v2267
    %2466 = vst [vmem:[#allocation5 + $0x130] sm:$0xff] %v2268
    %2467 = vst [vmem:[#allocation5 + $0x178] sm:$0xff] %v2269
    %2468 = vst [vmem:[#allocation5 + $0x1c0] sm:$0xff] %v2270
    %2469 = vst [vmem:[#allocation5 + $0x208] sm:$0xff] %v2271
    %2470 = vst [vmem:[#allocation5 + $0x250] sm:$0xff] %v2272
    %2471 = vst [vmem:[#allocation5 + $0x298] sm:$0xff] %v2273
    %2472 = vst [vmem:[#allocation5 + $0x2e0] sm:$0xff] %v2274
    %2473 = vst [vmem:[#allocation5 + $0x328] sm:$0xff] %v2275
    %2474 = vst [vmem:[#allocation5 + $0x370] sm:$0xff] %v2276
    %2475 = vst [vmem:[#allocation5 + $0x3b8] sm:$0xff] %v2277
    %2476 = vst [vmem:[#allocation5 + $0x400] sm:$0xff] %v2278
    %2477 = vst [vmem:[#allocation5 + $0x448] sm:$0xff] %v2279
    %2478 = vst [vmem:[#allocation5 + $0x490] sm:$0xff] %v2280
    %2479 = vst [vmem:[#allocation5 + $0x4d8] sm:$0xff] %v2281
    %2480 = vst [vmem:[#allocation5 + $0x520] sm:$0xff] %v2282
    %2481 = vst [vmem:[#allocation5 + $0x568] sm:$0xff] %v2283
    %2482 = vst [vmem:[#allocation5 + $0x5b0] sm:$0xff] %v2284
    %2483 = vst [vmem:[#allocation5 + $0x5f8] sm:$0xff] %v2285
    %2484 = vst [vmem:[#allocation5 + $0x640] sm:$0xff] %v2286
    %2485 = vst [vmem:[#allocation5 + $0x688] sm:$0xff] %v2287
    %2486 = vst [vmem:[#allocation5 + $0x6d0] sm:$0xff] %v2288
    %2487 = vst [vmem:[#allocation5 + $0x718] sm:$0xff] %v2289
    %2488 = vst [vmem:[#allocation5 + $0x760] sm:$0xff] %v2290
    %2489 = vst [vmem:[#allocation5 + $0x7a8] sm:$0xff] %v2291
    %2490 = vst [vmem:[#allocation5 + $0x7f0] sm:$0xff] %v2292
    %2491 = vst [vmem:[#allocation5 + $0x838] sm:$0xff] %v2293
    %2492 = vst [vmem:[#allocation5 + $0x880] sm:$0xff] %v2294
    %2493 = vst [vmem:[#allocation5 + $0x8c8] sm:$0xff] %v2295
    %2494 = vst [vmem:[#allocation5 + $0x18] sm:$0xff] %v2202
    %2495 = vst [vmem:[#allocation5 + $0x60] sm:$0xff] %v2203
    %2496 = vst [vmem:[#allocation5 + $0xa8] sm:$0xff] %v2204
    %2497 = vst [vmem:[#allocation5 + $0xf0] sm:$0xff] %v2205
    %2498 = vst [vmem:[#allocation5 + $0x138] sm:$0xff] %v2206
    %2499 = vst [vmem:[#allocation5 + $0x180] sm:$0xff] %v2207
    %2500 = vst [vmem:[#allocation5 + $0x1c8] sm:$0xff] %v2208
    %2501 = vst [vmem:[#allocation5 + $0x210] sm:$0xff] %v2209
    %2502 = vst [vmem:[#allocation5 + $0x258] sm:$0xff] %v2210
    %2503 = vst [vmem:[#allocation5 + $0x2a0] sm:$0xff] %v2211
    %2504 = vst [vmem:[#allocation5 + $0x2e8] sm:$0xff] %v2212
    %2505 = vst [vmem:[#allocation5 + $0x330] sm:$0xff] %v2213
    %2506 = vst [vmem:[#allocation5 + $0x378] sm:$0xff] %v2214
    %2507 = vst [vmem:[#allocation5 + $0x3c0] sm:$0xff] %v2215
    %2508 = vst [vmem:[#allocation5 + $0x408] sm:$0xff] %v2216
    %2509 = vst [vmem:[#allocation5 + $0x450] sm:$0xff] %v2217
    %2510 = vst [vmem:[#allocation5 + $0x498] sm:$0xff] %v2218
    %2511 = vst [vmem:[#allocation5 + $0x4e0] sm:$0xff] %v2219
    %2512 = vst [vmem:[#allocation5 + $0x528] sm:$0xff] %v2220
    %2513 = vst [vmem:[#allocation5 + $0x570] sm:$0xff] %v2221
    %2514 = vst [vmem:[#allocation5 + $0x5b8] sm:$0xff] %v2222
    %2515 = vst [vmem:[#allocation5 + $0x600] sm:$0xff] %v2223
    %2516 = vst [vmem:[#allocation5 + $0x648] sm:$0xff] %v2224
    %2517 = vst [vmem:[#allocation5 + $0x690] sm:$0xff] %v2225
    %2518 = vst [vmem:[#allocation5 + $0x6d8] sm:$0xff] %v2226
    %2519 = vst [vmem:[#allocation5 + $0x720] sm:$0xff] %v2227
    %2520 = vst [vmem:[#allocation5 + $0x768] sm:$0xff] %v2228
    %2521 = vst [vmem:[#allocation5 + $0x7b0] sm:$0xff] %v2229
    %2522 = vst [vmem:[#allocation5 + $0x7f8] sm:$0xff] %v2230
    %2523 = vst [vmem:[#allocation5 + $0x840] sm:$0xff] %v2231
    %2524 = vst [vmem:[#allocation5 + $0x888] sm:$0xff] %v2296
    %2525 = vst [vmem:[#allocation5 + $0x8d0] sm:$0xff] %v2297
    %2526 = vst [vmem:[#allocation5 + $0x20] sm:$0xff] %v2234
    %2527 = vst [vmem:[#allocation5 + $0x68] sm:$0xff] %v2235
    %2528 = vst [vmem:[#allocation5 + $0xb0] sm:$0xff] %v2236
    %2529 = vst [vmem:[#allocation5 + $0xf8] sm:$0xff] %v2237
    %2530 = vst [vmem:[#allocation5 + $0x140] sm:$0xff] %v2238
    %2531 = vst [vmem:[#allocation5 + $0x188] sm:$0xff] %v2239
    %2532 = vst [vmem:[#allocation5 + $0x1d0] sm:$0xff] %v2240
    %2533 = vst [vmem:[#allocation5 + $0x218] sm:$0xff] %v2241
    %2534 = vst [vmem:[#allocation5 + $0x260] sm:$0xff] %v2242
    %2535 = vst [vmem:[#allocation5 + $0x2a8] sm:$0xff] %v2243
    %2536 = vst [vmem:[#allocation5 + $0x2f0] sm:$0xff] %v2244
    %2537 = vst [vmem:[#allocation5 + $0x338] sm:$0xff] %v2245
    %2538 = vst [vmem:[#allocation5 + $0x380] sm:$0xff] %v2246
    %2539 = vst [vmem:[#allocation5 + $0x3c8] sm:$0xff] %v2247
    %2540 = vst [vmem:[#allocation5 + $0x410] sm:$0xff] %v2248
    %2541 = vst [vmem:[#allocation5 + $0x458] sm:$0xff] %v2249
    %2542 = vst [vmem:[#allocation5 + $0x4a0] sm:$0xff] %v2250
    %2543 = vst [vmem:[#allocation5 + $0x4e8] sm:$0xff] %v2251
    %2544 = vst [vmem:[#allocation5 + $0x530] sm:$0xff] %v2252
    %2545 = vst [vmem:[#allocation5 + $0x578] sm:$0xff] %v2253
    %2546 = vst [vmem:[#allocation5 + $0x5c0] sm:$0xff] %v2254
    %2547 = vst [vmem:[#allocation5 + $0x608] sm:$0xff] %v2255
    %2548 = vst [vmem:[#allocation5 + $0x650] sm:$0xff] %v2256
    %2549 = vst [vmem:[#allocation5 + $0x698] sm:$0xff] %v2257
    %2550 = vst [vmem:[#allocation5 + $0x6e0] sm:$0xff] %v2258
    %2551 = vst [vmem:[#allocation5 + $0x728] sm:$0xff] %v2259
    %2552 = vst [vmem:[#allocation5 + $0x770] sm:$0xff] %v2260
    %2553 = vst [vmem:[#allocation5 + $0x7b8] sm:$0xff] %v2261
    %2554 = vst [vmem:[#allocation5 + $0x800] sm:$0xff] %v2262
    %2555 = vst [vmem:[#allocation5 + $0x848] sm:$0xff] %v2263
    %2556 = vst [vmem:[#allocation5 + $0x890] sm:$0xff] %v2298
    %2557 = vst [vmem:[#allocation5 + $0x8d8] sm:$0xff] %v2299
    %2558 = vst [vmem:[#allocation5 + $0x28] sm:$0xff] %v2266
    %2559 = vst [vmem:[#allocation5 + $0x70] sm:$0xff] %v2267
    %2560 = vst [vmem:[#allocation5 + $0xb8] sm:$0xff] %v2268
    %2561 = vst [vmem:[#allocation5 + $0x100] sm:$0xff] %v2269
    %2562 = vst [vmem:[#allocation5 + $0x148] sm:$0xff] %v2270
    %2563 = vst [vmem:[#allocation5 + $0x190] sm:$0xff] %v2271
    %2564 = vst [vmem:[#allocation5 + $0x1d8] sm:$0xff] %v2272
    %2565 = vst [vmem:[#allocation5 + $0x220] sm:$0xff] %v2273
    %2566 = vst [vmem:[#allocation5 + $0x268] sm:$0xff] %v2274
    %2567 = vst [vmem:[#allocation5 + $0x2b0] sm:$0xff] %v2275
    %2568 = vst [vmem:[#allocation5 + $0x2f8] sm:$0xff] %v2276
    %2569 = vst [vmem:[#allocation5 + $0x340] sm:$0xff] %v2277
    %2570 = vst [vmem:[#allocation5 + $0x388] sm:$0xff] %v2278
    %2571 = vst [vmem:[#allocation5 + $0x3d0] sm:$0xff] %v2279
    %2572 = vst [vmem:[#allocation5 + $0x418] sm:$0xff] %v2280
    %2573 = vst [vmem:[#allocation5 + $0x460] sm:$0xff] %v2281
    %2574 = vst [vmem:[#allocation5 + $0x4a8] sm:$0xff] %v2282
    %2575 = vst [vmem:[#allocation5 + $0x4f0] sm:$0xff] %v2283
    %2576 = vst [vmem:[#allocation5 + $0x538] sm:$0xff] %v2284
    %2577 = vst [vmem:[#allocation5 + $0x580] sm:$0xff] %v2285
    %2578 = vst [vmem:[#allocation5 + $0x5c8] sm:$0xff] %v2286
    %2579 = vst [vmem:[#allocation5 + $0x610] sm:$0xff] %v2287
    %2580 = vst [vmem:[#allocation5 + $0x658] sm:$0xff] %v2288
    %2581 = vst [vmem:[#allocation5 + $0x6a0] sm:$0xff] %v2289
    %2582 = vst [vmem:[#allocation5 + $0x6e8] sm:$0xff] %v2290
    %2583 = vst [vmem:[#allocation5 + $0x730] sm:$0xff] %v2291
    %2584 = vst [vmem:[#allocation5 + $0x778] sm:$0xff] %v2292
    %2585 = vst [vmem:[#allocation5 + $0x7c0] sm:$0xff] %v2293
    %2586 = vst [vmem:[#allocation5 + $0x808] sm:$0xff] %v2294
    %2587 = vst [vmem:[#allocation5 + $0x850] sm:$0xff] %v2295
    %2588 = vst [vmem:[#allocation5 + $0x898] sm:$0xff] %v2300
    %2589 = vst [vmem:[#allocation5 + $0x8e0] sm:$0xff] %v2301
    %2590 = vst [vmem:[#allocation5 + $0x30] sm:$0xff] %v2302
    %2591 = vst [vmem:[#allocation5 + $0x78] sm:$0xff] %v2303
    %2592 = vst [vmem:[#allocation5 + $0xc0] sm:$0xff] %v2304
    %2593 = vst [vmem:[#allocation5 + $0x108] sm:$0xff] %v2305
    %2594 = vst [vmem:[#allocation5 + $0x150] sm:$0xff] %v2306
    %2595 = vst [vmem:[#allocation5 + $0x198] sm:$0xff] %v2307
    %2596 = vst [vmem:[#allocation5 + $0x1e0] sm:$0xff] %v2308
    %2597 = vst [vmem:[#allocation5 + $0x228] sm:$0xff] %v2309
    %2598 = vst [vmem:[#allocation5 + $0x270] sm:$0xff] %v2310
    %2599 = vst [vmem:[#allocation5 + $0x2b8] sm:$0xff] %v2311
    %2600 = vst [vmem:[#allocation5 + $0x300] sm:$0xff] %v2312
    %2601 = vst [vmem:[#allocation5 + $0x348] sm:$0xff] %v2313
    %2602 = vst [vmem:[#allocation5 + $0x390] sm:$0xff] %v2314
    %2603 = vst [vmem:[#allocation5 + $0x3d8] sm:$0xff] %v2315
    %2604 = vst [vmem:[#allocation5 + $0x420] sm:$0xff] %v2316
    %2605 = vst [vmem:[#allocation5 + $0x468] sm:$0xff] %v2317
    %2606 = vst [vmem:[#allocation5 + $0x4b0] sm:$0xff] %v2318
    %2607 = vst [vmem:[#allocation5 + $0x4f8] sm:$0xff] %v2319
    %2608 = vst [vmem:[#allocation5 + $0x540] sm:$0xff] %v2320
    %2609 = vst [vmem:[#allocation5 + $0x588] sm:$0xff] %v2321
    %2610 = vst [vmem:[#allocation5 + $0x5d0] sm:$0xff] %v2322
    %2611 = vst [vmem:[#allocation5 + $0x618] sm:$0xff] %v2323
    %2612 = vst [vmem:[#allocation5 + $0x660] sm:$0xff] %v2324
    %2613 = vst [vmem:[#allocation5 + $0x6a8] sm:$0xff] %v2325
    %2614 = vst [vmem:[#allocation5 + $0x6f0] sm:$0xff] %v2326
    %2615 = vst [vmem:[#allocation5 + $0x738] sm:$0xff] %v2327
    %2616 = vst [vmem:[#allocation5 + $0x780] sm:$0xff] %v2328
    %2617 = vst [vmem:[#allocation5 + $0x7c8] sm:$0xff] %v2329
    %2618 = vst [vmem:[#allocation5 + $0x810] sm:$0xff] %v2330
    %2619 = vst [vmem:[#allocation5 + $0x858] sm:$0xff] %v2331
    %2620 = vst [vmem:[#allocation5 + $0x8a0] sm:$0xff] %v2332
    %2621 = vst [vmem:[#allocation5 + $0x8e8] sm:$0xff] %v2333
    %2622 = vst [vmem:[#allocation5 + $0x38] sm:$0xff] %v2334
    %2623 = vst [vmem:[#allocation5 + $0x80] sm:$0xff] %v2335
    %2624 = vst [vmem:[#allocation5 + $0xc8] sm:$0xff] %v2336
    %2625 = vst [vmem:[#allocation5 + $0x110] sm:$0xff] %v2337
    %2626 = vst [vmem:[#allocation5 + $0x158] sm:$0xff] %v2338
    %2627 = vst [vmem:[#allocation5 + $0x1a0] sm:$0xff] %v2339
    %2628 = vst [vmem:[#allocation5 + $0x1e8] sm:$0xff] %v2340
    %2629 = vst [vmem:[#allocation5 + $0x230] sm:$0xff] %v2341
    %2630 = vst [vmem:[#allocation5 + $0x278] sm:$0xff] %v2342
    %2631 = vst [vmem:[#allocation5 + $0x2c0] sm:$0xff] %v2343
    %2632 = vst [vmem:[#allocation5 + $0x308] sm:$0xff] %v2344
    %2633 = vst [vmem:[#allocation5 + $0x350] sm:$0xff] %v2345
    %2634 = vst [vmem:[#allocation5 + $0x398] sm:$0xff] %v2346
    %2635 = vst [vmem:[#allocation5 + $0x3e0] sm:$0xff] %v2347
    %2636 = vst [vmem:[#allocation5 + $0x428] sm:$0xff] %v2348
    %2637 = vst [vmem:[#allocation5 + $0x470] sm:$0xff] %v2349
    %2638 = vst [vmem:[#allocation5 + $0x4b8] sm:$0xff] %v2350
    %2639 = vst [vmem:[#allocation5 + $0x500] sm:$0xff] %v2351
    %2640 = vst [vmem:[#allocation5 + $0x548] sm:$0xff] %v2352
    %2641 = vst [vmem:[#allocation5 + $0x590] sm:$0xff] %v2353
    %2642 = vst [vmem:[#allocation5 + $0x5d8] sm:$0xff] %v2354
    %2643 = vst [vmem:[#allocation5 + $0x620] sm:$0xff] %v2355
    %2644 = vst [vmem:[#allocation5 + $0x668] sm:$0xff] %v2356
    %2645 = vst [vmem:[#allocation5 + $0x6b0] sm:$0xff] %v2357
    %2646 = vst [vmem:[#allocation5 + $0x6f8] sm:$0xff] %v2358
    %2647 = vst [vmem:[#allocation5 + $0x740] sm:$0xff] %v2359
    %2648 = vst [vmem:[#allocation5 + $0x788] sm:$0xff] %v2360
    %2649 = vst [vmem:[#allocation5 + $0x7d0] sm:$0xff] %v2361
    %2650 = vst [vmem:[#allocation5 + $0x818] sm:$0xff] %v2362
    %2651 = vst [vmem:[#allocation5 + $0x860] sm:$0xff] %v2363
    %2652 = vst [vmem:[#allocation5 + $0x8a8] sm:$0xff] %v2364
    %2653 = vst [vmem:[#allocation5 + $0x8f0] sm:$0xff] %v2365
    %2654 = vst [vmem:[#allocation5 + $0x40] sm:$0xff] %v2366
    %2655 = vst [vmem:[#allocation5 + $0x88] sm:$0xff] %v2367
    %2656 = vst [vmem:[#allocation5 + $0xd0] sm:$0xff] %v2368
    %2657 = vst [vmem:[#allocation5 + $0x118] sm:$0xff] %v2369
    %2658 = vst [vmem:[#allocation5 + $0x160] sm:$0xff] %v2370
    %2659 = vst [vmem:[#allocation5 + $0x1a8] sm:$0xff] %v2371
    %2660 = vst [vmem:[#allocation5 + $0x1f0] sm:$0xff] %v2372
    %2661 = vst [vmem:[#allocation5 + $0x238] sm:$0xff] %v2373
    %2662 = vst [vmem:[#allocation5 + $0x280] sm:$0xff] %v2374
    %2663 = vst [vmem:[#allocation5 + $0x2c8] sm:$0xff] %v2375
    %2664 = vst [vmem:[#allocation5 + $0x310] sm:$0xff] %v2376
    %2665 = vst [vmem:[#allocation5 + $0x358] sm:$0xff] %v2377
    %2666 = vst [vmem:[#allocation5 + $0x3a0] sm:$0xff] %v2378
    %2667 = vst [vmem:[#allocation5 + $0x3e8] sm:$0xff] %v2379
    %2668 = vst [vmem:[#allocation5 + $0x430] sm:$0xff] %v2380
    %2669 = vst [vmem:[#allocation5 + $0x478] sm:$0xff] %v2381
    %2670 = vst [vmem:[#allocation5 + $0x4c0] sm:$0xff] %v2382
    %2671 = vst [vmem:[#allocation5 + $0x508] sm:$0xff] %v2383
    %2672 = vst [vmem:[#allocation5 + $0x550] sm:$0xff] %v2384
    %2673 = vst [vmem:[#allocation5 + $0x598] sm:$0xff] %v2385
    %2674 = vst [vmem:[#allocation5 + $0x5e0] sm:$0xff] %v2386
    %2675 = vst [vmem:[#allocation5 + $0x628] sm:$0xff] %v2387
    %2676 = vst [vmem:[#allocation5 + $0x670] sm:$0xff] %v2388
    %2677 = vst [vmem:[#allocation5 + $0x6b8] sm:$0xff] %v2389
    %2678 = vst [vmem:[#allocation5 + $0x700] sm:$0xff] %v2390
    %2679 = vst [vmem:[#allocation5 + $0x748] sm:$0xff] %v2391
    %2680 = vst [vmem:[#allocation5 + $0x790] sm:$0xff] %v2392
    %2681 = vst [vmem:[#allocation5 + $0x7d8] sm:$0xff] %v2393
    %2682 = vst [vmem:[#allocation5 + $0x820] sm:$0xff] %v2394
    %2683 = vst [vmem:[#allocation5 + $0x868] sm:$0xff] %v2395
    %2684 = vst [vmem:[#allocation5 + $0x8b0] sm:$0xff] %v2396
    %2685 = vst [vmem:[#allocation5 + $0x8f8] sm:$0xff] %v2397
    %v2686 = vld [vmem:[#allocation5] sm:$0xff]
    %v2687 = vld [vmem:[#allocation5 + $0x8] sm:$0xff]
    %v2688 = vld [vmem:[#allocation5 + $0x10] sm:$0xff]
    %v2689 = vld [vmem:[#allocation5 + $0x18] sm:$0xff]
    %v2690 = vld [vmem:[#allocation5 + $0x20] sm:$0xff]
    %v2691 = vld [vmem:[#allocation5 + $0x28] sm:$0xff]
    %v2692 = vld [vmem:[#allocation5 + $0x30] sm:$0xff]
    %v2693 = vld [vmem:[#allocation5 + $0x38] sm:$0xff]
    %v2694 = vld [vmem:[#allocation5 + $0x40] sm:$0xff]
    %v2695 = vld [vmem:[#allocation5 + $0x48] sm:$0xff]
    %v2696 = vld [vmem:[#allocation5 + $0x50] sm:$0xff]
    %v2697 = vld [vmem:[#allocation5 + $0x58] sm:$0xff]
    %v2698 = vld [vmem:[#allocation5 + $0x60] sm:$0xff]
    %v2699 = vld [vmem:[#allocation5 + $0x68] sm:$0xff]
    %v2700 = vld [vmem:[#allocation5 + $0x70] sm:$0xff]
    %v2701 = vld [vmem:[#allocation5 + $0x78] sm:$0xff]
    %v2702 = vld [vmem:[#allocation5 + $0x80] sm:$0xff]
    %v2703 = vld [vmem:[#allocation5 + $0x88] sm:$0xff]
    %v2704 = vld [vmem:[#allocation5 + $0x90] sm:$0xff]
    %v2705 = vld [vmem:[#allocation5 + $0x98] sm:$0xff]
    %v2706 = vld [vmem:[#allocation5 + $0xa0] sm:$0xff]
    %v2707 = vld [vmem:[#allocation5 + $0xa8] sm:$0xff]
    %v2708 = vld [vmem:[#allocation5 + $0xb0] sm:$0xff]
    %v2709 = vld [vmem:[#allocation5 + $0xb8] sm:$0xff]
    %v2710 = vld [vmem:[#allocation5 + $0xc0] sm:$0xff]
    %v2711 = vld [vmem:[#allocation5 + $0xc8] sm:$0xff]
    %v2712 = vld [vmem:[#allocation5 + $0xd0] sm:$0xff]
    %v2713 = vld [vmem:[#allocation5 + $0xd8] sm:$0xff]
    %v2714 = vld [vmem:[#allocation5 + $0xe0] sm:$0xff]
    %v2715 = vld [vmem:[#allocation5 + $0xe8] sm:$0xff]
    %v2716 = vld [vmem:[#allocation5 + $0xf0] sm:$0xff]
    %v2717 = vld [vmem:[#allocation5 + $0xf8] sm:$0xff]
    %v2718 = vld [vmem:[#allocation5 + $0x100] sm:$0xff]
    %v2719 = vld [vmem:[#allocation5 + $0x108] sm:$0xff]
    %v2720 = vld [vmem:[#allocation5 + $0x110] sm:$0xff]
    %v2721 = vld [vmem:[#allocation5 + $0x118] sm:$0xff]
    %v2722 = vld [vmem:[#allocation5 + $0x120] sm:$0xff]
    %v2723 = vld [vmem:[#allocation5 + $0x128] sm:$0xff]
    %v2724 = vld [vmem:[#allocation5 + $0x130] sm:$0xff]
    %v2725 = vld [vmem:[#allocation5 + $0x138] sm:$0xff]
    %v2726 = vld [vmem:[#allocation5 + $0x140] sm:$0xff]
    %v2727 = vld [vmem:[#allocation5 + $0x148] sm:$0xff]
    %v2728 = vld [vmem:[#allocation5 + $0x150] sm:$0xff]
    %v2729 = vld [vmem:[#allocation5 + $0x158] sm:$0xff]
    %v2730 = vld [vmem:[#allocation5 + $0x160] sm:$0xff]
    %v2731 = vld [vmem:[#allocation5 + $0x168] sm:$0xff]
    %v2732 = vld [vmem:[#allocation5 + $0x170] sm:$0xff]
    %v2733 = vld [vmem:[#allocation5 + $0x178] sm:$0xff]
    %v2734 = vld [vmem:[#allocation5 + $0x180] sm:$0xff]
    %v2735 = vld [vmem:[#allocation5 + $0x188] sm:$0xff]
    %v2736 = vld [vmem:[#allocation5 + $0x190] sm:$0xff]
    %v2737 = vld [vmem:[#allocation5 + $0x198] sm:$0xff]
    %v2738 = vld [vmem:[#allocation5 + $0x1a0] sm:$0xff]
    %v2739 = vld [vmem:[#allocation5 + $0x1a8] sm:$0xff]
    %v2740 = vld [vmem:[#allocation5 + $0x1b0] sm:$0xff]
    %v2741 = vld [vmem:[#allocation5 + $0x1b8] sm:$0xff]
    %v2742 = vld [vmem:[#allocation5 + $0x1c0] sm:$0xff]
    %v2743 = vld [vmem:[#allocation5 + $0x1c8] sm:$0xff]
    %v2744 = vld [vmem:[#allocation5 + $0x1d0] sm:$0xff]
    %v2745 = vld [vmem:[#allocation5 + $0x1d8] sm:$0xff]
    %v2746 = vld [vmem:[#allocation5 + $0x1e0] sm:$0xff]
    %v2747 = vld [vmem:[#allocation5 + $0x1e8] sm:$0xff]
    %v2748 = vld [vmem:[#allocation5 + $0x1f0] sm:$0xff]
    %v2749 = vld [vmem:[#allocation5 + $0x1f8] sm:$0xff]
    %v2750 = vld [vmem:[#allocation5 + $0x200] sm:$0xff]
    %v2751 = vld [vmem:[#allocation5 + $0x208] sm:$0xff]
    %v2752 = vld [vmem:[#allocation5 + $0x210] sm:$0xff]
    %v2753 = vld [vmem:[#allocation5 + $0x218] sm:$0xff]
    %v2754 = vld [vmem:[#allocation5 + $0x220] sm:$0xff]
    %v2755 = vld [vmem:[#allocation5 + $0x228] sm:$0xff]
    %v2756 = vld [vmem:[#allocation5 + $0x230] sm:$0xff]
    %v2757 = vld [vmem:[#allocation5 + $0x238] sm:$0xff]
    %v2758 = vld [vmem:[#allocation5 + $0x240] sm:$0xff]
    %v2759 = vld [vmem:[#allocation5 + $0x248] sm:$0xff]
    %v2760 = vld [vmem:[#allocation5 + $0x250] sm:$0xff]
    %v2761 = vld [vmem:[#allocation5 + $0x258] sm:$0xff]
    %v2762 = vld [vmem:[#allocation5 + $0x260] sm:$0xff]
    %v2763 = vld [vmem:[#allocation5 + $0x268] sm:$0xff]
    %v2764 = vld [vmem:[#allocation5 + $0x270] sm:$0xff]
    %v2765 = vld [vmem:[#allocation5 + $0x278] sm:$0xff]
    %v2766 = vld [vmem:[#allocation5 + $0x280] sm:$0xff]
    %v2767 = vld [vmem:[#allocation5 + $0x288] sm:$0xff]
    %v2768 = vld [vmem:[#allocation5 + $0x290] sm:$0xff]
    %v2769 = vld [vmem:[#allocation5 + $0x298] sm:$0xff]
    %v2770 = vld [vmem:[#allocation5 + $0x2a0] sm:$0xff]
    %v2771 = vld [vmem:[#allocation5 + $0x2a8] sm:$0xff]
    %v2772 = vld [vmem:[#allocation5 + $0x2b0] sm:$0xff]
    %v2773 = vld [vmem:[#allocation5 + $0x2b8] sm:$0xff]
    %v2774 = vld [vmem:[#allocation5 + $0x2c0] sm:$0xff]
    %v2775 = vld [vmem:[#allocation5 + $0x2c8] sm:$0xff]
    %v2776 = vld [vmem:[#allocation5 + $0x2d0] sm:$0xff]
    %v2777 = vld [vmem:[#allocation5 + $0x2d8] sm:$0xff]
    %v2778 = vld [vmem:[#allocation5 + $0x2e0] sm:$0xff]
    %v2779 = vld [vmem:[#allocation5 + $0x2e8] sm:$0xff]
    %v2780 = vld [vmem:[#allocation5 + $0x2f0] sm:$0xff]
    %v2781 = vld [vmem:[#allocation5 + $0x2f8] sm:$0xff]
    %v2782 = vld [vmem:[#allocation5 + $0x300] sm:$0xff]
    %v2783 = vld [vmem:[#allocation5 + $0x308] sm:$0xff]
    %v2784 = vld [vmem:[#allocation5 + $0x310] sm:$0xff]
    %v2785 = vld [vmem:[#allocation5 + $0x318] sm:$0xff]
    %v2786 = vld [vmem:[#allocation5 + $0x320] sm:$0xff]
    %v2787 = vld [vmem:[#allocation5 + $0x328] sm:$0xff]
    %v2788 = vld [vmem:[#allocation5 + $0x330] sm:$0xff]
    %v2789 = vld [vmem:[#allocation5 + $0x338] sm:$0xff]
    %v2790 = vld [vmem:[#allocation5 + $0x340] sm:$0xff]
    %v2791 = vld [vmem:[#allocation5 + $0x348] sm:$0xff]
    %v2792 = vld [vmem:[#allocation5 + $0x350] sm:$0xff]
    %v2793 = vld [vmem:[#allocation5 + $0x358] sm:$0xff]
    %v2794 = vld [vmem:[#allocation5 + $0x360] sm:$0xff]
    %v2795 = vld [vmem:[#allocation5 + $0x368] sm:$0xff]
    %v2796 = vld [vmem:[#allocation5 + $0x370] sm:$0xff]
    %v2797 = vld [vmem:[#allocation5 + $0x378] sm:$0xff]
    %v2798 = vld [vmem:[#allocation5 + $0x380] sm:$0xff]
    %v2799 = vld [vmem:[#allocation5 + $0x388] sm:$0xff]
    %v2800 = vld [vmem:[#allocation5 + $0x390] sm:$0xff]
    %v2801 = vld [vmem:[#allocation5 + $0x398] sm:$0xff]
    %v2802 = vld [vmem:[#allocation5 + $0x3a0] sm:$0xff]
    %v2803 = vld [vmem:[#allocation5 + $0x3a8] sm:$0xff]
    %v2804 = vld [vmem:[#allocation5 + $0x3b0] sm:$0xff]
    %v2805 = vld [vmem:[#allocation5 + $0x3b8] sm:$0xff]
    %v2806 = vld [vmem:[#allocation5 + $0x3c0] sm:$0xff]
    %v2807 = vld [vmem:[#allocation5 + $0x3c8] sm:$0xff]
    %v2808 = vld [vmem:[#allocation5 + $0x3d0] sm:$0xff]
    %v2809 = vld [vmem:[#allocation5 + $0x3d8] sm:$0xff]
    %v2810 = vld [vmem:[#allocation5 + $0x3e0] sm:$0xff]
    %v2811 = vld [vmem:[#allocation5 + $0x3e8] sm:$0xff]
    %v2812 = vld [vmem:[#allocation5 + $0x3f0] sm:$0xff]
    %v2813 = vld [vmem:[#allocation5 + $0x3f8] sm:$0xff]
    %v2814 = vld [vmem:[#allocation5 + $0x400] sm:$0xff]
    %v2815 = vld [vmem:[#allocation5 + $0x408] sm:$0xff]
    %v2816 = vld [vmem:[#allocation5 + $0x410] sm:$0xff]
    %v2817 = vld [vmem:[#allocation5 + $0x418] sm:$0xff]
    %v2818 = vld [vmem:[#allocation5 + $0x420] sm:$0xff]
    %v2819 = vld [vmem:[#allocation5 + $0x428] sm:$0xff]
    %v2820 = vld [vmem:[#allocation5 + $0x430] sm:$0xff]
    %v2821 = vld [vmem:[#allocation5 + $0x438] sm:$0xff]
    %v2822 = vld [vmem:[#allocation5 + $0x440] sm:$0xff]
    %v2823 = vld [vmem:[#allocation5 + $0x448] sm:$0xff]
    %v2824 = vld [vmem:[#allocation5 + $0x450] sm:$0xff]
    %v2825 = vld [vmem:[#allocation5 + $0x458] sm:$0xff]
    %v2826 = vld [vmem:[#allocation5 + $0x460] sm:$0xff]
    %v2827 = vld [vmem:[#allocation5 + $0x468] sm:$0xff]
    %v2828 = vld [vmem:[#allocation5 + $0x470] sm:$0xff]
    %v2829 = vld [vmem:[#allocation5 + $0x478] sm:$0xff]
    %v2830 = vld [vmem:[#allocation5 + $0x480] sm:$0xff]
    %v2831 = vld [vmem:[#allocation5 + $0x488] sm:$0xff]
    %v2832 = vld [vmem:[#allocation5 + $0x490] sm:$0xff]
    %v2833 = vld [vmem:[#allocation5 + $0x498] sm:$0xff]
    %v2834 = vld [vmem:[#allocation5 + $0x4a0] sm:$0xff]
    %v2835 = vld [vmem:[#allocation5 + $0x4a8] sm:$0xff]
    %v2836 = vld [vmem:[#allocation5 + $0x4b0] sm:$0xff]
    %v2837 = vld [vmem:[#allocation5 + $0x4b8] sm:$0xff]
    %v2838 = vld [vmem:[#allocation5 + $0x4c0] sm:$0xff]
    %v2839 = vld [vmem:[#allocation5 + $0x4c8] sm:$0xff]
    %v2840 = vld [vmem:[#allocation5 + $0x4d0] sm:$0xff]
    %v2841 = vld [vmem:[#allocation5 + $0x4d8] sm:$0xff]
    %v2842 = vld [vmem:[#allocation5 + $0x4e0] sm:$0xff]
    %v2843 = vld [vmem:[#allocation5 + $0x4e8] sm:$0xff]
    %v2844 = vld [vmem:[#allocation5 + $0x4f0] sm:$0xff]
    %v2845 = vld [vmem:[#allocation5 + $0x4f8] sm:$0xff]
    %v2846 = vld [vmem:[#allocation5 + $0x500] sm:$0xff]
    %v2847 = vld [vmem:[#allocation5 + $0x508] sm:$0xff]
    %v2848 = vld [vmem:[#allocation5 + $0x510] sm:$0xff]
    %v2849 = vld [vmem:[#allocation5 + $0x518] sm:$0xff]
    %v2850 = vld [vmem:[#allocation5 + $0x520] sm:$0xff]
    %v2851 = vld [vmem:[#allocation5 + $0x528] sm:$0xff]
    %v2852 = vld [vmem:[#allocation5 + $0x530] sm:$0xff]
    %v2853 = vld [vmem:[#allocation5 + $0x538] sm:$0xff]
    %v2854 = vld [vmem:[#allocation5 + $0x540] sm:$0xff]
    %v2855 = vld [vmem:[#allocation5 + $0x548] sm:$0xff]
    %v2856 = vld [vmem:[#allocation5 + $0x550] sm:$0xff]
    %v2857 = vld [vmem:[#allocation5 + $0x558] sm:$0xff]
    %v2858 = vld [vmem:[#allocation5 + $0x560] sm:$0xff]
    %v2859 = vld [vmem:[#allocation5 + $0x568] sm:$0xff]
    %v2860 = vld [vmem:[#allocation5 + $0x570] sm:$0xff]
    %v2861 = vld [vmem:[#allocation5 + $0x578] sm:$0xff]
    %v2862 = vld [vmem:[#allocation5 + $0x580] sm:$0xff]
    %v2863 = vld [vmem:[#allocation5 + $0x588] sm:$0xff]
    %v2864 = vld [vmem:[#allocation5 + $0x590] sm:$0xff]
    %v2865 = vld [vmem:[#allocation5 + $0x598] sm:$0xff]
    %v2866 = vld [vmem:[#allocation5 + $0x5a0] sm:$0xff]
    %v2867 = vld [vmem:[#allocation5 + $0x5a8] sm:$0xff]
    %v2868 = vld [vmem:[#allocation5 + $0x5b0] sm:$0xff]
    %v2869 = vld [vmem:[#allocation5 + $0x5b8] sm:$0xff]
    %v2870 = vld [vmem:[#allocation5 + $0x5c0] sm:$0xff]
    %v2871 = vld [vmem:[#allocation5 + $0x5c8] sm:$0xff]
    %v2872 = vld [vmem:[#allocation5 + $0x5d0] sm:$0xff]
    %v2873 = vld [vmem:[#allocation5 + $0x5d8] sm:$0xff]
    %v2874 = vld [vmem:[#allocation5 + $0x5e0] sm:$0xff]
    %v2875 = vld [vmem:[#allocation5 + $0x5e8] sm:$0xff]
    %v2876 = vld [vmem:[#allocation5 + $0x5f0] sm:$0xff]
    %v2877 = vld [vmem:[#allocation5 + $0x5f8] sm:$0xff]
    %v2878 = vld [vmem:[#allocation5 + $0x600] sm:$0xff]
    %v2879 = vld [vmem:[#allocation5 + $0x608] sm:$0xff]
    %v2880 = vld [vmem:[#allocation5 + $0x610] sm:$0xff]
    %v2881 = vld [vmem:[#allocation5 + $0x618] sm:$0xff]
    %v2882 = vld [vmem:[#allocation5 + $0x620] sm:$0xff]
    %v2883 = vld [vmem:[#allocation5 + $0x628] sm:$0xff]
    %v2884 = vld [vmem:[#allocation5 + $0x630] sm:$0xff]
    %v2885 = vld [vmem:[#allocation5 + $0x638] sm:$0xff]
    %v2886 = vld [vmem:[#allocation5 + $0x640] sm:$0xff]
    %v2887 = vld [vmem:[#allocation5 + $0x648] sm:$0xff]
    %v2888 = vld [vmem:[#allocation5 + $0x650] sm:$0xff]
    %v2889 = vld [vmem:[#allocation5 + $0x658] sm:$0xff]
    %v2890 = vld [vmem:[#allocation5 + $0x660] sm:$0xff]
    %v2891 = vld [vmem:[#allocation5 + $0x668] sm:$0xff]
    %v2892 = vld [vmem:[#allocation5 + $0x670] sm:$0xff]
    %v2893 = vld [vmem:[#allocation5 + $0x678] sm:$0xff]
    %v2894 = vld [vmem:[#allocation5 + $0x680] sm:$0xff]
    %v2895 = vld [vmem:[#allocation5 + $0x688] sm:$0xff]
    %v2896 = vld [vmem:[#allocation5 + $0x690] sm:$0xff]
    %v2897 = vld [vmem:[#allocation5 + $0x698] sm:$0xff]
    %v2898 = vld [vmem:[#allocation5 + $0x6a0] sm:$0xff]
    %v2899 = vld [vmem:[#allocation5 + $0x6a8] sm:$0xff]
    %v2900 = vld [vmem:[#allocation5 + $0x6b0] sm:$0xff]
    %v2901 = vld [vmem:[#allocation5 + $0x6b8] sm:$0xff]
    %v2902 = vld [vmem:[#allocation5 + $0x6c0] sm:$0xff]
    %v2903 = vld [vmem:[#allocation5 + $0x6c8] sm:$0xff]
    %v2904 = vld [vmem:[#allocation5 + $0x6d0] sm:$0xff]
    %v2905 = vld [vmem:[#allocation5 + $0x6d8] sm:$0xff]
    %v2906 = vld [vmem:[#allocation5 + $0x6e0] sm:$0xff]
    %v2907 = vld [vmem:[#allocation5 + $0x6e8] sm:$0xff]
    %v2908 = vld [vmem:[#allocation5 + $0x6f0] sm:$0xff]
    %v2909 = vld [vmem:[#allocation5 + $0x6f8] sm:$0xff]
    %v2910 = vld [vmem:[#allocation5 + $0x700] sm:$0xff]
    %v2911 = vld [vmem:[#allocation5 + $0x708] sm:$0xff]
    %v2912 = vld [vmem:[#allocation5 + $0x710] sm:$0xff]
    %v2913 = vld [vmem:[#allocation5 + $0x718] sm:$0xff]
    %v2914 = vld [vmem:[#allocation5 + $0x720] sm:$0xff]
    %v2915 = vld [vmem:[#allocation5 + $0x728] sm:$0xff]
    %v2916 = vld [vmem:[#allocation5 + $0x730] sm:$0xff]
    %v2917 = vld [vmem:[#allocation5 + $0x738] sm:$0xff]
    %v2918 = vld [vmem:[#allocation5 + $0x740] sm:$0xff]
    %v2919 = vld [vmem:[#allocation5 + $0x748] sm:$0xff]
    %v2920 = vld [vmem:[#allocation5 + $0x750] sm:$0xff]
    %v2921 = vld [vmem:[#allocation5 + $0x758] sm:$0xff]
    %v2922 = vld [vmem:[#allocation5 + $0x760] sm:$0xff]
    %v2923 = vld [vmem:[#allocation5 + $0x768] sm:$0xff]
    %v2924 = vld [vmem:[#allocation5 + $0x770] sm:$0xff]
    %v2925 = vld [vmem:[#allocation5 + $0x778] sm:$0xff]
    %v2926 = vld [vmem:[#allocation5 + $0x780] sm:$0xff]
    %v2927 = vld [vmem:[#allocation5 + $0x788] sm:$0xff]
    %v2928 = vld [vmem:[#allocation5 + $0x790] sm:$0xff]
    %v2929 = vld [vmem:[#allocation5 + $0x798] sm:$0xff]
    %v2930 = vld [vmem:[#allocation5 + $0x7a0] sm:$0xff]
    %v2931 = vld [vmem:[#allocation5 + $0x7a8] sm:$0xff]
    %v2932 = vld [vmem:[#allocation5 + $0x7b0] sm:$0xff]
    %v2933 = vld [vmem:[#allocation5 + $0x7b8] sm:$0xff]
    %v2934 = vld [vmem:[#allocation5 + $0x7c0] sm:$0xff]
    %v2935 = vld [vmem:[#allocation5 + $0x7c8] sm:$0xff]
    %v2936 = vld [vmem:[#allocation5 + $0x7d0] sm:$0xff]
    %v2937 = vld [vmem:[#allocation5 + $0x7d8] sm:$0xff]
    %v2938 = vld [vmem:[#allocation5 + $0x7e0] sm:$0xff]
    %v2939 = vld [vmem:[#allocation5 + $0x7e8] sm:$0xff]
    %v2940 = vld [vmem:[#allocation5 + $0x7f0] sm:$0xff]
    %v2941 = vld [vmem:[#allocation5 + $0x7f8] sm:$0xff]
    %v2942 = vld [vmem:[#allocation5 + $0x800] sm:$0xff]
    %v2943 = vld [vmem:[#allocation5 + $0x808] sm:$0xff]
    %v2944 = vld [vmem:[#allocation5 + $0x810] sm:$0xff]
    %v2945 = vld [vmem:[#allocation5 + $0x818] sm:$0xff]
    %v2946 = vld [vmem:[#allocation5 + $0x820] sm:$0xff]
    %v2947 = vld [vmem:[#allocation5 + $0x828] sm:$0xff]
    %v2948 = vld [vmem:[#allocation5 + $0x830] sm:$0xff]
    %v2949 = vld [vmem:[#allocation5 + $0x838] sm:$0xff]
    %v2950 = vld [vmem:[#allocation5 + $0x840] sm:$0xff]
    %v2951 = vld [vmem:[#allocation5 + $0x848] sm:$0xff]
    %v2952 = vld [vmem:[#allocation5 + $0x850] sm:$0xff]
    %v2953 = vld [vmem:[#allocation5 + $0x858] sm:$0xff]
    %v2954 = vld [vmem:[#allocation5 + $0x860] sm:$0xff]
    %v2955 = vld [vmem:[#allocation5 + $0x868] sm:$0xff]
    %v2956 = vld [vmem:[#allocation5 + $0x870] sm:$0xff]
    %v2957 = vld [vmem:[#allocation5 + $0x878] sm:$0xff]
    %v2958 = vld [vmem:[#allocation5 + $0x880] sm:$0xff]
    %v2959 = vld [vmem:[#allocation5 + $0x888] sm:$0xff]
    %v2960 = vld [vmem:[#allocation5 + $0x890] sm:$0xff]
    %v2961 = vld [vmem:[#allocation5 + $0x898] sm:$0xff]
    %v2962 = vld [vmem:[#allocation5 + $0x8a0] sm:$0xff]
    %v2963 = vld [vmem:[#allocation5 + $0x8a8] sm:$0xff]
    %v2964 = vld [vmem:[#allocation5 + $0x8b0] sm:$0xff]
    %v2965 = vld [vmem:[#allocation5 + $0x8b8] sm:$0xff]
    %v2966 = vld [vmem:[#allocation5 + $0x8c0] sm:$0xff]
    %v2967 = vld [vmem:[#allocation5 + $0x8c8] sm:$0xff]
    %v2968 = vld [vmem:[#allocation5 + $0x8d0] sm:$0xff]
    %v2969 = vld [vmem:[#allocation5 + $0x8d8] sm:$0xff]
    %v2970 = vld [vmem:[#allocation5 + $0x8e0] sm:$0xff]
    %v2971 = vld [vmem:[#allocation5 + $0x8e8] sm:$0xff]
    %v2972 = vld [vmem:[#allocation5 + $0x8f0] sm:$0xff]
    %v2973 = vld [vmem:[#allocation5 + $0x8f8] sm:$0xff]
    %v2974 = vld [vmem:[#allocation7] sm:$0xff]
    %v2975 = vld [vmem:[#allocation7 + $0x8] sm:$0xff]
    %v2976 = vld [vmem:[#allocation7 + $0x10] sm:$0xff]
    %v2977 = vld [vmem:[#allocation7 + $0x18] sm:$0xff]
    %v2978 = vld [vmem:[#allocation7 + $0x20] sm:$0xff]
    %v2979 = vld [vmem:[#allocation7 + $0x28] sm:$0xff]
    %v2980 = vld [vmem:[#allocation7 + $0x30] sm:$0xff]
    %v2981 = vld [vmem:[#allocation7 + $0x38] sm:$0xff]
    %v2982 = vld [vmem:[#allocation7 + $0x40] sm:$0xff]
    %v2983 = vld [vmem:[#allocation7 + $0x48] sm:$0xff]
    %v2984 = vld [vmem:[#allocation7 + $0x50] sm:$0xff]
    %v2985 = vld [vmem:[#allocation7 + $0x58] sm:$0xff]
    %v2986 = vld [vmem:[#allocation7 + $0x60] sm:$0xff]
    %v2987 = vld [vmem:[#allocation7 + $0x68] sm:$0xff]
    %v2988 = vld [vmem:[#allocation7 + $0x70] sm:$0xff]
    %v2989 = vld [vmem:[#allocation7 + $0x78] sm:$0xff]
    %v2990 = vld [vmem:[#allocation7 + $0x80] sm:$0xff]
    %v2991 = vld [vmem:[#allocation7 + $0x88] sm:$0xff]
    %v2992 = vld [vmem:[#allocation7 + $0x90] sm:$0xff]
    %v2993 = vld [vmem:[#allocation7 + $0x98] sm:$0xff]
    %v2994 = vld [vmem:[#allocation7 + $0xa0] sm:$0xff]
    %v2995 = vld [vmem:[#allocation7 + $0xa8] sm:$0xff]
    %v2996 = vld [vmem:[#allocation7 + $0xb0] sm:$0xff]
    %v2997 = vld [vmem:[#allocation7 + $0xb8] sm:$0xff]
    %v2998 = vld [vmem:[#allocation7 + $0xc0] sm:$0xff]
    %v2999 = vld [vmem:[#allocation7 + $0xc8] sm:$0xff]
    %v3000 = vld [vmem:[#allocation7 + $0xd0] sm:$0xff]
    %v3001 = vld [vmem:[#allocation7 + $0xd8] sm:$0xff]
    %v3002 = vld [vmem:[#allocation7 + $0xe0] sm:$0xff]
    %v3003 = vld [vmem:[#allocation7 + $0xe8] sm:$0xff]
    %v3004 = vld [vmem:[#allocation7 + $0xf0] sm:$0xff]
    %v3005 = vld [vmem:[#allocation7 + $0xf8] sm:$0xff]
    %v3006 = vld [vmem:[#allocation7 + $0x100] sm:$0xff]
    %v3007 = vld [vmem:[#allocation7 + $0x108] sm:$0xff]
    %v3008 = vld [vmem:[#allocation7 + $0x110] sm:$0xff]
    %v3009 = vld [vmem:[#allocation7 + $0x118] sm:$0xff]
    %v3010 = vld [vmem:[#allocation7 + $0x120] sm:$0xff]
    %v3011 = vld [vmem:[#allocation7 + $0x128] sm:$0xff]
    %v3012 = vld [vmem:[#allocation7 + $0x130] sm:$0xff]
    %v3013 = vld [vmem:[#allocation7 + $0x138] sm:$0xff]
    %v3014 = vld [vmem:[#allocation7 + $0x140] sm:$0xff]
    %v3015 = vld [vmem:[#allocation7 + $0x148] sm:$0xff]
    %v3016 = vld [vmem:[#allocation7 + $0x150] sm:$0xff]
    %v3017 = vld [vmem:[#allocation7 + $0x158] sm:$0xff]
    %v3018 = vld [vmem:[#allocation7 + $0x160] sm:$0xff]
    %v3019 = vld [vmem:[#allocation7 + $0x168] sm:$0xff]
    %v3020 = vld [vmem:[#allocation7 + $0x170] sm:$0xff]
    %v3021 = vld [vmem:[#allocation7 + $0x178] sm:$0xff]
    %v3022 = vld [vmem:[#allocation7 + $0x180] sm:$0xff]
    %v3023 = vld [vmem:[#allocation7 + $0x188] sm:$0xff]
    %v3024 = vld [vmem:[#allocation7 + $0x190] sm:$0xff]
    %v3025 = vld [vmem:[#allocation7 + $0x198] sm:$0xff]
    %v3026 = vld [vmem:[#allocation7 + $0x1a0] sm:$0xff]
    %v3027 = vld [vmem:[#allocation7 + $0x1a8] sm:$0xff]
    %v3028 = vld [vmem:[#allocation7 + $0x1b0] sm:$0xff]
    %v3029 = vld [vmem:[#allocation7 + $0x1b8] sm:$0xff]
    %v3030 = vld [vmem:[#allocation7 + $0x1c0] sm:$0xff]
    %v3031 = vld [vmem:[#allocation7 + $0x1c8] sm:$0xff]
    %v3032 = vld [vmem:[#allocation7 + $0x1d0] sm:$0xff]
    %v3033 = vld [vmem:[#allocation7 + $0x1d8] sm:$0xff]
    %v3034 = vld [vmem:[#allocation7 + $0x1e0] sm:$0xff]
    %v3035 = vld [vmem:[#allocation7 + $0x1e8] sm:$0xff]
    %v3036 = vld [vmem:[#allocation7 + $0x1f0] sm:$0xff]
    %v3037 = vld [vmem:[#allocation7 + $0x1f8] sm:$0xff]
    %v3038 = vld [vmem:[#allocation7 + $0x200] sm:$0xff]
    %v3039 = vld [vmem:[#allocation7 + $0x208] sm:$0xff]
    %v3040 = vld [vmem:[#allocation7 + $0x210] sm:$0xff]
    %v3041 = vld [vmem:[#allocation7 + $0x218] sm:$0xff]
    %v3042 = vld [vmem:[#allocation7 + $0x220] sm:$0xff]
    %v3043 = vld [vmem:[#allocation7 + $0x228] sm:$0xff]
    %v3044 = vld [vmem:[#allocation7 + $0x230] sm:$0xff]
    %v3045 = vld [vmem:[#allocation7 + $0x238] sm:$0xff]
    %v3046 = vld [vmem:[#allocation7 + $0x240] sm:$0xff]
    %v3047 = vld [vmem:[#allocation7 + $0x248] sm:$0xff]
    %v3048 = vld [vmem:[#allocation7 + $0x250] sm:$0xff]
    %v3049 = vld [vmem:[#allocation7 + $0x258] sm:$0xff]
    %v3050 = vld [vmem:[#allocation7 + $0x260] sm:$0xff]
    %v3051 = vld [vmem:[#allocation7 + $0x268] sm:$0xff]
    %v3052 = vld [vmem:[#allocation7 + $0x270] sm:$0xff]
    %v3053 = vld [vmem:[#allocation7 + $0x278] sm:$0xff]
    %v3054 = vld [vmem:[#allocation7 + $0x280] sm:$0xff]
    %v3055 = vld [vmem:[#allocation7 + $0x288] sm:$0xff]
    %v3056 = vld [vmem:[#allocation7 + $0x290] sm:$0xff]
    %v3057 = vld [vmem:[#allocation7 + $0x298] sm:$0xff]
    %v3058 = vld [vmem:[#allocation7 + $0x2a0] sm:$0xff]
    %v3059 = vld [vmem:[#allocation7 + $0x2a8] sm:$0xff]
    %v3060 = vld [vmem:[#allocation7 + $0x2b0] sm:$0xff]
    %v3061 = vld [vmem:[#allocation7 + $0x2b8] sm:$0xff]
    %v3062 = vld [vmem:[#allocation7 + $0x2c0] sm:$0xff]
    %v3063 = vld [vmem:[#allocation7 + $0x2c8] sm:$0xff]
    %v3064 = vld [vmem:[#allocation7 + $0x2d0] sm:$0xff]
    %v3065 = vld [vmem:[#allocation7 + $0x2d8] sm:$0xff]
    %v3066 = vld [vmem:[#allocation7 + $0x2e0] sm:$0xff]
    %v3067 = vld [vmem:[#allocation7 + $0x2e8] sm:$0xff]
    %v3068 = vld [vmem:[#allocation7 + $0x2f0] sm:$0xff]
    %v3069 = vld [vmem:[#allocation7 + $0x2f8] sm:$0xff]
    %v3070 = vld [vmem:[#allocation7 + $0x300] sm:$0xff]
    %v3071 = vld [vmem:[#allocation7 + $0x308] sm:$0xff]
    %v3072 = vld [vmem:[#allocation7 + $0x310] sm:$0xff]
    %v3073 = vld [vmem:[#allocation7 + $0x318] sm:$0xff]
    %v3074 = vld [vmem:[#allocation7 + $0x320] sm:$0xff]
    %v3075 = vld [vmem:[#allocation7 + $0x328] sm:$0xff]
    %v3076 = vld [vmem:[#allocation7 + $0x330] sm:$0xff]
    %v3077 = vld [vmem:[#allocation7 + $0x338] sm:$0xff]
    %v3078 = vld [vmem:[#allocation7 + $0x340] sm:$0xff]
    %v3079 = vld [vmem:[#allocation7 + $0x348] sm:$0xff]
    %v3080 = vld [vmem:[#allocation7 + $0x350] sm:$0xff]
    %v3081 = vld [vmem:[#allocation7 + $0x358] sm:$0xff]
    %v3082 = vld [vmem:[#allocation7 + $0x360] sm:$0xff]
    %v3083 = vld [vmem:[#allocation7 + $0x368] sm:$0xff]
    %v3084 = vld [vmem:[#allocation7 + $0x370] sm:$0xff]
    %v3085 = vld [vmem:[#allocation7 + $0x378] sm:$0xff]
    %v3086 = vld [vmem:[#allocation7 + $0x380] sm:$0xff]
    %v3087 = vld [vmem:[#allocation7 + $0x388] sm:$0xff]
    %v3088 = vld [vmem:[#allocation7 + $0x390] sm:$0xff]
    %v3089 = vld [vmem:[#allocation7 + $0x398] sm:$0xff]
    %v3090 = vld [vmem:[#allocation7 + $0x3a0] sm:$0xff]
    %v3091 = vld [vmem:[#allocation7 + $0x3a8] sm:$0xff]
    %v3092 = vld [vmem:[#allocation7 + $0x3b0] sm:$0xff]
    %v3093 = vld [vmem:[#allocation7 + $0x3b8] sm:$0xff]
    %v3094 = vld [vmem:[#allocation7 + $0x3c0] sm:$0xff]
    %v3095 = vld [vmem:[#allocation7 + $0x3c8] sm:$0xff]
    %v3096 = vld [vmem:[#allocation7 + $0x3d0] sm:$0xff]
    %v3097 = vld [vmem:[#allocation7 + $0x3d8] sm:$0xff]
    %v3098 = vld [vmem:[#allocation7 + $0x3e0] sm:$0xff]
    %v3099 = vld [vmem:[#allocation7 + $0x3e8] sm:$0xff]
    %v3100 = vld [vmem:[#allocation7 + $0x3f0] sm:$0xff]
    %v3101 = vld [vmem:[#allocation7 + $0x3f8] sm:$0xff]
    %v3102 = vld [vmem:[#allocation7 + $0x400] sm:$0xff]
    %v3103 = vld [vmem:[#allocation7 + $0x408] sm:$0xff]
    %v3104 = vld [vmem:[#allocation7 + $0x410] sm:$0xff]
    %v3105 = vld [vmem:[#allocation7 + $0x418] sm:$0xff]
    %v3106 = vld [vmem:[#allocation7 + $0x420] sm:$0xff]
    %v3107 = vld [vmem:[#allocation7 + $0x428] sm:$0xff]
    %v3108 = vld [vmem:[#allocation7 + $0x430] sm:$0xff]
    %v3109 = vld [vmem:[#allocation7 + $0x438] sm:$0xff]
    %v3110 = vld [vmem:[#allocation7 + $0x440] sm:$0xff]
    %v3111 = vld [vmem:[#allocation7 + $0x448] sm:$0xff]
    %v3112 = vld [vmem:[#allocation7 + $0x450] sm:$0xff]
    %v3113 = vld [vmem:[#allocation7 + $0x458] sm:$0xff]
    %v3114 = vld [vmem:[#allocation7 + $0x460] sm:$0xff]
    %v3115 = vld [vmem:[#allocation7 + $0x468] sm:$0xff]
    %v3116 = vld [vmem:[#allocation7 + $0x470] sm:$0xff]
    %v3117 = vld [vmem:[#allocation7 + $0x478] sm:$0xff]
    %v3118 = vld [vmem:[%s4] sm:$0x1]
    %v3120 = vlaneseq
    %v3121 = vshrl.u32 %v3120, 7
    %v3122 = vsub.s32 0, %v3121
    %v3123 = vrot.slane %v3118, %v3122
    %3125 = vmatprep.subr.mxu0 0.0
    %3126 = vmatpush1.msra.mxu0 %v2974
    %3127 = vmatprep.subr.mxu0 0.0
    %3128 = vmatpush1.msra.mxu0 %v2975
    %3129 = vmatprep.subr.mxu0 0.0
    %3130 = vmatpush1.msra.mxu0 %v2976
    %3131 = vmatprep.subr.mxu0 0.0
    %3132 = vmatpush1.msra.mxu0 %v2977
    %3133 = vmatprep.subr.mxu0 0.0
    %3134 = vmatpush1.msra.mxu0 %v2978
    %3135 = vmatprep.subr.mxu0 0.0
    %3136 = vmatpush1.msra.mxu0 %v2979
    %3137 = vmatprep.subr.mxu0 0.0
    %3138 = vmatpush1.msra.mxu0 %v2980
    %3139 = vmatprep.subr.mxu0 0.0
    %3140 = vmatpush1.msra.mxu0 %v2981
    %3141 = vmatprep.subr.mxu0 0.0
    %3142 = vmatpush1.msra.mxu0 %v2982
    %3143 = vmatprep.subr.mxu0 0.0
    %3144 = vmatpush1.msra.mxu0 %v2983
    %3145 = vmatprep.subr.mxu0 0.0
    %3146 = vmatpush1.msra.mxu0 %v2984
    %3147 = vmatprep.subr.mxu0 0.0
    %3148 = vmatpush1.msra.mxu0 %v2985
    %3149 = vmatprep.subr.mxu0 0.0
    %3150 = vmatpush1.msra.mxu0 %v2986
    %3151 = vmatprep.subr.mxu0 0.0
    %3152 = vmatpush1.msra.mxu0 %v2987
    %3153 = vmatprep.subr.mxu0 0.0
    %3154 = vmatpush1.msra.mxu0 %v2988
    %3155 = vmatprep.subr.mxu0 0.0
    %3156 = vmatpush1.msra.mxu0 %v2989
    %3157 = vmatprep.subr.mxu0 0.0
    %3158 = vmatpush1.msra.mxu0 %v2990
    %3159 = vmatprep.subr.mxu0 0.0
    %3160 = vmatpush1.msra.mxu0 %v2991
    %3161 = vmatprep.subr.mxu0 0.0
    %3162 = vmatpush1.msra.mxu0 %v2992
    %3163 = vmatprep.subr.mxu0 0.0
    %3164 = vmatpush1.msra.mxu0 %v2993
    %3165 = vmatprep.subr.mxu0 0.0
    %3166 = vmatpush1.msra.mxu0 %v2994
    %3167 = vmatprep.subr.mxu0 0.0
    %3168 = vmatpush1.msra.mxu0 %v2995
    %3169 = vmatprep.subr.mxu0 0.0
    %3170 = vmatpush1.msra.mxu0 %v2996
    %3171 = vmatprep.subr.mxu0 0.0
    %3172 = vmatpush1.msra.mxu0 %v2997
    %3173 = vmatprep.subr.mxu0 0.0
    %3174 = vmatpush1.msra.mxu0 %v2998
    %3175 = vmatprep.subr.mxu0 0.0
    %3176 = vmatpush1.msra.mxu0 %v2999
    %3177 = vmatprep.subr.mxu0 0.0
    %3178 = vmatpush1.msra.mxu0 %v3000
    %3179 = vmatprep.subr.mxu0 0.0
    %3180 = vmatpush1.msra.mxu0 %v3001
    %3181 = vmatprep.subr.mxu0 0.0
    %3182 = vmatpush1.msra.mxu0 %v3002
    %3183 = vmatprep.subr.mxu0 0.0
    %3184 = vmatpush1.msra.mxu0 %v3003
    %3185 = vmatprep.subr.mxu0 0.0
    %3186 = vmatpush1.msra.mxu0 %v3004
    %3187 = vmatprep.subr.mxu0 0.0
    %3188 = vmatpush1.msra.mxu0 %v3005
    %3189 = vmatprep.mubr.f32.mxu0 %v2687
    %3190 = vmatmul.mubr.f32.gmra.mrb[0].mxu0 %v2686
    %v3191 = vpop.f32.mrb[0].mxu0
    %v3192 = vadd.f32 %v3123, %v3191
    %v3193 = vpop.f32.mrb[0].mxu0
    %3194 = vmatprep.mubr.f32.mxu0 %v2696
    %3195 = vmatmul.mubr.f32.gmra.mrb[0].mxu0 %v2695
    %v3196 = vpop.f32.mrb[0].mxu0
    %v3197 = vadd.f32 %v3123, %v3196
    %v3198 = vpop.f32.mrb[0].mxu0
    %3199 = vmatprep.mubr.f32.mxu0 %v2705
    %3200 = vmatmul.mubr.f32.gmra.mrb[0].mxu0 %v2704
    %v3201 = vpop.f32.mrb[0].mxu0
    %v3202 = vadd.f32 %v3123, %v3201
    %v3203 = vpop.f32.mrb[0].mxu0
    %3204 = vmatprep.mubr.f32.mxu0 %v2714
    %3205 = vmatmul.mubr.f32.gmra.mrb[0].mxu0 %v2713
    %v3206 = vpop.f32.mrb[0].mxu0
    %v3207 = vadd.f32 %v3123, %v3206
    %v3208 = vpop.f32.mrb[0].mxu0
    %3209 = vmatprep.mubr.f32.mxu0 %v2723
    %3210 = vmatmul.mubr.f32.gmra.mrb[0].mxu0 %v2722
    %v3211 = vpop.f32.mrb[0].mxu0
    %v3212 = vadd.f32 %v3123, %v3211
    %v3213 = vpop.f32.mrb[0].mxu0
    %3214 = vmatprep.mubr.f32.mxu0 %v2732
    %3215 = vmatmul.mubr.f32.gmra.mrb[0].mxu0 %v2731
    %v3216 = vpop.f32.mrb[0].mxu0
    %v3217 = vadd.f32 %v3123, %v3216
    %v3218 = vpop.f32.mrb[0].mxu0
    %3219 = vmatprep.mubr.f32.mxu0 %v2741
    %3220 = vmatmul.mubr.f32.gmra.mrb[0].mxu0 %v2740
    %v3221 = vpop.f32.mrb[0].mxu0
    %v3222 = vadd.f32 %v3123, %v3221
    %v3223 = vpop.f32.mrb[0].mxu0
    %3224 = vmatprep.mubr.f32.mxu0 %v2750
    %3225 = vmatmul.mubr.f32.gmra.mrb[0].mxu0 %v2749
    %v3226 = vpop.f32.mrb[0].mxu0
    %v3227 = vadd.f32 %v3123, %v3226
    %v3228 = vpop.f32.mrb[0].mxu0
    %3229 = vmatprep.mubr.f32.mxu0 %v2759
    %3230 = vmatmul.mubr.f32.gmra.mrb[0].mxu0 %v2758
    %v3231 = vpop.f32.mrb[0].mxu0
    %v3232 = vadd.f32 %v3123, %v3231
    %v3233 = vpop.f32.mrb[0].mxu0
    %3234 = vmatprep.mubr.f32.mxu0 %v2768
    %3235 = vmatmul.mubr.f32.gmra.mrb[0].mxu0 %v2767
    %v3236 = vpop.f32.mrb[0].mxu0
    %v3237 = vadd.f32 %v3123, %v3236
    %v3238 = vpop.f32.mrb[0].mxu0
    %3239 = vmatprep.mubr.f32.mxu0 %v2777
    %3240 = vmatmul.mubr.f32.gmra.mrb[0].mxu0 %v2776
    %v3241 = vpop.f32.mrb[0].mxu0
    %v3242 = vadd.f32 %v3123, %v3241
    %v3243 = vpop.f32.mrb[0].mxu0
    %3244 = vmatprep.mubr.f32.mxu0 %v2786
    %3245 = vmatmul.mubr.f32.gmra.mrb[0].mxu0 %v2785
    %v3246 = vpop.f32.mrb[0].mxu0
    %v3247 = vadd.f32 %v3123, %v3246
    %v3248 = vpop.f32.mrb[0].mxu0
    %3249 = vmatprep.mubr.f32.mxu0 %v2795
    %3250 = vmatmul.mubr.f32.gmra.mrb[0].mxu0 %v2794
    %v3251 = vpop.f32.mrb[0].mxu0
    %v3252 = vadd.f32 %v3123, %v3251
    %v3253 = vpop.f32.mrb[0].mxu0
    %3254 = vmatprep.mubr.f32.mxu0 %v2804
    %3255 = vmatmul.mubr.f32.gmra.mrb[0].mxu0 %v2803
    %v3256 = vpop.f32.mrb[0].mxu0
    %v3257 = vadd.f32 %v3123, %v3256
    %v3258 = vpop.f32.mrb[0].mxu0
    %3259 = vmatprep.mubr.f32.mxu0 %v2813
    %3260 = vmatmul.mubr.f32.gmra.mrb[0].mxu0 %v2812
    %v3261 = vpop.f32.mrb[0].mxu0
    %v3262 = vadd.f32 %v3123, %v3261
    %v3263 = vpop.f32.mrb[0].mxu0
    %3264 = vmatprep.mubr.f32.mxu0 %v2822
    %3265 = vmatmul.mubr.f32.gmra.mrb[0].mxu0 %v2821
    %v3266 = vpop.f32.mrb[0].mxu0
    %v3267 = vadd.f32 %v3123, %v3266
    %v3268 = vpop.f32.mrb[0].mxu0
    %3269 = vmatprep.mubr.f32.mxu0 %v2831
    %3270 = vmatmul.mubr.f32.gmra.mrb[0].mxu0 %v2830
    %v3271 = vpop.f32.mrb[0].mxu0
    %v3272 = vadd.f32 %v3123, %v3271
    %v3273 = vpop.f32.mrb[0].mxu0
    %3274 = vmatprep.mubr.f32.mxu0 %v2840
    %3275 = vmatmul.mubr.f32.gmra.mrb[0].mxu0 %v2839
    %v3276 = vpop.f32.mrb[0].mxu0
    %v3277 = vadd.f32 %v3123, %v3276
    %v3278 = vpop.f32.mrb[0].mxu0
    %3279 = vmatprep.mubr.f32.mxu0 %v2849
    %3280 = vmatmul.mubr.f32.gmra.mrb[0].mxu0 %v2848
    %v3281 = vpop.f32.mrb[0].mxu0
    %v3282 = vadd.f32 %v3123, %v3281
    %v3283 = vpop.f32.mrb[0].mxu0
    %3284 = vmatprep.mubr.f32.mxu0 %v2858
    %3285 = vmatmul.mubr.f32.gmra.mrb[0].mxu0 %v2857
    %v3286 = vpop.f32.mrb[0].mxu0
    %v3287 = vadd.f32 %v3123, %v3286
    %v3288 = vpop.f32.mrb[0].mxu0
    %3289 = vmatprep.mubr.f32.mxu0 %v2867
    %3290 = vmatmul.mubr.f32.gmra.mrb[0].mxu0 %v2866
    %v3291 = vpop.f32.mrb[0].mxu0
    %v3292 = vadd.f32 %v3123, %v3291
    %v3293 = vpop.f32.mrb[0].mxu0
    %3294 = vmatprep.mubr.f32.mxu0 %v2876
    %3295 = vmatmul.mubr.f32.gmra.mrb[0].mxu0 %v2875
    %v3296 = vpop.f32.mrb[0].mxu0
    %v3297 = vadd.f32 %v3123, %v3296
    %v3298 = vpop.f32.mrb[0].mxu0
    %3299 = vmatprep.mubr.f32.mxu0 %v2885
    %3300 = vmatmul.mubr.f32.gmra.mrb[0].mxu0 %v2884
    %v3301 = vpop.f32.mrb[0].mxu0
    %v3302 = vadd.f32 %v3123, %v3301
    %v3303 = vpop.f32.mrb[0].mxu0
    %3304 = vmatprep.mubr.f32.mxu0 %v2894
    %3305 = vmatmul.mubr.f32.gmra.mrb[0].mxu0 %v2893
    %v3306 = vpop.f32.mrb[0].mxu0
    %v3307 = vadd.f32 %v3123, %v3306
    %v3308 = vpop.f32.mrb[0].mxu0
    %3309 = vmatprep.mubr.f32.mxu0 %v2903
    %3310 = vmatmul.mubr.f32.gmra.mrb[0].mxu0 %v2902
    %v3311 = vpop.f32.mrb[0].mxu0
    %v3312 = vadd.f32 %v3123, %v3311
    %v3313 = vpop.f32.mrb[0].mxu0
    %3314 = vmatprep.mubr.f32.mxu0 %v2912
    %3315 = vmatmul.mubr.f32.gmra.mrb[0].mxu0 %v2911
    %v3316 = vpop.f32.mrb[0].mxu0
    %v3317 = vadd.f32 %v3123, %v3316
    %v3318 = vpop.f32.mrb[0].mxu0
    %3319 = vmatprep.mubr.f32.mxu0 %v2921
    %3320 = vmatmul.mubr.f32.gmra.mrb[0].mxu0 %v2920
    %v3321 = vpop.f32.mrb[0].mxu0
    %v3322 = vadd.f32 %v3123, %v3321
    %v3323 = vpop.f32.mrb[0].mxu0
    %3324 = vmatprep.mubr.f32.mxu0 %v2930
    %3325 = vmatmul.mubr.f32.gmra.mrb[0].mxu0 %v2929
    %v3326 = vpop.f32.mrb[0].mxu0
    %v3327 = vadd.f32 %v3123, %v3326
    %v3328 = vpop.f32.mrb[0].mxu0
    %3329 = vmatprep.mubr.f32.mxu0 %v2939
    %3330 = vmatmul.mubr.f32.gmra.mrb[0].mxu0 %v2938
    %v3331 = vpop.f32.mrb[0].mxu0
    %v3332 = vadd.f32 %v3123, %v3331
    %v3333 = vpop.f32.mrb[0].mxu0
    %3334 = vmatprep.mubr.f32.mxu0 %v2948
    %3335 = vmatmul.mubr.f32.gmra.mrb[0].mxu0 %v2947
    %v3336 = vpop.f32.mrb[0].mxu0
    %v3337 = vadd.f32 %v3123, %v3336
    %v3338 = vpop.f32.mrb[0].mxu0
    %3339 = vmatprep.mubr.f32.mxu0 %v2957
    %3340 = vmatmul.mubr.f32.gmra.mrb[0].mxu0 %v2956
    %v3341 = vpop.f32.mrb[0].mxu0
    %v3342 = vadd.f32 %v3123, %v3341
    %v3343 = vpop.f32.mrb[0].mxu0
    %3344 = vmatprep.mubr.f32.mxu0 %v2966
    %3345 = vmatmul.mubr.f32.gmra.mrb[0].mxu0 %v2965
    %v3346 = vpop.f32.mrb[0].mxu0
    %v3347 = vadd.f32 %v3123, %v3346
    %v3348 = vpop.f32.mrb[0].mxu0
    %3349 = vdwg.mxu0
    %3350 = vmatprep.subr.mxu0 0.0
    %3351 = vmatpush1.msra.mxu0 %v3006
    %3352 = vmatprep.subr.mxu0 0.0
    %3353 = vmatpush1.msra.mxu0 %v3007
    %3354 = vmatprep.subr.mxu0 0.0
    %3355 = vmatpush1.msra.mxu0 %v3008
    %3356 = vmatprep.subr.mxu0 0.0
    %3357 = vmatpush1.msra.mxu0 %v3009
    %3358 = vmatprep.subr.mxu0 0.0
    %3359 = vmatpush1.msra.mxu0 %v3010
    %3360 = vmatprep.subr.mxu0 0.0
    %3361 = vmatpush1.msra.mxu0 %v3011
    %3362 = vmatprep.subr.mxu0 0.0
    %3363 = vmatpush1.msra.mxu0 %v3012
    %3364 = vmatprep.subr.mxu0 0.0
    %3365 = vmatpush1.msra.mxu0 %v3013
    %3366 = vmatprep.subr.mxu0 0.0
    %3367 = vmatpush1.msra.mxu0 %v3014
    %3368 = vmatprep.subr.mxu0 0.0
    %3369 = vmatpush1.msra.mxu0 %v3015
    %3370 = vmatprep.subr.mxu0 0.0
    %3371 = vmatpush1.msra.mxu0 %v3016
    %3372 = vmatprep.subr.mxu0 0.0
    %3373 = vmatpush1.msra.mxu0 %v3017
    %3374 = vmatprep.subr.mxu0 0.0
    %3375 = vmatpush1.msra.mxu0 %v3018
    %3376 = vmatprep.subr.mxu0 0.0
    %3377 = vmatpush1.msra.mxu0 %v3019
    %3378 = vmatprep.subr.mxu0 0.0
    %3379 = vmatpush1.msra.mxu0 %v3020
    %3380 = vmatprep.subr.mxu0 0.0
    %3381 = vmatpush1.msra.mxu0 %v3021
    %3382 = vmatprep.subr.mxu0 0.0
    %3383 = vmatpush1.msra.mxu0 %v3022
    %3384 = vmatprep.subr.mxu0 0.0
    %3385 = vmatpush1.msra.mxu0 %v3023
    %3386 = vmatprep.subr.mxu0 0.0
    %3387 = vmatpush1.msra.mxu0 %v3024
    %3388 = vmatprep.subr.mxu0 0.0
    %3389 = vmatpush1.msra.mxu0 %v3025
    %3390 = vmatprep.subr.mxu0 0.0
    %3391 = vmatpush1.msra.mxu0 %v3026
    %3392 = vmatprep.subr.mxu0 0.0
    %3393 = vmatpush1.msra.mxu0 %v3027
    %3394 = vmatprep.subr.mxu0 0.0
    %3395 = vmatpush1.msra.mxu0 %v3028
    %3396 = vmatprep.subr.mxu0 0.0
    %3397 = vmatpush1.msra.mxu0 %v3029
    %3398 = vmatprep.subr.mxu0 0.0
    %3399 = vmatpush1.msra.mxu0 %v3030
    %3400 = vmatprep.subr.mxu0 0.0
    %3401 = vmatpush1.msra.mxu0 %v3031
    %3402 = vmatprep.subr.mxu0 0.0
    %3403 = vmatpush1.msra.mxu0 %v3032
    %3404 = vmatprep.subr.mxu0 0.0
    %3405 = vmatpush1.msra.mxu0 %v3033
    %3406 = vmatprep.subr.mxu0 0.0
    %3407 = vmatpush1.msra.mxu0 %v3034
    %3408 = vmatprep.subr.mxu0 0.0
    %3409 = vmatpush1.msra.mxu0 %v3035
    %3410 = vmatprep.subr.mxu0 0.0
    %3411 = vmatpush1.msra.mxu0 %v3036
    %3412 = vmatprep.subr.mxu0 0.0
    %3413 = vmatpush1.msra.mxu0 %v3037
    %3414 = vmatprep.mubr.f32.mxu0 %v2689
    %3415 = vmatmul.mubr.f32.gmra.mrb[0].mxu0 %v2688
    %v3416 = vpop.f32.mrb[0].mxu0
    %v3417 = vadd.f32 %v3192, %v3416
    %v3418 = vpop.f32.mrb[0].mxu0
    %3419 = vmatprep.mubr.f32.mxu0 %v2698
    %3420 = vmatmul.mubr.f32.gmra.mrb[0].mxu0 %v2697
    %v3421 = vpop.f32.mrb[0].mxu0
    %v3422 = vadd.f32 %v3197, %v3421
    %v3423 = vpop.f32.mrb[0].mxu0
    %3424 = vmatprep.mubr.f32.mxu0 %v2707
    %3425 = vmatmul.mubr.f32.gmra.mrb[0].mxu0 %v2706
    %v3426 = vpop.f32.mrb[0].mxu0
    %v3427 = vadd.f32 %v3202, %v3426
    %v3428 = vpop.f32.mrb[0].mxu0
    %3429 = vmatprep.mubr.f32.mxu0 %v2716
    %3430 = vmatmul.mubr.f32.gmra.mrb[0].mxu0 %v2715
    %v3431 = vpop.f32.mrb[0].mxu0
    %v3432 = vadd.f32 %v3207, %v3431
    %v3433 = vpop.f32.mrb[0].mxu0
    %3434 = vmatprep.mubr.f32.mxu0 %v2725
    %3435 = vmatmul.mubr.f32.gmra.mrb[0].mxu0 %v2724
    %v3436 = vpop.f32.mrb[0].mxu0
    %v3437 = vadd.f32 %v3212, %v3436
    %v3438 = vpop.f32.mrb[0].mxu0
    %3439 = vmatprep.mubr.f32.mxu0 %v2734
    %3440 = vmatmul.mubr.f32.gmra.mrb[0].mxu0 %v2733
    %v3441 = vpop.f32.mrb[0].mxu0
    %v3442 = vadd.f32 %v3217, %v3441
    %v3443 = vpop.f32.mrb[0].mxu0
    %3444 = vmatprep.mubr.f32.mxu0 %v2743
    %3445 = vmatmul.mubr.f32.gmra.mrb[0].mxu0 %v2742
    %v3446 = vpop.f32.mrb[0].mxu0
    %v3447 = vadd.f32 %v3222, %v3446
    %v3448 = vpop.f32.mrb[0].mxu0
    %3449 = vmatprep.mubr.f32.mxu0 %v2752
    %3450 = vmatmul.mubr.f32.gmra.mrb[0].mxu0 %v2751
    %v3451 = vpop.f32.mrb[0].mxu0
    %v3452 = vadd.f32 %v3227, %v3451
    %v3453 = vpop.f32.mrb[0].mxu0
    %3454 = vmatprep.mubr.f32.mxu0 %v2761
    %3455 = vmatmul.mubr.f32.gmra.mrb[0].mxu0 %v2760
    %v3456 = vpop.f32.mrb[0].mxu0
    %v3457 = vadd.f32 %v3232, %v3456
    %v3458 = vpop.f32.mrb[0].mxu0
    %3459 = vmatprep.mubr.f32.mxu0 %v2770
    %3460 = vmatmul.mubr.f32.gmra.mrb[0].mxu0 %v2769
    %v3461 = vpop.f32.mrb[0].mxu0
    %v3462 = vadd.f32 %v3237, %v3461
    %v3463 = vpop.f32.mrb[0].mxu0
    %3464 = vmatprep.mubr.f32.mxu0 %v2779
    %3465 = vmatmul.mubr.f32.gmra.mrb[0].mxu0 %v2778
    %v3466 = vpop.f32.mrb[0].mxu0
    %v3467 = vadd.f32 %v3242, %v3466
    %v3468 = vpop.f32.mrb[0].mxu0
    %3469 = vmatprep.mubr.f32.mxu0 %v2788
    %3470 = vmatmul.mubr.f32.gmra.mrb[0].mxu0 %v2787
    %v3471 = vpop.f32.mrb[0].mxu0
    %v3472 = vadd.f32 %v3247, %v3471
    %v3473 = vpop.f32.mrb[0].mxu0
    %3474 = vmatprep.mubr.f32.mxu0 %v2797
    %3475 = vmatmul.mubr.f32.gmra.mrb[0].mxu0 %v2796
    %v3476 = vpop.f32.mrb[0].mxu0
    %v3477 = vadd.f32 %v3252, %v3476
    %v3478 = vpop.f32.mrb[0].mxu0
    %3479 = vmatprep.mubr.f32.mxu0 %v2806
    %3480 = vmatmul.mubr.f32.gmra.mrb[0].mxu0 %v2805
    %v3481 = vpop.f32.mrb[0].mxu0
    %v3482 = vadd.f32 %v3257, %v3481
    %v3483 = vpop.f32.mrb[0].mxu0
    %3484 = vmatprep.mubr.f32.mxu0 %v2815
    %3485 = vmatmul.mubr.f32.gmra.mrb[0].mxu0 %v2814
    %v3486 = vpop.f32.mrb[0].mxu0
    %v3487 = vadd.f32 %v3262, %v3486
    %v3488 = vpop.f32.mrb[0].mxu0
    %3489 = vmatprep.mubr.f32.mxu0 %v2824
    %3490 = vmatmul.mubr.f32.gmra.mrb[0].mxu0 %v2823
    %v3491 = vpop.f32.mrb[0].mxu0
    %v3492 = vadd.f32 %v3267, %v3491
    %v3493 = vpop.f32.mrb[0].mxu0
    %3494 = vmatprep.mubr.f32.mxu0 %v2833
    %3495 = vmatmul.mubr.f32.gmra.mrb[0].mxu0 %v2832
    %v3496 = vpop.f32.mrb[0].mxu0
    %v3497 = vadd.f32 %v3272, %v3496
    %v3498 = vpop.f32.mrb[0].mxu0
    %3499 = vmatprep.mubr.f32.mxu0 %v2842
    %3500 = vmatmul.mubr.f32.gmra.mrb[0].mxu0 %v2841
    %v3501 = vpop.f32.mrb[0].mxu0
    %v3502 = vadd.f32 %v3277, %v3501
    %v3503 = vpop.f32.mrb[0].mxu0
    %3504 = vmatprep.mubr.f32.mxu0 %v2851
    %3505 = vmatmul.mubr.f32.gmra.mrb[0].mxu0 %v2850
    %v3506 = vpop.f32.mrb[0].mxu0
    %v3507 = vadd.f32 %v3282, %v3506
    %v3508 = vpop.f32.mrb[0].mxu0
    %3509 = vmatprep.mubr.f32.mxu0 %v2860
    %3510 = vmatmul.mubr.f32.gmra.mrb[0].mxu0 %v2859
    %v3511 = vpop.f32.mrb[0].mxu0
    %v3512 = vadd.f32 %v3287, %v3511
    %v3513 = vpop.f32.mrb[0].mxu0
    %3514 = vmatprep.mubr.f32.mxu0 %v2869
    %3515 = vmatmul.mubr.f32.gmra.mrb[0].mxu0 %v2868
    %v3516 = vpop.f32.mrb[0].mxu0
    %v3517 = vadd.f32 %v3292, %v3516
    %v3518 = vpop.f32.mrb[0].mxu0
    %3519 = vmatprep.mubr.f32.mxu0 %v2878
    %3520 = vmatmul.mubr.f32.gmra.mrb[0].mxu0 %v2877
    %v3521 = vpop.f32.mrb[0].mxu0
    %v3522 = vadd.f32 %v3297, %v3521
    %v3523 = vpop.f32.mrb[0].mxu0
    %3524 = vmatprep.mubr.f32.mxu0 %v2887
    %3525 = vmatmul.mubr.f32.gmra.mrb[0].mxu0 %v2886
    %v3526 = vpop.f32.mrb[0].mxu0
    %v3527 = vadd.f32 %v3302, %v3526
    %v3528 = vpop.f32.mrb[0].mxu0
    %3529 = vmatprep.mubr.f32.mxu0 %v2896
    %3530 = vmatmul.mubr.f32.gmra.mrb[0].mxu0 %v2895
    %v3531 = vpop.f32.mrb[0].mxu0
    %v3532 = vadd.f32 %v3307, %v3531
    %v3533 = vpop.f32.mrb[0].mxu0
    %3534 = vmatprep.mubr.f32.mxu0 %v2905
    %3535 = vmatmul.mubr.f32.gmra.mrb[0].mxu0 %v2904
    %v3536 = vpop.f32.mrb[0].mxu0
    %v3537 = vadd.f32 %v3312, %v3536
    %v3538 = vpop.f32.mrb[0].mxu0
    %3539 = vmatprep.mubr.f32.mxu0 %v2914
    %3540 = vmatmul.mubr.f32.gmra.mrb[0].mxu0 %v2913
    %v3541 = vpop.f32.mrb[0].mxu0
    %v3542 = vadd.f32 %v3317, %v3541
    %v3543 = vpop.f32.mrb[0].mxu0
    %3544 = vmatprep.mubr.f32.mxu0 %v2923
    %3545 = vmatmul.mubr.f32.gmra.mrb[0].mxu0 %v2922
    %v3546 = vpop.f32.mrb[0].mxu0
    %v3547 = vadd.f32 %v3322, %v3546
    %v3548 = vpop.f32.mrb[0].mxu0
    %3549 = vmatprep.mubr.f32.mxu0 %v2932
    %3550 = vmatmul.mubr.f32.gmra.mrb[0].mxu0 %v2931
    %v3551 = vpop.f32.mrb[0].mxu0
    %v3552 = vadd.f32 %v3327, %v3551
    %v3553 = vpop.f32.mrb[0].mxu0
    %3554 = vmatprep.mubr.f32.mxu0 %v2941
    %3555 = vmatmul.mubr.f32.gmra.mrb[0].mxu0 %v2940
    %v3556 = vpop.f32.mrb[0].mxu0
    %v3557 = vadd.f32 %v3332, %v3556
    %v3558 = vpop.f32.mrb[0].mxu0
    %3559 = vmatprep.mubr.f32.mxu0 %v2950
    %3560 = vmatmul.mubr.f32.gmra.mrb[0].mxu0 %v2949
    %v3561 = vpop.f32.mrb[0].mxu0
    %v3562 = vadd.f32 %v3337, %v3561
    %v3563 = vpop.f32.mrb[0].mxu0
    %3564 = vmatprep.mubr.f32.mxu0 %v2959
    %3565 = vmatmul.mubr.f32.gmra.mrb[0].mxu0 %v2958
    %v3566 = vpop.f32.mrb[0].mxu0
    %v3567 = vadd.f32 %v3342, %v3566
    %v3568 = vpop.f32.mrb[0].mxu0
    %3569 = vmatprep.mubr.f32.mxu0 %v2968
    %3570 = vmatmul.mubr.f32.gmra.mrb[0].mxu0 %v2967
    %v3571 = vpop.f32.mrb[0].mxu0
    %v3572 = vadd.f32 %v3347, %v3571
    %v3573 = vpop.f32.mrb[0].mxu0
    %3574 = vdwg.mxu0
    %3575 = vmatprep.subr.mxu0 0.0
    %3576 = vmatpush1.msra.mxu0 %v3038
    %3577 = vmatprep.subr.mxu0 0.0
    %3578 = vmatpush1.msra.mxu0 %v3039
    %3579 = vmatprep.subr.mxu0 0.0
    %3580 = vmatpush1.msra.mxu0 %v3040
    %3581 = vmatprep.subr.mxu0 0.0
    %3582 = vmatpush1.msra.mxu0 %v3041
    %3583 = vmatprep.subr.mxu0 0.0
    %3584 = vmatpush1.msra.mxu0 %v3042
    %3585 = vmatprep.subr.mxu0 0.0
    %3586 = vmatpush1.msra.mxu0 %v3043
    %3587 = vmatprep.subr.mxu0 0.0
    %3588 = vmatpush1.msra.mxu0 %v3044
    %3589 = vmatprep.subr.mxu0 0.0
    %3590 = vmatpush1.msra.mxu0 %v3045
    %3591 = vmatprep.subr.mxu0 0.0
    %3592 = vmatpush1.msra.mxu0 %v3046
    %3593 = vmatprep.subr.mxu0 0.0
    %3594 = vmatpush1.msra.mxu0 %v3047
    %3595 = vmatprep.subr.mxu0 0.0
    %3596 = vmatpush1.msra.mxu0 %v3048
    %3597 = vmatprep.subr.mxu0 0.0
    %3598 = vmatpush1.msra.mxu0 %v3049
    %3599 = vmatprep.subr.mxu0 0.0
    %3600 = vmatpush1.msra.mxu0 %v3050
    %3601 = vmatprep.subr.mxu0 0.0
    %3602 = vmatpush1.msra.mxu0 %v3051
    %3603 = vmatprep.subr.mxu0 0.0
    %3604 = vmatpush1.msra.mxu0 %v3052
    %3605 = vmatprep.subr.mxu0 0.0
    %3606 = vmatpush1.msra.mxu0 %v3053
    %3607 = vmatprep.subr.mxu0 0.0
    %3608 = vmatpush1.msra.mxu0 %v3054
    %3609 = vmatprep.subr.mxu0 0.0
    %3610 = vmatpush1.msra.mxu0 %v3055
    %3611 = vmatprep.subr.mxu0 0.0
    %3612 = vmatpush1.msra.mxu0 %v3056
    %3613 = vmatprep.subr.mxu0 0.0
    %3614 = vmatpush1.msra.mxu0 %v3057
    %3615 = vmatprep.subr.mxu0 0.0
    %3616 = vmatpush1.msra.mxu0 %v3058
    %3617 = vmatprep.subr.mxu0 0.0
    %3618 = vmatpush1.msra.mxu0 %v3059
    %3619 = vmatprep.subr.mxu0 0.0
    %3620 = vmatpush1.msra.mxu0 %v3060
    %3621 = vmatprep.subr.mxu0 0.0
    %3622 = vmatpush1.msra.mxu0 %v3061
    %3623 = vmatprep.subr.mxu0 0.0
    %3624 = vmatpush1.msra.mxu0 %v3062
    %3625 = vmatprep.subr.mxu0 0.0
    %3626 = vmatpush1.msra.mxu0 %v3063
    %3627 = vmatprep.subr.mxu0 0.0
    %3628 = vmatpush1.msra.mxu0 %v3064
    %3629 = vmatprep.subr.mxu0 0.0
    %3630 = vmatpush1.msra.mxu0 %v3065
    %3631 = vmatprep.subr.mxu0 0.0
    %3632 = vmatpush1.msra.mxu0 %v3066
    %3633 = vmatprep.subr.mxu0 0.0
    %3634 = vmatpush1.msra.mxu0 %v3067
    %3635 = vmatprep.subr.mxu0 0.0
    %3636 = vmatpush1.msra.mxu0 %v3068
    %3637 = vmatprep.subr.mxu0 0.0
    %3638 = vmatpush1.msra.mxu0 %v3069
    %3639 = vmatprep.mubr.f32.mxu0 %v2691
    %3640 = vmatmul.mubr.f32.gmra.mrb[0].mxu0 %v2690
    %v3641 = vpop.f32.mrb[0].mxu0
    %v3642 = vadd.f32 %v3417, %v3641
    %v3643 = vpop.f32.mrb[0].mxu0
    %3644 = vmatprep.mubr.f32.mxu0 %v2700
    %3645 = vmatmul.mubr.f32.gmra.mrb[0].mxu0 %v2699
    %v3646 = vpop.f32.mrb[0].mxu0
    %v3647 = vadd.f32 %v3422, %v3646
    %v3648 = vpop.f32.mrb[0].mxu0
    %3649 = vmatprep.mubr.f32.mxu0 %v2709
    %3650 = vmatmul.mubr.f32.gmra.mrb[0].mxu0 %v2708
    %v3651 = vpop.f32.mrb[0].mxu0
    %v3652 = vadd.f32 %v3427, %v3651
    %v3653 = vpop.f32.mrb[0].mxu0
    %3654 = vmatprep.mubr.f32.mxu0 %v2718
    %3655 = vmatmul.mubr.f32.gmra.mrb[0].mxu0 %v2717
    %v3656 = vpop.f32.mrb[0].mxu0
    %v3657 = vadd.f32 %v3432, %v3656
    %v3658 = vpop.f32.mrb[0].mxu0
    %3659 = vmatprep.mubr.f32.mxu0 %v2727
    %3660 = vmatmul.mubr.f32.gmra.mrb[0].mxu0 %v2726
    %v3661 = vpop.f32.mrb[0].mxu0
    %v3662 = vadd.f32 %v3437, %v3661
    %v3663 = vpop.f32.mrb[0].mxu0
    %3664 = vmatprep.mubr.f32.mxu0 %v2736
    %3665 = vmatmul.mubr.f32.gmra.mrb[0].mxu0 %v2735
    %v3666 = vpop.f32.mrb[0].mxu0
    %v3667 = vadd.f32 %v3442, %v3666
    %v3668 = vpop.f32.mrb[0].mxu0
    %3669 = vmatprep.mubr.f32.mxu0 %v2745
    %3670 = vmatmul.mubr.f32.gmra.mrb[0].mxu0 %v2744
    %v3671 = vpop.f32.mrb[0].mxu0
    %v3672 = vadd.f32 %v3447, %v3671
    %v3673 = vpop.f32.mrb[0].mxu0
    %3674 = vmatprep.mubr.f32.mxu0 %v2754
    %3675 = vmatmul.mubr.f32.gmra.mrb[0].mxu0 %v2753
    %v3676 = vpop.f32.mrb[0].mxu0
    %v3677 = vadd.f32 %v3452, %v3676
    %v3678 = vpop.f32.mrb[0].mxu0
    %3679 = vmatprep.mubr.f32.mxu0 %v2763
    %3680 = vmatmul.mubr.f32.gmra.mrb[0].mxu0 %v2762
    %v3681 = vpop.f32.mrb[0].mxu0
    %v3682 = vadd.f32 %v3457, %v3681
    %v3683 = vpop.f32.mrb[0].mxu0
    %3684 = vmatprep.mubr.f32.mxu0 %v2772
    %3685 = vmatmul.mubr.f32.gmra.mrb[0].mxu0 %v2771
    %v3686 = vpop.f32.mrb[0].mxu0
    %v3687 = vadd.f32 %v3462, %v3686
    %v3688 = vpop.f32.mrb[0].mxu0
    %3689 = vmatprep.mubr.f32.mxu0 %v2781
    %3690 = vmatmul.mubr.f32.gmra.mrb[0].mxu0 %v2780
    %v3691 = vpop.f32.mrb[0].mxu0
    %v3692 = vadd.f32 %v3467, %v3691
    %v3693 = vpop.f32.mrb[0].mxu0
    %3694 = vmatprep.mubr.f32.mxu0 %v2790
    %3695 = vmatmul.mubr.f32.gmra.mrb[0].mxu0 %v2789
    %v3696 = vpop.f32.mrb[0].mxu0
    %v3697 = vadd.f32 %v3472, %v3696
    %v3698 = vpop.f32.mrb[0].mxu0
    %3699 = vmatprep.mubr.f32.mxu0 %v2799
    %3700 = vmatmul.mubr.f32.gmra.mrb[0].mxu0 %v2798
    %v3701 = vpop.f32.mrb[0].mxu0
    %v3702 = vadd.f32 %v3477, %v3701
    %v3703 = vpop.f32.mrb[0].mxu0
    %3704 = vmatprep.mubr.f32.mxu0 %v2808
    %3705 = vmatmul.mubr.f32.gmra.mrb[0].mxu0 %v2807
    %v3706 = vpop.f32.mrb[0].mxu0
    %v3707 = vadd.f32 %v3482, %v3706
    %v3708 = vpop.f32.mrb[0].mxu0
    %3709 = vmatprep.mubr.f32.mxu0 %v2817
    %3710 = vmatmul.mubr.f32.gmra.mrb[0].mxu0 %v2816
    %v3711 = vpop.f32.mrb[0].mxu0
    %v3712 = vadd.f32 %v3487, %v3711
    %v3713 = vpop.f32.mrb[0].mxu0
    %3714 = vmatprep.mubr.f32.mxu0 %v2826
    %3715 = vmatmul.mubr.f32.gmra.mrb[0].mxu0 %v2825
    %v3716 = vpop.f32.mrb[0].mxu0
    %v3717 = vadd.f32 %v3492, %v3716
    %v3718 = vpop.f32.mrb[0].mxu0
    %3719 = vmatprep.mubr.f32.mxu0 %v2835
    %3720 = vmatmul.mubr.f32.gmra.mrb[0].mxu0 %v2834
    %v3721 = vpop.f32.mrb[0].mxu0
    %v3722 = vadd.f32 %v3497, %v3721
    %v3723 = vpop.f32.mrb[0].mxu0
    %3724 = vmatprep.mubr.f32.mxu0 %v2844
    %3725 = vmatmul.mubr.f32.gmra.mrb[0].mxu0 %v2843
    %v3726 = vpop.f32.mrb[0].mxu0
    %v3727 = vadd.f32 %v3502, %v3726
    %v3728 = vpop.f32.mrb[0].mxu0
    %3729 = vmatprep.mubr.f32.mxu0 %v2853
    %3730 = vmatmul.mubr.f32.gmra.mrb[0].mxu0 %v2852
    %v3731 = vpop.f32.mrb[0].mxu0
    %v3732 = vadd.f32 %v3507, %v3731
    %v3733 = vpop.f32.mrb[0].mxu0
    %3734 = vmatprep.mubr.f32.mxu0 %v2862
    %3735 = vmatmul.mubr.f32.gmra.mrb[0].mxu0 %v2861
    %v3736 = vpop.f32.mrb[0].mxu0
    %v3737 = vadd.f32 %v3512, %v3736
    %v3738 = vpop.f32.mrb[0].mxu0
    %3739 = vmatprep.mubr.f32.mxu0 %v2871
    %3740 = vmatmul.mubr.f32.gmra.mrb[0].mxu0 %v2870
    %v3741 = vpop.f32.mrb[0].mxu0
    %v3742 = vadd.f32 %v3517, %v3741
    %v3743 = vpop.f32.mrb[0].mxu0
    %3744 = vmatprep.mubr.f32.mxu0 %v2880
    %3745 = vmatmul.mubr.f32.gmra.mrb[0].mxu0 %v2879
    %v3746 = vpop.f32.mrb[0].mxu0
    %v3747 = vadd.f32 %v3522, %v3746
    %v3748 = vpop.f32.mrb[0].mxu0
    %3749 = vmatprep.mubr.f32.mxu0 %v2889
    %3750 = vmatmul.mubr.f32.gmra.mrb[0].mxu0 %v2888
    %v3751 = vpop.f32.mrb[0].mxu0
    %v3752 = vadd.f32 %v3527, %v3751
    %v3753 = vpop.f32.mrb[0].mxu0
    %3754 = vmatprep.mubr.f32.mxu0 %v2898
    %3755 = vmatmul.mubr.f32.gmra.mrb[0].mxu0 %v2897
    %v3756 = vpop.f32.mrb[0].mxu0
    %v3757 = vadd.f32 %v3532, %v3756
    %v3758 = vpop.f32.mrb[0].mxu0
    %3759 = vmatprep.mubr.f32.mxu0 %v2907
    %3760 = vmatmul.mubr.f32.gmra.mrb[0].mxu0 %v2906
    %v3761 = vpop.f32.mrb[0].mxu0
    %v3762 = vadd.f32 %v3537, %v3761
    %v3763 = vpop.f32.mrb[0].mxu0
    %3764 = vmatprep.mubr.f32.mxu0 %v2916
    %3765 = vmatmul.mubr.f32.gmra.mrb[0].mxu0 %v2915
    %v3766 = vpop.f32.mrb[0].mxu0
    %v3767 = vadd.f32 %v3542, %v3766
    %v3768 = vpop.f32.mrb[0].mxu0
    %3769 = vmatprep.mubr.f32.mxu0 %v2925
    %3770 = vmatmul.mubr.f32.gmra.mrb[0].mxu0 %v2924
    %v3771 = vpop.f32.mrb[0].mxu0
    %v3772 = vadd.f32 %v3547, %v3771
    %v3773 = vpop.f32.mrb[0].mxu0
    %3774 = vmatprep.mubr.f32.mxu0 %v2934
    %3775 = vmatmul.mubr.f32.gmra.mrb[0].mxu0 %v2933
    %v3776 = vpop.f32.mrb[0].mxu0
    %v3777 = vadd.f32 %v3552, %v3776
    %v3778 = vpop.f32.mrb[0].mxu0
    %3779 = vmatprep.mubr.f32.mxu0 %v2943
    %3780 = vmatmul.mubr.f32.gmra.mrb[0].mxu0 %v2942
    %v3781 = vpop.f32.mrb[0].mxu0
    %v3782 = vadd.f32 %v3557, %v3781
    %v3783 = vpop.f32.mrb[0].mxu0
    %3784 = vmatprep.mubr.f32.mxu0 %v2952
    %3785 = vmatmul.mubr.f32.gmra.mrb[0].mxu0 %v2951
    %v3786 = vpop.f32.mrb[0].mxu0
    %v3787 = vadd.f32 %v3562, %v3786
    %v3788 = vpop.f32.mrb[0].mxu0
    %3789 = vmatprep.mubr.f32.mxu0 %v2961
    %3790 = vmatmul.mubr.f32.gmra.mrb[0].mxu0 %v2960
    %v3791 = vpop.f32.mrb[0].mxu0
    %v3792 = vadd.f32 %v3567, %v3791
    %v3793 = vpop.f32.mrb[0].mxu0
    %3794 = vmatprep.mubr.f32.mxu0 %v2970
    %3795 = vmatmul.mubr.f32.gmra.mrb[0].mxu0 %v2969
    %v3796 = vpop.f32.mrb[0].mxu0
    %v3797 = vadd.f32 %v3572, %v3796
    %v3798 = vpop.f32.mrb[0].mxu0
    %3799 = vdwg.mxu0
    %3800 = vmatprep.subr.mxu0 0.0
    %3801 = vmatpush1.msra.mxu0 %v3070
    %3802 = vmatprep.subr.mxu0 0.0
    %3803 = vmatpush1.msra.mxu0 %v3071
    %3804 = vmatprep.subr.mxu0 0.0
    %3805 = vmatpush1.msra.mxu0 %v3072
    %3806 = vmatprep.subr.mxu0 0.0
    %3807 = vmatpush1.msra.mxu0 %v3073
    %3808 = vmatprep.subr.mxu0 0.0
    %3809 = vmatpush1.msra.mxu0 %v3074
    %3810 = vmatprep.subr.mxu0 0.0
    %3811 = vmatpush1.msra.mxu0 %v3075
    %3812 = vmatprep.subr.mxu0 0.0
    %3813 = vmatpush1.msra.mxu0 %v3076
    %3814 = vmatprep.subr.mxu0 0.0
    %3815 = vmatpush1.msra.mxu0 %v3077
    %3816 = vmatprep.subr.mxu0 0.0
    %3817 = vmatpush1.msra.mxu0 %v3078
    %3818 = vmatprep.subr.mxu0 0.0
    %3819 = vmatpush1.msra.mxu0 %v3079
    %3820 = vmatprep.subr.mxu0 0.0
    %3821 = vmatpush1.msra.mxu0 %v3080
    %3822 = vmatprep.subr.mxu0 0.0
    %3823 = vmatpush1.msra.mxu0 %v3081
    %3824 = vmatprep.subr.mxu0 0.0
    %3825 = vmatpush1.msra.mxu0 %v3082
    %3826 = vmatprep.subr.mxu0 0.0
    %3827 = vmatpush1.msra.mxu0 %v3083
    %3828 = vmatprep.subr.mxu0 0.0
    %3829 = vmatpush1.msra.mxu0 %v3084
    %3830 = vmatprep.subr.mxu0 0.0
    %3831 = vmatpush1.msra.mxu0 %v3085
    %3832 = vmatprep.subr.mxu0 0.0
    %3833 = vmatpush1.msra.mxu0 %v3086
    %3834 = vmatprep.subr.mxu0 0.0
    %3835 = vmatpush1.msra.mxu0 %v3087
    %3836 = vmatprep.subr.mxu0 0.0
    %3837 = vmatpush1.msra.mxu0 %v3088
    %3838 = vmatprep.subr.mxu0 0.0
    %3839 = vmatpush1.msra.mxu0 %v3089
    %3840 = vmatprep.subr.mxu0 0.0
    %3841 = vmatpush1.msra.mxu0 %v3090
    %3842 = vmatprep.subr.mxu0 0.0
    %3843 = vmatpush1.msra.mxu0 %v3091
    %3844 = vmatprep.subr.mxu0 0.0
    %3845 = vmatpush1.msra.mxu0 %v3092
    %3846 = vmatprep.subr.mxu0 0.0
    %3847 = vmatpush1.msra.mxu0 %v3093
    %3848 = vmatprep.subr.mxu0 0.0
    %3849 = vmatpush1.msra.mxu0 %v3094
    %3850 = vmatprep.subr.mxu0 0.0
    %3851 = vmatpush1.msra.mxu0 %v3095
    %3852 = vmatprep.subr.mxu0 0.0
    %3853 = vmatpush1.msra.mxu0 %v3096
    %3854 = vmatprep.subr.mxu0 0.0
    %3855 = vmatpush1.msra.mxu0 %v3097
    %3856 = vmatprep.subr.mxu0 0.0
    %3857 = vmatpush1.msra.mxu0 %v3098
    %3858 = vmatprep.subr.mxu0 0.0
    %3859 = vmatpush1.msra.mxu0 %v3099
    %3860 = vmatprep.subr.mxu0 0.0
    %3861 = vmatpush1.msra.mxu0 %v3100
    %3862 = vmatprep.subr.mxu0 0.0
    %3863 = vmatpush1.msra.mxu0 %v3101
    %3864 = vmatprep.mubr.f32.mxu0 %v2693
    %3865 = vmatmul.mubr.f32.gmra.mrb[0].mxu0 %v2692
    %v3866 = vpop.f32.mrb[0].mxu0
    %v3867 = vadd.f32 %v3642, %v3866
    %v3868 = vpop.f32.mrb[0].mxu0
    %3869 = vmatprep.mubr.f32.mxu0 %v2702
    %3870 = vmatmul.mubr.f32.gmra.mrb[0].mxu0 %v2701
    %v3871 = vpop.f32.mrb[0].mxu0
    %v3872 = vadd.f32 %v3647, %v3871
    %v3873 = vpop.f32.mrb[0].mxu0
    %3874 = vmatprep.mubr.f32.mxu0 %v2711
    %3875 = vmatmul.mubr.f32.gmra.mrb[0].mxu0 %v2710
    %v3876 = vpop.f32.mrb[0].mxu0
    %v3877 = vadd.f32 %v3652, %v3876
    %v3878 = vpop.f32.mrb[0].mxu0
    %3879 = vmatprep.mubr.f32.mxu0 %v2720
    %3880 = vmatmul.mubr.f32.gmra.mrb[0].mxu0 %v2719
    %v3881 = vpop.f32.mrb[0].mxu0
    %v3882 = vadd.f32 %v3657, %v3881
    %v3883 = vpop.f32.mrb[0].mxu0
    %3884 = vmatprep.mubr.f32.mxu0 %v2729
    %3885 = vmatmul.mubr.f32.gmra.mrb[0].mxu0 %v2728
    %v3886 = vpop.f32.mrb[0].mxu0
    %v3887 = vadd.f32 %v3662, %v3886
    %v3888 = vpop.f32.mrb[0].mxu0
    %3889 = vmatprep.mubr.f32.mxu0 %v2738
    %3890 = vmatmul.mubr.f32.gmra.mrb[0].mxu0 %v2737
    %v3891 = vpop.f32.mrb[0].mxu0
    %v3892 = vadd.f32 %v3667, %v3891
    %v3893 = vpop.f32.mrb[0].mxu0
    %3894 = vmatprep.mubr.f32.mxu0 %v2747
    %3895 = vmatmul.mubr.f32.gmra.mrb[0].mxu0 %v2746
    %v3896 = vpop.f32.mrb[0].mxu0
    %v3897 = vadd.f32 %v3672, %v3896
    %v3898 = vpop.f32.mrb[0].mxu0
    %3899 = vmatprep.mubr.f32.mxu0 %v2756
    %3900 = vmatmul.mubr.f32.gmra.mrb[0].mxu0 %v2755
    %v3901 = vpop.f32.mrb[0].mxu0
    %v3902 = vadd.f32 %v3677, %v3901
    %v3903 = vpop.f32.mrb[0].mxu0
    %3904 = vmatprep.mubr.f32.mxu0 %v2765
    %3905 = vmatmul.mubr.f32.gmra.mrb[0].mxu0 %v2764
    %v3906 = vpop.f32.mrb[0].mxu0
    %v3907 = vadd.f32 %v3682, %v3906
    %v3908 = vpop.f32.mrb[0].mxu0
    %3909 = vmatprep.mubr.f32.mxu0 %v2774
    %3910 = vmatmul.mubr.f32.gmra.mrb[0].mxu0 %v2773
    %v3911 = vpop.f32.mrb[0].mxu0
    %v3912 = vadd.f32 %v3687, %v3911
    %v3913 = vpop.f32.mrb[0].mxu0
    %3914 = vmatprep.mubr.f32.mxu0 %v2783
    %3915 = vmatmul.mubr.f32.gmra.mrb[0].mxu0 %v2782
    %v3916 = vpop.f32.mrb[0].mxu0
    %v3917 = vadd.f32 %v3692, %v3916
    %v3918 = vpop.f32.mrb[0].mxu0
    %3919 = vmatprep.mubr.f32.mxu0 %v2792
    %3920 = vmatmul.mubr.f32.gmra.mrb[0].mxu0 %v2791
    %v3921 = vpop.f32.mrb[0].mxu0
    %v3922 = vadd.f32 %v3697, %v3921
    %v3923 = vpop.f32.mrb[0].mxu0
    %3924 = vmatprep.mubr.f32.mxu0 %v2801
    %3925 = vmatmul.mubr.f32.gmra.mrb[0].mxu0 %v2800
    %v3926 = vpop.f32.mrb[0].mxu0
    %v3927 = vadd.f32 %v3702, %v3926
    %v3928 = vpop.f32.mrb[0].mxu0
    %3929 = vmatprep.mubr.f32.mxu0 %v2810
    %3930 = vmatmul.mubr.f32.gmra.mrb[0].mxu0 %v2809
    %v3931 = vpop.f32.mrb[0].mxu0
    %v3932 = vadd.f32 %v3707, %v3931
    %v3933 = vpop.f32.mrb[0].mxu0
    %3934 = vmatprep.mubr.f32.mxu0 %v2819
    %3935 = vmatmul.mubr.f32.gmra.mrb[0].mxu0 %v2818
    %v3936 = vpop.f32.mrb[0].mxu0
    %v3937 = vadd.f32 %v3712, %v3936
    %v3938 = vpop.f32.mrb[0].mxu0
    %3939 = vmatprep.mubr.f32.mxu0 %v2828
    %3940 = vmatmul.mubr.f32.gmra.mrb[0].mxu0 %v2827
    %v3941 = vpop.f32.mrb[0].mxu0
    %v3942 = vadd.f32 %v3717, %v3941
    %v3943 = vpop.f32.mrb[0].mxu0
    %3944 = vmatprep.mubr.f32.mxu0 %v2837
    %3945 = vmatmul.mubr.f32.gmra.mrb[0].mxu0 %v2836
    %v3946 = vpop.f32.mrb[0].mxu0
    %v3947 = vadd.f32 %v3722, %v3946
    %v3948 = vpop.f32.mrb[0].mxu0
    %3949 = vmatprep.mubr.f32.mxu0 %v2846
    %3950 = vmatmul.mubr.f32.gmra.mrb[0].mxu0 %v2845
    %v3951 = vpop.f32.mrb[0].mxu0
    %v3952 = vadd.f32 %v3727, %v3951
    %v3953 = vpop.f32.mrb[0].mxu0
    %3954 = vmatprep.mubr.f32.mxu0 %v2855
    %3955 = vmatmul.mubr.f32.gmra.mrb[0].mxu0 %v2854
    %v3956 = vpop.f32.mrb[0].mxu0
    %v3957 = vadd.f32 %v3732, %v3956
    %v3958 = vpop.f32.mrb[0].mxu0
    %3959 = vmatprep.mubr.f32.mxu0 %v2864
    %3960 = vmatmul.mubr.f32.gmra.mrb[0].mxu0 %v2863
    %v3961 = vpop.f32.mrb[0].mxu0
    %v3962 = vadd.f32 %v3737, %v3961
    %v3963 = vpop.f32.mrb[0].mxu0
    %3964 = vmatprep.mubr.f32.mxu0 %v2873
    %3965 = vmatmul.mubr.f32.gmra.mrb[0].mxu0 %v2872
    %v3966 = vpop.f32.mrb[0].mxu0
    %v3967 = vadd.f32 %v3742, %v3966
    %v3968 = vpop.f32.mrb[0].mxu0
    %3969 = vmatprep.mubr.f32.mxu0 %v2882
    %3970 = vmatmul.mubr.f32.gmra.mrb[0].mxu0 %v2881
    %v3971 = vpop.f32.mrb[0].mxu0
    %v3972 = vadd.f32 %v3747, %v3971
    %v3973 = vpop.f32.mrb[0].mxu0
    %3974 = vmatprep.mubr.f32.mxu0 %v2891
    %3975 = vmatmul.mubr.f32.gmra.mrb[0].mxu0 %v2890
    %v3976 = vpop.f32.mrb[0].mxu0
    %v3977 = vadd.f32 %v3752, %v3976
    %v3978 = vpop.f32.mrb[0].mxu0
    %3979 = vmatprep.mubr.f32.mxu0 %v2900
    %3980 = vmatmul.mubr.f32.gmra.mrb[0].mxu0 %v2899
    %v3981 = vpop.f32.mrb[0].mxu0
    %v3982 = vadd.f32 %v3757, %v3981
    %v3983 = vpop.f32.mrb[0].mxu0
    %3984 = vmatprep.mubr.f32.mxu0 %v2909
    %3985 = vmatmul.mubr.f32.gmra.mrb[0].mxu0 %v2908
    %v3986 = vpop.f32.mrb[0].mxu0
    %v3987 = vadd.f32 %v3762, %v3986
    %v3988 = vpop.f32.mrb[0].mxu0
    %3989 = vmatprep.mubr.f32.mxu0 %v2918
    %3990 = vmatmul.mubr.f32.gmra.mrb[0].mxu0 %v2917
    %v3991 = vpop.f32.mrb[0].mxu0
    %v3992 = vadd.f32 %v3767, %v3991
    %v3993 = vpop.f32.mrb[0].mxu0
    %3994 = vmatprep.mubr.f32.mxu0 %v2927
    %3995 = vmatmul.mubr.f32.gmra.mrb[0].mxu0 %v2926
    %v3996 = vpop.f32.mrb[0].mxu0
    %v3997 = vadd.f32 %v3772, %v3996
    %v3998 = vpop.f32.mrb[0].mxu0
    %3999 = vmatprep.mubr.f32.mxu0 %v2936
    %4000 = vmatmul.mubr.f32.gmra.mrb[0].mxu0 %v2935
    %v4001 = vpop.f32.mrb[0].mxu0
    %v4002 = vadd.f32 %v3777, %v4001
    %v4003 = vpop.f32.mrb[0].mxu0
    %4004 = vmatprep.mubr.f32.mxu0 %v2945
    %4005 = vmatmul.mubr.f32.gmra.mrb[0].mxu0 %v2944
    %v4006 = vpop.f32.mrb[0].mxu0
    %v4007 = vadd.f32 %v3782, %v4006
    %v4008 = vpop.f32.mrb[0].mxu0
    %4009 = vmatprep.mubr.f32.mxu0 %v2954
    %4010 = vmatmul.mubr.f32.gmra.mrb[0].mxu0 %v2953
    %v4011 = vpop.f32.mrb[0].mxu0
    %v4012 = vadd.f32 %v3787, %v4011
    %v4013 = vpop.f32.mrb[0].mxu0
    %4014 = vmatprep.mubr.f32.mxu0 %v2963
    %4015 = vmatmul.mubr.f32.gmra.mrb[0].mxu0 %v2962
    %v4016 = vpop.f32.mrb[0].mxu0
    %v4017 = vadd.f32 %v3792, %v4016
    %v4018 = vpop.f32.mrb[0].mxu0
    %4019 = vmatprep.mubr.f32.mxu0 %v2972
    %4020 = vmatmul.mubr.f32.gmra.mrb[0].mxu0 %v2971
    %v4021 = vpop.f32.mrb[0].mxu0
    %v4022 = vadd.f32 %v3797, %v4021
    %v4023 = vpop.f32.mrb[0].mxu0
    %4024 = vdwg.mxu0
    %4025 = vmatprep.subr.mxu0 0.0
    %4026 = vmatpush1.msra.mxu0 %v3102
    %4027 = vmatprep.subr.mxu0 0.0
    %4028 = vmatpush1.msra.mxu0 %v3103
    %4029 = vmatprep.subr.mxu0 0.0
    %4030 = vmatpush1.msra.mxu0 %v3104
    %4031 = vmatprep.subr.mxu0 0.0
    %4032 = vmatpush1.msra.mxu0 %v3105
    %4033 = vmatprep.subr.mxu0 0.0
    %4034 = vmatpush1.msra.mxu0 %v3106
    %4035 = vmatprep.subr.mxu0 0.0
    %4036 = vmatpush1.msra.mxu0 %v3107
    %4037 = vmatprep.subr.mxu0 0.0
    %4038 = vmatpush1.msra.mxu0 %v3108
    %4039 = vmatprep.subr.mxu0 0.0
    %4040 = vmatpush1.msra.mxu0 %v3109
    %4041 = vmatprep.subr.mxu0 0.0
    %4042 = vmatpush1.msra.mxu0 %v3110
    %4043 = vmatprep.subr.mxu0 0.0
    %4044 = vmatpush1.msra.mxu0 %v3111
    %4045 = vmatprep.subr.mxu0 0.0
    %4046 = vmatpush1.msra.mxu0 %v3112
    %4047 = vmatprep.subr.mxu0 0.0
    %4048 = vmatpush1.msra.mxu0 %v3113
    %4049 = vmatprep.subr.mxu0 0.0
    %4050 = vmatpush1.msra.mxu0 %v3114
    %4051 = vmatprep.subr.mxu0 0.0
    %4052 = vmatpush1.msra.mxu0 %v3115
    %4053 = vmatprep.subr.mxu0 0.0
    %4054 = vmatpush1.msra.mxu0 %v3116
    %4055 = vmatprep.subr.mxu0 0.0
    %4056 = vmatpush1.msra.mxu0 %v3117
    %4057 = vmatprep.subr.mxu0 0.0
    %4058 = vmatpush1.msra.mxu0 0.0
    %4059 = vmatprep.subr.mxu0 0.0
    %4060 = vmatpush1.msra.mxu0 0.0
    %4061 = vmatprep.subr.mxu0 0.0
    %4062 = vmatpush1.msra.mxu0 0.0
    %4063 = vmatprep.subr.mxu0 0.0
    %4064 = vmatpush1.msra.mxu0 0.0
    %4065 = vmatprep.subr.mxu0 0.0
    %4066 = vmatpush1.msra.mxu0 0.0
    %4067 = vmatprep.subr.mxu0 0.0
    %4068 = vmatpush1.msra.mxu0 0.0
    %4069 = vmatprep.subr.mxu0 0.0
    %4070 = vmatpush1.msra.mxu0 0.0
    %4071 = vmatprep.subr.mxu0 0.0
    %4072 = vmatpush1.msra.mxu0 0.0
    %4073 = vmatprep.subr.mxu0 0.0
    %4074 = vmatpush1.msra.mxu0 0.0
    %4075 = vmatprep.subr.mxu0 0.0
    %4076 = vmatpush1.msra.mxu0 0.0
    %4077 = vmatprep.subr.mxu0 0.0
    %4078 = vmatpush1.msra.mxu0 0.0
    %4079 = vmatprep.subr.mxu0 0.0
    %4080 = vmatpush1.msra.mxu0 0.0
    %4081 = vmatprep.subr.mxu0 0.0
    %4082 = vmatpush1.msra.mxu0 0.0
    %4083 = vmatprep.subr.mxu0 0.0
    %4084 = vmatpush1.msra.mxu0 0.0
    %4085 = vmatprep.subr.mxu0 0.0
    %4086 = vmatpush1.msra.mxu0 0.0
    %4087 = vmatprep.subr.mxu0 0.0
    %4088 = vmatpush1.msra.mxu0 0.0
    %4089 = vmatprep.mubr.f32.mxu0 0.0
    %4090 = vmatmul.mubr.f32.gmra.mrb[0].mxu0 %v2694
    %v4091 = vpop.f32.mrb[0].mxu0
    %v4092 = vadd.f32 %v3867, %v4091
    %v4093 = vpop.f32.mrb[0].mxu0
    %4094 = vmatprep.mubr.f32.mxu0 0.0
    %4095 = vmatmul.mubr.f32.gmra.mrb[0].mxu0 %v2703
    %v4096 = vpop.f32.mrb[0].mxu0
    %v4097 = vadd.f32 %v3872, %v4096
    %v4098 = vpop.f32.mrb[0].mxu0
    %4099 = vmatprep.mubr.f32.mxu0 0.0
    %4100 = vmatmul.mubr.f32.gmra.mrb[0].mxu0 %v2712
    %v4101 = vpop.f32.mrb[0].mxu0
    %v4102 = vadd.f32 %v3877, %v4101
    %v4103 = vpop.f32.mrb[0].mxu0
    %4104 = vmatprep.mubr.f32.mxu0 0.0
    %4105 = vmatmul.mubr.f32.gmra.mrb[0].mxu0 %v2721
    %v4106 = vpop.f32.mrb[0].mxu0
    %v4107 = vadd.f32 %v3882, %v4106
    %v4108 = vpop.f32.mrb[0].mxu0
    %4109 = vmatprep.mubr.f32.mxu0 0.0
    %4110 = vmatmul.mubr.f32.gmra.mrb[0].mxu0 %v2730
    %v4111 = vpop.f32.mrb[0].mxu0
    %v4112 = vadd.f32 %v3887, %v4111
    %v4113 = vpop.f32.mrb[0].mxu0
    %4114 = vmatprep.mubr.f32.mxu0 0.0
    %4115 = vmatmul.mubr.f32.gmra.mrb[0].mxu0 %v2739
    %v4116 = vpop.f32.mrb[0].mxu0
    %v4117 = vadd.f32 %v3892, %v4116
    %v4118 = vpop.f32.mrb[0].mxu0
    %4119 = vmatprep.mubr.f32.mxu0 0.0
    %4120 = vmatmul.mubr.f32.gmra.mrb[0].mxu0 %v2748
    %v4121 = vpop.f32.mrb[0].mxu0
    %v4122 = vadd.f32 %v3897, %v4121
    %v4123 = vpop.f32.mrb[0].mxu0
    %4124 = vmatprep.mubr.f32.mxu0 0.0
    %4125 = vmatmul.mubr.f32.gmra.mrb[0].mxu0 %v2757
    %v4126 = vpop.f32.mrb[0].mxu0
    %v4127 = vadd.f32 %v3902, %v4126
    %v4128 = vpop.f32.mrb[0].mxu0
    %4129 = vmatprep.mubr.f32.mxu0 0.0
    %4130 = vmatmul.mubr.f32.gmra.mrb[0].mxu0 %v2766
    %v4131 = vpop.f32.mrb[0].mxu0
    %v4132 = vadd.f32 %v3907, %v4131
    %v4133 = vpop.f32.mrb[0].mxu0
    %4134 = vmatprep.mubr.f32.mxu0 0.0
    %4135 = vmatmul.mubr.f32.gmra.mrb[0].mxu0 %v2775
    %v4136 = vpop.f32.mrb[0].mxu0
    %v4137 = vadd.f32 %v3912, %v4136
    %v4138 = vpop.f32.mrb[0].mxu0
    %4139 = vmatprep.mubr.f32.mxu0 0.0
    %4140 = vmatmul.mubr.f32.gmra.mrb[0].mxu0 %v2784
    %v4141 = vpop.f32.mrb[0].mxu0
    %v4142 = vadd.f32 %v3917, %v4141
    %v4143 = vpop.f32.mrb[0].mxu0
    %4144 = vmatprep.mubr.f32.mxu0 0.0
    %4145 = vmatmul.mubr.f32.gmra.mrb[0].mxu0 %v2793
    %v4146 = vpop.f32.mrb[0].mxu0
    %v4147 = vadd.f32 %v3922, %v4146
    %v4148 = vpop.f32.mrb[0].mxu0
    %4149 = vmatprep.mubr.f32.mxu0 0.0
    %4150 = vmatmul.mubr.f32.gmra.mrb[0].mxu0 %v2802
    %v4151 = vpop.f32.mrb[0].mxu0
    %v4152 = vadd.f32 %v3927, %v4151
    %v4153 = vpop.f32.mrb[0].mxu0
    %4154 = vmatprep.mubr.f32.mxu0 0.0
    %4155 = vmatmul.mubr.f32.gmra.mrb[0].mxu0 %v2811
    %v4156 = vpop.f32.mrb[0].mxu0
    %v4157 = vadd.f32 %v3932, %v4156
    %v4158 = vpop.f32.mrb[0].mxu0
    %4159 = vmatprep.mubr.f32.mxu0 0.0
    %4160 = vmatmul.mubr.f32.gmra.mrb[0].mxu0 %v2820
    %v4161 = vpop.f32.mrb[0].mxu0
    %v4162 = vadd.f32 %v3937, %v4161
    %v4163 = vpop.f32.mrb[0].mxu0
    %4164 = vmatprep.mubr.f32.mxu0 0.0
    %4165 = vmatmul.mubr.f32.gmra.mrb[0].mxu0 %v2829
    %v4166 = vpop.f32.mrb[0].mxu0
    %v4167 = vadd.f32 %v3942, %v4166
    %v4168 = vpop.f32.mrb[0].mxu0
    %4169 = vmatprep.mubr.f32.mxu0 0.0
    %4170 = vmatmul.mubr.f32.gmra.mrb[0].mxu0 %v2838
    %v4171 = vpop.f32.mrb[0].mxu0
    %v4172 = vadd.f32 %v3947, %v4171
    %v4173 = vpop.f32.mrb[0].mxu0
    %4174 = vmatprep.mubr.f32.mxu0 0.0
    %4175 = vmatmul.mubr.f32.gmra.mrb[0].mxu0 %v2847
    %v4176 = vpop.f32.mrb[0].mxu0
    %v4177 = vadd.f32 %v3952, %v4176
    %v4178 = vpop.f32.mrb[0].mxu0
    %4179 = vmatprep.mubr.f32.mxu0 0.0
    %4180 = vmatmul.mubr.f32.gmra.mrb[0].mxu0 %v2856
    %v4181 = vpop.f32.mrb[0].mxu0
    %v4182 = vadd.f32 %v3957, %v4181
    %v4183 = vpop.f32.mrb[0].mxu0
    %4184 = vmatprep.mubr.f32.mxu0 0.0
    %4185 = vmatmul.mubr.f32.gmra.mrb[0].mxu0 %v2865
    %v4186 = vpop.f32.mrb[0].mxu0
    %v4187 = vadd.f32 %v3962, %v4186
    %v4188 = vpop.f32.mrb[0].mxu0
    %4189 = vmatprep.mubr.f32.mxu0 0.0
    %4190 = vmatmul.mubr.f32.gmra.mrb[0].mxu0 %v2874
    %v4191 = vpop.f32.mrb[0].mxu0
    %v4192 = vadd.f32 %v3967, %v4191
    %v4193 = vpop.f32.mrb[0].mxu0
    %4194 = vmatprep.mubr.f32.mxu0 0.0
    %4195 = vmatmul.mubr.f32.gmra.mrb[0].mxu0 %v2883
    %v4196 = vpop.f32.mrb[0].mxu0
    %v4197 = vadd.f32 %v3972, %v4196
    %v4198 = vpop.f32.mrb[0].mxu0
    %4199 = vmatprep.mubr.f32.mxu0 0.0
    %4200 = vmatmul.mubr.f32.gmra.mrb[0].mxu0 %v2892
    %v4201 = vpop.f32.mrb[0].mxu0
    %v4202 = vadd.f32 %v3977, %v4201
    %v4203 = vpop.f32.mrb[0].mxu0
    %4204 = vmatprep.mubr.f32.mxu0 0.0
    %4205 = vmatmul.mubr.f32.gmra.mrb[0].mxu0 %v2901
    %v4206 = vpop.f32.mrb[0].mxu0
    %v4207 = vadd.f32 %v3982, %v4206
    %v4208 = vpop.f32.mrb[0].mxu0
    %4209 = vmatprep.mubr.f32.mxu0 0.0
    %4210 = vmatmul.mubr.f32.gmra.mrb[0].mxu0 %v2910
    %v4211 = vpop.f32.mrb[0].mxu0
    %v4212 = vadd.f32 %v3987, %v4211
    %v4213 = vpop.f32.mrb[0].mxu0
    %4214 = vmatprep.mubr.f32.mxu0 0.0
    %4215 = vmatmul.mubr.f32.gmra.mrb[0].mxu0 %v2919
    %v4216 = vpop.f32.mrb[0].mxu0
    %v4217 = vadd.f32 %v3992, %v4216
    %v4218 = vpop.f32.mrb[0].mxu0
    %4219 = vmatprep.mubr.f32.mxu0 0.0
    %4220 = vmatmul.mubr.f32.gmra.mrb[0].mxu0 %v2928
    %v4221 = vpop.f32.mrb[0].mxu0
    %v4222 = vadd.f32 %v3997, %v4221
    %v4223 = vpop.f32.mrb[0].mxu0
    %4224 = vmatprep.mubr.f32.mxu0 0.0
    %4225 = vmatmul.mubr.f32.gmra.mrb[0].mxu0 %v2937
    %v4226 = vpop.f32.mrb[0].mxu0
    %v4227 = vadd.f32 %v4002, %v4226
    %v4228 = vpop.f32.mrb[0].mxu0
    %4229 = vmatprep.mubr.f32.mxu0 0.0
    %4230 = vmatmul.mubr.f32.gmra.mrb[0].mxu0 %v2946
    %v4231 = vpop.f32.mrb[0].mxu0
    %v4232 = vadd.f32 %v4007, %v4231
    %v4233 = vpop.f32.mrb[0].mxu0
    %4234 = vmatprep.mubr.f32.mxu0 0.0
    %4235 = vmatmul.mubr.f32.gmra.mrb[0].mxu0 %v2955
    %v4236 = vpop.f32.mrb[0].mxu0
    %v4237 = vadd.f32 %v4012, %v4236
    %v4238 = vpop.f32.mrb[0].mxu0
    %4239 = vmatprep.mubr.f32.mxu0 0.0
    %4240 = vmatmul.mubr.f32.gmra.mrb[0].mxu0 %v2964
    %v4241 = vpop.f32.mrb[0].mxu0
    %v4242 = vadd.f32 %v4017, %v4241
    %v4243 = vpop.f32.mrb[0].mxu0
    %4244 = vmatprep.mubr.f32.mxu0 0.0
    %4245 = vmatmul.mubr.f32.gmra.mrb[0].mxu0 %v2973
    %v4246 = vpop.f32.mrb[0].mxu0
    %v4247 = vadd.f32 %v4022, %v4246
    %v4248 = vpop.f32.mrb[0].mxu0
    %4249 = vdwg.mxu0
    %v4250 = vmax.f32 %v4092, 0.0
    %v4251 = vmax.f32 %v4097, 0.0
    %v4252 = vmax.f32 %v4102, 0.0
    %v4253 = vmax.f32 %v4107, 0.0
    %v4254 = vmax.f32 %v4112, 0.0
    %v4255 = vmax.f32 %v4117, 0.0
    %v4256 = vmax.f32 %v4122, 0.0
    %v4257 = vmax.f32 %v4127, 0.0
    %v4258 = vmax.f32 %v4132, 0.0
    %v4259 = vmax.f32 %v4137, 0.0
    %v4260 = vmax.f32 %v4142, 0.0
    %v4261 = vmax.f32 %v4147, 0.0
    %v4262 = vmax.f32 %v4152, 0.0
    %v4263 = vmax.f32 %v4157, 0.0
    %v4264 = vmax.f32 %v4162, 0.0
    %v4265 = vmax.f32 %v4167, 0.0
    %v4266 = vmax.f32 %v4172, 0.0
    %v4267 = vmax.f32 %v4177, 0.0
    %v4268 = vmax.f32 %v4182, 0.0
    %v4269 = vmax.f32 %v4187, 0.0
    %v4270 = vmax.f32 %v4192, 0.0
    %v4271 = vmax.f32 %v4197, 0.0
    %v4272 = vmax.f32 %v4202, 0.0
    %v4273 = vmax.f32 %v4207, 0.0
    %v4274 = vmax.f32 %v4212, 0.0
    %v4275 = vmax.f32 %v4217, 0.0
    %v4276 = vmax.f32 %v4222, 0.0
    %v4277 = vmax.f32 %v4227, 0.0
    %v4278 = vmax.f32 %v4232, 0.0
    %v4279 = vmax.f32 %v4237, 0.0
    %v4280 = vmax.f32 %v4242, 0.0
    %v4281 = vmax.f32 %v4247, 0.0
    %v4282 = vmul.f32 %v4250, %v541
    %v4283 = vmul.f32 %v4251, %v542
    %v4284 = vmul.f32 %v4252, %v543
    %v4285 = vmul.f32 %v4253, %v544
    %v4286 = vmul.f32 %v4254, %v545
    %v4287 = vmul.f32 %v4255, %v546
    %v4288 = vmul.f32 %v4256, %v547
    %v4289 = vmul.f32 %v4257, %v548
    %v4290 = vmul.f32 %v4258, %v549
    %v4291 = vmul.f32 %v4259, %v550
    %v4292 = vmul.f32 %v4260, %v551
    %v4293 = vmul.f32 %v4261, %v552
    %v4294 = vmul.f32 %v4262, %v553
    %v4295 = vmul.f32 %v4263, %v554
    %v4296 = vmul.f32 %v4264, %v555
    %v4297 = vmul.f32 %v4265, %v556
    %v4298 = vmul.f32 %v4266, %v557
    %v4299 = vmul.f32 %v4267, %v558
    %v4300 = vmul.f32 %v4268, %v559
    %v4301 = vmul.f32 %v4269, %v560
    %v4302 = vmul.f32 %v4270, %v561
    %v4303 = vmul.f32 %v4271, %v562
    %v4304 = vmul.f32 %v4272, %v563
    %v4305 = vmul.f32 %v4273, %v564
    %v4306 = vmul.f32 %v4274, %v565
    %v4307 = vmul.f32 %v4275, %v566
    %v4308 = vmul.f32 %v4276, %v567
    %v4309 = vmul.f32 %v4277, %v568
    %v4310 = vmul.f32 %v4278, %v569
    %v4311 = vmul.f32 %v4279, %v570
    %v4312 = vmul.f32 %v4280, %v571
    %v4313 = vmul.f32 %v4281, %v572
    %4314 = vst [vmem:[#allocation2 + $0x11] sm:$0xff] %v4282
    %4315 = vst [vmem:[#allocation2 + $0x19] sm:$0xff] %v4283
    %4316 = vst [vmem:[#allocation2 + $0x21] sm:$0xff] %v4284
    %4317 = vst [vmem:[#allocation2 + $0x29] sm:$0xff] %v4285
    %4318 = vst [vmem:[#allocation2 + $0x31] sm:$0xff] %v4286
    %4319 = vst [vmem:[#allocation2 + $0x39] sm:$0xff] %v4287
    %4320 = vst [vmem:[#allocation2 + $0x41] sm:$0xff] %v4288
    %4321 = vst [vmem:[#allocation2 + $0x49] sm:$0xff] %v4289
    %4322 = vst [vmem:[#allocation2 + $0x51] sm:$0xff] %v4290
    %4323 = vst [vmem:[#allocation2 + $0x59] sm:$0xff] %v4291
    %4324 = vst [vmem:[#allocation2 + $0x61] sm:$0xff] %v4292
    %4325 = vst [vmem:[#allocation2 + $0x69] sm:$0xff] %v4293
    %4326 = vst [vmem:[#allocation2 + $0x71] sm:$0xff] %v4294
    %4327 = vst [vmem:[#allocation2 + $0x79] sm:$0xff] %v4295
    %4328 = vst [vmem:[#allocation2 + $0x81] sm:$0xff] %v4296
    %4329 = vst [vmem:[#allocation2 + $0x89] sm:$0xff] %v4297
    %4330 = vst [vmem:[#allocation2 + $0x91] sm:$0xff] %v4298
    %4331 = vst [vmem:[#allocation2 + $0x99] sm:$0xff] %v4299
    %4332 = vst [vmem:[#allocation2 + $0xa1] sm:$0xff] %v4300
    %4333 = vst [vmem:[#allocation2 + $0xa9] sm:$0xff] %v4301
    %4334 = vst [vmem:[#allocation2 + $0xb1] sm:$0xff] %v4302
    %4335 = vst [vmem:[#allocation2 + $0xb9] sm:$0xff] %v4303
    %4336 = vst [vmem:[#allocation2 + $0xc1] sm:$0xff] %v4304
    %4337 = vst [vmem:[#allocation2 + $0xc9] sm:$0xff] %v4305
    %4338 = vst [vmem:[#allocation2 + $0xd1] sm:$0xff] %v4306
    %4339 = vst [vmem:[#allocation2 + $0xd9] sm:$0xff] %v4307
    %4340 = vst [vmem:[#allocation2 + $0xe1] sm:$0xff] %v4308
    %4341 = vst [vmem:[#allocation2 + $0xe9] sm:$0xff] %v4309
    %4342 = vst [vmem:[#allocation2 + $0xf1] sm:$0xff] %v4310
    %4343 = vst [vmem:[#allocation2 + $0xf9] sm:$0xff] %v4311
    %4344 = vst [vmem:[#allocation2 + $0x101] sm:$0xff] %v4312
    %4345 = vst [vmem:[#allocation2 + $0x109] sm:$0xff] %v4313
    %4346 = vst [vmem:[#allocation3 + $0x10] sm:$0xff] %v4250
    %4347 = vst [vmem:[#allocation3 + $0x18] sm:$0xff] %v4251
    %4348 = vst [vmem:[#allocation3 + $0x20] sm:$0xff] %v4252
    %4349 = vst [vmem:[#allocation3 + $0x28] sm:$0xff] %v4253
    %4350 = vst [vmem:[#allocation3 + $0x30] sm:$0xff] %v4254
    %4351 = vst [vmem:[#allocation3 + $0x38] sm:$0xff] %v4255
    %4352 = vst [vmem:[#allocation3 + $0x40] sm:$0xff] %v4256
    %4353 = vst [vmem:[#allocation3 + $0x48] sm:$0xff] %v4257
    %4354 = vst [vmem:[#allocation3 + $0x50] sm:$0xff] %v4258
    %4355 = vst [vmem:[#allocation3 + $0x58] sm:$0xff] %v4259
    %4356 = vst [vmem:[#allocation3 + $0x60] sm:$0xff] %v4260
    %4357 = vst [vmem:[#allocation3 + $0x68] sm:$0xff] %v4261
    %4358 = vst [vmem:[#allocation3 + $0x70] sm:$0xff] %v4262
    %4359 = vst [vmem:[#allocation3 + $0x78] sm:$0xff] %v4263
    %4360 = vst [vmem:[#allocation3 + $0x80] sm:$0xff] %v4264
    %4361 = vst [vmem:[#allocation3 + $0x88] sm:$0xff] %v4265
    %4362 = vst [vmem:[#allocation3 + $0x90] sm:$0xff] %v4266
    %4363 = vst [vmem:[#allocation3 + $0x98] sm:$0xff] %v4267
    %4364 = vst [vmem:[#allocation3 + $0xa0] sm:$0xff] %v4268
    %4365 = vst [vmem:[#allocation3 + $0xa8] sm:$0xff] %v4269
    %4366 = vst [vmem:[#allocation3 + $0xb0] sm:$0xff] %v4270
    %4367 = vst [vmem:[#allocation3 + $0xb8] sm:$0xff] %v4271
    %4368 = vst [vmem:[#allocation3 + $0xc0] sm:$0xff] %v4272
    %4369 = vst [vmem:[#allocation3 + $0xc8] sm:$0xff] %v4273
    %4370 = vst [vmem:[#allocation3 + $0xd0] sm:$0xff] %v4274
    %4371 = vst [vmem:[#allocation3 + $0xd8] sm:$0xff] %v4275
    %4372 = vst [vmem:[#allocation3 + $0xe0] sm:$0xff] %v4276
    %4373 = vst [vmem:[#allocation3 + $0xe8] sm:$0xff] %v4277
    %4374 = vst [vmem:[#allocation3 + $0xf0] sm:$0xff] %v4278
    %4375 = vst [vmem:[#allocation3 + $0xf8] sm:$0xff] %v4279
    %4376 = vst [vmem:[#allocation3 + $0x100] sm:$0xff] %v4280
    %4377 = vst [vmem:[#allocation3 + $0x108] sm:$0xff] %v4281
    %v4378 = vmul.f32 %v4250, %v637
    %v4379 = vmul.f32 %v4251, %v638
    %v4380 = vmul.f32 %v4252, %v639
    %v4381 = vmul.f32 %v4253, %v640
    %v4382 = vmul.f32 %v4254, %v641
    %v4383 = vmul.f32 %v4255, %v642
    %v4384 = vmul.f32 %v4256, %v643
    %v4385 = vmul.f32 %v4257, %v644
    %v4386 = vmul.f32 %v4258, %v645
    %v4387 = vmul.f32 %v4259, %v646
    %v4388 = vmul.f32 %v4260, %v647
    %v4389 = vmul.f32 %v4261, %v648
    %v4390 = vmul.f32 %v4262, %v649
    %v4391 = vmul.f32 %v4263, %v650
    %v4392 = vmul.f32 %v4264, %v651
    %v4393 = vmul.f32 %v4265, %v652
    %v4394 = vmul.f32 %v4266, %v653
    %v4395 = vmul.f32 %v4267, %v654
    %v4396 = vmul.f32 %v4268, %v655
    %v4397 = vmul.f32 %v4269, %v656
    %v4398 = vmul.f32 %v4270, %v657
    %v4399 = vmul.f32 %v4271, %v658
    %v4400 = vmul.f32 %v4272, %v659
    %v4401 = vmul.f32 %v4273, %v660
    %v4402 = vmul.f32 %v4274, %v661
    %v4403 = vmul.f32 %v4275, %v662
    %v4404 = vmul.f32 %v4276, %v663
    %v4405 = vmul.f32 %v4277, %v664
    %v4406 = vmul.f32 %v4278, %v665
    %v4407 = vmul.f32 %v4279, %v666
    %v4408 = vmul.f32 %v4280, %v667
    %v4409 = vmul.f32 %v4281, %v668
    %4410 = vst [vmem:[#allocation4 + $0xf] sm:$0xff] %v4378
    %4411 = vst [vmem:[#allocation4 + $0x17] sm:$0xff] %v4379
    %4412 = vst [vmem:[#allocation4 + $0x1f] sm:$0xff] %v4380
    %4413 = vst [vmem:[#allocation4 + $0x27] sm:$0xff] %v4381
    %4414 = vst [vmem:[#allocation4 + $0x2f] sm:$0xff] %v4382
    %4415 = vst [vmem:[#allocation4 + $0x37] sm:$0xff] %v4383
    %4416 = vst [vmem:[#allocation4 + $0x3f] sm:$0xff] %v4384
    %4417 = vst [vmem:[#allocation4 + $0x47] sm:$0xff] %v4385
    %4418 = vst [vmem:[#allocation4 + $0x4f] sm:$0xff] %v4386
    %4419 = vst [vmem:[#allocation4 + $0x57] sm:$0xff] %v4387
    %4420 = vst [vmem:[#allocation4 + $0x5f] sm:$0xff] %v4388
    %4421 = vst [vmem:[#allocation4 + $0x67] sm:$0xff] %v4389
    %4422 = vst [vmem:[#allocation4 + $0x6f] sm:$0xff] %v4390
    %4423 = vst [vmem:[#allocation4 + $0x77] sm:$0xff] %v4391
    %4424 = vst [vmem:[#allocation4 + $0x7f] sm:$0xff] %v4392
    %4425 = vst [vmem:[#allocation4 + $0x87] sm:$0xff] %v4393
    %4426 = vst [vmem:[#allocation4 + $0x8f] sm:$0xff] %v4394
    %4427 = vst [vmem:[#allocation4 + $0x97] sm:$0xff] %v4395
    %4428 = vst [vmem:[#allocation4 + $0x9f] sm:$0xff] %v4396
    %4429 = vst [vmem:[#allocation4 + $0xa7] sm:$0xff] %v4397
    %4430 = vst [vmem:[#allocation4 + $0xaf] sm:$0xff] %v4398
    %4431 = vst [vmem:[#allocation4 + $0xb7] sm:$0xff] %v4399
    %4432 = vst [vmem:[#allocation4 + $0xbf] sm:$0xff] %v4400
    %4433 = vst [vmem:[#allocation4 + $0xc7] sm:$0xff] %v4401
    %4434 = vst [vmem:[#allocation4 + $0xcf] sm:$0xff] %v4402
    %4435 = vst [vmem:[#allocation4 + $0xd7] sm:$0xff] %v4403
    %4436 = vst [vmem:[#allocation4 + $0xdf] sm:$0xff] %v4404
    %4437 = vst [vmem:[#allocation4 + $0xe7] sm:$0xff] %v4405
    %4438 = vst [vmem:[#allocation4 + $0xef] sm:$0xff] %v4406
    %4439 = vst [vmem:[#allocation4 + $0xf7] sm:$0xff] %v4407
    %4440 = vst [vmem:[#allocation4 + $0xff] sm:$0xff] %v4408
    %4441 = vst [vmem:[#allocation4 + $0x107] sm:$0xff] %v4409
    %v4442 = vld [vmem:[#allocation2] sm:$0xff]
    %v4443 = vld [vmem:[#allocation2 + $0x8] sm:$0xff]
    %v4444 = vld [vmem:[#allocation2 + $0x10] sm:$0xff]
    %v4445 = vld [vmem:[#allocation2 + $0x18] sm:$0xff]
    %v4446 = vld [vmem:[#allocation2 + $0x20] sm:$0xff]
    %v4447 = vld [vmem:[#allocation2 + $0x28] sm:$0xff]
    %v4448 = vld [vmem:[#allocation2 + $0x30] sm:$0xff]
    %v4449 = vld [vmem:[#allocation2 + $0x38] sm:$0xff]
    %v4450 = vld [vmem:[#allocation2 + $0x40] sm:$0xff]
    %v4451 = vld [vmem:[#allocation2 + $0x48] sm:$0xff]
    %v4452 = vld [vmem:[#allocation2 + $0x50] sm:$0xff]
    %v4453 = vld [vmem:[#allocation2 + $0x58] sm:$0xff]
    %v4454 = vld [vmem:[#allocation2 + $0x60] sm:$0xff]
    %v4455 = vld [vmem:[#allocation2 + $0x68] sm:$0xff]
    %v4456 = vld [vmem:[#allocation2 + $0x70] sm:$0xff]
    %v4457 = vld [vmem:[#allocation2 + $0x78] sm:$0xff]
    %v4458 = vld [vmem:[#allocation2 + $0x80] sm:$0xff]
    %v4459 = vld [vmem:[#allocation2 + $0x88] sm:$0xff]
    %v4460 = vld [vmem:[#allocation2 + $0x90] sm:$0xff]
    %v4461 = vld [vmem:[#allocation2 + $0x98] sm:$0xff]
    %v4462 = vld [vmem:[#allocation2 + $0xa0] sm:$0xff]
    %v4463 = vld [vmem:[#allocation2 + $0xa8] sm:$0xff]
    %v4464 = vld [vmem:[#allocation2 + $0xb0] sm:$0xff]
    %v4465 = vld [vmem:[#allocation2 + $0xb8] sm:$0xff]
    %v4466 = vld [vmem:[#allocation2 + $0xc0] sm:$0xff]
    %v4467 = vld [vmem:[#allocation2 + $0xc8] sm:$0xff]
    %v4468 = vld [vmem:[#allocation2 + $0xd0] sm:$0xff]
    %v4469 = vld [vmem:[#allocation2 + $0xd8] sm:$0xff]
    %v4470 = vld [vmem:[#allocation2 + $0xe0] sm:$0xff]
    %v4471 = vld [vmem:[#allocation2 + $0xe8] sm:$0xff]
    %v4472 = vld [vmem:[#allocation2 + $0xf0] sm:$0xff]
    %v4473 = vld [vmem:[#allocation2 + $0xf8] sm:$0xff]
    %v4474 = vld [vmem:[#allocation3] sm:$0xff]
    %v4475 = vld [vmem:[#allocation3 + $0x8] sm:$0xff]
    %v4476 = vld [vmem:[#allocation3 + $0x10] sm:$0xff]
    %v4477 = vld [vmem:[#allocation3 + $0x18] sm:$0xff]
    %v4478 = vld [vmem:[#allocation3 + $0x20] sm:$0xff]
    %v4479 = vld [vmem:[#allocation3 + $0x28] sm:$0xff]
    %v4480 = vld [vmem:[#allocation3 + $0x30] sm:$0xff]
    %v4481 = vld [vmem:[#allocation3 + $0x38] sm:$0xff]
    %v4482 = vld [vmem:[#allocation3 + $0x40] sm:$0xff]
    %v4483 = vld [vmem:[#allocation3 + $0x48] sm:$0xff]
    %v4484 = vld [vmem:[#allocation3 + $0x50] sm:$0xff]
    %v4485 = vld [vmem:[#allocation3 + $0x58] sm:$0xff]
    %v4486 = vld [vmem:[#allocation3 + $0x60] sm:$0xff]
    %v4487 = vld [vmem:[#allocation3 + $0x68] sm:$0xff]
    %v4488 = vld [vmem:[#allocation3 + $0x70] sm:$0xff]
    %v4489 = vld [vmem:[#allocation3 + $0x78] sm:$0xff]
    %v4490 = vld [vmem:[#allocation3 + $0x80] sm:$0xff]
    %v4491 = vld [vmem:[#allocation3 + $0x88] sm:$0xff]
    %v4492 = vld [vmem:[#allocation3 + $0x90] sm:$0xff]
    %v4493 = vld [vmem:[#allocation3 + $0x98] sm:$0xff]
    %v4494 = vld [vmem:[#allocation3 + $0xa0] sm:$0xff]
    %v4495 = vld [vmem:[#allocation3 + $0xa8] sm:$0xff]
    %v4496 = vld [vmem:[#allocation3 + $0xb0] sm:$0xff]
    %v4497 = vld [vmem:[#allocation3 + $0xb8] sm:$0xff]
    %v4498 = vld [vmem:[#allocation3 + $0xc0] sm:$0xff]
    %v4499 = vld [vmem:[#allocation3 + $0xc8] sm:$0xff]
    %v4500 = vld [vmem:[#allocation3 + $0xd0] sm:$0xff]
    %v4501 = vld [vmem:[#allocation3 + $0xd8] sm:$0xff]
    %v4502 = vld [vmem:[#allocation3 + $0xe0] sm:$0xff]
    %v4503 = vld [vmem:[#allocation3 + $0xe8] sm:$0xff]
    %v4504 = vld [vmem:[#allocation3 + $0xf0] sm:$0xff]
    %v4505 = vld [vmem:[#allocation3 + $0xf8] sm:$0xff]
    %v4506 = vld [vmem:[#allocation4] sm:$0xff]
    %v4507 = vld [vmem:[#allocation4 + $0x8] sm:$0xff]
    %v4508 = vld [vmem:[#allocation4 + $0x10] sm:$0xff]
    %v4509 = vld [vmem:[#allocation4 + $0x18] sm:$0xff]
    %v4510 = vld [vmem:[#allocation4 + $0x20] sm:$0xff]
    %v4511 = vld [vmem:[#allocation4 + $0x28] sm:$0xff]
    %v4512 = vld [vmem:[#allocation4 + $0x30] sm:$0xff]
    %v4513 = vld [vmem:[#allocation4 + $0x38] sm:$0xff]
    %v4514 = vld [vmem:[#allocation4 + $0x40] sm:$0xff]
    %v4515 = vld [vmem:[#allocation4 + $0x48] sm:$0xff]
    %v4516 = vld [vmem:[#allocation4 + $0x50] sm:$0xff]
    %v4517 = vld [vmem:[#allocation4 + $0x58] sm:$0xff]
    %v4518 = vld [vmem:[#allocation4 + $0x60] sm:$0xff]
    %v4519 = vld [vmem:[#allocation4 + $0x68] sm:$0xff]
    %v4520 = vld [vmem:[#allocation4 + $0x70] sm:$0xff]
    %v4521 = vld [vmem:[#allocation4 + $0x78] sm:$0xff]
    %v4522 = vld [vmem:[#allocation4 + $0x80] sm:$0xff]
    %v4523 = vld [vmem:[#allocation4 + $0x88] sm:$0xff]
    %v4524 = vld [vmem:[#allocation4 + $0x90] sm:$0xff]
    %v4525 = vld [vmem:[#allocation4 + $0x98] sm:$0xff]
    %v4526 = vld [vmem:[#allocation4 + $0xa0] sm:$0xff]
    %v4527 = vld [vmem:[#allocation4 + $0xa8] sm:$0xff]
    %v4528 = vld [vmem:[#allocation4 + $0xb0] sm:$0xff]
    %v4529 = vld [vmem:[#allocation4 + $0xb8] sm:$0xff]
    %v4530 = vld [vmem:[#allocation4 + $0xc0] sm:$0xff]
    %v4531 = vld [vmem:[#allocation4 + $0xc8] sm:$0xff]
    %v4532 = vld [vmem:[#allocation4 + $0xd0] sm:$0xff]
    %v4533 = vld [vmem:[#allocation4 + $0xd8] sm:$0xff]
    %v4534 = vld [vmem:[#allocation4 + $0xe0] sm:$0xff]
    %v4535 = vld [vmem:[#allocation4 + $0xe8] sm:$0xff]
    %v4536 = vld [vmem:[#allocation4 + $0xf0] sm:$0xff]
    %v4537 = vld [vmem:[#allocation4 + $0xf8] sm:$0xff]
    %v4538 = vld [vmem:[#allocation2 + $0x100] sm:$0xff]
    %v4539 = vld [vmem:[#allocation2 + $0x108] sm:$0xff]
    %v4540 = vld [vmem:[#allocation3 + $0x100] sm:$0xff]
    %v4541 = vld [vmem:[#allocation3 + $0x108] sm:$0xff]
    %v4542 = vld [vmem:[#allocation4 + $0x100] sm:$0xff]
    %v4543 = vld [vmem:[#allocation4 + $0x108] sm:$0xff]
    %v4544 = vld [vmem:[#allocation2 + $0x20] sm:$0xff]
    %v4545 = vld [vmem:[#allocation2 + $0x28] sm:$0xff]
    %v4546 = vld [vmem:[#allocation2 + $0x30] sm:$0xff]
    %v4547 = vld [vmem:[#allocation2 + $0x38] sm:$0xff]
    %v4548 = vld [vmem:[#allocation2 + $0x40] sm:$0xff]
    %v4549 = vld [vmem:[#allocation2 + $0x48] sm:$0xff]
    %v4550 = vld [vmem:[#allocation2 + $0x50] sm:$0xff]
    %v4551 = vld [vmem:[#allocation2 + $0x58] sm:$0xff]
    %v4552 = vld [vmem:[#allocation2 + $0x60] sm:$0xff]
    %v4553 = vld [vmem:[#allocation2 + $0x68] sm:$0xff]
    %v4554 = vld [vmem:[#allocation2 + $0x70] sm:$0xff]
    %v4555 = vld [vmem:[#allocation2 + $0x78] sm:$0xff]
    %v4556 = vld [vmem:[#allocation2 + $0x80] sm:$0xff]
    %v4557 = vld [vmem:[#allocation2 + $0x88] sm:$0xff]
    %v4558 = vld [vmem:[#allocation2 + $0x90] sm:$0xff]
    %v4559 = vld [vmem:[#allocation2 + $0x98] sm:$0xff]
    %v4560 = vld [vmem:[#allocation2 + $0xa0] sm:$0xff]
    %v4561 = vld [vmem:[#allocation2 + $0xa8] sm:$0xff]
    %v4562 = vld [vmem:[#allocation2 + $0xb0] sm:$0xff]
    %v4563 = vld [vmem:[#allocation2 + $0xb8] sm:$0xff]
    %v4564 = vld [vmem:[#allocation2 + $0xc0] sm:$0xff]
    %v4565 = vld [vmem:[#allocation2 + $0xc8] sm:$0xff]
    %v4566 = vld [vmem:[#allocation2 + $0xd0] sm:$0xff]
    %v4567 = vld [vmem:[#allocation2 + $0xd8] sm:$0xff]
    %v4568 = vld [vmem:[#allocation2 + $0xe0] sm:$0xff]
    %v4569 = vld [vmem:[#allocation2 + $0xe8] sm:$0xff]
    %v4570 = vld [vmem:[#allocation2 + $0xf0] sm:$0xff]
    %v4571 = vld [vmem:[#allocation2 + $0xf8] sm:$0xff]
    %v4572 = vld [vmem:[#allocation2 + $0x100] sm:$0xff]
    %v4573 = vld [vmem:[#allocation2 + $0x108] sm:$0xff]
    %v4574 = vld [vmem:[#allocation2 + $0x110] sm:$0xff]
    %v4575 = vld [vmem:[#allocation2 + $0x118] sm:$0xff]
    %v4576 = vld [vmem:[#allocation3 + $0x20] sm:$0xff]
    %v4577 = vld [vmem:[#allocation3 + $0x28] sm:$0xff]
    %v4578 = vld [vmem:[#allocation3 + $0x30] sm:$0xff]
    %v4579 = vld [vmem:[#allocation3 + $0x38] sm:$0xff]
    %v4580 = vld [vmem:[#allocation3 + $0x40] sm:$0xff]
    %v4581 = vld [vmem:[#allocation3 + $0x48] sm:$0xff]
    %v4582 = vld [vmem:[#allocation3 + $0x50] sm:$0xff]
    %v4583 = vld [vmem:[#allocation3 + $0x58] sm:$0xff]
    %v4584 = vld [vmem:[#allocation3 + $0x60] sm:$0xff]
    %v4585 = vld [vmem:[#allocation3 + $0x68] sm:$0xff]
    %v4586 = vld [vmem:[#allocation3 + $0x70] sm:$0xff]
    %v4587 = vld [vmem:[#allocation3 + $0x78] sm:$0xff]
    %v4588 = vld [vmem:[#allocation3 + $0x80] sm:$0xff]
    %v4589 = vld [vmem:[#allocation3 + $0x88] sm:$0xff]
    %v4590 = vld [vmem:[#allocation3 + $0x90] sm:$0xff]
    %v4591 = vld [vmem:[#allocation3 + $0x98] sm:$0xff]
    %v4592 = vld [vmem:[#allocation3 + $0xa0] sm:$0xff]
    %v4593 = vld [vmem:[#allocation3 + $0xa8] sm:$0xff]
    %v4594 = vld [vmem:[#allocation3 + $0xb0] sm:$0xff]
    %v4595 = vld [vmem:[#allocation3 + $0xb8] sm:$0xff]
    %v4596 = vld [vmem:[#allocation3 + $0xc0] sm:$0xff]
    %v4597 = vld [vmem:[#allocation3 + $0xc8] sm:$0xff]
    %v4598 = vld [vmem:[#allocation3 + $0xd0] sm:$0xff]
    %v4599 = vld [vmem:[#allocation3 + $0xd8] sm:$0xff]
    %v4600 = vld [vmem:[#allocation3 + $0xe0] sm:$0xff]
    %v4601 = vld [vmem:[#allocation3 + $0xe8] sm:$0xff]
    %v4602 = vld [vmem:[#allocation3 + $0xf0] sm:$0xff]
    %v4603 = vld [vmem:[#allocation3 + $0xf8] sm:$0xff]
    %v4604 = vld [vmem:[#allocation3 + $0x100] sm:$0xff]
    %v4605 = vld [vmem:[#allocation3 + $0x108] sm:$0xff]
    %v4606 = vld [vmem:[#allocation3 + $0x110] sm:$0xff]
    %v4607 = vld [vmem:[#allocation3 + $0x118] sm:$0xff]
    %v4608 = vld [vmem:[#allocation4 + $0x20] sm:$0xff]
    %v4609 = vld [vmem:[#allocation4 + $0x28] sm:$0xff]
    %v4610 = vld [vmem:[#allocation4 + $0x30] sm:$0xff]
    %v4611 = vld [vmem:[#allocation4 + $0x38] sm:$0xff]
    %v4612 = vld [vmem:[#allocation4 + $0x40] sm:$0xff]
    %v4613 = vld [vmem:[#allocation4 + $0x48] sm:$0xff]
    %v4614 = vld [vmem:[#allocation4 + $0x50] sm:$0xff]
    %v4615 = vld [vmem:[#allocation4 + $0x58] sm:$0xff]
    %v4616 = vld [vmem:[#allocation4 + $0x60] sm:$0xff]
    %v4617 = vld [vmem:[#allocation4 + $0x68] sm:$0xff]
    %v4618 = vld [vmem:[#allocation4 + $0x70] sm:$0xff]
    %v4619 = vld [vmem:[#allocation4 + $0x78] sm:$0xff]
    %v4620 = vld [vmem:[#allocation4 + $0x80] sm:$0xff]
    %v4621 = vld [vmem:[#allocation4 + $0x88] sm:$0xff]
    %v4622 = vld [vmem:[#allocation4 + $0x90] sm:$0xff]
    %v4623 = vld [vmem:[#allocation4 + $0x98] sm:$0xff]
    %v4624 = vld [vmem:[#allocation4 + $0xa0] sm:$0xff]
    %v4625 = vld [vmem:[#allocation4 + $0xa8] sm:$0xff]
    %v4626 = vld [vmem:[#allocation4 + $0xb0] sm:$0xff]
    %v4627 = vld [vmem:[#allocation4 + $0xb8] sm:$0xff]
    %v4628 = vld [vmem:[#allocation4 + $0xc0] sm:$0xff]
    %v4629 = vld [vmem:[#allocation4 + $0xc8] sm:$0xff]
    %v4630 = vld [vmem:[#allocation4 + $0xd0] sm:$0xff]
    %v4631 = vld [vmem:[#allocation4 + $0xd8] sm:$0xff]
    %v4632 = vld [vmem:[#allocation4 + $0xe0] sm:$0xff]
    %v4633 = vld [vmem:[#allocation4 + $0xe8] sm:$0xff]
    %v4634 = vld [vmem:[#allocation4 + $0xf0] sm:$0xff]
    %v4635 = vld [vmem:[#allocation4 + $0xf8] sm:$0xff]
    %v4636 = vld [vmem:[#allocation4 + $0x100] sm:$0xff]
    %v4637 = vld [vmem:[#allocation4 + $0x108] sm:$0xff]
    %v4638 = vld [vmem:[#allocation4 + $0x110] sm:$0xff]
    %v4639 = vld [vmem:[#allocation4 + $0x118] sm:$0xff]
    %v4640 = vld [vmem:[%s5] sm:$0x1]
    %v4641 = vlaneseq
    %v4642 = vshrl.u32 %v4641, 7
    %v4643 = vsub.s32 0, %v4642
    %v4644 = vrot.slane %v4640, %v4643
    %v4645 = vmul.f32 %v4442, %v4644
    %v4646 = vmul.f32 %v4443, %v4644
    %v4647 = vmul.f32 %v4444, %v4644
    %v4648 = vmul.f32 %v4445, %v4644
    %v4649 = vmul.f32 %v4446, %v4644
    %v4650 = vmul.f32 %v4447, %v4644
    %v4651 = vmul.f32 %v4448, %v4644
    %v4652 = vmul.f32 %v4449, %v4644
    %v4653 = vmul.f32 %v4450, %v4644
    %v4654 = vmul.f32 %v4451, %v4644
    %v4655 = vmul.f32 %v4452, %v4644
    %v4656 = vmul.f32 %v4453, %v4644
    %v4657 = vmul.f32 %v4454, %v4644
    %v4658 = vmul.f32 %v4455, %v4644
    %v4659 = vmul.f32 %v4456, %v4644
    %v4660 = vmul.f32 %v4457, %v4644
    %v4661 = vmul.f32 %v4458, %v4644
    %v4662 = vmul.f32 %v4459, %v4644
    %v4663 = vmul.f32 %v4460, %v4644
    %v4664 = vmul.f32 %v4461, %v4644
    %v4665 = vmul.f32 %v4462, %v4644
    %v4666 = vmul.f32 %v4463, %v4644
    %v4667 = vmul.f32 %v4464, %v4644
    %v4668 = vmul.f32 %v4465, %v4644
    %v4669 = vmul.f32 %v4466, %v4644
    %v4670 = vmul.f32 %v4467, %v4644
    %v4671 = vmul.f32 %v4468, %v4644
    %v4672 = vmul.f32 %v4469, %v4644
    %v4673 = vmul.f32 %v4470, %v4644
    %v4674 = vmul.f32 %v4471, %v4644
    %v4675 = vmul.f32 %v4472, %v4644
    %v4676 = vmul.f32 %v4473, %v4644
    %v4677 = vld [vmem:[%s5 + $0x1] sm:$0x1]
    %v4678 = vlaneseq
    %v4679 = vshrl.u32 %v4678, 7
    %v4680 = vsub.s32 0, %v4679
    %v4681 = vrot.slane %v4677, %v4680
    %v4682 = vmul.f32 %v4474, %v4681
    %v4683 = vmul.f32 %v4475, %v4681
    %v4684 = vmul.f32 %v4476, %v4681
    %v4685 = vmul.f32 %v4477, %v4681
    %v4686 = vmul.f32 %v4478, %v4681
    %v4687 = vmul.f32 %v4479, %v4681
    %v4688 = vmul.f32 %v4480, %v4681
    %v4689 = vmul.f32 %v4481, %v4681
    %v4690 = vmul.f32 %v4482, %v4681
    %v4691 = vmul.f32 %v4483, %v4681
    %v4692 = vmul.f32 %v4484, %v4681
    %v4693 = vmul.f32 %v4485, %v4681
    %v4694 = vmul.f32 %v4486, %v4681
    %v4695 = vmul.f32 %v4487, %v4681
    %v4696 = vmul.f32 %v4488, %v4681
    %v4697 = vmul.f32 %v4489, %v4681
    %v4698 = vmul.f32 %v4490, %v4681
    %v4699 = vmul.f32 %v4491, %v4681
    %v4700 = vmul.f32 %v4492, %v4681
    %v4701 = vmul.f32 %v4493, %v4681
    %v4702 = vmul.f32 %v4494, %v4681
    %v4703 = vmul.f32 %v4495, %v4681
    %v4704 = vmul.f32 %v4496, %v4681
    %v4705 = vmul.f32 %v4497, %v4681
    %v4706 = vmul.f32 %v4498, %v4681
    %v4707 = vmul.f32 %v4499, %v4681
    %v4708 = vmul.f32 %v4500, %v4681
    %v4709 = vmul.f32 %v4501, %v4681
    %v4710 = vmul.f32 %v4502, %v4681
    %v4711 = vmul.f32 %v4503, %v4681
    %v4712 = vmul.f32 %v4504, %v4681
    %v4713 = vmul.f32 %v4505, %v4681
    %v4714 = vld [vmem:[%s5 + $0x2] sm:$0x1]
    %v4715 = vlaneseq
    %v4716 = vshrl.u32 %v4715, 7
    %v4717 = vsub.s32 0, %v4716
    %v4718 = vrot.slane %v4714, %v4717
    %v4719 = vmul.f32 %v4506, %v4718
    %v4720 = vmul.f32 %v4507, %v4718
    %v4721 = vmul.f32 %v4508, %v4718
    %v4722 = vmul.f32 %v4509, %v4718
    %v4723 = vmul.f32 %v4510, %v4718
    %v4724 = vmul.f32 %v4511, %v4718
    %v4725 = vmul.f32 %v4512, %v4718
    %v4726 = vmul.f32 %v4513, %v4718
    %v4727 = vmul.f32 %v4514, %v4718
    %v4728 = vmul.f32 %v4515, %v4718
    %v4729 = vmul.f32 %v4516, %v4718
    %v4730 = vmul.f32 %v4517, %v4718
    %v4731 = vmul.f32 %v4518, %v4718
    %v4732 = vmul.f32 %v4519, %v4718
    %v4733 = vmul.f32 %v4520, %v4718
    %v4734 = vmul.f32 %v4521, %v4718
    %v4735 = vmul.f32 %v4522, %v4718
    %v4736 = vmul.f32 %v4523, %v4718
    %v4737 = vmul.f32 %v4524, %v4718
    %v4738 = vmul.f32 %v4525, %v4718
    %v4739 = vmul.f32 %v4526, %v4718
    %v4740 = vmul.f32 %v4527, %v4718
    %v4741 = vmul.f32 %v4528, %v4718
    %v4742 = vmul.f32 %v4529, %v4718
    %v4743 = vmul.f32 %v4530, %v4718
    %v4744 = vmul.f32 %v4531, %v4718
    %v4745 = vmul.f32 %v4532, %v4718
    %v4746 = vmul.f32 %v4533, %v4718
    %v4747 = vmul.f32 %v4534, %v4718
    %v4748 = vmul.f32 %v4535, %v4718
    %v4749 = vmul.f32 %v4536, %v4718
    %v4750 = vmul.f32 %v4537, %v4718
    %v4751 = vadd.f32 %v4645, %v4682
    %v4752 = vadd.f32 %v4646, %v4683
    %v4753 = vadd.f32 %v4647, %v4684
    %v4754 = vadd.f32 %v4648, %v4685
    %v4755 = vadd.f32 %v4649, %v4686
    %v4756 = vadd.f32 %v4650, %v4687
    %v4757 = vadd.f32 %v4651, %v4688
    %v4758 = vadd.f32 %v4652, %v4689
    %v4759 = vadd.f32 %v4653, %v4690
    %v4760 = vadd.f32 %v4654, %v4691
    %v4761 = vadd.f32 %v4655, %v4692
    %v4762 = vadd.f32 %v4656, %v4693
    %v4763 = vadd.f32 %v4657, %v4694
    %v4764 = vadd.f32 %v4658, %v4695
    %v4765 = vadd.f32 %v4659, %v4696
    %v4766 = vadd.f32 %v4660, %v4697
    %v4767 = vadd.f32 %v4661, %v4698
    %v4768 = vadd.f32 %v4662, %v4699
    %v4769 = vadd.f32 %v4663, %v4700
    %v4770 = vadd.f32 %v4664, %v4701
    %v4771 = vadd.f32 %v4665, %v4702
    %v4772 = vadd.f32 %v4666, %v4703
    %v4773 = vadd.f32 %v4667, %v4704
    %v4774 = vadd.f32 %v4668, %v4705
    %v4775 = vadd.f32 %v4669, %v4706
    %v4776 = vadd.f32 %v4670, %v4707
    %v4777 = vadd.f32 %v4671, %v4708
    %v4778 = vadd.f32 %v4672, %v4709
    %v4779 = vadd.f32 %v4673, %v4710
    %v4780 = vadd.f32 %v4674, %v4711
    %v4781 = vadd.f32 %v4675, %v4712
    %v4782 = vadd.f32 %v4676, %v4713
    %v4783 = vadd.f32 %v4751, %v4719
    %v4784 = vadd.f32 %v4752, %v4720
    %v4785 = vadd.f32 %v4753, %v4721
    %v4786 = vadd.f32 %v4754, %v4722
    %v4787 = vadd.f32 %v4755, %v4723
    %v4788 = vadd.f32 %v4756, %v4724
    %v4789 = vadd.f32 %v4757, %v4725
    %v4790 = vadd.f32 %v4758, %v4726
    %v4791 = vadd.f32 %v4759, %v4727
    %v4792 = vadd.f32 %v4760, %v4728
    %v4793 = vadd.f32 %v4761, %v4729
    %v4794 = vadd.f32 %v4762, %v4730
    %v4795 = vadd.f32 %v4763, %v4731
    %v4796 = vadd.f32 %v4764, %v4732
    %v4797 = vadd.f32 %v4765, %v4733
    %v4798 = vadd.f32 %v4766, %v4734
    %v4799 = vadd.f32 %v4767, %v4735
    %v4800 = vadd.f32 %v4768, %v4736
    %v4801 = vadd.f32 %v4769, %v4737
    %v4802 = vadd.f32 %v4770, %v4738
    %v4803 = vadd.f32 %v4771, %v4739
    %v4804 = vadd.f32 %v4772, %v4740
    %v4805 = vadd.f32 %v4773, %v4741
    %v4806 = vadd.f32 %v4774, %v4742
    %v4807 = vadd.f32 %v4775, %v4743
    %v4808 = vadd.f32 %v4776, %v4744
    %v4809 = vadd.f32 %v4777, %v4745
    %v4810 = vadd.f32 %v4778, %v4746
    %v4811 = vadd.f32 %v4779, %v4747
    %v4812 = vadd.f32 %v4780, %v4748
    %v4813 = vadd.f32 %v4781, %v4749
    %v4814 = vadd.f32 %v4782, %v4750
    %v4815 = vld [vmem:[%s5 + $0x3] sm:$0x1]
    %v4816 = vlaneseq
    %v4817 = vshrl.u32 %v4816, 7
    %v4818 = vsub.s32 0, %v4817
    %v4819 = vrot.slane %v4815, %v4818
    %v4820 = vmul.f32 %v4444, %v4819
    %v4821 = vmul.f32 %v4445, %v4819
    %v4822 = vmul.f32 %v4446, %v4819
    %v4823 = vmul.f32 %v4447, %v4819
    %v4824 = vmul.f32 %v4448, %v4819
    %v4825 = vmul.f32 %v4449, %v4819
    %v4826 = vmul.f32 %v4450, %v4819
    %v4827 = vmul.f32 %v4451, %v4819
    %v4828 = vmul.f32 %v4452, %v4819
    %v4829 = vmul.f32 %v4453, %v4819
    %v4830 = vmul.f32 %v4454, %v4819
    %v4831 = vmul.f32 %v4455, %v4819
    %v4832 = vmul.f32 %v4456, %v4819
    %v4833 = vmul.f32 %v4457, %v4819
    %v4834 = vmul.f32 %v4458, %v4819
    %v4835 = vmul.f32 %v4459, %v4819
    %v4836 = vmul.f32 %v4460, %v4819
    %v4837 = vmul.f32 %v4461, %v4819
    %v4838 = vmul.f32 %v4462, %v4819
    %v4839 = vmul.f32 %v4463, %v4819
    %v4840 = vmul.f32 %v4464, %v4819
    %v4841 = vmul.f32 %v4465, %v4819
    %v4842 = vmul.f32 %v4466, %v4819
    %v4843 = vmul.f32 %v4467, %v4819
    %v4844 = vmul.f32 %v4468, %v4819
    %v4845 = vmul.f32 %v4469, %v4819
    %v4846 = vmul.f32 %v4470, %v4819
    %v4847 = vmul.f32 %v4471, %v4819
    %v4848 = vmul.f32 %v4472, %v4819
    %v4849 = vmul.f32 %v4473, %v4819
    %v4850 = vmul.f32 %v4538, %v4819
    %v4851 = vmul.f32 %v4539, %v4819
    %v4852 = vld [vmem:[%s5 + $0x4] sm:$0x1]
    %v4853 = vlaneseq
    %v4854 = vshrl.u32 %v4853, 7
    %v4855 = vsub.s32 0, %v4854
    %v4856 = vrot.slane %v4852, %v4855
    %v4857 = vmul.f32 %v4476, %v4856
    %v4858 = vmul.f32 %v4477, %v4856
    %v4859 = vmul.f32 %v4478, %v4856
    %v4860 = vmul.f32 %v4479, %v4856
    %v4861 = vmul.f32 %v4480, %v4856
    %v4862 = vmul.f32 %v4481, %v4856
    %v4863 = vmul.f32 %v4482, %v4856
    %v4864 = vmul.f32 %v4483, %v4856
    %v4865 = vmul.f32 %v4484, %v4856
    %v4866 = vmul.f32 %v4485, %v4856
    %v4867 = vmul.f32 %v4486, %v4856
    %v4868 = vmul.f32 %v4487, %v4856
    %v4869 = vmul.f32 %v4488, %v4856
    %v4870 = vmul.f32 %v4489, %v4856
    %v4871 = vmul.f32 %v4490, %v4856
    %v4872 = vmul.f32 %v4491, %v4856
    %v4873 = vmul.f32 %v4492, %v4856
    %v4874 = vmul.f32 %v4493, %v4856
    %v4875 = vmul.f32 %v4494, %v4856
    %v4876 = vmul.f32 %v4495, %v4856
    %v4877 = vmul.f32 %v4496, %v4856
    %v4878 = vmul.f32 %v4497, %v4856
    %v4879 = vmul.f32 %v4498, %v4856
    %v4880 = vmul.f32 %v4499, %v4856
    %v4881 = vmul.f32 %v4500, %v4856
    %v4882 = vmul.f32 %v4501, %v4856
    %v4883 = vmul.f32 %v4502, %v4856
    %v4884 = vmul.f32 %v4503, %v4856
    %v4885 = vmul.f32 %v4504, %v4856
    %v4886 = vmul.f32 %v4505, %v4856
    %v4887 = vmul.f32 %v4540, %v4856
    %v4888 = vmul.f32 %v4541, %v4856
    %v4889 = vld [vmem:[%s5 + $0x5] sm:$0x1]
    %v4890 = vlaneseq
    %v4891 = vshrl.u32 %v4890, 7
    %v4892 = vsub.s32 0, %v4891
    %v4893 = vrot.slane %v4889, %v4892
    %v4894 = vmul.f32 %v4508, %v4893
    %v4895 = vmul.f32 %v4509, %v4893
    %v4896 = vmul.f32 %v4510, %v4893
    %v4897 = vmul.f32 %v4511, %v4893
    %v4898 = vmul.f32 %v4512, %v4893
    %v4899 = vmul.f32 %v4513, %v4893
    %v4900 = vmul.f32 %v4514, %v4893
    %v4901 = vmul.f32 %v4515, %v4893
    %v4902 = vmul.f32 %v4516, %v4893
    %v4903 = vmul.f32 %v4517, %v4893
    %v4904 = vmul.f32 %v4518, %v4893
    %v4905 = vmul.f32 %v4519, %v4893
    %v4906 = vmul.f32 %v4520, %v4893
    %v4907 = vmul.f32 %v4521, %v4893
    %v4908 = vmul.f32 %v4522, %v4893
    %v4909 = vmul.f32 %v4523, %v4893
    %v4910 = vmul.f32 %v4524, %v4893
    %v4911 = vmul.f32 %v4525, %v4893
    %v4912 = vmul.f32 %v4526, %v4893
    %v4913 = vmul.f32 %v4527, %v4893
    %v4914 = vmul.f32 %v4528, %v4893
    %v4915 = vmul.f32 %v4529, %v4893
    %v4916 = vmul.f32 %v4530, %v4893
    %v4917 = vmul.f32 %v4531, %v4893
    %v4918 = vmul.f32 %v4532, %v4893
    %v4919 = vmul.f32 %v4533, %v4893
    %v4920 = vmul.f32 %v4534, %v4893
    %v4921 = vmul.f32 %v4535, %v4893
    %v4922 = vmul.f32 %v4536, %v4893
    %v4923 = vmul.f32 %v4537, %v4893
    %v4924 = vmul.f32 %v4542, %v4893
    %v4925 = vmul.f32 %v4543, %v4893
    %v4926 = vadd.f32 %v4820, %v4857
    %v4927 = vadd.f32 %v4821, %v4858
    %v4928 = vadd.f32 %v4822, %v4859
    %v4929 = vadd.f32 %v4823, %v4860
    %v4930 = vadd.f32 %v4824, %v4861
    %v4931 = vadd.f32 %v4825, %v4862
    %v4932 = vadd.f32 %v4826, %v4863
    %v4933 = vadd.f32 %v4827, %v4864
    %v4934 = vadd.f32 %v4828, %v4865
    %v4935 = vadd.f32 %v4829, %v4866
    %v4936 = vadd.f32 %v4830, %v4867
    %v4937 = vadd.f32 %v4831, %v4868
    %v4938 = vadd.f32 %v4832, %v4869
    %v4939 = vadd.f32 %v4833, %v4870
    %v4940 = vadd.f32 %v4834, %v4871
    %v4941 = vadd.f32 %v4835, %v4872
    %v4942 = vadd.f32 %v4836, %v4873
    %v4943 = vadd.f32 %v4837, %v4874
    %v4944 = vadd.f32 %v4838, %v4875
    %v4945 = vadd.f32 %v4839, %v4876
    %v4946 = vadd.f32 %v4840, %v4877
    %v4947 = vadd.f32 %v4841, %v4878
    %v4948 = vadd.f32 %v4842, %v4879
    %v4949 = vadd.f32 %v4843, %v4880
    %v4950 = vadd.f32 %v4844, %v4881
    %v4951 = vadd.f32 %v4845, %v4882
    %v4952 = vadd.f32 %v4846, %v4883
    %v4953 = vadd.f32 %v4847, %v4884
    %v4954 = vadd.f32 %v4848, %v4885
    %v4955 = vadd.f32 %v4849, %v4886
    %v4956 = vadd.f32 %v4850, %v4887
    %v4957 = vadd.f32 %v4851, %v4888
    %v4958 = vadd.f32 %v4926, %v4894
    %v4959 = vadd.f32 %v4927, %v4895
    %v4960 = vadd.f32 %v4928, %v4896
    %v4961 = vadd.f32 %v4929, %v4897
    %v4962 = vadd.f32 %v4930, %v4898
    %v4963 = vadd.f32 %v4931, %v4899
    %v4964 = vadd.f32 %v4932, %v4900
    %v4965 = vadd.f32 %v4933, %v4901
    %v4966 = vadd.f32 %v4934, %v4902
    %v4967 = vadd.f32 %v4935, %v4903
    %v4968 = vadd.f32 %v4936, %v4904
    %v4969 = vadd.f32 %v4937, %v4905
    %v4970 = vadd.f32 %v4938, %v4906
    %v4971 = vadd.f32 %v4939, %v4907
    %v4972 = vadd.f32 %v4940, %v4908
    %v4973 = vadd.f32 %v4941, %v4909
    %v4974 = vadd.f32 %v4942, %v4910
    %v4975 = vadd.f32 %v4943, %v4911
    %v4976 = vadd.f32 %v4944, %v4912
    %v4977 = vadd.f32 %v4945, %v4913
    %v4978 = vadd.f32 %v4946, %v4914
    %v4979 = vadd.f32 %v4947, %v4915
    %v4980 = vadd.f32 %v4948, %v4916
    %v4981 = vadd.f32 %v4949, %v4917
    %v4982 = vadd.f32 %v4950, %v4918
    %v4983 = vadd.f32 %v4951, %v4919
    %v4984 = vadd.f32 %v4952, %v4920
    %v4985 = vadd.f32 %v4953, %v4921
    %v4986 = vadd.f32 %v4954, %v4922
    %v4987 = vadd.f32 %v4955, %v4923
    %v4988 = vadd.f32 %v4956, %v4924
    %v4989 = vadd.f32 %v4957, %v4925
    %v4990 = vld [vmem:[%s5 + $0x6] sm:$0x1]
    %v4991 = vlaneseq
    %v4992 = vshrl.u32 %v4991, 7
    %v4993 = vsub.s32 0, %v4992
    %v4994 = vrot.slane %v4990, %v4993
    %v4995 = vmul.f32 %v4544, %v4994
    %v4996 = vmul.f32 %v4545, %v4994
    %v4997 = vmul.f32 %v4546, %v4994
    %v4998 = vmul.f32 %v4547, %v4994
    %v4999 = vmul.f32 %v4548, %v4994
    %v5000 = vmul.f32 %v4549, %v4994
    %v5001 = vmul.f32 %v4550, %v4994
    %v5002 = vmul.f32 %v4551, %v4994
    %v5003 = vmul.f32 %v4552, %v4994
    %v5004 = vmul.f32 %v4553, %v4994
    %v5005 = vmul.f32 %v4554, %v4994
    %v5006 = vmul.f32 %v4555, %v4994
    %v5007 = vmul.f32 %v4556, %v4994
    %v5008 = vmul.f32 %v4557, %v4994
    %v5009 = vmul.f32 %v4558, %v4994
    %v5010 = vmul.f32 %v4559, %v4994
    %v5011 = vmul.f32 %v4560, %v4994
    %v5012 = vmul.f32 %v4561, %v4994
    %v5013 = vmul.f32 %v4562, %v4994
    %v5014 = vmul.f32 %v4563, %v4994
    %v5015 = vmul.f32 %v4564, %v4994
    %v5016 = vmul.f32 %v4565, %v4994
    %v5017 = vmul.f32 %v4566, %v4994
    %v5018 = vmul.f32 %v4567, %v4994
    %v5019 = vmul.f32 %v4568, %v4994
    %v5020 = vmul.f32 %v4569, %v4994
    %v5021 = vmul.f32 %v4570, %v4994
    %v5022 = vmul.f32 %v4571, %v4994
    %v5023 = vmul.f32 %v4572, %v4994
    %v5024 = vmul.f32 %v4573, %v4994
    %v5025 = vmul.f32 %v4574, %v4994
    %v5026 = vmul.f32 %v4575, %v4994
    %v5027 = vld [vmem:[%s5 + $0x7] sm:$0x1]
    %v5028 = vlaneseq
    %v5029 = vshrl.u32 %v5028, 7
    %v5030 = vsub.s32 0, %v5029
    %v5031 = vrot.slane %v5027, %v5030
    %v5032 = vmul.f32 %v4576, %v5031
    %v5033 = vmul.f32 %v4577, %v5031
    %v5034 = vmul.f32 %v4578, %v5031
    %v5035 = vmul.f32 %v4579, %v5031
    %v5036 = vmul.f32 %v4580, %v5031
    %v5037 = vmul.f32 %v4581, %v5031
    %v5038 = vmul.f32 %v4582, %v5031
    %v5039 = vmul.f32 %v4583, %v5031
    %v5040 = vmul.f32 %v4584, %v5031
    %v5041 = vmul.f32 %v4585, %v5031
    %v5042 = vmul.f32 %v4586, %v5031
    %v5043 = vmul.f32 %v4587, %v5031
    %v5044 = vmul.f32 %v4588, %v5031
    %v5045 = vmul.f32 %v4589, %v5031
    %v5046 = vmul.f32 %v4590, %v5031
    %v5047 = vmul.f32 %v4591, %v5031
    %v5048 = vmul.f32 %v4592, %v5031
    %v5049 = vmul.f32 %v4593, %v5031
    %v5050 = vmul.f32 %v4594, %v5031
    %v5051 = vmul.f32 %v4595, %v5031
    %v5052 = vmul.f32 %v4596, %v5031
    %v5053 = vmul.f32 %v4597, %v5031
    %v5054 = vmul.f32 %v4598, %v5031
    %v5055 = vmul.f32 %v4599, %v5031
    %v5056 = vmul.f32 %v4600, %v5031
    %v5057 = vmul.f32 %v4601, %v5031
    %v5058 = vmul.f32 %v4602, %v5031
    %v5059 = vmul.f32 %v4603, %v5031
    %v5060 = vmul.f32 %v4604, %v5031
    %v5061 = vmul.f32 %v4605, %v5031
    %v5062 = vmul.f32 %v4606, %v5031
    %v5063 = vmul.f32 %v4607, %v5031
    %v5064 = vld [vmem:[%s5 + $0x8] sm:$0x1]
    %v5065 = vlaneseq
    %v5066 = vshrl.u32 %v5065, 7
    %v5067 = vsub.s32 0, %v5066
    %v5068 = vrot.slane %v5064, %v5067
    %v5069 = vmul.f32 %v4608, %v5068
    %v5070 = vmul.f32 %v4609, %v5068
    %v5071 = vmul.f32 %v4610, %v5068
    %v5072 = vmul.f32 %v4611, %v5068
    %v5073 = vmul.f32 %v4612, %v5068
    %v5074 = vmul.f32 %v4613, %v5068
    %v5075 = vmul.f32 %v4614, %v5068
    %v5076 = vmul.f32 %v4615, %v5068
    %v5077 = vmul.f32 %v4616, %v5068
    %v5078 = vmul.f32 %v4617, %v5068
    %v5079 = vmul.f32 %v4618, %v5068
    %v5080 = vmul.f32 %v4619, %v5068
    %v5081 = vmul.f32 %v4620, %v5068
    %v5082 = vmul.f32 %v4621, %v5068
    %v5083 = vmul.f32 %v4622, %v5068
    %v5084 = vmul.f32 %v4623, %v5068
    %v5085 = vmul.f32 %v4624, %v5068
    %v5086 = vmul.f32 %v4625, %v5068
    %v5087 = vmul.f32 %v4626, %v5068
    %v5088 = vmul.f32 %v4627, %v5068
    %v5089 = vmul.f32 %v4628, %v5068
    %v5090 = vmul.f32 %v4629, %v5068
    %v5091 = vmul.f32 %v4630, %v5068
    %v5092 = vmul.f32 %v4631, %v5068
    %v5093 = vmul.f32 %v4632, %v5068
    %v5094 = vmul.f32 %v4633, %v5068
    %v5095 = vmul.f32 %v4634, %v5068
    %v5096 = vmul.f32 %v4635, %v5068
    %v5097 = vmul.f32 %v4636, %v5068
    %v5098 = vmul.f32 %v4637, %v5068
    %v5099 = vmul.f32 %v4638, %v5068
    %v5100 = vmul.f32 %v4639, %v5068
    %v5101 = vadd.f32 %v4995, %v5032
    %v5102 = vadd.f32 %v4996, %v5033
    %v5103 = vadd.f32 %v4997, %v5034
    %v5104 = vadd.f32 %v4998, %v5035
    %v5105 = vadd.f32 %v4999, %v5036
    %v5106 = vadd.f32 %v5000, %v5037
    %v5107 = vadd.f32 %v5001, %v5038
    %v5108 = vadd.f32 %v5002, %v5039
    %v5109 = vadd.f32 %v5003, %v5040
    %v5110 = vadd.f32 %v5004, %v5041
    %v5111 = vadd.f32 %v5005, %v5042
    %v5112 = vadd.f32 %v5006, %v5043
    %v5113 = vadd.f32 %v5007, %v5044
    %v5114 = vadd.f32 %v5008, %v5045
    %v5115 = vadd.f32 %v5009, %v5046
    %v5116 = vadd.f32 %v5010, %v5047
    %v5117 = vadd.f32 %v5011, %v5048
    %v5118 = vadd.f32 %v5012, %v5049
    %v5119 = vadd.f32 %v5013, %v5050
    %v5120 = vadd.f32 %v5014, %v5051
    %v5121 = vadd.f32 %v5015, %v5052
    %v5122 = vadd.f32 %v5016, %v5053
    %v5123 = vadd.f32 %v5017, %v5054
    %v5124 = vadd.f32 %v5018, %v5055
    %v5125 = vadd.f32 %v5019, %v5056
    %v5126 = vadd.f32 %v5020, %v5057
    %v5127 = vadd.f32 %v5021, %v5058
    %v5128 = vadd.f32 %v5022, %v5059
    %v5129 = vadd.f32 %v5023, %v5060
    %v5130 = vadd.f32 %v5024, %v5061
    %v5131 = vadd.f32 %v5025, %v5062
    %v5132 = vadd.f32 %v5026, %v5063
    %v5133 = vadd.f32 %v5101, %v5069
    %v5134 = vadd.f32 %v5102, %v5070
    %v5135 = vadd.f32 %v5103, %v5071
    %v5136 = vadd.f32 %v5104, %v5072
    %v5137 = vadd.f32 %v5105, %v5073
    %v5138 = vadd.f32 %v5106, %v5074
    %v5139 = vadd.f32 %v5107, %v5075
    %v5140 = vadd.f32 %v5108, %v5076
    %v5141 = vadd.f32 %v5109, %v5077
    %v5142 = vadd.f32 %v5110, %v5078
    %v5143 = vadd.f32 %v5111, %v5079
    %v5144 = vadd.f32 %v5112, %v5080
    %v5145 = vadd.f32 %v5113, %v5081
    %v5146 = vadd.f32 %v5114, %v5082
    %v5147 = vadd.f32 %v5115, %v5083
    %v5148 = vadd.f32 %v5116, %v5084
    %v5149 = vadd.f32 %v5117, %v5085
    %v5150 = vadd.f32 %v5118, %v5086
    %v5151 = vadd.f32 %v5119, %v5087
    %v5152 = vadd.f32 %v5120, %v5088
    %v5153 = vadd.f32 %v5121, %v5089
    %v5154 = vadd.f32 %v5122, %v5090
    %v5155 = vadd.f32 %v5123, %v5091
    %v5156 = vadd.f32 %v5124, %v5092
    %v5157 = vadd.f32 %v5125, %v5093
    %v5158 = vadd.f32 %v5126, %v5094
    %v5159 = vadd.f32 %v5127, %v5095
    %v5160 = vadd.f32 %v5128, %v5096
    %v5161 = vadd.f32 %v5129, %v5097
    %v5162 = vadd.f32 %v5130, %v5098
    %v5163 = vadd.f32 %v5131, %v5099
    %v5164 = vadd.f32 %v5132, %v5100
    %v5165 = vadd.f32 %v4783, %v4958
    %v5166 = vadd.f32 %v4784, %v4959
    %v5167 = vadd.f32 %v4785, %v4960
    %v5168 = vadd.f32 %v4786, %v4961
    %v5169 = vadd.f32 %v4787, %v4962
    %v5170 = vadd.f32 %v4788, %v4963
    %v5171 = vadd.f32 %v4789, %v4964
    %v5172 = vadd.f32 %v4790, %v4965
    %v5173 = vadd.f32 %v4791, %v4966
    %v5174 = vadd.f32 %v4792, %v4967
    %v5175 = vadd.f32 %v4793, %v4968
    %v5176 = vadd.f32 %v4794, %v4969
    %v5177 = vadd.f32 %v4795, %v4970
    %v5178 = vadd.f32 %v4796, %v4971
    %v5179 = vadd.f32 %v4797, %v4972
    %v5180 = vadd.f32 %v4798, %v4973
    %v5181 = vadd.f32 %v4799, %v4974
    %v5182 = vadd.f32 %v4800, %v4975
    %v5183 = vadd.f32 %v4801, %v4976
    %v5184 = vadd.f32 %v4802, %v4977
    %v5185 = vadd.f32 %v4803, %v4978
    %v5186 = vadd.f32 %v4804, %v4979
    %v5187 = vadd.f32 %v4805, %v4980
    %v5188 = vadd.f32 %v4806, %v4981
    %v5189 = vadd.f32 %v4807, %v4982
    %v5190 = vadd.f32 %v4808, %v4983
    %v5191 = vadd.f32 %v4809, %v4984
    %v5192 = vadd.f32 %v4810, %v4985
    %v5193 = vadd.f32 %v4811, %v4986
    %v5194 = vadd.f32 %v4812, %v4987
    %v5195 = vadd.f32 %v4813, %v4988
    %v5196 = vadd.f32 %v4814, %v4989
    %v5197 = vadd.f32 %v5165, %v5133
    %v5198 = vadd.f32 %v5166, %v5134
    %v5199 = vadd.f32 %v5167, %v5135
    %v5200 = vadd.f32 %v5168, %v5136
    %v5201 = vadd.f32 %v5169, %v5137
    %v5202 = vadd.f32 %v5170, %v5138
    %v5203 = vadd.f32 %v5171, %v5139
    %v5204 = vadd.f32 %v5172, %v5140
    %v5205 = vadd.f32 %v5173, %v5141
    %v5206 = vadd.f32 %v5174, %v5142
    %v5207 = vadd.f32 %v5175, %v5143
    %v5208 = vadd.f32 %v5176, %v5144
    %v5209 = vadd.f32 %v5177, %v5145
    %v5210 = vadd.f32 %v5178, %v5146
    %v5211 = vadd.f32 %v5179, %v5147
    %v5212 = vadd.f32 %v5180, %v5148
    %v5213 = vadd.f32 %v5181, %v5149
    %v5214 = vadd.f32 %v5182, %v5150
    %v5215 = vadd.f32 %v5183, %v5151
    %v5216 = vadd.f32 %v5184, %v5152
    %v5217 = vadd.f32 %v5185, %v5153
    %v5218 = vadd.f32 %v5186, %v5154
    %v5219 = vadd.f32 %v5187, %v5155
    %v5220 = vadd.f32 %v5188, %v5156
    %v5221 = vadd.f32 %v5189, %v5157
    %v5222 = vadd.f32 %v5190, %v5158
    %v5223 = vadd.f32 %v5191, %v5159
    %v5224 = vadd.f32 %v5192, %v5160
    %v5225 = vadd.f32 %v5193, %v5161
    %v5226 = vadd.f32 %v5194, %v5162
    %v5227 = vadd.f32 %v5195, %v5163
    %v5228 = vadd.f32 %v5196, %v5164
    %v5229 = vld [vmem:[%s7] sm:$0x3]
    %v5230 = vld [vmem:[#allocation6] sm:$0x1]
    %v5232 = vlaneseq
    %v5233 = vshrl.u32 %v5232, 7
    %v5234 = vsub.s32 0, %v5233
    %v5235 = vrot.slane %v5230, %v5234
    %5236 = vset.pattern.permute.xlu0 0
    %5237 = vperm.xlu0 %5236, %v5235
    %v5238 = vpop.permute.xlu0 %5237
    %5240 = vmatprep.subr.mxu0 0.0
    %5241 = vmatpush1.xpose.msra.mxu0 %v5197
    %5242 = vmatprep.subr.mxu0 0.0
    %5243 = vmatpush1.xpose.msra.mxu0 %v5198
    %5244 = vmatprep.subr.mxu0 0.0
    %5245 = vmatpush1.xpose.msra.mxu0 %v5199
    %5246 = vmatprep.subr.mxu0 0.0
    %5247 = vmatpush1.xpose.msra.mxu0 %v5200
    %5248 = vmatprep.subr.mxu0 0.0
    %5249 = vmatpush1.xpose.msra.mxu0 %v5201
    %5250 = vmatprep.subr.mxu0 0.0
    %5251 = vmatpush1.xpose.msra.mxu0 %v5202
    %5252 = vmatprep.subr.mxu0 0.0
    %5253 = vmatpush1.xpose.msra.mxu0 %v5203
    %5254 = vmatprep.subr.mxu0 0.0
    %5255 = vmatpush1.xpose.msra.mxu0 %v5204
    %5256 = vmatprep.subr.mxu0 0.0
    %5257 = vmatpush1.xpose.msra.mxu0 %v5205
    %5258 = vmatprep.subr.mxu0 0.0
    %5259 = vmatpush1.xpose.msra.mxu0 %v5206
    %5260 = vmatprep.subr.mxu0 0.0
    %5261 = vmatpush1.xpose.msra.mxu0 %v5207
    %5262 = vmatprep.subr.mxu0 0.0
    %5263 = vmatpush1.xpose.msra.mxu0 %v5208
    %5264 = vmatprep.subr.mxu0 0.0
    %5265 = vmatpush1.xpose.msra.mxu0 %v5209
    %5266 = vmatprep.subr.mxu0 0.0
    %5267 = vmatpush1.xpose.msra.mxu0 %v5210
    %5268 = vmatprep.subr.mxu0 0.0
    %5269 = vmatpush1.xpose.msra.mxu0 %v5211
    %5270 = vmatprep.subr.mxu0 0.0
    %5271 = vmatpush1.xpose.msra.mxu0 %v5212
    %5272 = vmatprep.subr.mxu0 0.0
    %5273 = vmatpush1.xpose.msra.mxu0 %v5213
    %5274 = vmatprep.subr.mxu0 0.0
    %5275 = vmatpush1.xpose.msra.mxu0 %v5214
    %5276 = vmatprep.subr.mxu0 0.0
    %5277 = vmatpush1.xpose.msra.mxu0 %v5215
    %5278 = vmatprep.subr.mxu0 0.0
    %5279 = vmatpush1.xpose.msra.mxu0 %v5216
    %5280 = vmatprep.subr.mxu0 0.0
    %5281 = vmatpush1.xpose.msra.mxu0 %v5217
    %5282 = vmatprep.subr.mxu0 0.0
    %5283 = vmatpush1.xpose.msra.mxu0 %v5218
    %5284 = vmatprep.subr.mxu0 0.0
    %5285 = vmatpush1.xpose.msra.mxu0 %v5219
    %5286 = vmatprep.subr.mxu0 0.0
    %5287 = vmatpush1.xpose.msra.mxu0 %v5220
    %5288 = vmatprep.subr.mxu0 0.0
    %5289 = vmatpush1.xpose.msra.mxu0 %v5221
    %5290 = vmatprep.subr.mxu0 0.0
    %5291 = vmatpush1.xpose.msra.mxu0 %v5222
    %5292 = vmatprep.subr.mxu0 0.0
    %5293 = vmatpush1.xpose.msra.mxu0 %v5223
    %5294 = vmatprep.subr.mxu0 0.0
    %5295 = vmatpush1.xpose.msra.mxu0 %v5224
    %5296 = vmatprep.subr.mxu0 0.0
    %5297 = vmatpush1.xpose.msra.mxu0 %v5225
    %5298 = vmatprep.subr.mxu0 0.0
    %5299 = vmatpush1.xpose.msra.mxu0 %v5226
    %5300 = vmatprep.subr.mxu0 0.0
    %5301 = vmatpush1.xpose.msra.mxu0 %v5227
    %5302 = vmatprep.subr.mxu0 0.0
    %5303 = vmatpush1.xpose.msra.mxu0 %v5228
    %5304 = vmatprep.mubr.f32.mxu0 0.0
    %5305 = vmatmul.mubr.f32.gmra.mrb[0].mxu0 %v5229
    %v5306 = vpop.f32.mrb[0].mxu0
    %v5307 = vadd.f32 %v5238, %v5306
    %v5308 = vpop.f32.mrb[0].mxu0
    %v5309 = vadd.f32 %v5238, %v5308
    %5310 = vdwg.mxu0
    %v5313 = vcombine.low %v5307, %v5309
    %v5315 = vunpack.c.l.s4 1983009808
    %v5316 = vunpack.c.0.s8 %v5315
    %v5317 = vlaneseq
    %v5318 = vshrl.u32 %v5317, 7
    %v5319 = vsub.s32 %v5316, %v5318
    %v5320 = vrot.slane %v5313, %v5319
    %5322 = vst [vmem:[#allocation10] sm:$0xf] %v5320
    // Predicated region
    $region38: #{tpu_custom_call.1} parent=1 // pred_check
      _
    $region39: #{tpu_custom_call.1} parent=1 // pred_check_branch
      %5324 = sbr.rel (0) target = $region41
    $region40: #{tpu_custom_call.1} parent=1 // pred_region
      %s5326 = ssub.s32 64, 64
      %5327 = vsyncadd [#allocation9], %s5326
      %s5329 = sshll.u32 [#allocation10], 4
      %s5330 = int_to_ptr.vmem [resolvable:$true] %s5329
      %5332 = dma.vmem_to_hbm [thread:$0]  %s5330, 64, %s8, [#allocation9]
    $region41: #{tpu_custom_call.1} parent=1 // pred_fallthru
      _
    // Predicated region
    $region42: #{tpu_custom_call.1} parent=1 // pred_check
      _
    $region43: #{tpu_custom_call.1} parent=1 // pred_check_branch
      %5334 = sbr.rel (0) target = $region45
    $region44: #{tpu_custom_call.1} parent=1 // pred_region
      %5335 = dma.done [#allocation9], 64
    $region45: #{tpu_custom_call.1} parent=1 // pred_fallthru
      _
    %5336 = vsyncpa [#allocation8], 1
    %5337 = vsyncpa [#allocation9], 1

</llo_original>
